<compile_context>
chip_gen: v5e
topology: v5e:2x2
jax: 0.10.0
libtpu: 0.0.40
codegen_flags: <defaults>
</compile_context>

<pallas_src>
import jax
import jax.numpy as jnp
from jax.experimental import pallas as pl
from jax.experimental.pallas import tpu as pltpu


def _round_up(n: int, m: int) -> int:
    return ((n + m - 1) // m) * m


# Layer dims of three_block_model:
#   m0: Linear(2,200), (200,500), (500,1000), (1000,1000)
#   m1: Linear(1000,1000) x 7
#   m2: Linear(1000,500), (500,200), (200,100), (100,50), (50,2) + ReLU + Sigmoid
_LAYER_DIMS = (
    (2, 200), (200, 500), (500, 1000), (1000, 1000),           # m0
    (1000, 1000), (1000, 1000), (1000, 1000), (1000, 1000),     # m1
    (1000, 1000), (1000, 1000), (1000, 1000),
    (1000, 500), (500, 200), (200, 100), (100, 50), (50, 2),    # m2
)
_HEAD_IDX = (0, 1, 2)                  # small m0 layers (resident)
_BIG_IDX = tuple(range(3, 11))         # eight (1000,1000) layers (streamed)
_TAIL_IDX = tuple(range(11, 16))       # small m2 layers (resident)
_N_BIG = len(_BIG_IDX)                 # 8 -> grid size

_OUT_DIM = _LAYER_DIMS[-1][1]          # 2
_IN_PAD = _round_up(_LAYER_DIMS[0][0], 128)    # 128
_OUT_PAD = _round_up(_OUT_DIM, 128)            # 128
_BIG_PAD = _round_up(1000, 128)                # 1024

# Padded output widths of the 8 small layers (rows of the packed bias array):
#   rows 0..2 = m0 head, rows 3..7 = m2 tail.
_SMALL_DOUT_PAD = tuple(_round_up(_LAYER_DIMS[i][1], 128)
                        for i in (_HEAD_IDX + _TAIL_IDX))


# -----------------------------------------------------------------------------
# Kernel
# -----------------------------------------------------------------------------
def _mlp_kernel(x_ref,
                hw0_ref, hw1_ref, hw2_ref,                     # m0 head weights (bf16)
                tw0_ref, tw1_ref, tw2_ref, tw3_ref, tw4_ref,   # m2 tail weights (bf16)
                big_w_ref,                                     # (1,1024,1024) bf16, streamed
                big_b_ref,                                     # (1,1,1024)    f32,  streamed
                small_b_ref,                                   # (8,1024)      f32,  resident
                out_ref,                                       # (Bp, 128)     f32
                h_ref):                                        # VMEM scratch (Bp, 1024) f32
    i = pl.program_id(0)
    last = pl.num_programs(0) - 1

    def linear_relu(h, w_ref, b_row, dout_p):
        w = w_ref[...]                                          # bf16
        y = jnp.dot(h.astype(w.dtype), w,
                    preferred_element_type=jnp.float32)         # MXU, f32 accumulate
        b = small_b_ref[b_row:b_row + 1, :dout_p]                # (1, dout_p) f32
        return jnp.maximum(y + b, 0.0)                           # bias + ReLU on VPU

    # ---- m0 head (2->200->500->1000), only at the first grid step ----------
    @pl.when(i == 0)
    def _head():
        h = x_ref[...]                                           # (Bp, 128) f32
        h = linear_relu(h, hw0_ref, 0, 256)
        h = linear_relu(h, hw1_ref, 1, 512)
        h = linear_relu(h, hw2_ref, 2, 1024)
        h_ref[...] = h

    # ---- streamed big layer i (m0[3] for i==0, else m1[i-1]) ----------------
    w = big_w_ref[0]                                             # (1024,1024) bf16
    y = jnp.dot(h_ref[...].astype(w.dtype), w,
                preferred_element_type=jnp.float32)              # (Bp,1024) f32
    h_ref[...] = jnp.maximum(y + big_b_ref[0], 0.0)

    # ---- m2 tail (1000->500->200->100->50->2) + Sigmoid, last step ----------
    @pl.when(i == last)
    def _tail():
        h = h_ref[...]
        h = linear_relu(h, tw0_ref, 3, 512)
        h = linear_relu(h, tw1_ref, 4, 256)
        h = linear_relu(h, tw2_ref, 5, 128)
        h = linear_relu(h, tw3_ref, 6, 128)
        h = linear_relu(h, tw4_ref, 7, 128)
        # Final Sigmoid (exact; at (Bp,128) the divide is essentially free).
        out_ref[...] = (1.0 / (1.0 + jnp.exp(-h))).astype(out_ref.dtype)


# -----------------------------------------------------------------------------
# Parameter handling
# -----------------------------------------------------------------------------
def init_params(key):
    """Deterministic params mimicking nn.Linear default init:
    U(-1/sqrt(fan_in), 1/sqrt(fan_in)) for weight and bias.
    Weights stored as (in_features, out_features) so y = x @ W + b."""
    params = []
    for (din, dout) in _LAYER_DIMS:
        key, kw, kb = jax.random.split(key, 3)
        bound = 1.0 / (din ** 0.5)
        w = jax.random.uniform(kw, (din, dout), jnp.float32, -bound, bound)
        b = jax.random.uniform(kb, (dout,), jnp.float32, -bound, bound)
        params.append((w, b))
    return params


def prepare_params(params):
    """Pad ONCE to (8,128)-friendly shapes.  Weights -> bf16; the eight big
    (1000,1000) weights are stacked for streaming; biases packed into two
    small f32 arrays.  Zero padding keeps padded lanes exactly zero through
    matmul + bias + ReLU."""
    def pad_w(w):
        din, dout = w.shape
        dinp, doutp = _round_up(din, 128), _round_up(dout, 128)
        return (jnp.zeros((dinp, doutp), jnp.bfloat16)
                .at[:din, :dout].set(w.astype(jnp.bfloat16)))

    head_w = [pad_w(params[i][0]) for i in _HEAD_IDX]
    tail_w = [pad_w(params[i][0]) for i in _TAIL_IDX]
    big_w = jnp.stack([pad_w(params[i][0]) for i in _BIG_IDX])     # (8,1024,1024) bf16

    big_b = jnp.zeros((_N_BIG, 1, _BIG_PAD), jnp.float32)
    for s, i in enumerate(_BIG_IDX):
        b = params[i][1]
        big_b = big_b.at[s, 0, :b.shape[0]].set(b)

    small_b = jnp.zeros((len(_HEAD_IDX) + len(_TAIL_IDX), _BIG_PAD), jnp.float32)
    for r, i in enumerate(_HEAD_IDX + _TAIL_IDX):
        b = params[i][1]
        small_b = small_b.at[r, :b.shape[0]].set(b)

    return dict(head_w=head_w, tail_w=tail_w,
                big_w=big_w, big_b=big_b, small_b=small_b)


# -----------------------------------------------------------------------------
# Forward
# -----------------------------------------------------------------------------
def fused_forward(pp, x):
    """One pallas_call for the whole model.  x: (B, 2) f32 -> (B, 2) f32."""
    B, din0 = x.shape
    Bp = _round_up(max(B, 8), 8)
    xp = jnp.zeros((Bp, _IN_PAD), jnp.float32).at[:B, :din0].set(x)

    head_w, tail_w = pp["head_w"], pp["tail_w"]
    big_w, big_b, small_b = pp["big_w"], pp["big_b"], pp["small_b"]

    in_specs = [pl.BlockSpec((Bp, _IN_PAD), lambda i: (0, 0))]
    for w in head_w + tail_w:                       # small weights: fully resident
        in_specs.append(pl.BlockSpec(w.shape, lambda i: (0, 0)))
    # Streamed big weight + bias: one (1024,1024) layer per grid step.
    in_specs.append(pl.BlockSpec((1, _BIG_PAD, _BIG_PAD), lambda i: (i, 0, 0)))
    in_specs.append(pl.BlockSpec((1, 1, _BIG_PAD), lambda i: (i, 0, 0)))
    # Packed small-layer biases: resident.
    in_specs.append(pl.BlockSpec(small_b.shape, lambda i: (0, 0)))

    # Advisory cost estimate (weight-bandwidth dominated).
    flops = 2 * Bp * sum(_round_up(d, 128) * _round_up(o, 128) for d, o in _LAYER_DIMS)
    bytes_accessed = (xp.size * 4
                      + sum(w.size * 2 for w in head_w + tail_w)
                      + big_w.size * 2
                      + big_b.size * 4 + small_b.size * 4
                      + Bp * _OUT_PAD * 4)
    cost = pl.CostEstimate(flops=flops,
                           transcendentals=Bp * _OUT_PAD,
                           bytes_accessed=bytes_accessed)

    out = pl.pallas_call(
        _mlp_kernel,
        out_shape=jax.ShapeDtypeStruct((Bp, _OUT_PAD), jnp.float32),
        grid=(_N_BIG,),
        in_specs=in_specs,
        out_specs=pl.BlockSpec((Bp, _OUT_PAD), lambda i: (0, 0)),
        scratch_shapes=[pltpu.VMEM((Bp, _BIG_PAD), jnp.float32)],   # running activation
        compiler_params=pltpu.CompilerParams(
            dimension_semantics=("arbitrary",),     # sequential carry across layers
            vmem_limit_bytes=24 << 20),             # ~10 MiB actually needed
        cost_estimate=cost,
    )(xp, *head_w, *tail_w, big_w, big_b, small_b)
    return out[:B, :_OUT_DIM]


def reference_forward(params, x):
    """Pure-JAX f32 reference matching the PyTorch forward."""
    h = x
    for (w, b) in params:
        h = jnp.maximum(h @ w + b, 0.0)
    return 1.0 / (1.0 + jnp.exp(-h))


if __name__ == "__main__":
    key = jax.random.PRNGKey(0)
    key, kx = jax.random.split(key)
    batch = 8
    x = jax.random.normal(kx, (batch, 2), jnp.float32)

    params = init_params(key)
    pp = prepare_params(params)

    fwd = jax.jit(fused_forward)
    out = jax.block_until_ready(fwd(pp, x))

    assert out.shape == (batch, _OUT_DIM), out.shape
    assert out.dtype == jnp.float32
    assert bool(jnp.all(jnp.isfinite(out)))
    # ReLU -> Sigmoid: outputs live in [0.5, 1.0]; tiny slack for bf16 weights.
    assert bool(jnp.all(out >= 0.49)) and bool(jnp.all(out <= 1.0 + 1e-4))

    ref = reference_forward(params, x)
    max_err = float(jnp.max(jnp.abs(out - ref)))
    assert max_err < 5e-2, f"max |pallas - reference| = {max_err}"

    print("KERNEL_OK")
</pallas_src>

<mosaic_0001>
module attributes {stable_mosaic.version = 11 : i64} {
  func.func @_mlp_kernel(%arg0: i32, %arg1: memref<8x128xf32, #tpu.memory_space<vmem>>, %arg2: memref<128x256xbf16, #tpu.memory_space<vmem>>, %arg3: memref<256x512xbf16, #tpu.memory_space<vmem>>, %arg4: memref<512x1024xbf16, #tpu.memory_space<vmem>>, %arg5: memref<1024x512xbf16, #tpu.memory_space<vmem>>, %arg6: memref<512x256xbf16, #tpu.memory_space<vmem>>, %arg7: memref<256x128xbf16, #tpu.memory_space<vmem>>, %arg8: memref<128x128xbf16, #tpu.memory_space<vmem>>, %arg9: memref<128x128xbf16, #tpu.memory_space<vmem>>, %arg10: memref<1x1024x1024xbf16, #tpu.memory_space<vmem>>, %arg11: memref<1x1x1024xf32, #tpu.memory_space<vmem>>, %arg12: memref<8x1024xf32, #tpu.memory_space<vmem>>, %arg13: memref<8x128xf32, #tpu.memory_space<vmem>>, %arg14: memref<8x1024xf32, #tpu.memory_space<vmem>>) attributes {dimension_semantics = [#tpu.dimension_semantics<arbitrary>], iteration_bounds = array<i64: 8>, scalar_prefetch = 0 : i64, scratch_operands = 1 : i64, tpu.core_type = #tpu.core_type<tc>, window_params = [{pipeline_mode = #tpu.pipeline_mode<synchronous>, transform_indices = @transform_0, window_bounds = array<i64: 8, 128>}, {pipeline_mode = #tpu.pipeline_mode<synchronous>, transform_indices = @transform_1, window_bounds = array<i64: 128, 256>}, {pipeline_mode = #tpu.pipeline_mode<synchronous>, transform_indices = @transform_2, window_bounds = array<i64: 256, 512>}, {pipeline_mode = #tpu.pipeline_mode<synchronous>, transform_indices = @transform_3, window_bounds = array<i64: 512, 1024>}, {pipeline_mode = #tpu.pipeline_mode<synchronous>, transform_indices = @transform_4, window_bounds = array<i64: 1024, 512>}, {pipeline_mode = #tpu.pipeline_mode<synchronous>, transform_indices = @transform_5, window_bounds = array<i64: 512, 256>}, {pipeline_mode = #tpu.pipeline_mode<synchronous>, transform_indices = @transform_6, window_bounds = array<i64: 256, 128>}, {pipeline_mode = #tpu.pipeline_mode<synchronous>, transform_indices = @transform_7, window_bounds = array<i64: 128, 128>}, {pipeline_mode = #tpu.pipeline_mode<synchronous>, transform_indices = @transform_8, window_bounds = array<i64: 128, 128>}, {transform_indices = @transform_9, window_bounds = array<i64: 1, 1024, 1024>}, {transform_indices = @transform_10, window_bounds = array<i64: 1, 1, 1024>}, {pipeline_mode = #tpu.pipeline_mode<synchronous>, transform_indices = @transform_11, window_bounds = array<i64: 8, 1024>}, {pipeline_mode = #tpu.pipeline_mode<synchronous>, transform_indices = @transform_12, window_bounds = array<i64: 8, 128>}]} {
    %c0_i32 = arith.constant 0 : i32
    %0 = arith.cmpi eq, %arg0, %c0_i32 : i32
    %1 = arith.extui %0 : i1 to i32
    %c0_i32_0 = arith.constant 0 : i32
    %2 = arith.cmpi ne, %1, %c0_i32_0 : i32
    scf.if %2 {
      %c0_12 = arith.constant 0 : index
      %c0_13 = arith.constant 0 : index
      %18 = vector.load %arg1[%c0_12, %c0_13] : memref<8x128xf32, #tpu.memory_space<vmem>>, vector<8x128xf32>
      %c0_14 = arith.constant 0 : index
      %c0_15 = arith.constant 0 : index
      %19 = vector.load %arg2[%c0_14, %c0_15] : memref<128x256xbf16, #tpu.memory_space<vmem>>, vector<128x256xbf16>
      %20 = arith.truncf %18 : vector<8x128xf32> to vector<8x128xbf16>
      %cst_16 = arith.constant dense<0.000000e+00> : vector<8x256xf32>
      %21 = tpu.matmul %20, %19, %cst_16 {dimension_numbers = #tpu.dot_dimension_numbers<[1], [0], [0], [1], [0, 0, 1, 1], [], []>} : vector<8x128xbf16>, vector<128x256xbf16>, vector<8x256xf32> -> vector<8x256xf32>
      %c0_17 = arith.constant 0 : index
      %c0_18 = arith.constant 0 : index
      %22 = vector.load %arg12[%c0_17, %c0_18] : memref<8x1024xf32, #tpu.memory_space<vmem>>, vector<1x256xf32>
      %23 = vector.broadcast %22 : vector<1x256xf32> to vector<8x256xf32>
      %24 = arith.addf %21, %23 : vector<8x256xf32>
      %cst_19 = arith.constant 0.000000e+00 : f32
      %25 = vector.broadcast %cst_19 : f32 to vector<8x256xf32>
      %26 = arith.maximumf %24, %25 : vector<8x256xf32>
      %c0_20 = arith.constant 0 : index
      %c0_21 = arith.constant 0 : index
      %27 = vector.load %arg3[%c0_20, %c0_21] : memref<256x512xbf16, #tpu.memory_space<vmem>>, vector<256x512xbf16>
      %28 = arith.truncf %26 : vector<8x256xf32> to vector<8x256xbf16>
      %cst_22 = arith.constant dense<0.000000e+00> : vector<8x512xf32>
      %29 = tpu.matmul %28, %27, %cst_22 {dimension_numbers = #tpu.dot_dimension_numbers<[1], [0], [0], [1], [0, 0, 1, 1], [], []>} : vector<8x256xbf16>, vector<256x512xbf16>, vector<8x512xf32> -> vector<8x512xf32>
      %c1 = arith.constant 1 : index
      %c0_23 = arith.constant 0 : index
      %30 = vector.load %arg12[%c1, %c0_23] : memref<8x1024xf32, #tpu.memory_space<vmem>>, vector<1x512xf32>
      %31 = vector.broadcast %30 : vector<1x512xf32> to vector<8x512xf32>
      %32 = arith.addf %29, %31 : vector<8x512xf32>
      %cst_24 = arith.constant 0.000000e+00 : f32
      %33 = vector.broadcast %cst_24 : f32 to vector<8x512xf32>
      %34 = arith.maximumf %32, %33 : vector<8x512xf32>
      %c0_25 = arith.constant 0 : index
      %c0_26 = arith.constant 0 : index
      %35 = vector.load %arg4[%c0_25, %c0_26] : memref<512x1024xbf16, #tpu.memory_space<vmem>>, vector<512x1024xbf16>
      %36 = arith.truncf %34 : vector<8x512xf32> to vector<8x512xbf16>
      %cst_27 = arith.constant dense<0.000000e+00> : vector<8x1024xf32>
      %37 = tpu.matmul %36, %35, %cst_27 {dimension_numbers = #tpu.dot_dimension_numbers<[1], [0], [0], [1], [0, 0, 1, 1], [], []>} : vector<8x512xbf16>, vector<512x1024xbf16>, vector<8x1024xf32> -> vector<8x1024xf32>
      %c2 = arith.constant 2 : index
      %c0_28 = arith.constant 0 : index
      %38 = vector.load %arg12[%c2, %c0_28] : memref<8x1024xf32, #tpu.memory_space<vmem>>, vector<1x1024xf32>
      %39 = vector.broadcast %38 : vector<1x1024xf32> to vector<8x1024xf32>
      %40 = arith.addf %37, %39 : vector<8x1024xf32>
      %cst_29 = arith.constant 0.000000e+00 : f32
      %41 = vector.broadcast %cst_29 : f32 to vector<8x1024xf32>
      %42 = arith.maximumf %40, %41 : vector<8x1024xf32>
      %c0_30 = arith.constant 0 : index
      %c0_31 = arith.constant 0 : index
      %43 = vector.load %arg14[%c0_30, %c0_31] : memref<8x1024xf32, #tpu.memory_space<vmem>>, vector<8x1024xf32>
      tpu.vector_store %arg14[%c0_30, %c0_31], %42 {strides = array<i32>} : memref<8x1024xf32, #tpu.memory_space<vmem>>, vector<8x1024xf32>,
    } else {
    }
    %c0 = arith.constant 0 : index
    %c0_1 = arith.constant 0 : index
    %c0_2 = arith.constant 0 : index
    %3 = vector.load %arg10[%c0, %c0_1, %c0_2] : memref<1x1024x1024xbf16, #tpu.memory_space<vmem>>, vector<1x1024x1024xbf16>
    %4 = vector.shape_cast %3 : vector<1x1024x1024xbf16> to vector<1024x1024xbf16>
    %c0_3 = arith.constant 0 : index
    %c0_4 = arith.constant 0 : index
    %5 = vector.load %arg14[%c0_3, %c0_4] : memref<8x1024xf32, #tpu.memory_space<vmem>>, vector<8x1024xf32>
    %6 = arith.truncf %5 : vector<8x1024xf32> to vector<8x1024xbf16>
    %cst = arith.constant dense<0.000000e+00> : vector<8x1024xf32>
    %7 = tpu.matmul %6, %4, %cst {dimension_numbers = #tpu.dot_dimension_numbers<[1], [0], [0], [1], [0, 0, 1, 1], [], []>} : vector<8x1024xbf16>, vector<1024x1024xbf16>, vector<8x1024xf32> -> vector<8x1024xf32>
    %c0_5 = arith.constant 0 : index
    %c0_6 = arith.constant 0 : index
    %c0_7 = arith.constant 0 : index
    %8 = vector.load %arg11[%c0_5, %c0_6, %c0_7] : memref<1x1x1024xf32, #tpu.memory_space<vmem>>, vector<1x1x1024xf32>
    %9 = vector.shape_cast %8 : vector<1x1x1024xf32> to vector<1x1024xf32>
    %10 = vector.broadcast %9 : vector<1x1024xf32> to vector<8x1024xf32>
    %11 = arith.addf %7, %10 : vector<8x1024xf32>
    %cst_8 = arith.constant 0.000000e+00 : f32
    %12 = vector.broadcast %cst_8 : f32 to vector<8x1024xf32>
    %13 = arith.maximumf %11, %12 : vector<8x1024xf32>
    %c0_9 = arith.constant 0 : index
    %c0_10 = arith.constant 0 : index
    %14 = vector.load %arg14[%c0_9, %c0_10] : memref<8x1024xf32, #tpu.memory_space<vmem>>, vector<8x1024xf32>
    tpu.vector_store %arg14[%c0_9, %c0_10], %13 {strides = array<i32>} : memref<8x1024xf32, #tpu.memory_space<vmem>>, vector<8x1024xf32>,
    %c7_i32 = arith.constant 7 : i32
    %15 = arith.cmpi eq, %arg0, %c7_i32 : i32
    %16 = arith.extui %15 : i1 to i32
    %c0_i32_11 = arith.constant 0 : i32
    %17 = arith.cmpi ne, %16, %c0_i32_11 : i32
    scf.if %17 {
      %c0_12 = arith.constant 0 : index
      %c0_13 = arith.constant 0 : index
      %18 = vector.load %arg14[%c0_12, %c0_13] : memref<8x1024xf32, #tpu.memory_space<vmem>>, vector<8x1024xf32>
      %c0_14 = arith.constant 0 : index
      %c0_15 = arith.constant 0 : index
      %19 = vector.load %arg5[%c0_14, %c0_15] : memref<1024x512xbf16, #tpu.memory_space<vmem>>, vector<1024x512xbf16>
      %20 = arith.truncf %18 : vector<8x1024xf32> to vector<8x1024xbf16>
      %cst_16 = arith.constant dense<0.000000e+00> : vector<8x512xf32>
      %21 = tpu.matmul %20, %19, %cst_16 {dimension_numbers = #tpu.dot_dimension_numbers<[1], [0], [0], [1], [0, 0, 1, 1], [], []>} : vector<8x1024xbf16>, vector<1024x512xbf16>, vector<8x512xf32> -> vector<8x512xf32>
      %c3 = arith.constant 3 : index
      %c0_17 = arith.constant 0 : index
      %22 = vector.load %arg12[%c3, %c0_17] : memref<8x1024xf32, #tpu.memory_space<vmem>>, vector<1x512xf32>
      %23 = vector.broadcast %22 : vector<1x512xf32> to vector<8x512xf32>
      %24 = arith.addf %21, %23 : vector<8x512xf32>
      %cst_18 = arith.constant 0.000000e+00 : f32
      %25 = vector.broadcast %cst_18 : f32 to vector<8x512xf32>
      %26 = arith.maximumf %24, %25 : vector<8x512xf32>
      %c0_19 = arith.constant 0 : index
      %c0_20 = arith.constant 0 : index
      %27 = vector.load %arg6[%c0_19, %c0_20] : memref<512x256xbf16, #tpu.memory_space<vmem>>, vector<512x256xbf16>
      %28 = arith.truncf %26 : vector<8x512xf32> to vector<8x512xbf16>
      %cst_21 = arith.constant dense<0.000000e+00> : vector<8x256xf32>
      %29 = tpu.matmul %28, %27, %cst_21 {dimension_numbers = #tpu.dot_dimension_numbers<[1], [0], [0], [1], [0, 0, 1, 1], [], []>} : vector<8x512xbf16>, vector<512x256xbf16>, vector<8x256xf32> -> vector<8x256xf32>
      %c4 = arith.constant 4 : index
      %c0_22 = arith.constant 0 : index
      %30 = vector.load %arg12[%c4, %c0_22] : memref<8x1024xf32, #tpu.memory_space<vmem>>, vector<1x256xf32>
      %31 = vector.broadcast %30 : vector<1x256xf32> to vector<8x256xf32>
      %32 = arith.addf %29, %31 : vector<8x256xf32>
      %cst_23 = arith.constant 0.000000e+00 : f32
      %33 = vector.broadcast %cst_23 : f32 to vector<8x256xf32>
      %34 = arith.maximumf %32, %33 : vector<8x256xf32>
      %c0_24 = arith.constant 0 : index
      %c0_25 = arith.constant 0 : index
      %35 = vector.load %arg7[%c0_24, %c0_25] : memref<256x128xbf16, #tpu.memory_space<vmem>>, vector<256x128xbf16>
      %36 = arith.truncf %34 : vector<8x256xf32> to vector<8x256xbf16>
      %cst_26 = arith.constant dense<0.000000e+00> : vector<8x128xf32>
      %37 = tpu.matmul %36, %35, %cst_26 {dimension_numbers = #tpu.dot_dimension_numbers<[1], [0], [0], [1], [0, 0, 1, 1], [], []>} : vector<8x256xbf16>, vector<256x128xbf16>, vector<8x128xf32> -> vector<8x128xf32>
      %c5 = arith.constant 5 : index
      %c0_27 = arith.constant 0 : index
      %38 = vector.load %arg12[%c5, %c0_27] : memref<8x1024xf32, #tpu.memory_space<vmem>>, vector<1x128xf32>
      %39 = vector.broadcast %38 : vector<1x128xf32> to vector<8x128xf32>
      %40 = arith.addf %37, %39 : vector<8x128xf32>
      %cst_28 = arith.constant 0.000000e+00 : f32
      %41 = vector.broadcast %cst_28 : f32 to vector<8x128xf32>
      %42 = arith.maximumf %40, %41 : vector<8x128xf32>
      %c0_29 = arith.constant 0 : index
      %c0_30 = arith.constant 0 : index
      %43 = vector.load %arg8[%c0_29, %c0_30] : memref<128x128xbf16, #tpu.memory_space<vmem>>, vector<128x128xbf16>
      %44 = arith.truncf %42 : vector<8x128xf32> to vector<8x128xbf16>
      %cst_31 = arith.constant dense<0.000000e+00> : vector<8x128xf32>
      %45 = tpu.matmul %44, %43, %cst_31 {dimension_numbers = #tpu.dot_dimension_numbers<[1], [0], [0], [1], [0, 0, 1, 1], [], []>} : vector<8x128xbf16>, vector<128x128xbf16>, vector<8x128xf32> -> vector<8x128xf32>
      %c6 = arith.constant 6 : index
      %c0_32 = arith.constant 0 : index
      %46 = vector.load %arg12[%c6, %c0_32] : memref<8x1024xf32, #tpu.memory_space<vmem>>, vector<1x128xf32>
      %47 = vector.broadcast %46 : vector<1x128xf32> to vector<8x128xf32>
      %48 = arith.addf %45, %47 : vector<8x128xf32>
      %cst_33 = arith.constant 0.000000e+00 : f32
      %49 = vector.broadcast %cst_33 : f32 to vector<8x128xf32>
      %50 = arith.maximumf %48, %49 : vector<8x128xf32>
      %c0_34 = arith.constant 0 : index
      %c0_35 = arith.constant 0 : index
      %51 = vector.load %arg9[%c0_34, %c0_35] : memref<128x128xbf16, #tpu.memory_space<vmem>>, vector<128x128xbf16>
      %52 = arith.truncf %50 : vector<8x128xf32> to vector<8x128xbf16>
      %cst_36 = arith.constant dense<0.000000e+00> : vector<8x128xf32>
      %53 = tpu.matmul %52, %51, %cst_36 {dimension_numbers = #tpu.dot_dimension_numbers<[1], [0], [0], [1], [0, 0, 1, 1], [], []>} : vector<8x128xbf16>, vector<128x128xbf16>, vector<8x128xf32> -> vector<8x128xf32>
      %c7 = arith.constant 7 : index
      %c0_37 = arith.constant 0 : index
      %54 = vector.load %arg12[%c7, %c0_37] : memref<8x1024xf32, #tpu.memory_space<vmem>>, vector<1x128xf32>
      %55 = vector.broadcast %54 : vector<1x128xf32> to vector<8x128xf32>
      %56 = arith.addf %53, %55 : vector<8x128xf32>
      %cst_38 = arith.constant 0.000000e+00 : f32
      %57 = vector.broadcast %cst_38 : f32 to vector<8x128xf32>
      %58 = arith.maximumf %56, %57 : vector<8x128xf32>
      %cst_39 = arith.constant 0.000000e+00 : f32
      %59 = vector.broadcast %cst_39 : f32 to vector<8x128xf32>
      %60 = arith.subf %59, %58 : vector<8x128xf32>
      %61 = math.exp %60 : vector<8x128xf32>
      %cst_40 = arith.constant 1.000000e+00 : f32
      %62 = vector.broadcast %cst_40 : f32 to vector<8x128xf32>
      %63 = arith.addf %62, %61 : vector<8x128xf32>
      %cst_41 = arith.constant 1.000000e+00 : f32
      %64 = vector.broadcast %cst_41 : f32 to vector<8x128xf32>
      %65 = arith.divf %64, %63 : vector<8x128xf32>
      %c0_42 = arith.constant 0 : index
      %c0_43 = arith.constant 0 : index
      %66 = vector.load %arg13[%c0_42, %c0_43] : memref<8x128xf32, #tpu.memory_space<vmem>>, vector<8x128xf32>
      tpu.vector_store %arg13[%c0_42, %c0_43], %65 {strides = array<i32>} : memref<8x128xf32, #tpu.memory_space<vmem>>, vector<8x128xf32>,
    } else {
    }
    return
  }
  func.func @transform_0(%arg0: i32) -> (i32, i32) {
    %c0_i32 = arith.constant 0 : i32
    %c0_i32_0 = arith.constant 0 : i32
    %c0_i32_1 = arith.constant 0 : i32
    return %c0_i32, %c0_i32_0 : i32, i32
  }
  func.func @transform_1(%arg0: i32) -> (i32, i32) {
    %c0_i32 = arith.constant 0 : i32
    %c0_i32_0 = arith.constant 0 : i32
    %c0_i32_1 = arith.constant 0 : i32
    return %c0_i32, %c0_i32_0 : i32, i32
  }
  func.func @transform_2(%arg0: i32) -> (i32, i32) {
    %c0_i32 = arith.constant 0 : i32
    %c0_i32_0 = arith.constant 0 : i32
    %c0_i32_1 = arith.constant 0 : i32
    return %c0_i32, %c0_i32_0 : i32, i32
  }
  func.func @transform_3(%arg0: i32) -> (i32, i32) {
    %c0_i32 = arith.constant 0 : i32
    %c0_i32_0 = arith.constant 0 : i32
    %c0_i32_1 = arith.constant 0 : i32
    return %c0_i32, %c0_i32_0 : i32, i32
  }
  func.func @transform_4(%arg0: i32) -> (i32, i32) {
    %c0_i32 = arith.constant 0 : i32
    %c0_i32_0 = arith.constant 0 : i32
    %c0_i32_1 = arith.constant 0 : i32
    return %c0_i32, %c0_i32_0 : i32, i32
  }
  func.func @transform_5(%arg0: i32) -> (i32, i32) {
    %c0_i32 = arith.constant 0 : i32
    %c0_i32_0 = arith.constant 0 : i32
    %c0_i32_1 = arith.constant 0 : i32
    return %c0_i32, %c0_i32_0 : i32, i32
  }
  func.func @transform_6(%arg0: i32) -> (i32, i32) {
    %c0_i32 = arith.constant 0 : i32
    %c0_i32_0 = arith.constant 0 : i32
    %c0_i32_1 = arith.constant 0 : i32
    return %c0_i32, %c0_i32_0 : i32, i32
  }
  func.func @transform_7(%arg0: i32) -> (i32, i32) {
    %c0_i32 = arith.constant 0 : i32
    %c0_i32_0 = arith.constant 0 : i32
    %c0_i32_1 = arith.constant 0 : i32
    return %c0_i32, %c0_i32_0 : i32, i32
  }
  func.func @transform_8(%arg0: i32) -> (i32, i32) {
    %c0_i32 = arith.constant 0 : i32
    %c0_i32_0 = arith.constant 0 : i32
    %c0_i32_1 = arith.constant 0 : i32
    return %c0_i32, %c0_i32_0 : i32, i32
  }
  func.func @transform_9(%arg0: i32) -> (i32, i32, i32) {
    %c0_i32 = arith.constant 0 : i32
    %c0_i32_0 = arith.constant 0 : i32
    %c0_i32_1 = arith.constant 0 : i32
    return %arg0, %c0_i32, %c0_i32_0 : i32, i32, i32
  }
  func.func @transform_10(%arg0: i32) -> (i32, i32, i32) {
    %c0_i32 = arith.constant 0 : i32
    %c0_i32_0 = arith.constant 0 : i32
    %c0_i32_1 = arith.constant 0 : i32
    return %arg0, %c0_i32, %c0_i32_0 : i32, i32, i32
  }
  func.func @transform_11(%arg0: i32) -> (i32, i32) {
    %c0_i32 = arith.constant 0 : i32
    %c0_i32_0 = arith.constant 0 : i32
    %c0_i32_1 = arith.constant 0 : i32
    return %c0_i32, %c0_i32_0 : i32, i32
  }
  func.func @transform_12(%arg0: i32) -> (i32, i32) {
    %c0_i32 = arith.constant 0 : i32
    %c0_i32_0 = arith.constant 0 : i32
    %c0_i32_1 = arith.constant 0 : i32
    return %c0_i32, %c0_i32_0 : i32, i32
  }
}

</mosaic_0001>

<llo_original>
// kernel: fused_forward.1
$region0: #{fused_forward.1}
  #allocation0 [shape = 'u32[]', space=smem, size = 0x4, offset = 0x4, fixed_abs, tag = 'smem constant byte address 0x4 - core index']
  #allocation1 [shape = 'u32[72,128]{1,0:T(1,128)}', space=vmem, size = 0x9000, scoped, tag = 'internal scratch']
  #allocation2 [shape = 'f32[8,1024]{1,0:T(8,128)}', space=vmem, size = 0x8000, scoped, tag = 'scratch operand']
  %s0 = inlined_call_operand.vmem [shape: f32[8,128], index: 0, kind: input, shape index: {}]
  %s1 = inlined_call_operand.hbm [shape: bf16[128,256], index: 1, kind: input, shape index: {}]
  %s2 = inlined_call_operand.hbm [shape: bf16[256,512], index: 2, kind: input, shape index: {}]
  %s3 = inlined_call_operand.hbm [shape: bf16[512,1024], index: 3, kind: input, shape index: {}]
  %s4 = inlined_call_operand.hbm [shape: bf16[1024,512], index: 4, kind: input, shape index: {}]
  %s5 = inlined_call_operand.hbm [shape: bf16[512,256], index: 5, kind: input, shape index: {}]
  %s6 = inlined_call_operand.hbm [shape: bf16[256,128], index: 6, kind: input, shape index: {}]
  %s7 = inlined_call_operand.hbm [shape: bf16[128,128], index: 7, kind: input, shape index: {}]
  %s8 = inlined_call_operand.hbm [shape: bf16[128,128], index: 8, kind: input, shape index: {}]
  %s9 = inlined_call_operand.hbm [shape: bf16[8,1024,1024], index: 9, kind: input, shape index: {}]
  %s10 = inlined_call_operand.hbm [shape: f32[8,1,1024], index: 10, kind: input, shape index: {}]
  %s11 = inlined_call_operand.hbm [shape: f32[8,1024], index: 11, kind: input, shape index: {}]
  %s12 = inlined_call_operand.vmem [shape: f32[8,128], index: 12, kind: output, shape index: {}]
  %s13 = sld [smem:[#allocation0]]
  $region133: #{fused_forward.1} parent=0
    _
  %s15 = ssub.s32 1, %s13
  %s16 = scalar_select 0, %s15, %s13
  $region1: #{fused_forward.1} parent=0
    #allocation3 [shape = 'u8[65536]{0}', space=vmem, size = 0x10000, scoped, tag = 'input window, operand 1, single buffered']
    #allocation4 [shape = 's32[2]{0}', space=sflag, size = 0x8, scoped, tag = 'scoped memory for fused_forward.1']
    #allocation5 [shape = 'u8[262144]{0}', space=vmem, size = 0x40000, scoped, tag = 'input window, operand 2, single buffered']
    #allocation6 [shape = 's32[1]{0}', space=sflag, size = 0x4, scoped, tag = 'scoped memory for fused_forward.1']
    #allocation7 [shape = 'u8[1048576]{0}', space=vmem, size = 0x100000, scoped, tag = 'input window, operand 3, single buffered']
    #allocation8 [shape = 'u8[1048576]{0}', space=vmem, size = 0x100000, scoped, tag = 'input window, operand 4, single buffered']
    #allocation9 [shape = 's32[1]{0}', space=sflag, size = 0x4, scoped, tag = 'scoped memory for fused_forward.1']
    #allocation10 [shape = 'u8[262144]{0}', space=vmem, size = 0x40000, scoped, tag = 'input window, operand 5, single buffered']
    #allocation11 [shape = 'u8[65536]{0}', space=vmem, size = 0x10000, scoped, tag = 'input window, operand 6, single buffered']
    #allocation12 [shape = 's32[1]{0}', space=sflag, size = 0x4, scoped, tag = 'scoped memory for fused_forward.1']
    #allocation13 [shape = 'u8[32768]{0}', space=vmem, size = 0x8000, scoped, tag = 'input window, operand 7, single buffered']
    #allocation14 [shape = 'u8[32768]{0}', space=vmem, size = 0x8000, scoped, tag = 'input window, operand 8, single buffered']
    #allocation15 [shape = 's32[1]{0}', space=sflag, size = 0x4, scoped, tag = 'scoped memory for fused_forward.1']
    #allocation16 [shape = 'u8[4194304]{0}', space=vmem, size = 0x400000, scoped, tag = 'input window, operand 9']
    #allocation17 [shape = 'u8[8192]{0}', space=vmem, size = 0x2000, scoped, tag = 'input window, operand 10']
    #allocation18 [shape = 'u8[32768]{0}', space=vmem, size = 0x8000, scoped, tag = 'input window, operand 11, single buffered']
    %17 = vsyncpa [#allocation4], 0
    %18 = vsyncpa [#allocation6], 0
    %19 = vsyncpa [#allocation9], 0
    %20 = vsyncpa [#allocation12], 0
    %21 = vsyncpa [#allocation15], 0
    loop: start=0, step=1, limit=10
    $region2: #{fused_forward.1} parent=1 // loop_pre_header
      _
    $region3: #{fused_forward.1} parent=1 // loop_header
      %s23 = sphi 0, %s27
      %p24 = scmp.ge.s32.totalorder %s23, 10
      %s31 = sphi 0, %s31
      %s33 = sphi 0, %s31
      %s34 = sphi 0, %s33
      %s48 = sphi 0, %s34
      %s52 = sphi 0, %s52
      %s54 = sphi 0, %s52
      %s55 = sphi 0, %s54
      %s69 = sphi 0, %s55
      %s73 = sphi 0, %s73
      %s75 = sphi 0, %s73
      %s76 = sphi 0, %s75
      %s90 = sphi 0, %s76
      %s94 = sphi 0, %s94
      %s96 = sphi 0, %s94
      %s97 = sphi 0, %s96
      %s111 = sphi 0, %s97
      %s115 = sphi 0, %s115
      %s117 = sphi 0, %s115
      %s118 = sphi 0, %s117
      %s132 = sphi 0, %s118
      %s136 = sphi 0, %s136
      %s138 = sphi 0, %s136
      %s139 = sphi 0, %s138
      %s153 = sphi 0, %s139
      %s157 = sphi 0, %s157
      %s159 = sphi 0, %s157
      %s160 = sphi 0, %s159
      %s174 = sphi 0, %s160
      %s178 = sphi 0, %s178
      %s180 = sphi 0, %s178
      %s181 = sphi 0, %s180
      %s195 = sphi 0, %s181
      %s199 = sphi 0, %s199
      %s201 = sphi 0, %s199
      %s202 = sphi 0, %s201
      %s216 = sphi 0, %s202
      %s222 = sphi 0, %s224
      %s225 = sphi 0, %s222
      %s226 = sphi 0, %s225
      %s242 = sphi 0, %s226
      %s248 = sphi 0, %s250
      %s251 = sphi 0, %s248
      %s252 = sphi 0, %s251
      %s268 = sphi 0, %s252
      %s272 = sphi 0, %s272
      %s274 = sphi 0, %s272
      %s275 = sphi 0, %s274
      %s289 = sphi 0, %s275
      %s293 = sphi 0, %s293
      %s295 = sphi 0, %s293
      %s296 = sphi 0, %s295
      %s310 = sphi 0, %s296
    $region4: #{fused_forward.1} parent=1 // loop_header_branch
      %26 = sbr.rel (%p24) target = $region8
    $region5: #{fused_forward.1} parent=1 // loop_body
      %s28 = ssub.s32 %s23, 1
      %s29 = ssub.s32 %s23, 2
      %s30 = sadd.s32 %s23, 1
      %s32 = sadd.s32 %s31, 1
      %p35 = scmp.eq.s32.totalorder %s23, 7
      %p36 = scmp.ne.s32.totalorder %s31, %s33
      %p37 = scmp.eq.s32.totalorder %s23, 0
      %p38 = por %p36, %p37
      %p39 = scmp.ne.s32.totalorder %s31, %s33
      %p40 = scmp.eq.s32.totalorder %s28, 7
      %p41 = por %p39, %p40
      %p42 = scmp.ne.s32.totalorder %s33, %s34
      %p43 = scmp.eq.s32.totalorder %s28, 0
      %p44 = por %p42, %p43
      %p45 = scmp.ne.s32.totalorder %s33, %s34
      %p46 = scmp.eq.s32.totalorder %s29, 7
      %p47 = por %p45, %p46
      %p49 = scmp.ne.s32.totalorder %s34, %s48
      %p50 = scmp.eq.s32.totalorder %s29, 0
      %p51 = por %p49, %p50
      %s53 = sadd.s32 %s52, 1
      %p56 = scmp.eq.s32.totalorder %s23, 7
      %p57 = scmp.ne.s32.totalorder %s52, %s54
      %p58 = scmp.eq.s32.totalorder %s23, 0
      %p59 = por %p57, %p58
      %p60 = scmp.ne.s32.totalorder %s52, %s54
      %p61 = scmp.eq.s32.totalorder %s28, 7
      %p62 = por %p60, %p61
      %p63 = scmp.ne.s32.totalorder %s54, %s55
      %p64 = scmp.eq.s32.totalorder %s28, 0
      %p65 = por %p63, %p64
      %p66 = scmp.ne.s32.totalorder %s54, %s55
      %p67 = scmp.eq.s32.totalorder %s29, 7
      %p68 = por %p66, %p67
      %p70 = scmp.ne.s32.totalorder %s55, %s69
      %p71 = scmp.eq.s32.totalorder %s29, 0
      %p72 = por %p70, %p71
      %s74 = sadd.s32 %s73, 1
      %p77 = scmp.eq.s32.totalorder %s23, 7
      %p78 = scmp.ne.s32.totalorder %s73, %s75
      %p79 = scmp.eq.s32.totalorder %s23, 0
      %p80 = por %p78, %p79
      %p81 = scmp.ne.s32.totalorder %s73, %s75
      %p82 = scmp.eq.s32.totalorder %s28, 7
      %p83 = por %p81, %p82
      %p84 = scmp.ne.s32.totalorder %s75, %s76
      %p85 = scmp.eq.s32.totalorder %s28, 0
      %p86 = por %p84, %p85
      %p87 = scmp.ne.s32.totalorder %s75, %s76
      %p88 = scmp.eq.s32.totalorder %s29, 7
      %p89 = por %p87, %p88
      %p91 = scmp.ne.s32.totalorder %s76, %s90
      %p92 = scmp.eq.s32.totalorder %s29, 0
      %p93 = por %p91, %p92
      %s95 = sadd.s32 %s94, 1
      %p98 = scmp.eq.s32.totalorder %s23, 7
      %p99 = scmp.ne.s32.totalorder %s94, %s96
      %p100 = scmp.eq.s32.totalorder %s23, 0
      %p101 = por %p99, %p100
      %p102 = scmp.ne.s32.totalorder %s94, %s96
      %p103 = scmp.eq.s32.totalorder %s28, 7
      %p104 = por %p102, %p103
      %p105 = scmp.ne.s32.totalorder %s96, %s97
      %p106 = scmp.eq.s32.totalorder %s28, 0
      %p107 = por %p105, %p106
      %p108 = scmp.ne.s32.totalorder %s96, %s97
      %p109 = scmp.eq.s32.totalorder %s29, 7
      %p110 = por %p108, %p109
      %p112 = scmp.ne.s32.totalorder %s97, %s111
      %p113 = scmp.eq.s32.totalorder %s29, 0
      %p114 = por %p112, %p113
      %s116 = sadd.s32 %s115, 1
      %p119 = scmp.eq.s32.totalorder %s23, 7
      %p120 = scmp.ne.s32.totalorder %s115, %s117
      %p121 = scmp.eq.s32.totalorder %s23, 0
      %p122 = por %p120, %p121
      %p123 = scmp.ne.s32.totalorder %s115, %s117
      %p124 = scmp.eq.s32.totalorder %s28, 7
      %p125 = por %p123, %p124
      %p126 = scmp.ne.s32.totalorder %s117, %s118
      %p127 = scmp.eq.s32.totalorder %s28, 0
      %p128 = por %p126, %p127
      %p129 = scmp.ne.s32.totalorder %s117, %s118
      %p130 = scmp.eq.s32.totalorder %s29, 7
      %p131 = por %p129, %p130
      %p133 = scmp.ne.s32.totalorder %s118, %s132
      %p134 = scmp.eq.s32.totalorder %s29, 0
      %p135 = por %p133, %p134
      %s137 = sadd.s32 %s136, 1
      %p140 = scmp.eq.s32.totalorder %s23, 7
      %p141 = scmp.ne.s32.totalorder %s136, %s138
      %p142 = scmp.eq.s32.totalorder %s23, 0
      %p143 = por %p141, %p142
      %p144 = scmp.ne.s32.totalorder %s136, %s138
      %p145 = scmp.eq.s32.totalorder %s28, 7
      %p146 = por %p144, %p145
      %p147 = scmp.ne.s32.totalorder %s138, %s139
      %p148 = scmp.eq.s32.totalorder %s28, 0
      %p149 = por %p147, %p148
      %p150 = scmp.ne.s32.totalorder %s138, %s139
      %p151 = scmp.eq.s32.totalorder %s29, 7
      %p152 = por %p150, %p151
      %p154 = scmp.ne.s32.totalorder %s139, %s153
      %p155 = scmp.eq.s32.totalorder %s29, 0
      %p156 = por %p154, %p155
      %s158 = sadd.s32 %s157, 1
      %p161 = scmp.eq.s32.totalorder %s23, 7
      %p162 = scmp.ne.s32.totalorder %s157, %s159
      %p163 = scmp.eq.s32.totalorder %s23, 0
      %p164 = por %p162, %p163
      %p165 = scmp.ne.s32.totalorder %s157, %s159
      %p166 = scmp.eq.s32.totalorder %s28, 7
      %p167 = por %p165, %p166
      %p168 = scmp.ne.s32.totalorder %s159, %s160
      %p169 = scmp.eq.s32.totalorder %s28, 0
      %p170 = por %p168, %p169
      %p171 = scmp.ne.s32.totalorder %s159, %s160
      %p172 = scmp.eq.s32.totalorder %s29, 7
      %p173 = por %p171, %p172
      %p175 = scmp.ne.s32.totalorder %s160, %s174
      %p176 = scmp.eq.s32.totalorder %s29, 0
      %p177 = por %p175, %p176
      %s179 = sadd.s32 %s178, 1
      %p182 = scmp.eq.s32.totalorder %s23, 7
      %p183 = scmp.ne.s32.totalorder %s178, %s180
      %p184 = scmp.eq.s32.totalorder %s23, 0
      %p185 = por %p183, %p184
      %p186 = scmp.ne.s32.totalorder %s178, %s180
      %p187 = scmp.eq.s32.totalorder %s28, 7
      %p188 = por %p186, %p187
      %p189 = scmp.ne.s32.totalorder %s180, %s181
      %p190 = scmp.eq.s32.totalorder %s28, 0
      %p191 = por %p189, %p190
      %p192 = scmp.ne.s32.totalorder %s180, %s181
      %p193 = scmp.eq.s32.totalorder %s29, 7
      %p194 = por %p192, %p193
      %p196 = scmp.ne.s32.totalorder %s181, %s195
      %p197 = scmp.eq.s32.totalorder %s29, 0
      %p198 = por %p196, %p197
      %s200 = sadd.s32 %s199, 1
      %p203 = scmp.eq.s32.totalorder %s23, 7
      %p204 = scmp.ne.s32.totalorder %s199, %s201
      %p205 = scmp.eq.s32.totalorder %s23, 0
      %p206 = por %p204, %p205
      %p207 = scmp.ne.s32.totalorder %s199, %s201
      %p208 = scmp.eq.s32.totalorder %s28, 7
      %p209 = por %p207, %p208
      %p210 = scmp.ne.s32.totalorder %s201, %s202
      %p211 = scmp.eq.s32.totalorder %s28, 0
      %p212 = por %p210, %p211
      %p213 = scmp.ne.s32.totalorder %s201, %s202
      %p214 = scmp.eq.s32.totalorder %s29, 7
      %p215 = por %p213, %p214
      %p217 = scmp.ne.s32.totalorder %s202, %s216
      %p218 = scmp.eq.s32.totalorder %s29, 0
      %p219 = por %p217, %p218
      %s220 = ssub.s32 %s23, %s30
      %p221 = scmp.eq.s32.totalorder %s220, 0
      %s223 = sadd.s32 %s222, 1
      %s224 = scalar_select %p221, %s222, %s223
      %p227 = pneg %p221
      %p228 = scmp.eq.s32.totalorder %s23, 7
      %p229 = por %p227, %p228
      %p230 = scmp.ne.s32.totalorder %s222, %s225
      %p231 = scmp.eq.s32.totalorder %s23, 0
      %p232 = por %p230, %p231
      %p233 = scmp.ne.s32.totalorder %s222, %s225
      %p234 = scmp.eq.s32.totalorder %s28, 7
      %p235 = por %p233, %p234
      %p236 = scmp.ne.s32.totalorder %s225, %s226
      %p237 = scmp.eq.s32.totalorder %s28, 0
      %p238 = por %p236, %p237
      %p239 = scmp.ne.s32.totalorder %s225, %s226
      %p240 = scmp.eq.s32.totalorder %s29, 7
      %p241 = por %p239, %p240
      %p243 = scmp.ne.s32.totalorder %s226, %s242
      %p244 = scmp.eq.s32.totalorder %s29, 0
      %p245 = por %p243, %p244
      %s246 = ssub.s32 %s23, %s30
      %p247 = scmp.eq.s32.totalorder %s246, 0
      %s249 = sadd.s32 %s248, 1
      %s250 = scalar_select %p247, %s248, %s249
      %p253 = pneg %p247
      %p254 = scmp.eq.s32.totalorder %s23, 7
      %p255 = por %p253, %p254
      %p256 = scmp.ne.s32.totalorder %s248, %s251
      %p257 = scmp.eq.s32.totalorder %s23, 0
      %p258 = por %p256, %p257
      %p259 = scmp.ne.s32.totalorder %s248, %s251
      %p260 = scmp.eq.s32.totalorder %s28, 7
      %p261 = por %p259, %p260
      %p262 = scmp.ne.s32.totalorder %s251, %s252
      %p263 = scmp.eq.s32.totalorder %s28, 0
      %p264 = por %p262, %p263
      %p265 = scmp.ne.s32.totalorder %s251, %s252
      %p266 = scmp.eq.s32.totalorder %s29, 7
      %p267 = por %p265, %p266
      %p269 = scmp.ne.s32.totalorder %s252, %s268
      %p270 = scmp.eq.s32.totalorder %s29, 0
      %p271 = por %p269, %p270
      %s273 = sadd.s32 %s272, 1
      %p276 = scmp.eq.s32.totalorder %s23, 7
      %p277 = scmp.ne.s32.totalorder %s272, %s274
      %p278 = scmp.eq.s32.totalorder %s23, 0
      %p279 = por %p277, %p278
      %p280 = scmp.ne.s32.totalorder %s272, %s274
      %p281 = scmp.eq.s32.totalorder %s28, 7
      %p282 = por %p280, %p281
      %p283 = scmp.ne.s32.totalorder %s274, %s275
      %p284 = scmp.eq.s32.totalorder %s28, 0
      %p285 = por %p283, %p284
      %p286 = scmp.ne.s32.totalorder %s274, %s275
      %p287 = scmp.eq.s32.totalorder %s29, 7
      %p288 = por %p286, %p287
      %p290 = scmp.ne.s32.totalorder %s275, %s289
      %p291 = scmp.eq.s32.totalorder %s29, 0
      %p292 = por %p290, %p291
      %s294 = sadd.s32 %s293, 1
      %p297 = scmp.eq.s32.totalorder %s23, 7
      %p298 = scmp.ne.s32.totalorder %s293, %s295
      %p299 = scmp.eq.s32.totalorder %s23, 0
      %p300 = por %p298, %p299
      %p301 = scmp.ne.s32.totalorder %s293, %s295
      %p302 = scmp.eq.s32.totalorder %s28, 7
      %p303 = por %p301, %p302
      %p304 = scmp.ne.s32.totalorder %s295, %s296
      %p305 = scmp.eq.s32.totalorder %s28, 0
      %p306 = por %p304, %p305
      %p307 = scmp.ne.s32.totalorder %s295, %s296
      %p308 = scmp.eq.s32.totalorder %s29, 7
      %p309 = por %p307, %p308
      %p311 = scmp.ne.s32.totalorder %s296, %s310
      %p312 = scmp.eq.s32.totalorder %s29, 0
      %p313 = por %p311, %p312
      %p314 = scmp.le.s32.totalorder 1, %s23
      %p315 = scmp.lt.s32.totalorder %s23, 9
      %p316 = pnand %p314, %p315
      %p317 = pneg %p316
      // Predicated region
      $region9: #{fused_forward.1} parent=5 // pred_check
        _
      $region10: #{fused_forward.1} parent=5 // pred_check_branch
        %319 = sbr.rel (%p316) target = $region12
      $region11: #{fused_forward.1} parent=5 // pred_region
        %s320 = ssub.s32 %s23, 1
        // Predicated region
        $region13: #{fused_forward.1} parent=11 // pred_check
          %p321 = pneg %p44
        $region14: #{fused_forward.1} parent=11 // pred_check_branch
          %323 = sbr.rel (%p321) target = $region16
        $region15: #{fused_forward.1} parent=11 // pred_region
          _
        $region16: #{fused_forward.1} parent=11 // pred_fallthru
          _
        // Predicated region
        $region17: #{fused_forward.1} parent=11 // pred_check
          %p324 = pneg %p65
        $region18: #{fused_forward.1} parent=11 // pred_check_branch
          %326 = sbr.rel (%p324) target = $region20
        $region19: #{fused_forward.1} parent=11 // pred_region
          %328 = vsyncadd [#allocation4], 0
          %s329 = sshll.u32 %s1, 4
          %s330 = int_to_ptr.hbm [resolvable:$true] %s329
          %s331 = sshll.u32 [#allocation3], 4
          %s332 = int_to_ptr.vmem [resolvable:$true] %s331
          %337 = dma.hbm_to_vmem [thread:$0]  %s330, 2048, %s332, [#allocation4], 128, 128, 8
        $region20: #{fused_forward.1} parent=11 // pred_fallthru
          _
        // Predicated region
        $region21: #{fused_forward.1} parent=11 // pred_check
          %p338 = pneg %p86
        $region22: #{fused_forward.1} parent=11 // pred_check_branch
          %340 = sbr.rel (%p338) target = $region24
        $region23: #{fused_forward.1} parent=11 // pred_region
          %342 = vsyncadd [#allocation6], 0
          %s343 = sshll.u32 %s2, 4
          %s344 = int_to_ptr.hbm [resolvable:$true] %s343
          %s345 = sshll.u32 [#allocation5], 4
          %s346 = int_to_ptr.vmem [resolvable:$true] %s345
          %351 = dma.hbm_to_vmem [thread:$0]  %s344, 8192, %s346, [#allocation6], 256, 256, 16
        $region24: #{fused_forward.1} parent=11 // pred_fallthru
          _
        // Predicated region
        $region25: #{fused_forward.1} parent=11 // pred_check
          %p352 = pneg %p107
        $region26: #{fused_forward.1} parent=11 // pred_check_branch
          %354 = sbr.rel (%p352) target = $region28
        $region27: #{fused_forward.1} parent=11 // pred_region
          %356 = vsyncadd [#allocation6], 0
          %s357 = sshll.u32 %s3, 4
          %s358 = int_to_ptr.hbm [resolvable:$true] %s357
          %s359 = sshll.u32 [#allocation7], 4
          %s360 = int_to_ptr.vmem [resolvable:$true] %s359
          %365 = dma.hbm_to_vmem [thread:$0]  %s358, 32768, %s360, [#allocation6], 512, 512, 32
        $region28: #{fused_forward.1} parent=11 // pred_fallthru
          _
        // Predicated region
        $region29: #{fused_forward.1} parent=11 // pred_check
          %p366 = pneg %p128
        $region30: #{fused_forward.1} parent=11 // pred_check_branch
          %368 = sbr.rel (%p366) target = $region32
        $region31: #{fused_forward.1} parent=11 // pred_region
          %370 = vsyncadd [#allocation9], 0
          %s371 = sshll.u32 %s4, 4
          %s372 = int_to_ptr.hbm [resolvable:$true] %s371
          %s373 = sshll.u32 [#allocation8], 4
          %s374 = int_to_ptr.vmem [resolvable:$true] %s373
          %379 = dma.hbm_to_vmem [thread:$0]  %s372, 32768, %s374, [#allocation9], 256, 256, 16
        $region32: #{fused_forward.1} parent=11 // pred_fallthru
          _
        // Predicated region
        $region33: #{fused_forward.1} parent=11 // pred_check
          %p380 = pneg %p149
        $region34: #{fused_forward.1} parent=11 // pred_check_branch
          %382 = sbr.rel (%p380) target = $region36
        $region35: #{fused_forward.1} parent=11 // pred_region
          %384 = vsyncadd [#allocation9], 0
          %s385 = sshll.u32 %s5, 4
          %s386 = int_to_ptr.hbm [resolvable:$true] %s385
          %s387 = sshll.u32 [#allocation10], 4
          %s388 = int_to_ptr.vmem [resolvable:$true] %s387
          %393 = dma.hbm_to_vmem [thread:$0]  %s386, 8192, %s388, [#allocation9], 128, 128, 8
        $region36: #{fused_forward.1} parent=11 // pred_fallthru
          _
        // Predicated region
        $region37: #{fused_forward.1} parent=11 // pred_check
          %p394 = pneg %p170
        $region38: #{fused_forward.1} parent=11 // pred_check_branch
          %396 = sbr.rel (%p394) target = $region40
        $region39: #{fused_forward.1} parent=11 // pred_region
          %398 = vsyncadd [#allocation12], 0
          %s399 = sshll.u32 %s6, 4
          %s400 = int_to_ptr.hbm [resolvable:$true] %s399
          %s401 = sshll.u32 [#allocation11], 4
          %s402 = int_to_ptr.vmem [resolvable:$true] %s401
          %407 = dma.hbm_to_vmem [thread:$0]  %s400, 2048, %s402, [#allocation12], 64, 64, 4
        $region40: #{fused_forward.1} parent=11 // pred_fallthru
          _
        // Predicated region
        $region41: #{fused_forward.1} parent=11 // pred_check
          %p408 = pneg %p191
        $region42: #{fused_forward.1} parent=11 // pred_check_branch
          %410 = sbr.rel (%p408) target = $region44
        $region43: #{fused_forward.1} parent=11 // pred_region
          %412 = vsyncadd [#allocation12], 0
          %s413 = sshll.u32 %s7, 4
          %s414 = int_to_ptr.hbm [resolvable:$true] %s413
          %s415 = sshll.u32 [#allocation13], 4
          %s416 = int_to_ptr.vmem [resolvable:$true] %s415
          %421 = dma.hbm_to_vmem [thread:$0]  %s414, 1024, %s416, [#allocation12], 64, 64, 4
        $region44: #{fused_forward.1} parent=11 // pred_fallthru
          _
        // Predicated region
        $region45: #{fused_forward.1} parent=11 // pred_check
          %p422 = pneg %p212
        $region46: #{fused_forward.1} parent=11 // pred_check_branch
          %424 = sbr.rel (%p422) target = $region48
        $region47: #{fused_forward.1} parent=11 // pred_region
          %426 = vsyncadd [#allocation15], 0
          %s427 = sshll.u32 %s8, 4
          %s428 = int_to_ptr.hbm [resolvable:$true] %s427
          %s429 = sshll.u32 [#allocation14], 4
          %s430 = int_to_ptr.vmem [resolvable:$true] %s429
          %435 = dma.hbm_to_vmem [thread:$0]  %s428, 1024, %s430, [#allocation15], 64, 64, 4
        $region48: #{fused_forward.1} parent=11 // pred_fallthru
          _
        // Predicated region
        $region49: #{fused_forward.1} parent=11 // pred_check
          %p436 = pneg %p285
        $region50: #{fused_forward.1} parent=11 // pred_check_branch
          %438 = sbr.rel (%p436) target = $region52
        $region51: #{fused_forward.1} parent=11 // pred_region
          %440 = vsyncadd [#allocation6], 0
          %s442 = sshll.u32 %s11, 4
          %s443 = int_to_ptr.hbm [resolvable:$true] %s442
          %s444 = sshll.u32 [#allocation18], 4
          %s445 = int_to_ptr.vmem [resolvable:$true] %s444
          %447 = dma.hbm_to_vmem [thread:$0]  %s443, 1024, %s445, [#allocation6]
        $region52: #{fused_forward.1} parent=11 // pred_fallthru
          _
      $region12: #{fused_forward.1} parent=5 // pred_fallthru
        _
      %p448 = scmp.lt.s32.totalorder %s23, 8
      // Predicated region
      $region53: #{fused_forward.1} parent=5 // pred_check
        %p449 = pneg %p448
      $region54: #{fused_forward.1} parent=5 // pred_check_branch
        %451 = sbr.rel (%p449) target = $region56
      $region55: #{fused_forward.1} parent=5 // pred_region
        // Predicated region
        $region57: #{fused_forward.1} parent=55 // pred_check
          %p452 = pneg %p232
        $region58: #{fused_forward.1} parent=55 // pred_check_branch
          %454 = sbr.rel (%p452) target = $region60
        $region59: #{fused_forward.1} parent=55 // pred_region
          %s455 = sand.u32 %s23, 1
          %s456 = scalar_lea.sflag [#allocation4], %s455
          %s457 = sand.u32 %s222, 1
          %s458 = smul.addr %s457, 4096
          %s459 = scalar_lea.vmem [#allocation16], %s458
          %461 = vsyncadd %s456, 0
          %s462 = smul.addr %s23, 1024
          %s463 = smul.addr %s462, 4
          %s464 = scalar_lea.hbm %s9, %s463
          %s465 = sshll.u32 %s464, 4
          %s466 = int_to_ptr.hbm [resolvable:$true] %s465
          %s467 = sshll.u32 %s459, 4
          %s468 = int_to_ptr.vmem [resolvable:$true] %s467
          %473 = dma.hbm_to_vmem [thread:$0]  %s466, 65536, %s468, %s456, 512, 512, 32
        $region60: #{fused_forward.1} parent=55 // pred_fallthru
          _
        // Predicated region
        $region61: #{fused_forward.1} parent=55 // pred_check
          %p474 = pneg %p258
        $region62: #{fused_forward.1} parent=55 // pred_check_branch
          %476 = sbr.rel (%p474) target = $region64
        $region63: #{fused_forward.1} parent=55 // pred_region
          %s477 = sand.u32 %s23, 1
          %s478 = scalar_lea.sflag [#allocation4], %s477
          %s479 = sand.u32 %s248, 1
          %s480 = smul.addr %s479, 8
          %s481 = scalar_lea.vmem [#allocation17], %s480
          %483 = vsyncadd %s478, 0
          %s484 = smul.addr %s23, 8
          %s485 = scalar_lea.hbm %s10, %s484
          %s487 = sshll.u32 %s485, 4
          %s488 = int_to_ptr.hbm [resolvable:$true] %s487
          %s489 = sshll.u32 %s481, 4
          %s490 = int_to_ptr.vmem [resolvable:$true] %s489
          %492 = dma.hbm_to_vmem [thread:$0]  %s488, 128, %s490, %s478
        $region64: #{fused_forward.1} parent=55 // pred_fallthru
          _
      $region56: #{fused_forward.1} parent=5 // pred_fallthru
        _
      %p493 = scmp.le.s32.totalorder 1, %s23
      %p494 = scmp.lt.s32.totalorder %s23, 9
      %p495 = pnand %p493, %p494
      %p496 = pneg %p495
      // Predicated region
      $region65: #{fused_forward.1} parent=5 // pred_check
        _
      $region66: #{fused_forward.1} parent=5 // pred_check_branch
        %498 = sbr.rel (%p495) target = $region68
      $region67: #{fused_forward.1} parent=5 // pred_region
        %s499 = ssub.s32 %s23, 1
        // Predicated region
        $region69: #{fused_forward.1} parent=67 // pred_check
          %p500 = pneg %p65
        $region70: #{fused_forward.1} parent=67 // pred_check_branch
          %502 = sbr.rel (%p500) target = $region72
        $region71: #{fused_forward.1} parent=67 // pred_region
          %504 = dma.done [#allocation4], 2048
        $region72: #{fused_forward.1} parent=67 // pred_fallthru
          _
        // Predicated region
        $region73: #{fused_forward.1} parent=67 // pred_check
          %p505 = pneg %p86
        $region74: #{fused_forward.1} parent=67 // pred_check_branch
          %507 = sbr.rel (%p505) target = $region76
        $region75: #{fused_forward.1} parent=67 // pred_region
          %509 = dma.done [#allocation6], 8192
        $region76: #{fused_forward.1} parent=67 // pred_fallthru
          _
        // Predicated region
        $region77: #{fused_forward.1} parent=67 // pred_check
          %p510 = pneg %p107
        $region78: #{fused_forward.1} parent=67 // pred_check_branch
          %512 = sbr.rel (%p510) target = $region80
        $region79: #{fused_forward.1} parent=67 // pred_region
          %514 = dma.done [#allocation6], 32768
        $region80: #{fused_forward.1} parent=67 // pred_fallthru
          _
        // Predicated region
        $region81: #{fused_forward.1} parent=67 // pred_check
          %p515 = pneg %p128
        $region82: #{fused_forward.1} parent=67 // pred_check_branch
          %517 = sbr.rel (%p515) target = $region84
        $region83: #{fused_forward.1} parent=67 // pred_region
          %519 = dma.done [#allocation9], 32768
        $region84: #{fused_forward.1} parent=67 // pred_fallthru
          _
        // Predicated region
        $region85: #{fused_forward.1} parent=67 // pred_check
          %p520 = pneg %p149
        $region86: #{fused_forward.1} parent=67 // pred_check_branch
          %522 = sbr.rel (%p520) target = $region88
        $region87: #{fused_forward.1} parent=67 // pred_region
          %524 = dma.done [#allocation9], 8192
        $region88: #{fused_forward.1} parent=67 // pred_fallthru
          _
        // Predicated region
        $region89: #{fused_forward.1} parent=67 // pred_check
          %p525 = pneg %p170
        $region90: #{fused_forward.1} parent=67 // pred_check_branch
          %527 = sbr.rel (%p525) target = $region92
        $region91: #{fused_forward.1} parent=67 // pred_region
          %529 = dma.done [#allocation12], 2048
        $region92: #{fused_forward.1} parent=67 // pred_fallthru
          _
        // Predicated region
        $region93: #{fused_forward.1} parent=67 // pred_check
          %p530 = pneg %p191
        $region94: #{fused_forward.1} parent=67 // pred_check_branch
          %532 = sbr.rel (%p530) target = $region96
        $region95: #{fused_forward.1} parent=67 // pred_region
          %534 = dma.done [#allocation12], 1024
        $region96: #{fused_forward.1} parent=67 // pred_fallthru
          _
        // Predicated region
        $region97: #{fused_forward.1} parent=67 // pred_check
          %p535 = pneg %p212
        $region98: #{fused_forward.1} parent=67 // pred_check_branch
          %537 = sbr.rel (%p535) target = $region100
        $region99: #{fused_forward.1} parent=67 // pred_region
          %539 = dma.done [#allocation15], 1024
        $region100: #{fused_forward.1} parent=67 // pred_fallthru
          _
        %s540 = sand.u32 %s28, 1
        %s541 = scalar_lea.sflag [#allocation4], %s540
        %s542 = sand.u32 %s225, 1
        %s543 = smul.addr %s542, 4096
        %s544 = scalar_lea.vmem [#allocation16], %s543
        // Predicated region
        $region101: #{fused_forward.1} parent=67 // pred_check
          %p545 = pneg %p238
        $region102: #{fused_forward.1} parent=67 // pred_check_branch
          %547 = sbr.rel (%p545) target = $region104
        $region103: #{fused_forward.1} parent=67 // pred_region
          %549 = dma.done %s541, 65536
        $region104: #{fused_forward.1} parent=67 // pred_fallthru
          _
        %s550 = sand.u32 %s28, 1
        %s551 = scalar_lea.sflag [#allocation4], %s550
        %s552 = sand.u32 %s251, 1
        %s553 = smul.addr %s552, 8
        %s554 = scalar_lea.vmem [#allocation17], %s553
        // Predicated region
        $region105: #{fused_forward.1} parent=67 // pred_check
          %p555 = pneg %p264
        $region106: #{fused_forward.1} parent=67 // pred_check_branch
          %557 = sbr.rel (%p555) target = $region108
        $region107: #{fused_forward.1} parent=67 // pred_region
          %559 = dma.done %s551, 128
        $region108: #{fused_forward.1} parent=67 // pred_fallthru
          _
        // Predicated region
        $region109: #{fused_forward.1} parent=67 // pred_check
          %p560 = pneg %p285
        $region110: #{fused_forward.1} parent=67 // pred_check_branch
          %562 = sbr.rel (%p560) target = $region112
        $region111: #{fused_forward.1} parent=67 // pred_region
          %564 = dma.done [#allocation6], 1024
        $region112: #{fused_forward.1} parent=67 // pred_fallthru
          _
        %p565 = pneg %p44
        %p566 = pneg %p41
        %p567 = pneg %p65
        %p568 = pneg %p62
        %p569 = pneg %p86
        %p570 = pneg %p83
        %p571 = pneg %p107
        %p572 = pneg %p104
        %p573 = pneg %p128
        %p574 = pneg %p125
        %p575 = pneg %p149
        %p576 = pneg %p146
        %p577 = pneg %p170
        %p578 = pneg %p167
        %p579 = pneg %p191
        %p580 = pneg %p188
        %p581 = pneg %p212
        %p582 = pneg %p209
        %s583 = sand.u32 %s28, 1
        %s584 = scalar_lea.sflag [#allocation4], %s583
        %s585 = sand.u32 %s225, 1
        %s586 = smul.addr %s585, 4096
        %s587 = scalar_lea.vmem [#allocation16], %s586
        %p588 = pneg %p238
        %p589 = pneg %p235
        %s590 = sand.u32 %s28, 1
        %s591 = scalar_lea.sflag [#allocation4], %s590
        %s592 = sand.u32 %s251, 1
        %s593 = smul.addr %s592, 8
        %s594 = scalar_lea.vmem [#allocation17], %s593
        %p595 = pneg %p264
        %p596 = pneg %p261
        %p597 = pneg %p285
        %p598 = pneg %p282
        %p599 = pneg %p306
        %p600 = pneg %p303
        %p601 = scmp.eq.s32.totalorder %s28, 0
        // Predicated region
        $region113: #{fused_forward.1} parent=67 // pred_check
          %p602 = pneg %p601
        $region114: #{fused_forward.1} parent=67 // pred_check_branch
          %604 = sbr.rel (%p602) target = $region116
        $region115: #{fused_forward.1} parent=67 // pred_region
          %v605 = vld [vmem:[%s0] sm:$0xff]
          %v606 = vld [vmem:[#allocation3] sm:$0xff]
          %v607 = vld [vmem:[#allocation3 + $0x8] sm:$0xff]
          %v608 = vld [vmem:[#allocation3 + $0x10] sm:$0xff]
          %v609 = vld [vmem:[#allocation3 + $0x18] sm:$0xff]
          %v610 = vld [vmem:[#allocation3 + $0x20] sm:$0xff]
          %v611 = vld [vmem:[#allocation3 + $0x28] sm:$0xff]
          %v612 = vld [vmem:[#allocation3 + $0x30] sm:$0xff]
          %v613 = vld [vmem:[#allocation3 + $0x38] sm:$0xff]
          %v614 = vld [vmem:[#allocation3 + $0x40] sm:$0xff]
          %v615 = vld [vmem:[#allocation3 + $0x48] sm:$0xff]
          %v616 = vld [vmem:[#allocation3 + $0x50] sm:$0xff]
          %v617 = vld [vmem:[#allocation3 + $0x58] sm:$0xff]
          %v618 = vld [vmem:[#allocation3 + $0x60] sm:$0xff]
          %v619 = vld [vmem:[#allocation3 + $0x68] sm:$0xff]
          %v620 = vld [vmem:[#allocation3 + $0x70] sm:$0xff]
          %v621 = vld [vmem:[#allocation3 + $0x78] sm:$0xff]
          %v622 = vpack.c.bf16 %v605, %v605
          %v623 = vld [vmem:[#allocation18] ss:$8 sm:$0x3]
          %v625 = vperm.slane %v623, 0
          %v626 = vperm.slane %v623, 1
          %v645 = vunpack.c.l.b16 %v606
          %v646 = vunpack.c.h.b16 %v606
          %v647 = vunpack.c.l.b16 %v607
          %v648 = vunpack.c.h.b16 %v607
          %v649 = vunpack.c.l.b16 %v608
          %v650 = vunpack.c.h.b16 %v608
          %v651 = vunpack.c.l.b16 %v609
          %v652 = vunpack.c.h.b16 %v609
          %v653 = vunpack.c.l.b16 %v610
          %v654 = vunpack.c.h.b16 %v610
          %v655 = vunpack.c.l.b16 %v611
          %v656 = vunpack.c.h.b16 %v611
          %v657 = vunpack.c.l.b16 %v612
          %v658 = vunpack.c.h.b16 %v612
          %v659 = vunpack.c.l.b16 %v613
          %v660 = vunpack.c.h.b16 %v613
          %v661 = vunpack.c.l.b16 %v614
          %v662 = vunpack.c.h.b16 %v614
          %v663 = vunpack.c.l.b16 %v615
          %v664 = vunpack.c.h.b16 %v615
          %v665 = vunpack.c.l.b16 %v616
          %v666 = vunpack.c.h.b16 %v616
          %v667 = vunpack.c.l.b16 %v617
          %v668 = vunpack.c.h.b16 %v617
          %v669 = vunpack.c.l.b16 %v618
          %v670 = vunpack.c.h.b16 %v618
          %v671 = vunpack.c.l.b16 %v619
          %v672 = vunpack.c.h.b16 %v619
          %v673 = vunpack.c.l.b16 %v620
          %v674 = vunpack.c.h.b16 %v620
          %v675 = vunpack.c.l.b16 %v621
          %v676 = vunpack.c.h.b16 %v621
          %v677 = vpack.c.b16 %v647, %v645
          %v678 = vpack.c.b16 %v648, %v646
          %v679 = vpack.c.b16 %v651, %v649
          %v680 = vpack.c.b16 %v652, %v650
          %v681 = vpack.c.b16 %v655, %v653
          %v682 = vpack.c.b16 %v656, %v654
          %v683 = vpack.c.b16 %v659, %v657
          %v684 = vpack.c.b16 %v660, %v658
          %v685 = vpack.c.b16 %v663, %v661
          %v686 = vpack.c.b16 %v664, %v662
          %v687 = vpack.c.b16 %v667, %v665
          %v688 = vpack.c.b16 %v668, %v666
          %v689 = vpack.c.b16 %v671, %v669
          %v690 = vpack.c.b16 %v672, %v670
          %v691 = vpack.c.b16 %v675, %v673
          %v692 = vpack.c.b16 %v676, %v674
          %709 = vmatpush.bf16.msra.mxu0 %v691
          %710 = vmatpush.bf16.msra.mxu0 %v689
          %711 = vmatpush.bf16.msra.mxu0 %v687
          %712 = vmatpush.bf16.msra.mxu0 %v685
          %713 = vmatpush.bf16.msra.mxu0 %v683
          %714 = vmatpush.bf16.msra.mxu0 %v681
          %715 = vmatpush.bf16.msra.mxu0 %v679
          %716 = vmatpush.bf16.msra.mxu0 %v677
          %717 = vmatmul.bf16.gmra.mxu0 %v622
          %v718 = vpop.f32.mrf.mxu0
          %v719 = vadd.f32 %v625, %v718
          %v720 = vpop.f32.mrf.mxu0
          %721 = vdwg.mxu0
          %722 = vmatpush.bf16.msra.mxu0 %v692
          %723 = vmatpush.bf16.msra.mxu0 %v690
          %724 = vmatpush.bf16.msra.mxu0 %v688
          %725 = vmatpush.bf16.msra.mxu0 %v686
          %726 = vmatpush.bf16.msra.mxu0 %v684
          %727 = vmatpush.bf16.msra.mxu0 %v682
          %728 = vmatpush.bf16.msra.mxu0 %v680
          %729 = vmatpush.bf16.msra.mxu0 %v678
          %730 = vmatmul.bf16.gmra.mxu0 %v622
          %v731 = vpop.f32.mrf.mxu0
          %v732 = vadd.f32 %v626, %v731
          %v733 = vpop.f32.mrf.mxu0
          %734 = vdwg.mxu0
          %v735 = vmax.f32 %v719, 0.0
          %v736 = vmax.f32 %v732, 0.0
          %v737 = vld [vmem:[#allocation5] sm:$0xff]
          %v738 = vld [vmem:[#allocation5 + $0x8] sm:$0xff]
          %v739 = vld [vmem:[#allocation5 + $0x10] sm:$0xff]
          %v740 = vld [vmem:[#allocation5 + $0x18] sm:$0xff]
          %v741 = vld [vmem:[#allocation5 + $0x20] sm:$0xff]
          %v742 = vld [vmem:[#allocation5 + $0x28] sm:$0xff]
          %v743 = vld [vmem:[#allocation5 + $0x30] sm:$0xff]
          %v744 = vld [vmem:[#allocation5 + $0x38] sm:$0xff]
          %v745 = vld [vmem:[#allocation5 + $0x40] sm:$0xff]
          %v746 = vld [vmem:[#allocation5 + $0x48] sm:$0xff]
          %v747 = vld [vmem:[#allocation5 + $0x50] sm:$0xff]
          %v748 = vld [vmem:[#allocation5 + $0x58] sm:$0xff]
          %v749 = vld [vmem:[#allocation5 + $0x60] sm:$0xff]
          %v750 = vld [vmem:[#allocation5 + $0x68] sm:$0xff]
          %v751 = vld [vmem:[#allocation5 + $0x70] sm:$0xff]
          %v752 = vld [vmem:[#allocation5 + $0x78] sm:$0xff]
          %v753 = vld [vmem:[#allocation5 + $0x80] sm:$0xff]
          %v754 = vld [vmem:[#allocation5 + $0x88] sm:$0xff]
          %v755 = vld [vmem:[#allocation5 + $0x90] sm:$0xff]
          %v756 = vld [vmem:[#allocation5 + $0x98] sm:$0xff]
          %v757 = vld [vmem:[#allocation5 + $0xa0] sm:$0xff]
          %v758 = vld [vmem:[#allocation5 + $0xa8] sm:$0xff]
          %v759 = vld [vmem:[#allocation5 + $0xb0] sm:$0xff]
          %v760 = vld [vmem:[#allocation5 + $0xb8] sm:$0xff]
          %v761 = vld [vmem:[#allocation5 + $0xc0] sm:$0xff]
          %v762 = vld [vmem:[#allocation5 + $0xc8] sm:$0xff]
          %v763 = vld [vmem:[#allocation5 + $0xd0] sm:$0xff]
          %v764 = vld [vmem:[#allocation5 + $0xd8] sm:$0xff]
          %v765 = vld [vmem:[#allocation5 + $0xe0] sm:$0xff]
          %v766 = vld [vmem:[#allocation5 + $0xe8] sm:$0xff]
          %v767 = vld [vmem:[#allocation5 + $0xf0] sm:$0xff]
          %v768 = vld [vmem:[#allocation5 + $0xf8] sm:$0xff]
          %v769 = vld [vmem:[#allocation5 + $0x100] sm:$0xff]
          %v770 = vld [vmem:[#allocation5 + $0x108] sm:$0xff]
          %v771 = vld [vmem:[#allocation5 + $0x110] sm:$0xff]
          %v772 = vld [vmem:[#allocation5 + $0x118] sm:$0xff]
          %v773 = vld [vmem:[#allocation5 + $0x120] sm:$0xff]
          %v774 = vld [vmem:[#allocation5 + $0x128] sm:$0xff]
          %v775 = vld [vmem:[#allocation5 + $0x130] sm:$0xff]
          %v776 = vld [vmem:[#allocation5 + $0x138] sm:$0xff]
          %v777 = vld [vmem:[#allocation5 + $0x140] sm:$0xff]
          %v778 = vld [vmem:[#allocation5 + $0x148] sm:$0xff]
          %v779 = vld [vmem:[#allocation5 + $0x150] sm:$0xff]
          %v780 = vld [vmem:[#allocation5 + $0x158] sm:$0xff]
          %v781 = vld [vmem:[#allocation5 + $0x160] sm:$0xff]
          %v782 = vld [vmem:[#allocation5 + $0x168] sm:$0xff]
          %v783 = vld [vmem:[#allocation5 + $0x170] sm:$0xff]
          %v784 = vld [vmem:[#allocation5 + $0x178] sm:$0xff]
          %v785 = vld [vmem:[#allocation5 + $0x180] sm:$0xff]
          %v786 = vld [vmem:[#allocation5 + $0x188] sm:$0xff]
          %v787 = vld [vmem:[#allocation5 + $0x190] sm:$0xff]
          %v788 = vld [vmem:[#allocation5 + $0x198] sm:$0xff]
          %v789 = vld [vmem:[#allocation5 + $0x1a0] sm:$0xff]
          %v790 = vld [vmem:[#allocation5 + $0x1a8] sm:$0xff]
          %v791 = vld [vmem:[#allocation5 + $0x1b0] sm:$0xff]
          %v792 = vld [vmem:[#allocation5 + $0x1b8] sm:$0xff]
          %v793 = vld [vmem:[#allocation5 + $0x1c0] sm:$0xff]
          %v794 = vld [vmem:[#allocation5 + $0x1c8] sm:$0xff]
          %v795 = vld [vmem:[#allocation5 + $0x1d0] sm:$0xff]
          %v796 = vld [vmem:[#allocation5 + $0x1d8] sm:$0xff]
          %v797 = vld [vmem:[#allocation5 + $0x1e0] sm:$0xff]
          %v798 = vld [vmem:[#allocation5 + $0x1e8] sm:$0xff]
          %v799 = vld [vmem:[#allocation5 + $0x1f0] sm:$0xff]
          %v800 = vld [vmem:[#allocation5 + $0x1f8] sm:$0xff]
          %v801 = vpack.c.bf16 %v735, %v735
          %v802 = vpack.c.bf16 %v736, %v736
          %s803 = scalar_lea.vmem [#allocation18], 1
          %v804 = vld [vmem:[%s803] ss:$8 sm:$0xf]
          %v806 = vperm.slane %v804, 0
          %v807 = vperm.slane %v804, 1
          %v808 = vperm.slane %v804, 2
          %v809 = vperm.slane %v804, 3
          %v878 = vunpack.c.l.b16 %v737
          %v879 = vunpack.c.h.b16 %v737
          %v880 = vunpack.c.l.b16 %v738
          %v881 = vunpack.c.h.b16 %v738
          %v882 = vunpack.c.l.b16 %v739
          %v883 = vunpack.c.h.b16 %v739
          %v884 = vunpack.c.l.b16 %v740
          %v885 = vunpack.c.h.b16 %v740
          %v886 = vunpack.c.l.b16 %v741
          %v887 = vunpack.c.h.b16 %v741
          %v888 = vunpack.c.l.b16 %v742
          %v889 = vunpack.c.h.b16 %v742
          %v890 = vunpack.c.l.b16 %v743
          %v891 = vunpack.c.h.b16 %v743
          %v892 = vunpack.c.l.b16 %v744
          %v893 = vunpack.c.h.b16 %v744
          %v894 = vunpack.c.l.b16 %v745
          %v895 = vunpack.c.h.b16 %v745
          %v896 = vunpack.c.l.b16 %v746
          %v897 = vunpack.c.h.b16 %v746
          %v898 = vunpack.c.l.b16 %v747
          %v899 = vunpack.c.h.b16 %v747
          %v900 = vunpack.c.l.b16 %v748
          %v901 = vunpack.c.h.b16 %v748
          %v902 = vunpack.c.l.b16 %v749
          %v903 = vunpack.c.h.b16 %v749
          %v904 = vunpack.c.l.b16 %v750
          %v905 = vunpack.c.h.b16 %v750
          %v906 = vunpack.c.l.b16 %v751
          %v907 = vunpack.c.h.b16 %v751
          %v908 = vunpack.c.l.b16 %v752
          %v909 = vunpack.c.h.b16 %v752
          %v910 = vunpack.c.l.b16 %v753
          %v911 = vunpack.c.h.b16 %v753
          %v912 = vunpack.c.l.b16 %v754
          %v913 = vunpack.c.h.b16 %v754
          %v914 = vunpack.c.l.b16 %v755
          %v915 = vunpack.c.h.b16 %v755
          %v916 = vunpack.c.l.b16 %v756
          %v917 = vunpack.c.h.b16 %v756
          %v918 = vunpack.c.l.b16 %v757
          %v919 = vunpack.c.h.b16 %v757
          %v920 = vunpack.c.l.b16 %v758
          %v921 = vunpack.c.h.b16 %v758
          %v922 = vunpack.c.l.b16 %v759
          %v923 = vunpack.c.h.b16 %v759
          %v924 = vunpack.c.l.b16 %v760
          %v925 = vunpack.c.h.b16 %v760
          %v926 = vunpack.c.l.b16 %v761
          %v927 = vunpack.c.h.b16 %v761
          %v928 = vunpack.c.l.b16 %v762
          %v929 = vunpack.c.h.b16 %v762
          %v930 = vunpack.c.l.b16 %v763
          %v931 = vunpack.c.h.b16 %v763
          %v932 = vunpack.c.l.b16 %v764
          %v933 = vunpack.c.h.b16 %v764
          %v934 = vunpack.c.l.b16 %v765
          %v935 = vunpack.c.h.b16 %v765
          %v936 = vunpack.c.l.b16 %v766
          %v937 = vunpack.c.h.b16 %v766
          %v938 = vunpack.c.l.b16 %v767
          %v939 = vunpack.c.h.b16 %v767
          %v940 = vunpack.c.l.b16 %v768
          %v941 = vunpack.c.h.b16 %v768
          %v942 = vunpack.c.l.b16 %v769
          %v943 = vunpack.c.h.b16 %v769
          %v944 = vunpack.c.l.b16 %v770
          %v945 = vunpack.c.h.b16 %v770
          %v946 = vunpack.c.l.b16 %v771
          %v947 = vunpack.c.h.b16 %v771
          %v948 = vunpack.c.l.b16 %v772
          %v949 = vunpack.c.h.b16 %v772
          %v950 = vunpack.c.l.b16 %v773
          %v951 = vunpack.c.h.b16 %v773
          %v952 = vunpack.c.l.b16 %v774
          %v953 = vunpack.c.h.b16 %v774
          %v954 = vunpack.c.l.b16 %v775
          %v955 = vunpack.c.h.b16 %v775
          %v956 = vunpack.c.l.b16 %v776
          %v957 = vunpack.c.h.b16 %v776
          %v958 = vunpack.c.l.b16 %v777
          %v959 = vunpack.c.h.b16 %v777
          %v960 = vunpack.c.l.b16 %v778
          %v961 = vunpack.c.h.b16 %v778
          %v962 = vunpack.c.l.b16 %v779
          %v963 = vunpack.c.h.b16 %v779
          %v964 = vunpack.c.l.b16 %v780
          %v965 = vunpack.c.h.b16 %v780
          %v966 = vunpack.c.l.b16 %v781
          %v967 = vunpack.c.h.b16 %v781
          %v968 = vunpack.c.l.b16 %v782
          %v969 = vunpack.c.h.b16 %v782
          %v970 = vunpack.c.l.b16 %v783
          %v971 = vunpack.c.h.b16 %v783
          %v972 = vunpack.c.l.b16 %v784
          %v973 = vunpack.c.h.b16 %v784
          %v974 = vunpack.c.l.b16 %v785
          %v975 = vunpack.c.h.b16 %v785
          %v976 = vunpack.c.l.b16 %v786
          %v977 = vunpack.c.h.b16 %v786
          %v978 = vunpack.c.l.b16 %v787
          %v979 = vunpack.c.h.b16 %v787
          %v980 = vunpack.c.l.b16 %v788
          %v981 = vunpack.c.h.b16 %v788
          %v982 = vunpack.c.l.b16 %v789
          %v983 = vunpack.c.h.b16 %v789
          %v984 = vunpack.c.l.b16 %v790
          %v985 = vunpack.c.h.b16 %v790
          %v986 = vunpack.c.l.b16 %v791
          %v987 = vunpack.c.h.b16 %v791
          %v988 = vunpack.c.l.b16 %v792
          %v989 = vunpack.c.h.b16 %v792
          %v990 = vunpack.c.l.b16 %v793
          %v991 = vunpack.c.h.b16 %v793
          %v992 = vunpack.c.l.b16 %v794
          %v993 = vunpack.c.h.b16 %v794
          %v994 = vunpack.c.l.b16 %v795
          %v995 = vunpack.c.h.b16 %v795
          %v996 = vunpack.c.l.b16 %v796
          %v997 = vunpack.c.h.b16 %v796
          %v998 = vunpack.c.l.b16 %v797
          %v999 = vunpack.c.h.b16 %v797
          %v1000 = vunpack.c.l.b16 %v798
          %v1001 = vunpack.c.h.b16 %v798
          %v1002 = vunpack.c.l.b16 %v799
          %v1003 = vunpack.c.h.b16 %v799
          %v1004 = vunpack.c.l.b16 %v800
          %v1005 = vunpack.c.h.b16 %v800
          %v1006 = vpack.c.b16 %v882, %v878
          %v1007 = vpack.c.b16 %v883, %v879
          %v1008 = vpack.c.b16 %v884, %v880
          %v1009 = vpack.c.b16 %v885, %v881
          %v1010 = vpack.c.b16 %v890, %v886
          %v1011 = vpack.c.b16 %v891, %v887
          %v1012 = vpack.c.b16 %v892, %v888
          %v1013 = vpack.c.b16 %v893, %v889
          %v1014 = vpack.c.b16 %v898, %v894
          %v1015 = vpack.c.b16 %v899, %v895
          %v1016 = vpack.c.b16 %v900, %v896
          %v1017 = vpack.c.b16 %v901, %v897
          %v1018 = vpack.c.b16 %v906, %v902
          %v1019 = vpack.c.b16 %v907, %v903
          %v1020 = vpack.c.b16 %v908, %v904
          %v1021 = vpack.c.b16 %v909, %v905
          %v1022 = vpack.c.b16 %v914, %v910
          %v1023 = vpack.c.b16 %v915, %v911
          %v1024 = vpack.c.b16 %v916, %v912
          %v1025 = vpack.c.b16 %v917, %v913
          %v1026 = vpack.c.b16 %v922, %v918
          %v1027 = vpack.c.b16 %v923, %v919
          %v1028 = vpack.c.b16 %v924, %v920
          %v1029 = vpack.c.b16 %v925, %v921
          %v1030 = vpack.c.b16 %v930, %v926
          %v1031 = vpack.c.b16 %v931, %v927
          %v1032 = vpack.c.b16 %v932, %v928
          %v1033 = vpack.c.b16 %v933, %v929
          %v1034 = vpack.c.b16 %v938, %v934
          %v1035 = vpack.c.b16 %v939, %v935
          %v1036 = vpack.c.b16 %v940, %v936
          %v1037 = vpack.c.b16 %v941, %v937
          %v1038 = vpack.c.b16 %v946, %v942
          %v1039 = vpack.c.b16 %v947, %v943
          %v1040 = vpack.c.b16 %v948, %v944
          %v1041 = vpack.c.b16 %v949, %v945
          %v1042 = vpack.c.b16 %v954, %v950
          %v1043 = vpack.c.b16 %v955, %v951
          %v1044 = vpack.c.b16 %v956, %v952
          %v1045 = vpack.c.b16 %v957, %v953
          %v1046 = vpack.c.b16 %v962, %v958
          %v1047 = vpack.c.b16 %v963, %v959
          %v1048 = vpack.c.b16 %v964, %v960
          %v1049 = vpack.c.b16 %v965, %v961
          %v1050 = vpack.c.b16 %v970, %v966
          %v1051 = vpack.c.b16 %v971, %v967
          %v1052 = vpack.c.b16 %v972, %v968
          %v1053 = vpack.c.b16 %v973, %v969
          %v1054 = vpack.c.b16 %v978, %v974
          %v1055 = vpack.c.b16 %v979, %v975
          %v1056 = vpack.c.b16 %v980, %v976
          %v1057 = vpack.c.b16 %v981, %v977
          %v1058 = vpack.c.b16 %v986, %v982
          %v1059 = vpack.c.b16 %v987, %v983
          %v1060 = vpack.c.b16 %v988, %v984
          %v1061 = vpack.c.b16 %v989, %v985
          %v1062 = vpack.c.b16 %v994, %v990
          %v1063 = vpack.c.b16 %v995, %v991
          %v1064 = vpack.c.b16 %v996, %v992
          %v1065 = vpack.c.b16 %v997, %v993
          %v1066 = vpack.c.b16 %v1002, %v998
          %v1067 = vpack.c.b16 %v1003, %v999
          %v1068 = vpack.c.b16 %v1004, %v1000
          %v1069 = vpack.c.b16 %v1005, %v1001
          %1134 = vmatpush.bf16.msra.mxu0 %v1034
          %1135 = vmatpush.bf16.msra.mxu0 %v1030
          %1136 = vmatpush.bf16.msra.mxu0 %v1026
          %1137 = vmatpush.bf16.msra.mxu0 %v1022
          %1138 = vmatpush.bf16.msra.mxu0 %v1018
          %1139 = vmatpush.bf16.msra.mxu0 %v1014
          %1140 = vmatpush.bf16.msra.mxu0 %v1010
          %1141 = vmatpush.bf16.msra.mxu0 %v1006
          %1142 = vmatmul.bf16.gmra.mxu0 %v801
          %v1143 = vpop.f32.mrf.mxu0
          %v1144 = vadd.f32 %v806, %v1143
          %v1145 = vpop.f32.mrf.mxu0
          %1146 = vdwg.mxu0
          %1147 = vmatpush.bf16.msra.mxu0 %v1066
          %1148 = vmatpush.bf16.msra.mxu0 %v1062
          %1149 = vmatpush.bf16.msra.mxu0 %v1058
          %1150 = vmatpush.bf16.msra.mxu0 %v1054
          %1151 = vmatpush.bf16.msra.mxu0 %v1050
          %1152 = vmatpush.bf16.msra.mxu0 %v1046
          %1153 = vmatpush.bf16.msra.mxu0 %v1042
          %1154 = vmatpush.bf16.msra.mxu0 %v1038
          %1155 = vmatmul.bf16.gmra.mxu0 %v802
          %v1156 = vpop.f32.mrf.mxu0
          %v1157 = vadd.f32 %v1144, %v1156
          %v1158 = vpop.f32.mrf.mxu0
          %1159 = vdwg.mxu0
          %1160 = vmatpush.bf16.msra.mxu0 %v1035
          %1161 = vmatpush.bf16.msra.mxu0 %v1031
          %1162 = vmatpush.bf16.msra.mxu0 %v1027
          %1163 = vmatpush.bf16.msra.mxu0 %v1023
          %1164 = vmatpush.bf16.msra.mxu0 %v1019
          %1165 = vmatpush.bf16.msra.mxu0 %v1015
          %1166 = vmatpush.bf16.msra.mxu0 %v1011
          %1167 = vmatpush.bf16.msra.mxu0 %v1007
          %1168 = vmatmul.bf16.gmra.mxu0 %v801
          %v1169 = vpop.f32.mrf.mxu0
          %v1170 = vadd.f32 %v807, %v1169
          %v1171 = vpop.f32.mrf.mxu0
          %1172 = vdwg.mxu0
          %1173 = vmatpush.bf16.msra.mxu0 %v1067
          %1174 = vmatpush.bf16.msra.mxu0 %v1063
          %1175 = vmatpush.bf16.msra.mxu0 %v1059
          %1176 = vmatpush.bf16.msra.mxu0 %v1055
          %1177 = vmatpush.bf16.msra.mxu0 %v1051
          %1178 = vmatpush.bf16.msra.mxu0 %v1047
          %1179 = vmatpush.bf16.msra.mxu0 %v1043
          %1180 = vmatpush.bf16.msra.mxu0 %v1039
          %1181 = vmatmul.bf16.gmra.mxu0 %v802
          %v1182 = vpop.f32.mrf.mxu0
          %v1183 = vadd.f32 %v1170, %v1182
          %v1184 = vpop.f32.mrf.mxu0
          %1185 = vdwg.mxu0
          %1186 = vmatpush.bf16.msra.mxu0 %v1036
          %1187 = vmatpush.bf16.msra.mxu0 %v1032
          %1188 = vmatpush.bf16.msra.mxu0 %v1028
          %1189 = vmatpush.bf16.msra.mxu0 %v1024
          %1190 = vmatpush.bf16.msra.mxu0 %v1020
          %1191 = vmatpush.bf16.msra.mxu0 %v1016
          %1192 = vmatpush.bf16.msra.mxu0 %v1012
          %1193 = vmatpush.bf16.msra.mxu0 %v1008
          %1194 = vmatmul.bf16.gmra.mxu0 %v801
          %v1195 = vpop.f32.mrf.mxu0
          %v1196 = vadd.f32 %v808, %v1195
          %v1197 = vpop.f32.mrf.mxu0
          %1198 = vdwg.mxu0
          %1199 = vmatpush.bf16.msra.mxu0 %v1068
          %1200 = vmatpush.bf16.msra.mxu0 %v1064
          %1201 = vmatpush.bf16.msra.mxu0 %v1060
          %1202 = vmatpush.bf16.msra.mxu0 %v1056
          %1203 = vmatpush.bf16.msra.mxu0 %v1052
          %1204 = vmatpush.bf16.msra.mxu0 %v1048
          %1205 = vmatpush.bf16.msra.mxu0 %v1044
          %1206 = vmatpush.bf16.msra.mxu0 %v1040
          %1207 = vmatmul.bf16.gmra.mxu0 %v802
          %v1208 = vpop.f32.mrf.mxu0
          %v1209 = vadd.f32 %v1196, %v1208
          %v1210 = vpop.f32.mrf.mxu0
          %1211 = vdwg.mxu0
          %1212 = vmatpush.bf16.msra.mxu0 %v1037
          %1213 = vmatpush.bf16.msra.mxu0 %v1033
          %1214 = vmatpush.bf16.msra.mxu0 %v1029
          %1215 = vmatpush.bf16.msra.mxu0 %v1025
          %1216 = vmatpush.bf16.msra.mxu0 %v1021
          %1217 = vmatpush.bf16.msra.mxu0 %v1017
          %1218 = vmatpush.bf16.msra.mxu0 %v1013
          %1219 = vmatpush.bf16.msra.mxu0 %v1009
          %1220 = vmatmul.bf16.gmra.mxu0 %v801
          %v1221 = vpop.f32.mrf.mxu0
          %v1222 = vadd.f32 %v809, %v1221
          %v1223 = vpop.f32.mrf.mxu0
          %1224 = vdwg.mxu0
          %1225 = vmatpush.bf16.msra.mxu0 %v1069
          %1226 = vmatpush.bf16.msra.mxu0 %v1065
          %1227 = vmatpush.bf16.msra.mxu0 %v1061
          %1228 = vmatpush.bf16.msra.mxu0 %v1057
          %1229 = vmatpush.bf16.msra.mxu0 %v1053
          %1230 = vmatpush.bf16.msra.mxu0 %v1049
          %1231 = vmatpush.bf16.msra.mxu0 %v1045
          %1232 = vmatpush.bf16.msra.mxu0 %v1041
          %1233 = vmatmul.bf16.gmra.mxu0 %v802
          %v1234 = vpop.f32.mrf.mxu0
          %v1235 = vadd.f32 %v1222, %v1234
          %v1236 = vpop.f32.mrf.mxu0
          %1237 = vdwg.mxu0
          %v1238 = vmax.f32 %v1157, 0.0
          %v1239 = vmax.f32 %v1183, 0.0
          %v1240 = vmax.f32 %v1209, 0.0
          %v1241 = vmax.f32 %v1235, 0.0
          %v1242 = vld [vmem:[#allocation7] sm:$0xff]
          %v1243 = vld [vmem:[#allocation7 + $0x8] sm:$0xff]
          %v1244 = vld [vmem:[#allocation7 + $0x10] sm:$0xff]
          %v1245 = vld [vmem:[#allocation7 + $0x18] sm:$0xff]
          %v1246 = vld [vmem:[#allocation7 + $0x20] sm:$0xff]
          %v1247 = vld [vmem:[#allocation7 + $0x28] sm:$0xff]
          %v1248 = vld [vmem:[#allocation7 + $0x30] sm:$0xff]
          %v1249 = vld [vmem:[#allocation7 + $0x38] sm:$0xff]
          %v1250 = vld [vmem:[#allocation7 + $0x40] sm:$0xff]
          %v1251 = vld [vmem:[#allocation7 + $0x48] sm:$0xff]
          %v1252 = vld [vmem:[#allocation7 + $0x50] sm:$0xff]
          %v1253 = vld [vmem:[#allocation7 + $0x58] sm:$0xff]
          %v1254 = vld [vmem:[#allocation7 + $0x60] sm:$0xff]
          %v1255 = vld [vmem:[#allocation7 + $0x68] sm:$0xff]
          %v1256 = vld [vmem:[#allocation7 + $0x70] sm:$0xff]
          %v1257 = vld [vmem:[#allocation7 + $0x78] sm:$0xff]
          %v1258 = vld [vmem:[#allocation7 + $0x80] sm:$0xff]
          %v1259 = vld [vmem:[#allocation7 + $0x88] sm:$0xff]
          %v1260 = vld [vmem:[#allocation7 + $0x90] sm:$0xff]
          %v1261 = vld [vmem:[#allocation7 + $0x98] sm:$0xff]
          %v1262 = vld [vmem:[#allocation7 + $0xa0] sm:$0xff]
          %v1263 = vld [vmem:[#allocation7 + $0xa8] sm:$0xff]
          %v1264 = vld [vmem:[#allocation7 + $0xb0] sm:$0xff]
          %v1265 = vld [vmem:[#allocation7 + $0xb8] sm:$0xff]
          %v1266 = vld [vmem:[#allocation7 + $0xc0] sm:$0xff]
          %v1267 = vld [vmem:[#allocation7 + $0xc8] sm:$0xff]
          %v1268 = vld [vmem:[#allocation7 + $0xd0] sm:$0xff]
          %v1269 = vld [vmem:[#allocation7 + $0xd8] sm:$0xff]
          %v1270 = vld [vmem:[#allocation7 + $0xe0] sm:$0xff]
          %v1271 = vld [vmem:[#allocation7 + $0xe8] sm:$0xff]
          %v1272 = vld [vmem:[#allocation7 + $0xf0] sm:$0xff]
          %v1273 = vld [vmem:[#allocation7 + $0xf8] sm:$0xff]
          %v1274 = vld [vmem:[#allocation7 + $0x100] sm:$0xff]
          %v1275 = vld [vmem:[#allocation7 + $0x108] sm:$0xff]
          %v1276 = vld [vmem:[#allocation7 + $0x110] sm:$0xff]
          %v1277 = vld [vmem:[#allocation7 + $0x118] sm:$0xff]
          %v1278 = vld [vmem:[#allocation7 + $0x120] sm:$0xff]
          %v1279 = vld [vmem:[#allocation7 + $0x128] sm:$0xff]
          %v1280 = vld [vmem:[#allocation7 + $0x130] sm:$0xff]
          %v1281 = vld [vmem:[#allocation7 + $0x138] sm:$0xff]
          %v1282 = vld [vmem:[#allocation7 + $0x140] sm:$0xff]
          %v1283 = vld [vmem:[#allocation7 + $0x148] sm:$0xff]
          %v1284 = vld [vmem:[#allocation7 + $0x150] sm:$0xff]
          %v1285 = vld [vmem:[#allocation7 + $0x158] sm:$0xff]
          %v1286 = vld [vmem:[#allocation7 + $0x160] sm:$0xff]
          %v1287 = vld [vmem:[#allocation7 + $0x168] sm:$0xff]
          %v1288 = vld [vmem:[#allocation7 + $0x170] sm:$0xff]
          %v1289 = vld [vmem:[#allocation7 + $0x178] sm:$0xff]
          %v1290 = vld [vmem:[#allocation7 + $0x180] sm:$0xff]
          %v1291 = vld [vmem:[#allocation7 + $0x188] sm:$0xff]
          %v1292 = vld [vmem:[#allocation7 + $0x190] sm:$0xff]
          %v1293 = vld [vmem:[#allocation7 + $0x198] sm:$0xff]
          %v1294 = vld [vmem:[#allocation7 + $0x1a0] sm:$0xff]
          %v1295 = vld [vmem:[#allocation7 + $0x1a8] sm:$0xff]
          %v1296 = vld [vmem:[#allocation7 + $0x1b0] sm:$0xff]
          %v1297 = vld [vmem:[#allocation7 + $0x1b8] sm:$0xff]
          %v1298 = vld [vmem:[#allocation7 + $0x1c0] sm:$0xff]
          %v1299 = vld [vmem:[#allocation7 + $0x1c8] sm:$0xff]
          %v1300 = vld [vmem:[#allocation7 + $0x1d0] sm:$0xff]
          %v1301 = vld [vmem:[#allocation7 + $0x1d8] sm:$0xff]
          %v1302 = vld [vmem:[#allocation7 + $0x1e0] sm:$0xff]
          %v1303 = vld [vmem:[#allocation7 + $0x1e8] sm:$0xff]
          %v1304 = vld [vmem:[#allocation7 + $0x1f0] sm:$0xff]
          %v1305 = vld [vmem:[#allocation7 + $0x1f8] sm:$0xff]
          %v1306 = vld [vmem:[#allocation7 + $0x200] sm:$0xff]
          %v1307 = vld [vmem:[#allocation7 + $0x208] sm:$0xff]
          %v1308 = vld [vmem:[#allocation7 + $0x210] sm:$0xff]
          %v1309 = vld [vmem:[#allocation7 + $0x218] sm:$0xff]
          %v1310 = vld [vmem:[#allocation7 + $0x220] sm:$0xff]
          %v1311 = vld [vmem:[#allocation7 + $0x228] sm:$0xff]
          %v1312 = vld [vmem:[#allocation7 + $0x230] sm:$0xff]
          %v1313 = vld [vmem:[#allocation7 + $0x238] sm:$0xff]
          %v1314 = vld [vmem:[#allocation7 + $0x240] sm:$0xff]
          %v1315 = vld [vmem:[#allocation7 + $0x248] sm:$0xff]
          %v1316 = vld [vmem:[#allocation7 + $0x250] sm:$0xff]
          %v1317 = vld [vmem:[#allocation7 + $0x258] sm:$0xff]
          %v1318 = vld [vmem:[#allocation7 + $0x260] sm:$0xff]
          %v1319 = vld [vmem:[#allocation7 + $0x268] sm:$0xff]
          %v1320 = vld [vmem:[#allocation7 + $0x270] sm:$0xff]
          %v1321 = vld [vmem:[#allocation7 + $0x278] sm:$0xff]
          %v1322 = vld [vmem:[#allocation7 + $0x280] sm:$0xff]
          %v1323 = vld [vmem:[#allocation7 + $0x288] sm:$0xff]
          %v1324 = vld [vmem:[#allocation7 + $0x290] sm:$0xff]
          %v1325 = vld [vmem:[#allocation7 + $0x298] sm:$0xff]
          %v1326 = vld [vmem:[#allocation7 + $0x2a0] sm:$0xff]
          %v1327 = vld [vmem:[#allocation7 + $0x2a8] sm:$0xff]
          %v1328 = vld [vmem:[#allocation7 + $0x2b0] sm:$0xff]
          %v1329 = vld [vmem:[#allocation7 + $0x2b8] sm:$0xff]
          %v1330 = vld [vmem:[#allocation7 + $0x2c0] sm:$0xff]
          %v1331 = vld [vmem:[#allocation7 + $0x2c8] sm:$0xff]
          %v1332 = vld [vmem:[#allocation7 + $0x2d0] sm:$0xff]
          %v1333 = vld [vmem:[#allocation7 + $0x2d8] sm:$0xff]
          %v1334 = vld [vmem:[#allocation7 + $0x2e0] sm:$0xff]
          %v1335 = vld [vmem:[#allocation7 + $0x2e8] sm:$0xff]
          %v1336 = vld [vmem:[#allocation7 + $0x2f0] sm:$0xff]
          %v1337 = vld [vmem:[#allocation7 + $0x2f8] sm:$0xff]
          %v1338 = vld [vmem:[#allocation7 + $0x300] sm:$0xff]
          %v1339 = vld [vmem:[#allocation7 + $0x308] sm:$0xff]
          %v1340 = vld [vmem:[#allocation7 + $0x310] sm:$0xff]
          %v1341 = vld [vmem:[#allocation7 + $0x318] sm:$0xff]
          %v1342 = vld [vmem:[#allocation7 + $0x320] sm:$0xff]
          %v1343 = vld [vmem:[#allocation7 + $0x328] sm:$0xff]
          %v1344 = vld [vmem:[#allocation7 + $0x330] sm:$0xff]
          %v1345 = vld [vmem:[#allocation7 + $0x338] sm:$0xff]
          %v1346 = vld [vmem:[#allocation7 + $0x340] sm:$0xff]
          %v1347 = vld [vmem:[#allocation7 + $0x348] sm:$0xff]
          %v1348 = vld [vmem:[#allocation7 + $0x350] sm:$0xff]
          %v1349 = vld [vmem:[#allocation7 + $0x358] sm:$0xff]
          %v1350 = vld [vmem:[#allocation7 + $0x360] sm:$0xff]
          %v1351 = vld [vmem:[#allocation7 + $0x368] sm:$0xff]
          %v1352 = vld [vmem:[#allocation7 + $0x370] sm:$0xff]
          %v1353 = vld [vmem:[#allocation7 + $0x378] sm:$0xff]
          %v1354 = vld [vmem:[#allocation7 + $0x380] sm:$0xff]
          %v1355 = vld [vmem:[#allocation7 + $0x388] sm:$0xff]
          %v1356 = vld [vmem:[#allocation7 + $0x390] sm:$0xff]
          %v1357 = vld [vmem:[#allocation7 + $0x398] sm:$0xff]
          %v1358 = vld [vmem:[#allocation7 + $0x3a0] sm:$0xff]
          %v1359 = vld [vmem:[#allocation7 + $0x3a8] sm:$0xff]
          %v1360 = vld [vmem:[#allocation7 + $0x3b0] sm:$0xff]
          %v1361 = vld [vmem:[#allocation7 + $0x3b8] sm:$0xff]
          %v1362 = vld [vmem:[#allocation7 + $0x3c0] sm:$0xff]
          %v1363 = vld [vmem:[#allocation7 + $0x3c8] sm:$0xff]
          %v1364 = vld [vmem:[#allocation7 + $0x3d0] sm:$0xff]
          %v1365 = vld [vmem:[#allocation7 + $0x3d8] sm:$0xff]
          %v1366 = vld [vmem:[#allocation7 + $0x3e0] sm:$0xff]
          %v1367 = vld [vmem:[#allocation7 + $0x3e8] sm:$0xff]
          %v1368 = vld [vmem:[#allocation7 + $0x3f0] sm:$0xff]
          %v1369 = vld [vmem:[#allocation7 + $0x3f8] sm:$0xff]
          %v1370 = vld [vmem:[#allocation7 + $0x400] sm:$0xff]
          %v1371 = vld [vmem:[#allocation7 + $0x408] sm:$0xff]
          %v1372 = vld [vmem:[#allocation7 + $0x410] sm:$0xff]
          %v1373 = vld [vmem:[#allocation7 + $0x418] sm:$0xff]
          %v1374 = vld [vmem:[#allocation7 + $0x420] sm:$0xff]
          %v1375 = vld [vmem:[#allocation7 + $0x428] sm:$0xff]
          %v1376 = vld [vmem:[#allocation7 + $0x430] sm:$0xff]
          %v1377 = vld [vmem:[#allocation7 + $0x438] sm:$0xff]
          %v1378 = vld [vmem:[#allocation7 + $0x440] sm:$0xff]
          %v1379 = vld [vmem:[#allocation7 + $0x448] sm:$0xff]
          %v1380 = vld [vmem:[#allocation7 + $0x450] sm:$0xff]
          %v1381 = vld [vmem:[#allocation7 + $0x458] sm:$0xff]
          %v1382 = vld [vmem:[#allocation7 + $0x460] sm:$0xff]
          %v1383 = vld [vmem:[#allocation7 + $0x468] sm:$0xff]
          %v1384 = vld [vmem:[#allocation7 + $0x470] sm:$0xff]
          %v1385 = vld [vmem:[#allocation7 + $0x478] sm:$0xff]
          %v1386 = vld [vmem:[#allocation7 + $0x480] sm:$0xff]
          %v1387 = vld [vmem:[#allocation7 + $0x488] sm:$0xff]
          %v1388 = vld [vmem:[#allocation7 + $0x490] sm:$0xff]
          %v1389 = vld [vmem:[#allocation7 + $0x498] sm:$0xff]
          %v1390 = vld [vmem:[#allocation7 + $0x4a0] sm:$0xff]
          %v1391 = vld [vmem:[#allocation7 + $0x4a8] sm:$0xff]
          %v1392 = vld [vmem:[#allocation7 + $0x4b0] sm:$0xff]
          %v1393 = vld [vmem:[#allocation7 + $0x4b8] sm:$0xff]
          %v1394 = vld [vmem:[#allocation7 + $0x4c0] sm:$0xff]
          %v1395 = vld [vmem:[#allocation7 + $0x4c8] sm:$0xff]
          %v1396 = vld [vmem:[#allocation7 + $0x4d0] sm:$0xff]
          %v1397 = vld [vmem:[#allocation7 + $0x4d8] sm:$0xff]
          %v1398 = vld [vmem:[#allocation7 + $0x4e0] sm:$0xff]
          %v1399 = vld [vmem:[#allocation7 + $0x4e8] sm:$0xff]
          %v1400 = vld [vmem:[#allocation7 + $0x4f0] sm:$0xff]
          %v1401 = vld [vmem:[#allocation7 + $0x4f8] sm:$0xff]
          %v1402 = vld [vmem:[#allocation7 + $0x500] sm:$0xff]
          %v1403 = vld [vmem:[#allocation7 + $0x508] sm:$0xff]
          %v1404 = vld [vmem:[#allocation7 + $0x510] sm:$0xff]
          %v1405 = vld [vmem:[#allocation7 + $0x518] sm:$0xff]
          %v1406 = vld [vmem:[#allocation7 + $0x520] sm:$0xff]
          %v1407 = vld [vmem:[#allocation7 + $0x528] sm:$0xff]
          %v1408 = vld [vmem:[#allocation7 + $0x530] sm:$0xff]
          %v1409 = vld [vmem:[#allocation7 + $0x538] sm:$0xff]
          %v1410 = vld [vmem:[#allocation7 + $0x540] sm:$0xff]
          %v1411 = vld [vmem:[#allocation7 + $0x548] sm:$0xff]
          %v1412 = vld [vmem:[#allocation7 + $0x550] sm:$0xff]
          %v1413 = vld [vmem:[#allocation7 + $0x558] sm:$0xff]
          %v1414 = vld [vmem:[#allocation7 + $0x560] sm:$0xff]
          %v1415 = vld [vmem:[#allocation7 + $0x568] sm:$0xff]
          %v1416 = vld [vmem:[#allocation7 + $0x570] sm:$0xff]
          %v1417 = vld [vmem:[#allocation7 + $0x578] sm:$0xff]
          %v1418 = vld [vmem:[#allocation7 + $0x580] sm:$0xff]
          %v1419 = vld [vmem:[#allocation7 + $0x588] sm:$0xff]
          %v1420 = vld [vmem:[#allocation7 + $0x590] sm:$0xff]
          %v1421 = vld [vmem:[#allocation7 + $0x598] sm:$0xff]
          %v1422 = vld [vmem:[#allocation7 + $0x5a0] sm:$0xff]
          %v1423 = vld [vmem:[#allocation7 + $0x5a8] sm:$0xff]
          %v1424 = vld [vmem:[#allocation7 + $0x5b0] sm:$0xff]
          %v1425 = vld [vmem:[#allocation7 + $0x5b8] sm:$0xff]
          %v1426 = vld [vmem:[#allocation7 + $0x5c0] sm:$0xff]
          %v1427 = vld [vmem:[#allocation7 + $0x5c8] sm:$0xff]
          %v1428 = vld [vmem:[#allocation7 + $0x5d0] sm:$0xff]
          %v1429 = vld [vmem:[#allocation7 + $0x5d8] sm:$0xff]
          %v1430 = vld [vmem:[#allocation7 + $0x5e0] sm:$0xff]
          %v1431 = vld [vmem:[#allocation7 + $0x5e8] sm:$0xff]
          %v1432 = vld [vmem:[#allocation7 + $0x5f0] sm:$0xff]
          %v1433 = vld [vmem:[#allocation7 + $0x5f8] sm:$0xff]
          %v1434 = vld [vmem:[#allocation7 + $0x600] sm:$0xff]
          %v1435 = vld [vmem:[#allocation7 + $0x608] sm:$0xff]
          %v1436 = vld [vmem:[#allocation7 + $0x610] sm:$0xff]
          %v1437 = vld [vmem:[#allocation7 + $0x618] sm:$0xff]
          %v1438 = vld [vmem:[#allocation7 + $0x620] sm:$0xff]
          %v1439 = vld [vmem:[#allocation7 + $0x628] sm:$0xff]
          %v1440 = vld [vmem:[#allocation7 + $0x630] sm:$0xff]
          %v1441 = vld [vmem:[#allocation7 + $0x638] sm:$0xff]
          %v1442 = vld [vmem:[#allocation7 + $0x640] sm:$0xff]
          %v1443 = vld [vmem:[#allocation7 + $0x648] sm:$0xff]
          %v1444 = vld [vmem:[#allocation7 + $0x650] sm:$0xff]
          %v1445 = vld [vmem:[#allocation7 + $0x658] sm:$0xff]
          %v1446 = vld [vmem:[#allocation7 + $0x660] sm:$0xff]
          %v1447 = vld [vmem:[#allocation7 + $0x668] sm:$0xff]
          %v1448 = vld [vmem:[#allocation7 + $0x670] sm:$0xff]
          %v1449 = vld [vmem:[#allocation7 + $0x678] sm:$0xff]
          %v1450 = vld [vmem:[#allocation7 + $0x680] sm:$0xff]
          %v1451 = vld [vmem:[#allocation7 + $0x688] sm:$0xff]
          %v1452 = vld [vmem:[#allocation7 + $0x690] sm:$0xff]
          %v1453 = vld [vmem:[#allocation7 + $0x698] sm:$0xff]
          %v1454 = vld [vmem:[#allocation7 + $0x6a0] sm:$0xff]
          %v1455 = vld [vmem:[#allocation7 + $0x6a8] sm:$0xff]
          %v1456 = vld [vmem:[#allocation7 + $0x6b0] sm:$0xff]
          %v1457 = vld [vmem:[#allocation7 + $0x6b8] sm:$0xff]
          %v1458 = vld [vmem:[#allocation7 + $0x6c0] sm:$0xff]
          %v1459 = vld [vmem:[#allocation7 + $0x6c8] sm:$0xff]
          %v1460 = vld [vmem:[#allocation7 + $0x6d0] sm:$0xff]
          %v1461 = vld [vmem:[#allocation7 + $0x6d8] sm:$0xff]
          %v1462 = vld [vmem:[#allocation7 + $0x6e0] sm:$0xff]
          %v1463 = vld [vmem:[#allocation7 + $0x6e8] sm:$0xff]
          %v1464 = vld [vmem:[#allocation7 + $0x6f0] sm:$0xff]
          %v1465 = vld [vmem:[#allocation7 + $0x6f8] sm:$0xff]
          %v1466 = vld [vmem:[#allocation7 + $0x700] sm:$0xff]
          %v1467 = vld [vmem:[#allocation7 + $0x708] sm:$0xff]
          %v1468 = vld [vmem:[#allocation7 + $0x710] sm:$0xff]
          %v1469 = vld [vmem:[#allocation7 + $0x718] sm:$0xff]
          %v1470 = vld [vmem:[#allocation7 + $0x720] sm:$0xff]
          %v1471 = vld [vmem:[#allocation7 + $0x728] sm:$0xff]
          %v1472 = vld [vmem:[#allocation7 + $0x730] sm:$0xff]
          %v1473 = vld [vmem:[#allocation7 + $0x738] sm:$0xff]
          %v1474 = vld [vmem:[#allocation7 + $0x740] sm:$0xff]
          %v1475 = vld [vmem:[#allocation7 + $0x748] sm:$0xff]
          %v1476 = vld [vmem:[#allocation7 + $0x750] sm:$0xff]
          %v1477 = vld [vmem:[#allocation7 + $0x758] sm:$0xff]
          %v1478 = vld [vmem:[#allocation7 + $0x760] sm:$0xff]
          %v1479 = vld [vmem:[#allocation7 + $0x768] sm:$0xff]
          %v1480 = vld [vmem:[#allocation7 + $0x770] sm:$0xff]
          %v1481 = vld [vmem:[#allocation7 + $0x778] sm:$0xff]
          %v1482 = vld [vmem:[#allocation7 + $0x780] sm:$0xff]
          %v1483 = vld [vmem:[#allocation7 + $0x788] sm:$0xff]
          %v1484 = vld [vmem:[#allocation7 + $0x790] sm:$0xff]
          %v1485 = vld [vmem:[#allocation7 + $0x798] sm:$0xff]
          %v1486 = vld [vmem:[#allocation7 + $0x7a0] sm:$0xff]
          %v1487 = vld [vmem:[#allocation7 + $0x7a8] sm:$0xff]
          %v1488 = vld [vmem:[#allocation7 + $0x7b0] sm:$0xff]
          %v1489 = vld [vmem:[#allocation7 + $0x7b8] sm:$0xff]
          %v1490 = vld [vmem:[#allocation7 + $0x7c0] sm:$0xff]
          %v1491 = vld [vmem:[#allocation7 + $0x7c8] sm:$0xff]
          %v1492 = vld [vmem:[#allocation7 + $0x7d0] sm:$0xff]
          %v1493 = vld [vmem:[#allocation7 + $0x7d8] sm:$0xff]
          %v1494 = vld [vmem:[#allocation7 + $0x7e0] sm:$0xff]
          %v1495 = vld [vmem:[#allocation7 + $0x7e8] sm:$0xff]
          %v1496 = vld [vmem:[#allocation7 + $0x7f0] sm:$0xff]
          %v1497 = vld [vmem:[#allocation7 + $0x7f8] sm:$0xff]
          %v1498 = vpack.c.bf16 %v1238, %v1238
          %v1499 = vpack.c.bf16 %v1239, %v1239
          %v1500 = vpack.c.bf16 %v1240, %v1240
          %v1501 = vpack.c.bf16 %v1241, %v1241
          %s1502 = scalar_lea.vmem [#allocation18], 2
          %v1503 = vld [vmem:[%s1502] ss:$8 sm:$0xf]
          %v1504 = vld [vmem:[%s1502] ss:$8 sm:$0xf0]
          %v1505 = vor.u32 %v1503, %v1504
          %v1507 = vperm.slane %v1505, 0
          %v1508 = vperm.slane %v1505, 1
          %v1509 = vperm.slane %v1505, 2
          %v1510 = vperm.slane %v1505, 3
          %v1511 = vperm.slane %v1505, 4
          %v1512 = vperm.slane %v1505, 5
          %v1513 = vperm.slane %v1505, 6
          %v1514 = vperm.slane %v1505, 7
          %v1779 = vunpack.c.l.b16 %v1242
          %v1780 = vunpack.c.h.b16 %v1242
          %v1781 = vunpack.c.l.b16 %v1243
          %v1782 = vunpack.c.h.b16 %v1243
          %v1783 = vunpack.c.l.b16 %v1244
          %v1784 = vunpack.c.h.b16 %v1244
          %v1785 = vunpack.c.l.b16 %v1245
          %v1786 = vunpack.c.h.b16 %v1245
          %v1787 = vunpack.c.l.b16 %v1246
          %v1788 = vunpack.c.h.b16 %v1246
          %v1789 = vunpack.c.l.b16 %v1247
          %v1790 = vunpack.c.h.b16 %v1247
          %v1791 = vunpack.c.l.b16 %v1248
          %v1792 = vunpack.c.h.b16 %v1248
          %v1793 = vunpack.c.l.b16 %v1249
          %v1794 = vunpack.c.h.b16 %v1249
          %v1795 = vunpack.c.l.b16 %v1250
          %v1796 = vunpack.c.h.b16 %v1250
          %v1797 = vunpack.c.l.b16 %v1251
          %v1798 = vunpack.c.h.b16 %v1251
          %v1799 = vunpack.c.l.b16 %v1252
          %v1800 = vunpack.c.h.b16 %v1252
          %v1801 = vunpack.c.l.b16 %v1253
          %v1802 = vunpack.c.h.b16 %v1253
          %v1803 = vunpack.c.l.b16 %v1254
          %v1804 = vunpack.c.h.b16 %v1254
          %v1805 = vunpack.c.l.b16 %v1255
          %v1806 = vunpack.c.h.b16 %v1255
          %v1807 = vunpack.c.l.b16 %v1256
          %v1808 = vunpack.c.h.b16 %v1256
          %v1809 = vunpack.c.l.b16 %v1257
          %v1810 = vunpack.c.h.b16 %v1257
          %v1811 = vunpack.c.l.b16 %v1258
          %v1812 = vunpack.c.h.b16 %v1258
          %v1813 = vunpack.c.l.b16 %v1259
          %v1814 = vunpack.c.h.b16 %v1259
          %v1815 = vunpack.c.l.b16 %v1260
          %v1816 = vunpack.c.h.b16 %v1260
          %v1817 = vunpack.c.l.b16 %v1261
          %v1818 = vunpack.c.h.b16 %v1261
          %v1819 = vunpack.c.l.b16 %v1262
          %v1820 = vunpack.c.h.b16 %v1262
          %v1821 = vunpack.c.l.b16 %v1263
          %v1822 = vunpack.c.h.b16 %v1263
          %v1823 = vunpack.c.l.b16 %v1264
          %v1824 = vunpack.c.h.b16 %v1264
          %v1825 = vunpack.c.l.b16 %v1265
          %v1826 = vunpack.c.h.b16 %v1265
          %v1827 = vunpack.c.l.b16 %v1266
          %v1828 = vunpack.c.h.b16 %v1266
          %v1829 = vunpack.c.l.b16 %v1267
          %v1830 = vunpack.c.h.b16 %v1267
          %v1831 = vunpack.c.l.b16 %v1268
          %v1832 = vunpack.c.h.b16 %v1268
          %v1833 = vunpack.c.l.b16 %v1269
          %v1834 = vunpack.c.h.b16 %v1269
          %v1835 = vunpack.c.l.b16 %v1270
          %v1836 = vunpack.c.h.b16 %v1270
          %v1837 = vunpack.c.l.b16 %v1271
          %v1838 = vunpack.c.h.b16 %v1271
          %v1839 = vunpack.c.l.b16 %v1272
          %v1840 = vunpack.c.h.b16 %v1272
          %v1841 = vunpack.c.l.b16 %v1273
          %v1842 = vunpack.c.h.b16 %v1273
          %v1843 = vunpack.c.l.b16 %v1274
          %v1844 = vunpack.c.h.b16 %v1274
          %v1845 = vunpack.c.l.b16 %v1275
          %v1846 = vunpack.c.h.b16 %v1275
          %v1847 = vunpack.c.l.b16 %v1276
          %v1848 = vunpack.c.h.b16 %v1276
          %v1849 = vunpack.c.l.b16 %v1277
          %v1850 = vunpack.c.h.b16 %v1277
          %v1851 = vunpack.c.l.b16 %v1278
          %v1852 = vunpack.c.h.b16 %v1278
          %v1853 = vunpack.c.l.b16 %v1279
          %v1854 = vunpack.c.h.b16 %v1279
          %v1855 = vunpack.c.l.b16 %v1280
          %v1856 = vunpack.c.h.b16 %v1280
          %v1857 = vunpack.c.l.b16 %v1281
          %v1858 = vunpack.c.h.b16 %v1281
          %v1859 = vunpack.c.l.b16 %v1282
          %v1860 = vunpack.c.h.b16 %v1282
          %v1861 = vunpack.c.l.b16 %v1283
          %v1862 = vunpack.c.h.b16 %v1283
          %v1863 = vunpack.c.l.b16 %v1284
          %v1864 = vunpack.c.h.b16 %v1284
          %v1865 = vunpack.c.l.b16 %v1285
          %v1866 = vunpack.c.h.b16 %v1285
          %v1867 = vunpack.c.l.b16 %v1286
          %v1868 = vunpack.c.h.b16 %v1286
          %v1869 = vunpack.c.l.b16 %v1287
          %v1870 = vunpack.c.h.b16 %v1287
          %v1871 = vunpack.c.l.b16 %v1288
          %v1872 = vunpack.c.h.b16 %v1288
          %v1873 = vunpack.c.l.b16 %v1289
          %v1874 = vunpack.c.h.b16 %v1289
          %v1875 = vunpack.c.l.b16 %v1290
          %v1876 = vunpack.c.h.b16 %v1290
          %v1877 = vunpack.c.l.b16 %v1291
          %v1878 = vunpack.c.h.b16 %v1291
          %v1879 = vunpack.c.l.b16 %v1292
          %v1880 = vunpack.c.h.b16 %v1292
          %v1881 = vunpack.c.l.b16 %v1293
          %v1882 = vunpack.c.h.b16 %v1293
          %v1883 = vunpack.c.l.b16 %v1294
          %v1884 = vunpack.c.h.b16 %v1294
          %v1885 = vunpack.c.l.b16 %v1295
          %v1886 = vunpack.c.h.b16 %v1295
          %v1887 = vunpack.c.l.b16 %v1296
          %v1888 = vunpack.c.h.b16 %v1296
          %v1889 = vunpack.c.l.b16 %v1297
          %v1890 = vunpack.c.h.b16 %v1297
          %v1891 = vunpack.c.l.b16 %v1298
          %v1892 = vunpack.c.h.b16 %v1298
          %v1893 = vunpack.c.l.b16 %v1299
          %v1894 = vunpack.c.h.b16 %v1299
          %v1895 = vunpack.c.l.b16 %v1300
          %v1896 = vunpack.c.h.b16 %v1300
          %v1897 = vunpack.c.l.b16 %v1301
          %v1898 = vunpack.c.h.b16 %v1301
          %v1899 = vunpack.c.l.b16 %v1302
          %v1900 = vunpack.c.h.b16 %v1302
          %v1901 = vunpack.c.l.b16 %v1303
          %v1902 = vunpack.c.h.b16 %v1303
          %v1903 = vunpack.c.l.b16 %v1304
          %v1904 = vunpack.c.h.b16 %v1304
          %v1905 = vunpack.c.l.b16 %v1305
          %v1906 = vunpack.c.h.b16 %v1305
          %v1907 = vunpack.c.l.b16 %v1306
          %v1908 = vunpack.c.h.b16 %v1306
          %v1909 = vunpack.c.l.b16 %v1307
          %v1910 = vunpack.c.h.b16 %v1307
          %v1911 = vunpack.c.l.b16 %v1308
          %v1912 = vunpack.c.h.b16 %v1308
          %v1913 = vunpack.c.l.b16 %v1309
          %v1914 = vunpack.c.h.b16 %v1309
          %v1915 = vunpack.c.l.b16 %v1310
          %v1916 = vunpack.c.h.b16 %v1310
          %v1917 = vunpack.c.l.b16 %v1311
          %v1918 = vunpack.c.h.b16 %v1311
          %v1919 = vunpack.c.l.b16 %v1312
          %v1920 = vunpack.c.h.b16 %v1312
          %v1921 = vunpack.c.l.b16 %v1313
          %v1922 = vunpack.c.h.b16 %v1313
          %v1923 = vunpack.c.l.b16 %v1314
          %v1924 = vunpack.c.h.b16 %v1314
          %v1925 = vunpack.c.l.b16 %v1315
          %v1926 = vunpack.c.h.b16 %v1315
          %v1927 = vunpack.c.l.b16 %v1316
          %v1928 = vunpack.c.h.b16 %v1316
          %v1929 = vunpack.c.l.b16 %v1317
          %v1930 = vunpack.c.h.b16 %v1317
          %v1931 = vunpack.c.l.b16 %v1318
          %v1932 = vunpack.c.h.b16 %v1318
          %v1933 = vunpack.c.l.b16 %v1319
          %v1934 = vunpack.c.h.b16 %v1319
          %v1935 = vunpack.c.l.b16 %v1320
          %v1936 = vunpack.c.h.b16 %v1320
          %v1937 = vunpack.c.l.b16 %v1321
          %v1938 = vunpack.c.h.b16 %v1321
          %v1939 = vunpack.c.l.b16 %v1322
          %v1940 = vunpack.c.h.b16 %v1322
          %v1941 = vunpack.c.l.b16 %v1323
          %v1942 = vunpack.c.h.b16 %v1323
          %v1943 = vunpack.c.l.b16 %v1324
          %v1944 = vunpack.c.h.b16 %v1324
          %v1945 = vunpack.c.l.b16 %v1325
          %v1946 = vunpack.c.h.b16 %v1325
          %v1947 = vunpack.c.l.b16 %v1326
          %v1948 = vunpack.c.h.b16 %v1326
          %v1949 = vunpack.c.l.b16 %v1327
          %v1950 = vunpack.c.h.b16 %v1327
          %v1951 = vunpack.c.l.b16 %v1328
          %v1952 = vunpack.c.h.b16 %v1328
          %v1953 = vunpack.c.l.b16 %v1329
          %v1954 = vunpack.c.h.b16 %v1329
          %v1955 = vunpack.c.l.b16 %v1330
          %v1956 = vunpack.c.h.b16 %v1330
          %v1957 = vunpack.c.l.b16 %v1331
          %v1958 = vunpack.c.h.b16 %v1331
          %v1959 = vunpack.c.l.b16 %v1332
          %v1960 = vunpack.c.h.b16 %v1332
          %v1961 = vunpack.c.l.b16 %v1333
          %v1962 = vunpack.c.h.b16 %v1333
          %v1963 = vunpack.c.l.b16 %v1334
          %v1964 = vunpack.c.h.b16 %v1334
          %v1965 = vunpack.c.l.b16 %v1335
          %v1966 = vunpack.c.h.b16 %v1335
          %v1967 = vunpack.c.l.b16 %v1336
          %v1968 = vunpack.c.h.b16 %v1336
          %v1969 = vunpack.c.l.b16 %v1337
          %v1970 = vunpack.c.h.b16 %v1337
          %v1971 = vunpack.c.l.b16 %v1338
          %v1972 = vunpack.c.h.b16 %v1338
          %v1973 = vunpack.c.l.b16 %v1339
          %v1974 = vunpack.c.h.b16 %v1339
          %v1975 = vunpack.c.l.b16 %v1340
          %v1976 = vunpack.c.h.b16 %v1340
          %v1977 = vunpack.c.l.b16 %v1341
          %v1978 = vunpack.c.h.b16 %v1341
          %v1979 = vunpack.c.l.b16 %v1342
          %v1980 = vunpack.c.h.b16 %v1342
          %v1981 = vunpack.c.l.b16 %v1343
          %v1982 = vunpack.c.h.b16 %v1343
          %v1983 = vunpack.c.l.b16 %v1344
          %v1984 = vunpack.c.h.b16 %v1344
          %v1985 = vunpack.c.l.b16 %v1345
          %v1986 = vunpack.c.h.b16 %v1345
          %v1987 = vunpack.c.l.b16 %v1346
          %v1988 = vunpack.c.h.b16 %v1346
          %v1989 = vunpack.c.l.b16 %v1347
          %v1990 = vunpack.c.h.b16 %v1347
          %v1991 = vunpack.c.l.b16 %v1348
          %v1992 = vunpack.c.h.b16 %v1348
          %v1993 = vunpack.c.l.b16 %v1349
          %v1994 = vunpack.c.h.b16 %v1349
          %v1995 = vunpack.c.l.b16 %v1350
          %v1996 = vunpack.c.h.b16 %v1350
          %v1997 = vunpack.c.l.b16 %v1351
          %v1998 = vunpack.c.h.b16 %v1351
          %v1999 = vunpack.c.l.b16 %v1352
          %v2000 = vunpack.c.h.b16 %v1352
          %v2001 = vunpack.c.l.b16 %v1353
          %v2002 = vunpack.c.h.b16 %v1353
          %v2003 = vunpack.c.l.b16 %v1354
          %v2004 = vunpack.c.h.b16 %v1354
          %v2005 = vunpack.c.l.b16 %v1355
          %v2006 = vunpack.c.h.b16 %v1355
          %v2007 = vunpack.c.l.b16 %v1356
          %v2008 = vunpack.c.h.b16 %v1356
          %v2009 = vunpack.c.l.b16 %v1357
          %v2010 = vunpack.c.h.b16 %v1357
          %v2011 = vunpack.c.l.b16 %v1358
          %v2012 = vunpack.c.h.b16 %v1358
          %v2013 = vunpack.c.l.b16 %v1359
          %v2014 = vunpack.c.h.b16 %v1359
          %v2015 = vunpack.c.l.b16 %v1360
          %v2016 = vunpack.c.h.b16 %v1360
          %v2017 = vunpack.c.l.b16 %v1361
          %v2018 = vunpack.c.h.b16 %v1361
          %v2019 = vunpack.c.l.b16 %v1362
          %v2020 = vunpack.c.h.b16 %v1362
          %v2021 = vunpack.c.l.b16 %v1363
          %v2022 = vunpack.c.h.b16 %v1363
          %v2023 = vunpack.c.l.b16 %v1364
          %v2024 = vunpack.c.h.b16 %v1364
          %v2025 = vunpack.c.l.b16 %v1365
          %v2026 = vunpack.c.h.b16 %v1365
          %v2027 = vunpack.c.l.b16 %v1366
          %v2028 = vunpack.c.h.b16 %v1366
          %v2029 = vunpack.c.l.b16 %v1367
          %v2030 = vunpack.c.h.b16 %v1367
          %v2031 = vunpack.c.l.b16 %v1368
          %v2032 = vunpack.c.h.b16 %v1368
          %v2033 = vunpack.c.l.b16 %v1369
          %v2034 = vunpack.c.h.b16 %v1369
          %v2035 = vunpack.c.l.b16 %v1370
          %v2036 = vunpack.c.h.b16 %v1370
          %v2037 = vunpack.c.l.b16 %v1371
          %v2038 = vunpack.c.h.b16 %v1371
          %v2039 = vunpack.c.l.b16 %v1372
          %v2040 = vunpack.c.h.b16 %v1372
          %v2041 = vunpack.c.l.b16 %v1373
          %v2042 = vunpack.c.h.b16 %v1373
          %v2043 = vunpack.c.l.b16 %v1374
          %v2044 = vunpack.c.h.b16 %v1374
          %v2045 = vunpack.c.l.b16 %v1375
          %v2046 = vunpack.c.h.b16 %v1375
          %v2047 = vunpack.c.l.b16 %v1376
          %v2048 = vunpack.c.h.b16 %v1376
          %v2049 = vunpack.c.l.b16 %v1377
          %v2050 = vunpack.c.h.b16 %v1377
          %v2051 = vunpack.c.l.b16 %v1378
          %v2052 = vunpack.c.h.b16 %v1378
          %v2053 = vunpack.c.l.b16 %v1379
          %v2054 = vunpack.c.h.b16 %v1379
          %v2055 = vunpack.c.l.b16 %v1380
          %v2056 = vunpack.c.h.b16 %v1380
          %v2057 = vunpack.c.l.b16 %v1381
          %v2058 = vunpack.c.h.b16 %v1381
          %v2059 = vunpack.c.l.b16 %v1382
          %v2060 = vunpack.c.h.b16 %v1382
          %v2061 = vunpack.c.l.b16 %v1383
          %v2062 = vunpack.c.h.b16 %v1383
          %v2063 = vunpack.c.l.b16 %v1384
          %v2064 = vunpack.c.h.b16 %v1384
          %v2065 = vunpack.c.l.b16 %v1385
          %v2066 = vunpack.c.h.b16 %v1385
          %v2067 = vunpack.c.l.b16 %v1386
          %v2068 = vunpack.c.h.b16 %v1386
          %v2069 = vunpack.c.l.b16 %v1387
          %v2070 = vunpack.c.h.b16 %v1387
          %v2071 = vunpack.c.l.b16 %v1388
          %v2072 = vunpack.c.h.b16 %v1388
          %v2073 = vunpack.c.l.b16 %v1389
          %v2074 = vunpack.c.h.b16 %v1389
          %v2075 = vunpack.c.l.b16 %v1390
          %v2076 = vunpack.c.h.b16 %v1390
          %v2077 = vunpack.c.l.b16 %v1391
          %v2078 = vunpack.c.h.b16 %v1391
          %v2079 = vunpack.c.l.b16 %v1392
          %v2080 = vunpack.c.h.b16 %v1392
          %v2081 = vunpack.c.l.b16 %v1393
          %v2082 = vunpack.c.h.b16 %v1393
          %v2083 = vunpack.c.l.b16 %v1394
          %v2084 = vunpack.c.h.b16 %v1394
          %v2085 = vunpack.c.l.b16 %v1395
          %v2086 = vunpack.c.h.b16 %v1395
          %v2087 = vunpack.c.l.b16 %v1396
          %v2088 = vunpack.c.h.b16 %v1396
          %v2089 = vunpack.c.l.b16 %v1397
          %v2090 = vunpack.c.h.b16 %v1397
          %v2091 = vunpack.c.l.b16 %v1398
          %v2092 = vunpack.c.h.b16 %v1398
          %v2093 = vunpack.c.l.b16 %v1399
          %v2094 = vunpack.c.h.b16 %v1399
          %v2095 = vunpack.c.l.b16 %v1400
          %v2096 = vunpack.c.h.b16 %v1400
          %v2097 = vunpack.c.l.b16 %v1401
          %v2098 = vunpack.c.h.b16 %v1401
          %v2099 = vunpack.c.l.b16 %v1402
          %v2100 = vunpack.c.h.b16 %v1402
          %v2101 = vunpack.c.l.b16 %v1403
          %v2102 = vunpack.c.h.b16 %v1403
          %v2103 = vunpack.c.l.b16 %v1404
          %v2104 = vunpack.c.h.b16 %v1404
          %v2105 = vunpack.c.l.b16 %v1405
          %v2106 = vunpack.c.h.b16 %v1405
          %v2107 = vunpack.c.l.b16 %v1406
          %v2108 = vunpack.c.h.b16 %v1406
          %v2109 = vunpack.c.l.b16 %v1407
          %v2110 = vunpack.c.h.b16 %v1407
          %v2111 = vunpack.c.l.b16 %v1408
          %v2112 = vunpack.c.h.b16 %v1408
          %v2113 = vunpack.c.l.b16 %v1409
          %v2114 = vunpack.c.h.b16 %v1409
          %v2115 = vunpack.c.l.b16 %v1410
          %v2116 = vunpack.c.h.b16 %v1410
          %v2117 = vunpack.c.l.b16 %v1411
          %v2118 = vunpack.c.h.b16 %v1411
          %v2119 = vunpack.c.l.b16 %v1412
          %v2120 = vunpack.c.h.b16 %v1412
          %v2121 = vunpack.c.l.b16 %v1413
          %v2122 = vunpack.c.h.b16 %v1413
          %v2123 = vunpack.c.l.b16 %v1414
          %v2124 = vunpack.c.h.b16 %v1414
          %v2125 = vunpack.c.l.b16 %v1415
          %v2126 = vunpack.c.h.b16 %v1415
          %v2127 = vunpack.c.l.b16 %v1416
          %v2128 = vunpack.c.h.b16 %v1416
          %v2129 = vunpack.c.l.b16 %v1417
          %v2130 = vunpack.c.h.b16 %v1417
          %v2131 = vunpack.c.l.b16 %v1418
          %v2132 = vunpack.c.h.b16 %v1418
          %v2133 = vunpack.c.l.b16 %v1419
          %v2134 = vunpack.c.h.b16 %v1419
          %v2135 = vunpack.c.l.b16 %v1420
          %v2136 = vunpack.c.h.b16 %v1420
          %v2137 = vunpack.c.l.b16 %v1421
          %v2138 = vunpack.c.h.b16 %v1421
          %v2139 = vunpack.c.l.b16 %v1422
          %v2140 = vunpack.c.h.b16 %v1422
          %v2141 = vunpack.c.l.b16 %v1423
          %v2142 = vunpack.c.h.b16 %v1423
          %v2143 = vunpack.c.l.b16 %v1424
          %v2144 = vunpack.c.h.b16 %v1424
          %v2145 = vunpack.c.l.b16 %v1425
          %v2146 = vunpack.c.h.b16 %v1425
          %v2147 = vunpack.c.l.b16 %v1426
          %v2148 = vunpack.c.h.b16 %v1426
          %v2149 = vunpack.c.l.b16 %v1427
          %v2150 = vunpack.c.h.b16 %v1427
          %v2151 = vunpack.c.l.b16 %v1428
          %v2152 = vunpack.c.h.b16 %v1428
          %v2153 = vunpack.c.l.b16 %v1429
          %v2154 = vunpack.c.h.b16 %v1429
          %v2155 = vunpack.c.l.b16 %v1430
          %v2156 = vunpack.c.h.b16 %v1430
          %v2157 = vunpack.c.l.b16 %v1431
          %v2158 = vunpack.c.h.b16 %v1431
          %v2159 = vunpack.c.l.b16 %v1432
          %v2160 = vunpack.c.h.b16 %v1432
          %v2161 = vunpack.c.l.b16 %v1433
          %v2162 = vunpack.c.h.b16 %v1433
          %v2163 = vunpack.c.l.b16 %v1434
          %v2164 = vunpack.c.h.b16 %v1434
          %v2165 = vunpack.c.l.b16 %v1435
          %v2166 = vunpack.c.h.b16 %v1435
          %v2167 = vunpack.c.l.b16 %v1436
          %v2168 = vunpack.c.h.b16 %v1436
          %v2169 = vunpack.c.l.b16 %v1437
          %v2170 = vunpack.c.h.b16 %v1437
          %v2171 = vunpack.c.l.b16 %v1438
          %v2172 = vunpack.c.h.b16 %v1438
          %v2173 = vunpack.c.l.b16 %v1439
          %v2174 = vunpack.c.h.b16 %v1439
          %v2175 = vunpack.c.l.b16 %v1440
          %v2176 = vunpack.c.h.b16 %v1440
          %v2177 = vunpack.c.l.b16 %v1441
          %v2178 = vunpack.c.h.b16 %v1441
          %v2179 = vunpack.c.l.b16 %v1442
          %v2180 = vunpack.c.h.b16 %v1442
          %v2181 = vunpack.c.l.b16 %v1443
          %v2182 = vunpack.c.h.b16 %v1443
          %v2183 = vunpack.c.l.b16 %v1444
          %v2184 = vunpack.c.h.b16 %v1444
          %v2185 = vunpack.c.l.b16 %v1445
          %v2186 = vunpack.c.h.b16 %v1445
          %v2187 = vunpack.c.l.b16 %v1446
          %v2188 = vunpack.c.h.b16 %v1446
          %v2189 = vunpack.c.l.b16 %v1447
          %v2190 = vunpack.c.h.b16 %v1447
          %v2191 = vunpack.c.l.b16 %v1448
          %v2192 = vunpack.c.h.b16 %v1448
          %v2193 = vunpack.c.l.b16 %v1449
          %v2194 = vunpack.c.h.b16 %v1449
          %v2195 = vunpack.c.l.b16 %v1450
          %v2196 = vunpack.c.h.b16 %v1450
          %v2197 = vunpack.c.l.b16 %v1451
          %v2198 = vunpack.c.h.b16 %v1451
          %v2199 = vunpack.c.l.b16 %v1452
          %v2200 = vunpack.c.h.b16 %v1452
          %v2201 = vunpack.c.l.b16 %v1453
          %v2202 = vunpack.c.h.b16 %v1453
          %v2203 = vunpack.c.l.b16 %v1454
          %v2204 = vunpack.c.h.b16 %v1454
          %v2205 = vunpack.c.l.b16 %v1455
          %v2206 = vunpack.c.h.b16 %v1455
          %v2207 = vunpack.c.l.b16 %v1456
          %v2208 = vunpack.c.h.b16 %v1456
          %v2209 = vunpack.c.l.b16 %v1457
          %v2210 = vunpack.c.h.b16 %v1457
          %v2211 = vunpack.c.l.b16 %v1458
          %v2212 = vunpack.c.h.b16 %v1458
          %v2213 = vunpack.c.l.b16 %v1459
          %v2214 = vunpack.c.h.b16 %v1459
          %v2215 = vunpack.c.l.b16 %v1460
          %v2216 = vunpack.c.h.b16 %v1460
          %v2217 = vunpack.c.l.b16 %v1461
          %v2218 = vunpack.c.h.b16 %v1461
          %v2219 = vunpack.c.l.b16 %v1462
          %v2220 = vunpack.c.h.b16 %v1462
          %v2221 = vunpack.c.l.b16 %v1463
          %v2222 = vunpack.c.h.b16 %v1463
          %v2223 = vunpack.c.l.b16 %v1464
          %v2224 = vunpack.c.h.b16 %v1464
          %v2225 = vunpack.c.l.b16 %v1465
          %v2226 = vunpack.c.h.b16 %v1465
          %v2227 = vunpack.c.l.b16 %v1466
          %v2228 = vunpack.c.h.b16 %v1466
          %v2229 = vunpack.c.l.b16 %v1467
          %v2230 = vunpack.c.h.b16 %v1467
          %v2231 = vunpack.c.l.b16 %v1468
          %v2232 = vunpack.c.h.b16 %v1468
          %v2233 = vunpack.c.l.b16 %v1469
          %v2234 = vunpack.c.h.b16 %v1469
          %v2235 = vunpack.c.l.b16 %v1470
          %v2236 = vunpack.c.h.b16 %v1470
          %v2237 = vunpack.c.l.b16 %v1471
          %v2238 = vunpack.c.h.b16 %v1471
          %v2239 = vunpack.c.l.b16 %v1472
          %v2240 = vunpack.c.h.b16 %v1472
          %v2241 = vunpack.c.l.b16 %v1473
          %v2242 = vunpack.c.h.b16 %v1473
          %v2243 = vunpack.c.l.b16 %v1474
          %v2244 = vunpack.c.h.b16 %v1474
          %v2245 = vunpack.c.l.b16 %v1475
          %v2246 = vunpack.c.h.b16 %v1475
          %v2247 = vunpack.c.l.b16 %v1476
          %v2248 = vunpack.c.h.b16 %v1476
          %v2249 = vunpack.c.l.b16 %v1477
          %v2250 = vunpack.c.h.b16 %v1477
          %v2251 = vunpack.c.l.b16 %v1478
          %v2252 = vunpack.c.h.b16 %v1478
          %v2253 = vunpack.c.l.b16 %v1479
          %v2254 = vunpack.c.h.b16 %v1479
          %v2255 = vunpack.c.l.b16 %v1480
          %v2256 = vunpack.c.h.b16 %v1480
          %v2257 = vunpack.c.l.b16 %v1481
          %v2258 = vunpack.c.h.b16 %v1481
          %v2259 = vunpack.c.l.b16 %v1482
          %v2260 = vunpack.c.h.b16 %v1482
          %v2261 = vunpack.c.l.b16 %v1483
          %v2262 = vunpack.c.h.b16 %v1483
          %v2263 = vunpack.c.l.b16 %v1484
          %v2264 = vunpack.c.h.b16 %v1484
          %v2265 = vunpack.c.l.b16 %v1485
          %v2266 = vunpack.c.h.b16 %v1485
          %v2267 = vunpack.c.l.b16 %v1486
          %v2268 = vunpack.c.h.b16 %v1486
          %v2269 = vunpack.c.l.b16 %v1487
          %v2270 = vunpack.c.h.b16 %v1487
          %v2271 = vunpack.c.l.b16 %v1488
          %v2272 = vunpack.c.h.b16 %v1488
          %v2273 = vunpack.c.l.b16 %v1489
          %v2274 = vunpack.c.h.b16 %v1489
          %v2275 = vunpack.c.l.b16 %v1490
          %v2276 = vunpack.c.h.b16 %v1490
          %v2277 = vunpack.c.l.b16 %v1491
          %v2278 = vunpack.c.h.b16 %v1491
          %v2279 = vunpack.c.l.b16 %v1492
          %v2280 = vunpack.c.h.b16 %v1492
          %v2281 = vunpack.c.l.b16 %v1493
          %v2282 = vunpack.c.h.b16 %v1493
          %v2283 = vunpack.c.l.b16 %v1494
          %v2284 = vunpack.c.h.b16 %v1494
          %v2285 = vunpack.c.l.b16 %v1495
          %v2286 = vunpack.c.h.b16 %v1495
          %v2287 = vunpack.c.l.b16 %v1496
          %v2288 = vunpack.c.h.b16 %v1496
          %v2289 = vunpack.c.l.b16 %v1497
          %v2290 = vunpack.c.h.b16 %v1497
          %v2291 = vpack.c.b16 %v1787, %v1779
          %v2292 = vpack.c.b16 %v1788, %v1780
          %v2293 = vpack.c.b16 %v1789, %v1781
          %v2294 = vpack.c.b16 %v1790, %v1782
          %v2295 = vpack.c.b16 %v1791, %v1783
          %v2296 = vpack.c.b16 %v1792, %v1784
          %v2297 = vpack.c.b16 %v1793, %v1785
          %v2298 = vpack.c.b16 %v1794, %v1786
          %v2299 = vpack.c.b16 %v1803, %v1795
          %v2300 = vpack.c.b16 %v1804, %v1796
          %v2301 = vpack.c.b16 %v1805, %v1797
          %v2302 = vpack.c.b16 %v1806, %v1798
          %v2303 = vpack.c.b16 %v1807, %v1799
          %v2304 = vpack.c.b16 %v1808, %v1800
          %v2305 = vpack.c.b16 %v1809, %v1801
          %v2306 = vpack.c.b16 %v1810, %v1802
          %v2307 = vpack.c.b16 %v1819, %v1811
          %v2308 = vpack.c.b16 %v1820, %v1812
          %v2309 = vpack.c.b16 %v1821, %v1813
          %v2310 = vpack.c.b16 %v1822, %v1814
          %v2311 = vpack.c.b16 %v1823, %v1815
          %v2312 = vpack.c.b16 %v1824, %v1816
          %v2313 = vpack.c.b16 %v1825, %v1817
          %v2314 = vpack.c.b16 %v1826, %v1818
          %v2315 = vpack.c.b16 %v1835, %v1827
          %v2316 = vpack.c.b16 %v1836, %v1828
          %v2317 = vpack.c.b16 %v1837, %v1829
          %v2318 = vpack.c.b16 %v1838, %v1830
          %v2319 = vpack.c.b16 %v1839, %v1831
          %v2320 = vpack.c.b16 %v1840, %v1832
          %v2321 = vpack.c.b16 %v1841, %v1833
          %v2322 = vpack.c.b16 %v1842, %v1834
          %v2323 = vpack.c.b16 %v1851, %v1843
          %v2324 = vpack.c.b16 %v1852, %v1844
          %v2325 = vpack.c.b16 %v1853, %v1845
          %v2326 = vpack.c.b16 %v1854, %v1846
          %v2327 = vpack.c.b16 %v1855, %v1847
          %v2328 = vpack.c.b16 %v1856, %v1848
          %v2329 = vpack.c.b16 %v1857, %v1849
          %v2330 = vpack.c.b16 %v1858, %v1850
          %v2331 = vpack.c.b16 %v1867, %v1859
          %v2332 = vpack.c.b16 %v1868, %v1860
          %v2333 = vpack.c.b16 %v1869, %v1861
          %v2334 = vpack.c.b16 %v1870, %v1862
          %v2335 = vpack.c.b16 %v1871, %v1863
          %v2336 = vpack.c.b16 %v1872, %v1864
          %v2337 = vpack.c.b16 %v1873, %v1865
          %v2338 = vpack.c.b16 %v1874, %v1866
          %v2339 = vpack.c.b16 %v1883, %v1875
          %v2340 = vpack.c.b16 %v1884, %v1876
          %v2341 = vpack.c.b16 %v1885, %v1877
          %v2342 = vpack.c.b16 %v1886, %v1878
          %v2343 = vpack.c.b16 %v1887, %v1879
          %v2344 = vpack.c.b16 %v1888, %v1880
          %v2345 = vpack.c.b16 %v1889, %v1881
          %v2346 = vpack.c.b16 %v1890, %v1882
          %v2347 = vpack.c.b16 %v1899, %v1891
          %v2348 = vpack.c.b16 %v1900, %v1892
          %v2349 = vpack.c.b16 %v1901, %v1893
          %v2350 = vpack.c.b16 %v1902, %v1894
          %v2351 = vpack.c.b16 %v1903, %v1895
          %v2352 = vpack.c.b16 %v1904, %v1896
          %v2353 = vpack.c.b16 %v1905, %v1897
          %v2354 = vpack.c.b16 %v1906, %v1898
          %v2355 = vpack.c.b16 %v1915, %v1907
          %v2356 = vpack.c.b16 %v1916, %v1908
          %v2357 = vpack.c.b16 %v1917, %v1909
          %v2358 = vpack.c.b16 %v1918, %v1910
          %v2359 = vpack.c.b16 %v1919, %v1911
          %v2360 = vpack.c.b16 %v1920, %v1912
          %v2361 = vpack.c.b16 %v1921, %v1913
          %v2362 = vpack.c.b16 %v1922, %v1914
          %v2363 = vpack.c.b16 %v1931, %v1923
          %v2364 = vpack.c.b16 %v1932, %v1924
          %v2365 = vpack.c.b16 %v1933, %v1925
          %v2366 = vpack.c.b16 %v1934, %v1926
          %v2367 = vpack.c.b16 %v1935, %v1927
          %v2368 = vpack.c.b16 %v1936, %v1928
          %v2369 = vpack.c.b16 %v1937, %v1929
          %v2370 = vpack.c.b16 %v1938, %v1930
          %v2371 = vpack.c.b16 %v1947, %v1939
          %v2372 = vpack.c.b16 %v1948, %v1940
          %v2373 = vpack.c.b16 %v1949, %v1941
          %v2374 = vpack.c.b16 %v1950, %v1942
          %v2375 = vpack.c.b16 %v1951, %v1943
          %v2376 = vpack.c.b16 %v1952, %v1944
          %v2377 = vpack.c.b16 %v1953, %v1945
          %v2378 = vpack.c.b16 %v1954, %v1946
          %v2379 = vpack.c.b16 %v1963, %v1955
          %v2380 = vpack.c.b16 %v1964, %v1956
          %v2381 = vpack.c.b16 %v1965, %v1957
          %v2382 = vpack.c.b16 %v1966, %v1958
          %v2383 = vpack.c.b16 %v1967, %v1959
          %v2384 = vpack.c.b16 %v1968, %v1960
          %v2385 = vpack.c.b16 %v1969, %v1961
          %v2386 = vpack.c.b16 %v1970, %v1962
          %v2387 = vpack.c.b16 %v1979, %v1971
          %v2388 = vpack.c.b16 %v1980, %v1972
          %v2389 = vpack.c.b16 %v1981, %v1973
          %v2390 = vpack.c.b16 %v1982, %v1974
          %v2391 = vpack.c.b16 %v1983, %v1975
          %v2392 = vpack.c.b16 %v1984, %v1976
          %v2393 = vpack.c.b16 %v1985, %v1977
          %v2394 = vpack.c.b16 %v1986, %v1978
          %v2395 = vpack.c.b16 %v1995, %v1987
          %v2396 = vpack.c.b16 %v1996, %v1988
          %v2397 = vpack.c.b16 %v1997, %v1989
          %v2398 = vpack.c.b16 %v1998, %v1990
          %v2399 = vpack.c.b16 %v1999, %v1991
          %v2400 = vpack.c.b16 %v2000, %v1992
          %v2401 = vpack.c.b16 %v2001, %v1993
          %v2402 = vpack.c.b16 %v2002, %v1994
          %v2403 = vpack.c.b16 %v2011, %v2003
          %v2404 = vpack.c.b16 %v2012, %v2004
          %v2405 = vpack.c.b16 %v2013, %v2005
          %v2406 = vpack.c.b16 %v2014, %v2006
          %v2407 = vpack.c.b16 %v2015, %v2007
          %v2408 = vpack.c.b16 %v2016, %v2008
          %v2409 = vpack.c.b16 %v2017, %v2009
          %v2410 = vpack.c.b16 %v2018, %v2010
          %v2411 = vpack.c.b16 %v2027, %v2019
          %v2412 = vpack.c.b16 %v2028, %v2020
          %v2413 = vpack.c.b16 %v2029, %v2021
          %v2414 = vpack.c.b16 %v2030, %v2022
          %v2415 = vpack.c.b16 %v2031, %v2023
          %v2416 = vpack.c.b16 %v2032, %v2024
          %v2417 = vpack.c.b16 %v2033, %v2025
          %v2418 = vpack.c.b16 %v2034, %v2026
          %v2419 = vpack.c.b16 %v2043, %v2035
          %v2420 = vpack.c.b16 %v2044, %v2036
          %v2421 = vpack.c.b16 %v2045, %v2037
          %v2422 = vpack.c.b16 %v2046, %v2038
          %v2423 = vpack.c.b16 %v2047, %v2039
          %v2424 = vpack.c.b16 %v2048, %v2040
          %v2425 = vpack.c.b16 %v2049, %v2041
          %v2426 = vpack.c.b16 %v2050, %v2042
          %v2427 = vpack.c.b16 %v2059, %v2051
          %v2428 = vpack.c.b16 %v2060, %v2052
          %v2429 = vpack.c.b16 %v2061, %v2053
          %v2430 = vpack.c.b16 %v2062, %v2054
          %v2431 = vpack.c.b16 %v2063, %v2055
          %v2432 = vpack.c.b16 %v2064, %v2056
          %v2433 = vpack.c.b16 %v2065, %v2057
          %v2434 = vpack.c.b16 %v2066, %v2058
          %v2435 = vpack.c.b16 %v2075, %v2067
          %v2436 = vpack.c.b16 %v2076, %v2068
          %v2437 = vpack.c.b16 %v2077, %v2069
          %v2438 = vpack.c.b16 %v2078, %v2070
          %v2439 = vpack.c.b16 %v2079, %v2071
          %v2440 = vpack.c.b16 %v2080, %v2072
          %v2441 = vpack.c.b16 %v2081, %v2073
          %v2442 = vpack.c.b16 %v2082, %v2074
          %v2443 = vpack.c.b16 %v2091, %v2083
          %v2444 = vpack.c.b16 %v2092, %v2084
          %v2445 = vpack.c.b16 %v2093, %v2085
          %v2446 = vpack.c.b16 %v2094, %v2086
          %v2447 = vpack.c.b16 %v2095, %v2087
          %v2448 = vpack.c.b16 %v2096, %v2088
          %v2449 = vpack.c.b16 %v2097, %v2089
          %v2450 = vpack.c.b16 %v2098, %v2090
          %v2451 = vpack.c.b16 %v2107, %v2099
          %v2452 = vpack.c.b16 %v2108, %v2100
          %v2453 = vpack.c.b16 %v2109, %v2101
          %v2454 = vpack.c.b16 %v2110, %v2102
          %v2455 = vpack.c.b16 %v2111, %v2103
          %v2456 = vpack.c.b16 %v2112, %v2104
          %v2457 = vpack.c.b16 %v2113, %v2105
          %v2458 = vpack.c.b16 %v2114, %v2106
          %v2459 = vpack.c.b16 %v2123, %v2115
          %v2460 = vpack.c.b16 %v2124, %v2116
          %v2461 = vpack.c.b16 %v2125, %v2117
          %v2462 = vpack.c.b16 %v2126, %v2118
          %v2463 = vpack.c.b16 %v2127, %v2119
          %v2464 = vpack.c.b16 %v2128, %v2120
          %v2465 = vpack.c.b16 %v2129, %v2121
          %v2466 = vpack.c.b16 %v2130, %v2122
          %v2467 = vpack.c.b16 %v2139, %v2131
          %v2468 = vpack.c.b16 %v2140, %v2132
          %v2469 = vpack.c.b16 %v2141, %v2133
          %v2470 = vpack.c.b16 %v2142, %v2134
          %v2471 = vpack.c.b16 %v2143, %v2135
          %v2472 = vpack.c.b16 %v2144, %v2136
          %v2473 = vpack.c.b16 %v2145, %v2137
          %v2474 = vpack.c.b16 %v2146, %v2138
          %v2475 = vpack.c.b16 %v2155, %v2147
          %v2476 = vpack.c.b16 %v2156, %v2148
          %v2477 = vpack.c.b16 %v2157, %v2149
          %v2478 = vpack.c.b16 %v2158, %v2150
          %v2479 = vpack.c.b16 %v2159, %v2151
          %v2480 = vpack.c.b16 %v2160, %v2152
          %v2481 = vpack.c.b16 %v2161, %v2153
          %v2482 = vpack.c.b16 %v2162, %v2154
          %v2483 = vpack.c.b16 %v2171, %v2163
          %v2484 = vpack.c.b16 %v2172, %v2164
          %v2485 = vpack.c.b16 %v2173, %v2165
          %v2486 = vpack.c.b16 %v2174, %v2166
          %v2487 = vpack.c.b16 %v2175, %v2167
          %v2488 = vpack.c.b16 %v2176, %v2168
          %v2489 = vpack.c.b16 %v2177, %v2169
          %v2490 = vpack.c.b16 %v2178, %v2170
          %v2491 = vpack.c.b16 %v2187, %v2179
          %v2492 = vpack.c.b16 %v2188, %v2180
          %v2493 = vpack.c.b16 %v2189, %v2181
          %v2494 = vpack.c.b16 %v2190, %v2182
          %v2495 = vpack.c.b16 %v2191, %v2183
          %v2496 = vpack.c.b16 %v2192, %v2184
          %v2497 = vpack.c.b16 %v2193, %v2185
          %v2498 = vpack.c.b16 %v2194, %v2186
          %v2499 = vpack.c.b16 %v2203, %v2195
          %v2500 = vpack.c.b16 %v2204, %v2196
          %v2501 = vpack.c.b16 %v2205, %v2197
          %v2502 = vpack.c.b16 %v2206, %v2198
          %v2503 = vpack.c.b16 %v2207, %v2199
          %v2504 = vpack.c.b16 %v2208, %v2200
          %v2505 = vpack.c.b16 %v2209, %v2201
          %v2506 = vpack.c.b16 %v2210, %v2202
          %v2507 = vpack.c.b16 %v2219, %v2211
          %v2508 = vpack.c.b16 %v2220, %v2212
          %v2509 = vpack.c.b16 %v2221, %v2213
          %v2510 = vpack.c.b16 %v2222, %v2214
          %v2511 = vpack.c.b16 %v2223, %v2215
          %v2512 = vpack.c.b16 %v2224, %v2216
          %v2513 = vpack.c.b16 %v2225, %v2217
          %v2514 = vpack.c.b16 %v2226, %v2218
          %v2515 = vpack.c.b16 %v2235, %v2227
          %v2516 = vpack.c.b16 %v2236, %v2228
          %v2517 = vpack.c.b16 %v2237, %v2229
          %v2518 = vpack.c.b16 %v2238, %v2230
          %v2519 = vpack.c.b16 %v2239, %v2231
          %v2520 = vpack.c.b16 %v2240, %v2232
          %v2521 = vpack.c.b16 %v2241, %v2233
          %v2522 = vpack.c.b16 %v2242, %v2234
          %v2523 = vpack.c.b16 %v2251, %v2243
          %v2524 = vpack.c.b16 %v2252, %v2244
          %v2525 = vpack.c.b16 %v2253, %v2245
          %v2526 = vpack.c.b16 %v2254, %v2246
          %v2527 = vpack.c.b16 %v2255, %v2247
          %v2528 = vpack.c.b16 %v2256, %v2248
          %v2529 = vpack.c.b16 %v2257, %v2249
          %v2530 = vpack.c.b16 %v2258, %v2250
          %v2531 = vpack.c.b16 %v2267, %v2259
          %v2532 = vpack.c.b16 %v2268, %v2260
          %v2533 = vpack.c.b16 %v2269, %v2261
          %v2534 = vpack.c.b16 %v2270, %v2262
          %v2535 = vpack.c.b16 %v2271, %v2263
          %v2536 = vpack.c.b16 %v2272, %v2264
          %v2537 = vpack.c.b16 %v2273, %v2265
          %v2538 = vpack.c.b16 %v2274, %v2266
          %v2539 = vpack.c.b16 %v2283, %v2275
          %v2540 = vpack.c.b16 %v2284, %v2276
          %v2541 = vpack.c.b16 %v2285, %v2277
          %v2542 = vpack.c.b16 %v2286, %v2278
          %v2543 = vpack.c.b16 %v2287, %v2279
          %v2544 = vpack.c.b16 %v2288, %v2280
          %v2545 = vpack.c.b16 %v2289, %v2281
          %v2546 = vpack.c.b16 %v2290, %v2282
          %2803 = vmatpush.bf16.msra.mxu0 %v2347
          %2804 = vmatpush.bf16.msra.mxu0 %v2339
          %2805 = vmatpush.bf16.msra.mxu0 %v2331
          %2806 = vmatpush.bf16.msra.mxu0 %v2323
          %2807 = vmatpush.bf16.msra.mxu0 %v2315
          %2808 = vmatpush.bf16.msra.mxu0 %v2307
          %2809 = vmatpush.bf16.msra.mxu0 %v2299
          %2810 = vmatpush.bf16.msra.mxu0 %v2291
          %2811 = vmatmul.bf16.gmra.mxu0 %v1498
          %v2812 = vpop.f32.mrf.mxu0
          %v2813 = vadd.f32 %v1507, %v2812
          %v2814 = vpop.f32.mrf.mxu0
          %2815 = vdwg.mxu0
          %2816 = vmatpush.bf16.msra.mxu0 %v2411
          %2817 = vmatpush.bf16.msra.mxu0 %v2403
          %2818 = vmatpush.bf16.msra.mxu0 %v2395
          %2819 = vmatpush.bf16.msra.mxu0 %v2387
          %2820 = vmatpush.bf16.msra.mxu0 %v2379
          %2821 = vmatpush.bf16.msra.mxu0 %v2371
          %2822 = vmatpush.bf16.msra.mxu0 %v2363
          %2823 = vmatpush.bf16.msra.mxu0 %v2355
          %2824 = vmatmul.bf16.gmra.mxu0 %v1499
          %v2825 = vpop.f32.mrf.mxu0
          %v2826 = vadd.f32 %v2813, %v2825
          %v2827 = vpop.f32.mrf.mxu0
          %2828 = vdwg.mxu0
          %2829 = vmatpush.bf16.msra.mxu0 %v2475
          %2830 = vmatpush.bf16.msra.mxu0 %v2467
          %2831 = vmatpush.bf16.msra.mxu0 %v2459
          %2832 = vmatpush.bf16.msra.mxu0 %v2451
          %2833 = vmatpush.bf16.msra.mxu0 %v2443
          %2834 = vmatpush.bf16.msra.mxu0 %v2435
          %2835 = vmatpush.bf16.msra.mxu0 %v2427
          %2836 = vmatpush.bf16.msra.mxu0 %v2419
          %2837 = vmatmul.bf16.gmra.mxu0 %v1500
          %v2838 = vpop.f32.mrf.mxu0
          %v2839 = vadd.f32 %v2826, %v2838
          %v2840 = vpop.f32.mrf.mxu0
          %2841 = vdwg.mxu0
          %2842 = vmatpush.bf16.msra.mxu0 %v2539
          %2843 = vmatpush.bf16.msra.mxu0 %v2531
          %2844 = vmatpush.bf16.msra.mxu0 %v2523
          %2845 = vmatpush.bf16.msra.mxu0 %v2515
          %2846 = vmatpush.bf16.msra.mxu0 %v2507
          %2847 = vmatpush.bf16.msra.mxu0 %v2499
          %2848 = vmatpush.bf16.msra.mxu0 %v2491
          %2849 = vmatpush.bf16.msra.mxu0 %v2483
          %2850 = vmatmul.bf16.gmra.mxu0 %v1501
          %v2851 = vpop.f32.mrf.mxu0
          %v2852 = vadd.f32 %v2839, %v2851
          %v2853 = vpop.f32.mrf.mxu0
          %2854 = vdwg.mxu0
          %2855 = vmatpush.bf16.msra.mxu0 %v2348
          %2856 = vmatpush.bf16.msra.mxu0 %v2340
          %2857 = vmatpush.bf16.msra.mxu0 %v2332
          %2858 = vmatpush.bf16.msra.mxu0 %v2324
          %2859 = vmatpush.bf16.msra.mxu0 %v2316
          %2860 = vmatpush.bf16.msra.mxu0 %v2308
          %2861 = vmatpush.bf16.msra.mxu0 %v2300
          %2862 = vmatpush.bf16.msra.mxu0 %v2292
          %2863 = vmatmul.bf16.gmra.mxu0 %v1498
          %v2864 = vpop.f32.mrf.mxu0
          %v2865 = vadd.f32 %v1508, %v2864
          %v2866 = vpop.f32.mrf.mxu0
          %2867 = vdwg.mxu0
          %2868 = vmatpush.bf16.msra.mxu0 %v2412
          %2869 = vmatpush.bf16.msra.mxu0 %v2404
          %2870 = vmatpush.bf16.msra.mxu0 %v2396
          %2871 = vmatpush.bf16.msra.mxu0 %v2388
          %2872 = vmatpush.bf16.msra.mxu0 %v2380
          %2873 = vmatpush.bf16.msra.mxu0 %v2372
          %2874 = vmatpush.bf16.msra.mxu0 %v2364
          %2875 = vmatpush.bf16.msra.mxu0 %v2356
          %2876 = vmatmul.bf16.gmra.mxu0 %v1499
          %v2877 = vpop.f32.mrf.mxu0
          %v2878 = vadd.f32 %v2865, %v2877
          %v2879 = vpop.f32.mrf.mxu0
          %2880 = vdwg.mxu0
          %2881 = vmatpush.bf16.msra.mxu0 %v2476
          %2882 = vmatpush.bf16.msra.mxu0 %v2468
          %2883 = vmatpush.bf16.msra.mxu0 %v2460
          %2884 = vmatpush.bf16.msra.mxu0 %v2452
          %2885 = vmatpush.bf16.msra.mxu0 %v2444
          %2886 = vmatpush.bf16.msra.mxu0 %v2436
          %2887 = vmatpush.bf16.msra.mxu0 %v2428
          %2888 = vmatpush.bf16.msra.mxu0 %v2420
          %2889 = vmatmul.bf16.gmra.mxu0 %v1500
          %v2890 = vpop.f32.mrf.mxu0
          %v2891 = vadd.f32 %v2878, %v2890
          %v2892 = vpop.f32.mrf.mxu0
          %2893 = vdwg.mxu0
          %2894 = vmatpush.bf16.msra.mxu0 %v2540
          %2895 = vmatpush.bf16.msra.mxu0 %v2532
          %2896 = vmatpush.bf16.msra.mxu0 %v2524
          %2897 = vmatpush.bf16.msra.mxu0 %v2516
          %2898 = vmatpush.bf16.msra.mxu0 %v2508
          %2899 = vmatpush.bf16.msra.mxu0 %v2500
          %2900 = vmatpush.bf16.msra.mxu0 %v2492
          %2901 = vmatpush.bf16.msra.mxu0 %v2484
          %2902 = vmatmul.bf16.gmra.mxu0 %v1501
          %v2903 = vpop.f32.mrf.mxu0
          %v2904 = vadd.f32 %v2891, %v2903
          %v2905 = vpop.f32.mrf.mxu0
          %2906 = vdwg.mxu0
          %2907 = vmatpush.bf16.msra.mxu0 %v2349
          %2908 = vmatpush.bf16.msra.mxu0 %v2341
          %2909 = vmatpush.bf16.msra.mxu0 %v2333
          %2910 = vmatpush.bf16.msra.mxu0 %v2325
          %2911 = vmatpush.bf16.msra.mxu0 %v2317
          %2912 = vmatpush.bf16.msra.mxu0 %v2309
          %2913 = vmatpush.bf16.msra.mxu0 %v2301
          %2914 = vmatpush.bf16.msra.mxu0 %v2293
          %2915 = vmatmul.bf16.gmra.mxu0 %v1498
          %v2916 = vpop.f32.mrf.mxu0
          %v2917 = vadd.f32 %v1509, %v2916
          %v2918 = vpop.f32.mrf.mxu0
          %2919 = vdwg.mxu0
          %2920 = vmatpush.bf16.msra.mxu0 %v2413
          %2921 = vmatpush.bf16.msra.mxu0 %v2405
          %2922 = vmatpush.bf16.msra.mxu0 %v2397
          %2923 = vmatpush.bf16.msra.mxu0 %v2389
          %2924 = vmatpush.bf16.msra.mxu0 %v2381
          %2925 = vmatpush.bf16.msra.mxu0 %v2373
          %2926 = vmatpush.bf16.msra.mxu0 %v2365
          %2927 = vmatpush.bf16.msra.mxu0 %v2357
          %2928 = vmatmul.bf16.gmra.mxu0 %v1499
          %v2929 = vpop.f32.mrf.mxu0
          %v2930 = vadd.f32 %v2917, %v2929
          %v2931 = vpop.f32.mrf.mxu0
          %2932 = vdwg.mxu0
          %2933 = vmatpush.bf16.msra.mxu0 %v2477
          %2934 = vmatpush.bf16.msra.mxu0 %v2469
          %2935 = vmatpush.bf16.msra.mxu0 %v2461
          %2936 = vmatpush.bf16.msra.mxu0 %v2453
          %2937 = vmatpush.bf16.msra.mxu0 %v2445
          %2938 = vmatpush.bf16.msra.mxu0 %v2437
          %2939 = vmatpush.bf16.msra.mxu0 %v2429
          %2940 = vmatpush.bf16.msra.mxu0 %v2421
          %2941 = vmatmul.bf16.gmra.mxu0 %v1500
          %v2942 = vpop.f32.mrf.mxu0
          %v2943 = vadd.f32 %v2930, %v2942
          %v2944 = vpop.f32.mrf.mxu0
          %2945 = vdwg.mxu0
          %2946 = vmatpush.bf16.msra.mxu0 %v2541
          %2947 = vmatpush.bf16.msra.mxu0 %v2533
          %2948 = vmatpush.bf16.msra.mxu0 %v2525
          %2949 = vmatpush.bf16.msra.mxu0 %v2517
          %2950 = vmatpush.bf16.msra.mxu0 %v2509
          %2951 = vmatpush.bf16.msra.mxu0 %v2501
          %2952 = vmatpush.bf16.msra.mxu0 %v2493
          %2953 = vmatpush.bf16.msra.mxu0 %v2485
          %2954 = vmatmul.bf16.gmra.mxu0 %v1501
          %v2955 = vpop.f32.mrf.mxu0
          %v2956 = vadd.f32 %v2943, %v2955
          %v2957 = vpop.f32.mrf.mxu0
          %2958 = vdwg.mxu0
          %2959 = vmatpush.bf16.msra.mxu0 %v2350
          %2960 = vmatpush.bf16.msra.mxu0 %v2342
          %2961 = vmatpush.bf16.msra.mxu0 %v2334
          %2962 = vmatpush.bf16.msra.mxu0 %v2326
          %2963 = vmatpush.bf16.msra.mxu0 %v2318
          %2964 = vmatpush.bf16.msra.mxu0 %v2310
          %2965 = vmatpush.bf16.msra.mxu0 %v2302
          %2966 = vmatpush.bf16.msra.mxu0 %v2294
          %2967 = vmatmul.bf16.gmra.mxu0 %v1498
          %v2968 = vpop.f32.mrf.mxu0
          %v2969 = vadd.f32 %v1510, %v2968
          %v2970 = vpop.f32.mrf.mxu0
          %2971 = vdwg.mxu0
          %2972 = vmatpush.bf16.msra.mxu0 %v2414
          %2973 = vmatpush.bf16.msra.mxu0 %v2406
          %2974 = vmatpush.bf16.msra.mxu0 %v2398
          %2975 = vmatpush.bf16.msra.mxu0 %v2390
          %2976 = vmatpush.bf16.msra.mxu0 %v2382
          %2977 = vmatpush.bf16.msra.mxu0 %v2374
          %2978 = vmatpush.bf16.msra.mxu0 %v2366
          %2979 = vmatpush.bf16.msra.mxu0 %v2358
          %2980 = vmatmul.bf16.gmra.mxu0 %v1499
          %v2981 = vpop.f32.mrf.mxu0
          %v2982 = vadd.f32 %v2969, %v2981
          %v2983 = vpop.f32.mrf.mxu0
          %2984 = vdwg.mxu0
          %2985 = vmatpush.bf16.msra.mxu0 %v2478
          %2986 = vmatpush.bf16.msra.mxu0 %v2470
          %2987 = vmatpush.bf16.msra.mxu0 %v2462
          %2988 = vmatpush.bf16.msra.mxu0 %v2454
          %2989 = vmatpush.bf16.msra.mxu0 %v2446
          %2990 = vmatpush.bf16.msra.mxu0 %v2438
          %2991 = vmatpush.bf16.msra.mxu0 %v2430
          %2992 = vmatpush.bf16.msra.mxu0 %v2422
          %2993 = vmatmul.bf16.gmra.mxu0 %v1500
          %v2994 = vpop.f32.mrf.mxu0
          %v2995 = vadd.f32 %v2982, %v2994
          %v2996 = vpop.f32.mrf.mxu0
          %2997 = vdwg.mxu0
          %2998 = vmatpush.bf16.msra.mxu0 %v2542
          %2999 = vmatpush.bf16.msra.mxu0 %v2534
          %3000 = vmatpush.bf16.msra.mxu0 %v2526
          %3001 = vmatpush.bf16.msra.mxu0 %v2518
          %3002 = vmatpush.bf16.msra.mxu0 %v2510
          %3003 = vmatpush.bf16.msra.mxu0 %v2502
          %3004 = vmatpush.bf16.msra.mxu0 %v2494
          %3005 = vmatpush.bf16.msra.mxu0 %v2486
          %3006 = vmatmul.bf16.gmra.mxu0 %v1501
          %v3007 = vpop.f32.mrf.mxu0
          %v3008 = vadd.f32 %v2995, %v3007
          %v3009 = vpop.f32.mrf.mxu0
          %3010 = vdwg.mxu0
          %3011 = vmatpush.bf16.msra.mxu0 %v2351
          %3012 = vmatpush.bf16.msra.mxu0 %v2343
          %3013 = vmatpush.bf16.msra.mxu0 %v2335
          %3014 = vmatpush.bf16.msra.mxu0 %v2327
          %3015 = vmatpush.bf16.msra.mxu0 %v2319
          %3016 = vmatpush.bf16.msra.mxu0 %v2311
          %3017 = vmatpush.bf16.msra.mxu0 %v2303
          %3018 = vmatpush.bf16.msra.mxu0 %v2295
          %3019 = vmatmul.bf16.gmra.mxu0 %v1498
          %v3020 = vpop.f32.mrf.mxu0
          %v3021 = vadd.f32 %v1511, %v3020
          %v3022 = vpop.f32.mrf.mxu0
          %3023 = vdwg.mxu0
          %3024 = vmatpush.bf16.msra.mxu0 %v2415
          %3025 = vmatpush.bf16.msra.mxu0 %v2407
          %3026 = vmatpush.bf16.msra.mxu0 %v2399
          %3027 = vmatpush.bf16.msra.mxu0 %v2391
          %3028 = vmatpush.bf16.msra.mxu0 %v2383
          %3029 = vmatpush.bf16.msra.mxu0 %v2375
          %3030 = vmatpush.bf16.msra.mxu0 %v2367
          %3031 = vmatpush.bf16.msra.mxu0 %v2359
          %3032 = vmatmul.bf16.gmra.mxu0 %v1499
          %v3033 = vpop.f32.mrf.mxu0
          %v3034 = vadd.f32 %v3021, %v3033
          %v3035 = vpop.f32.mrf.mxu0
          %3036 = vdwg.mxu0
          %3037 = vmatpush.bf16.msra.mxu0 %v2479
          %3038 = vmatpush.bf16.msra.mxu0 %v2471
          %3039 = vmatpush.bf16.msra.mxu0 %v2463
          %3040 = vmatpush.bf16.msra.mxu0 %v2455
          %3041 = vmatpush.bf16.msra.mxu0 %v2447
          %3042 = vmatpush.bf16.msra.mxu0 %v2439
          %3043 = vmatpush.bf16.msra.mxu0 %v2431
          %3044 = vmatpush.bf16.msra.mxu0 %v2423
          %3045 = vmatmul.bf16.gmra.mxu0 %v1500
          %v3046 = vpop.f32.mrf.mxu0
          %v3047 = vadd.f32 %v3034, %v3046
          %v3048 = vpop.f32.mrf.mxu0
          %3049 = vdwg.mxu0
          %3050 = vmatpush.bf16.msra.mxu0 %v2543
          %3051 = vmatpush.bf16.msra.mxu0 %v2535
          %3052 = vmatpush.bf16.msra.mxu0 %v2527
          %3053 = vmatpush.bf16.msra.mxu0 %v2519
          %3054 = vmatpush.bf16.msra.mxu0 %v2511
          %3055 = vmatpush.bf16.msra.mxu0 %v2503
          %3056 = vmatpush.bf16.msra.mxu0 %v2495
          %3057 = vmatpush.bf16.msra.mxu0 %v2487
          %3058 = vmatmul.bf16.gmra.mxu0 %v1501
          %v3059 = vpop.f32.mrf.mxu0
          %v3060 = vadd.f32 %v3047, %v3059
          %v3061 = vpop.f32.mrf.mxu0
          %3062 = vdwg.mxu0
          %3063 = vmatpush.bf16.msra.mxu0 %v2352
          %3064 = vmatpush.bf16.msra.mxu0 %v2344
          %3065 = vmatpush.bf16.msra.mxu0 %v2336
          %3066 = vmatpush.bf16.msra.mxu0 %v2328
          %3067 = vmatpush.bf16.msra.mxu0 %v2320
          %3068 = vmatpush.bf16.msra.mxu0 %v2312
          %3069 = vmatpush.bf16.msra.mxu0 %v2304
          %3070 = vmatpush.bf16.msra.mxu0 %v2296
          %3071 = vmatmul.bf16.gmra.mxu0 %v1498
          %v3072 = vpop.f32.mrf.mxu0
          %v3073 = vadd.f32 %v1512, %v3072
          %v3074 = vpop.f32.mrf.mxu0
          %3075 = vdwg.mxu0
          %3076 = vmatpush.bf16.msra.mxu0 %v2416
          %3077 = vmatpush.bf16.msra.mxu0 %v2408
          %3078 = vmatpush.bf16.msra.mxu0 %v2400
          %3079 = vmatpush.bf16.msra.mxu0 %v2392
          %3080 = vmatpush.bf16.msra.mxu0 %v2384
          %3081 = vmatpush.bf16.msra.mxu0 %v2376
          %3082 = vmatpush.bf16.msra.mxu0 %v2368
          %3083 = vmatpush.bf16.msra.mxu0 %v2360
          %3084 = vmatmul.bf16.gmra.mxu0 %v1499
          %v3085 = vpop.f32.mrf.mxu0
          %v3086 = vadd.f32 %v3073, %v3085
          %v3087 = vpop.f32.mrf.mxu0
          %3088 = vdwg.mxu0
          %3089 = vmatpush.bf16.msra.mxu0 %v2480
          %3090 = vmatpush.bf16.msra.mxu0 %v2472
          %3091 = vmatpush.bf16.msra.mxu0 %v2464
          %3092 = vmatpush.bf16.msra.mxu0 %v2456
          %3093 = vmatpush.bf16.msra.mxu0 %v2448
          %3094 = vmatpush.bf16.msra.mxu0 %v2440
          %3095 = vmatpush.bf16.msra.mxu0 %v2432
          %3096 = vmatpush.bf16.msra.mxu0 %v2424
          %3097 = vmatmul.bf16.gmra.mxu0 %v1500
          %v3098 = vpop.f32.mrf.mxu0
          %v3099 = vadd.f32 %v3086, %v3098
          %v3100 = vpop.f32.mrf.mxu0
          %3101 = vdwg.mxu0
          %3102 = vmatpush.bf16.msra.mxu0 %v2544
          %3103 = vmatpush.bf16.msra.mxu0 %v2536
          %3104 = vmatpush.bf16.msra.mxu0 %v2528
          %3105 = vmatpush.bf16.msra.mxu0 %v2520
          %3106 = vmatpush.bf16.msra.mxu0 %v2512
          %3107 = vmatpush.bf16.msra.mxu0 %v2504
          %3108 = vmatpush.bf16.msra.mxu0 %v2496
          %3109 = vmatpush.bf16.msra.mxu0 %v2488
          %3110 = vmatmul.bf16.gmra.mxu0 %v1501
          %v3111 = vpop.f32.mrf.mxu0
          %v3112 = vadd.f32 %v3099, %v3111
          %v3113 = vpop.f32.mrf.mxu0
          %3114 = vdwg.mxu0
          %3115 = vmatpush.bf16.msra.mxu0 %v2353
          %3116 = vmatpush.bf16.msra.mxu0 %v2345
          %3117 = vmatpush.bf16.msra.mxu0 %v2337
          %3118 = vmatpush.bf16.msra.mxu0 %v2329
          %3119 = vmatpush.bf16.msra.mxu0 %v2321
          %3120 = vmatpush.bf16.msra.mxu0 %v2313
          %3121 = vmatpush.bf16.msra.mxu0 %v2305
          %3122 = vmatpush.bf16.msra.mxu0 %v2297
          %3123 = vmatmul.bf16.gmra.mxu0 %v1498
          %v3124 = vpop.f32.mrf.mxu0
          %v3125 = vadd.f32 %v1513, %v3124
          %v3126 = vpop.f32.mrf.mxu0
          %3127 = vdwg.mxu0
          %3128 = vmatpush.bf16.msra.mxu0 %v2417
          %3129 = vmatpush.bf16.msra.mxu0 %v2409
          %3130 = vmatpush.bf16.msra.mxu0 %v2401
          %3131 = vmatpush.bf16.msra.mxu0 %v2393
          %3132 = vmatpush.bf16.msra.mxu0 %v2385
          %3133 = vmatpush.bf16.msra.mxu0 %v2377
          %3134 = vmatpush.bf16.msra.mxu0 %v2369
          %3135 = vmatpush.bf16.msra.mxu0 %v2361
          %3136 = vmatmul.bf16.gmra.mxu0 %v1499
          %v3137 = vpop.f32.mrf.mxu0
          %v3138 = vadd.f32 %v3125, %v3137
          %v3139 = vpop.f32.mrf.mxu0
          %3140 = vdwg.mxu0
          %3141 = vmatpush.bf16.msra.mxu0 %v2481
          %3142 = vmatpush.bf16.msra.mxu0 %v2473
          %3143 = vmatpush.bf16.msra.mxu0 %v2465
          %3144 = vmatpush.bf16.msra.mxu0 %v2457
          %3145 = vmatpush.bf16.msra.mxu0 %v2449
          %3146 = vmatpush.bf16.msra.mxu0 %v2441
          %3147 = vmatpush.bf16.msra.mxu0 %v2433
          %3148 = vmatpush.bf16.msra.mxu0 %v2425
          %3149 = vmatmul.bf16.gmra.mxu0 %v1500
          %v3150 = vpop.f32.mrf.mxu0
          %v3151 = vadd.f32 %v3138, %v3150
          %v3152 = vpop.f32.mrf.mxu0
          %3153 = vdwg.mxu0
          %3154 = vmatpush.bf16.msra.mxu0 %v2545
          %3155 = vmatpush.bf16.msra.mxu0 %v2537
          %3156 = vmatpush.bf16.msra.mxu0 %v2529
          %3157 = vmatpush.bf16.msra.mxu0 %v2521
          %3158 = vmatpush.bf16.msra.mxu0 %v2513
          %3159 = vmatpush.bf16.msra.mxu0 %v2505
          %3160 = vmatpush.bf16.msra.mxu0 %v2497
          %3161 = vmatpush.bf16.msra.mxu0 %v2489
          %3162 = vmatmul.bf16.gmra.mxu0 %v1501
          %v3163 = vpop.f32.mrf.mxu0
          %v3164 = vadd.f32 %v3151, %v3163
          %v3165 = vpop.f32.mrf.mxu0
          %3166 = vdwg.mxu0
          %3167 = vmatpush.bf16.msra.mxu0 %v2354
          %3168 = vmatpush.bf16.msra.mxu0 %v2346
          %3169 = vmatpush.bf16.msra.mxu0 %v2338
          %3170 = vmatpush.bf16.msra.mxu0 %v2330
          %3171 = vmatpush.bf16.msra.mxu0 %v2322
          %3172 = vmatpush.bf16.msra.mxu0 %v2314
          %3173 = vmatpush.bf16.msra.mxu0 %v2306
          %3174 = vmatpush.bf16.msra.mxu0 %v2298
          %3175 = vmatmul.bf16.gmra.mxu0 %v1498
          %v3176 = vpop.f32.mrf.mxu0
          %v3177 = vadd.f32 %v1514, %v3176
          %v3178 = vpop.f32.mrf.mxu0
          %3179 = vdwg.mxu0
          %3180 = vmatpush.bf16.msra.mxu0 %v2418
          %3181 = vmatpush.bf16.msra.mxu0 %v2410
          %3182 = vmatpush.bf16.msra.mxu0 %v2402
          %3183 = vmatpush.bf16.msra.mxu0 %v2394
          %3184 = vmatpush.bf16.msra.mxu0 %v2386
          %3185 = vmatpush.bf16.msra.mxu0 %v2378
          %3186 = vmatpush.bf16.msra.mxu0 %v2370
          %3187 = vmatpush.bf16.msra.mxu0 %v2362
          %3188 = vmatmul.bf16.gmra.mxu0 %v1499
          %v3189 = vpop.f32.mrf.mxu0
          %v3190 = vadd.f32 %v3177, %v3189
          %v3191 = vpop.f32.mrf.mxu0
          %3192 = vdwg.mxu0
          %3193 = vmatpush.bf16.msra.mxu0 %v2482
          %3194 = vmatpush.bf16.msra.mxu0 %v2474
          %3195 = vmatpush.bf16.msra.mxu0 %v2466
          %3196 = vmatpush.bf16.msra.mxu0 %v2458
          %3197 = vmatpush.bf16.msra.mxu0 %v2450
          %3198 = vmatpush.bf16.msra.mxu0 %v2442
          %3199 = vmatpush.bf16.msra.mxu0 %v2434
          %3200 = vmatpush.bf16.msra.mxu0 %v2426
          %3201 = vmatmul.bf16.gmra.mxu0 %v1500
          %v3202 = vpop.f32.mrf.mxu0
          %v3203 = vadd.f32 %v3190, %v3202
          %v3204 = vpop.f32.mrf.mxu0
          %3205 = vdwg.mxu0
          %3206 = vmatpush.bf16.msra.mxu0 %v2546
          %3207 = vmatpush.bf16.msra.mxu0 %v2538
          %3208 = vmatpush.bf16.msra.mxu0 %v2530
          %3209 = vmatpush.bf16.msra.mxu0 %v2522
          %3210 = vmatpush.bf16.msra.mxu0 %v2514
          %3211 = vmatpush.bf16.msra.mxu0 %v2506
          %3212 = vmatpush.bf16.msra.mxu0 %v2498
          %3213 = vmatpush.bf16.msra.mxu0 %v2490
          %3214 = vmatmul.bf16.gmra.mxu0 %v1501
          %v3215 = vpop.f32.mrf.mxu0
          %v3216 = vadd.f32 %v3203, %v3215
          %v3217 = vpop.f32.mrf.mxu0
          %3218 = vdwg.mxu0
          %v3219 = vmax.f32 %v2852, 0.0
          %v3220 = vmax.f32 %v2904, 0.0
          %v3221 = vmax.f32 %v2956, 0.0
          %v3222 = vmax.f32 %v3008, 0.0
          %v3223 = vmax.f32 %v3060, 0.0
          %v3224 = vmax.f32 %v3112, 0.0
          %v3225 = vmax.f32 %v3164, 0.0
          %v3226 = vmax.f32 %v3216, 0.0
          %3227 = vst [vmem:[#allocation2] sm:$0xff] %v3219
          %3228 = vst [vmem:[#allocation2 + $0x8] sm:$0xff] %v3220
          %3229 = vst [vmem:[#allocation2 + $0x10] sm:$0xff] %v3221
          %3230 = vst [vmem:[#allocation2 + $0x18] sm:$0xff] %v3222
          %3231 = vst [vmem:[#allocation2 + $0x20] sm:$0xff] %v3223
          %3232 = vst [vmem:[#allocation2 + $0x28] sm:$0xff] %v3224
          %3233 = vst [vmem:[#allocation2 + $0x30] sm:$0xff] %v3225
          %3234 = vst [vmem:[#allocation2 + $0x38] sm:$0xff] %v3226
        $region116: #{fused_forward.1} parent=67 // pred_fallthru
          _
        %v3235 = vld [vmem:[%s544] sm:$0xff]
        %v3236 = vld [vmem:[%s544 + $0x8] sm:$0xff]
        %v3237 = vld [vmem:[%s544 + $0x10] sm:$0xff]
        %v3238 = vld [vmem:[%s544 + $0x18] sm:$0xff]
        %v3239 = vld [vmem:[%s544 + $0x20] sm:$0xff]
        %v3240 = vld [vmem:[%s544 + $0x28] sm:$0xff]
        %v3241 = vld [vmem:[%s544 + $0x30] sm:$0xff]
        %v3242 = vld [vmem:[%s544 + $0x38] sm:$0xff]
        %v3243 = vld [vmem:[%s544 + $0x40] sm:$0xff]
        %v3244 = vld [vmem:[%s544 + $0x48] sm:$0xff]
        %v3245 = vld [vmem:[%s544 + $0x50] sm:$0xff]
        %v3246 = vld [vmem:[%s544 + $0x58] sm:$0xff]
        %v3247 = vld [vmem:[%s544 + $0x60] sm:$0xff]
        %v3248 = vld [vmem:[%s544 + $0x68] sm:$0xff]
        %v3249 = vld [vmem:[%s544 + $0x70] sm:$0xff]
        %v3250 = vld [vmem:[%s544 + $0x78] sm:$0xff]
        %v3251 = vld [vmem:[%s544 + $0x80] sm:$0xff]
        %v3252 = vld [vmem:[%s544 + $0x88] sm:$0xff]
        %v3253 = vld [vmem:[%s544 + $0x90] sm:$0xff]
        %v3254 = vld [vmem:[%s544 + $0x98] sm:$0xff]
        %v3255 = vld [vmem:[%s544 + $0xa0] sm:$0xff]
        %v3256 = vld [vmem:[%s544 + $0xa8] sm:$0xff]
        %v3257 = vld [vmem:[%s544 + $0xb0] sm:$0xff]
        %v3258 = vld [vmem:[%s544 + $0xb8] sm:$0xff]
        %v3259 = vld [vmem:[%s544 + $0xc0] sm:$0xff]
        %v3260 = vld [vmem:[%s544 + $0xc8] sm:$0xff]
        %v3261 = vld [vmem:[%s544 + $0xd0] sm:$0xff]
        %v3262 = vld [vmem:[%s544 + $0xd8] sm:$0xff]
        %v3263 = vld [vmem:[%s544 + $0xe0] sm:$0xff]
        %v3264 = vld [vmem:[%s544 + $0xe8] sm:$0xff]
        %v3265 = vld [vmem:[%s544 + $0xf0] sm:$0xff]
        %v3266 = vld [vmem:[%s544 + $0xf8] sm:$0xff]
        %v3267 = vld [vmem:[%s544 + $0x100] sm:$0xff]
        %v3268 = vld [vmem:[%s544 + $0x108] sm:$0xff]
        %v3269 = vld [vmem:[%s544 + $0x110] sm:$0xff]
        %v3270 = vld [vmem:[%s544 + $0x118] sm:$0xff]
        %v3271 = vld [vmem:[%s544 + $0x120] sm:$0xff]
        %v3272 = vld [vmem:[%s544 + $0x128] sm:$0xff]
        %v3273 = vld [vmem:[%s544 + $0x130] sm:$0xff]
        %v3274 = vld [vmem:[%s544 + $0x138] sm:$0xff]
        %v3275 = vld [vmem:[%s544 + $0x140] sm:$0xff]
        %v3276 = vld [vmem:[%s544 + $0x148] sm:$0xff]
        %v3277 = vld [vmem:[%s544 + $0x150] sm:$0xff]
        %v3278 = vld [vmem:[%s544 + $0x158] sm:$0xff]
        %v3279 = vld [vmem:[%s544 + $0x160] sm:$0xff]
        %v3280 = vld [vmem:[%s544 + $0x168] sm:$0xff]
        %v3281 = vld [vmem:[%s544 + $0x170] sm:$0xff]
        %v3282 = vld [vmem:[%s544 + $0x178] sm:$0xff]
        %v3283 = vld [vmem:[%s544 + $0x180] sm:$0xff]
        %v3284 = vld [vmem:[%s544 + $0x188] sm:$0xff]
        %v3285 = vld [vmem:[%s544 + $0x190] sm:$0xff]
        %v3286 = vld [vmem:[%s544 + $0x198] sm:$0xff]
        %v3287 = vld [vmem:[%s544 + $0x1a0] sm:$0xff]
        %v3288 = vld [vmem:[%s544 + $0x1a8] sm:$0xff]
        %v3289 = vld [vmem:[%s544 + $0x1b0] sm:$0xff]
        %v3290 = vld [vmem:[%s544 + $0x1b8] sm:$0xff]
        %v3291 = vld [vmem:[%s544 + $0x1c0] sm:$0xff]
        %v3292 = vld [vmem:[%s544 + $0x1c8] sm:$0xff]
        %v3293 = vld [vmem:[%s544 + $0x1d0] sm:$0xff]
        %v3294 = vld [vmem:[%s544 + $0x1d8] sm:$0xff]
        %v3295 = vld [vmem:[%s544 + $0x1e0] sm:$0xff]
        %v3296 = vld [vmem:[%s544 + $0x1e8] sm:$0xff]
        %v3297 = vld [vmem:[%s544 + $0x1f0] sm:$0xff]
        %v3298 = vld [vmem:[%s544 + $0x1f8] sm:$0xff]
        %v3299 = vld [vmem:[%s544 + $0x200] sm:$0xff]
        %v3300 = vld [vmem:[%s544 + $0x208] sm:$0xff]
        %v3301 = vld [vmem:[%s544 + $0x210] sm:$0xff]
        %v3302 = vld [vmem:[%s544 + $0x218] sm:$0xff]
        %v3303 = vld [vmem:[%s544 + $0x220] sm:$0xff]
        %v3304 = vld [vmem:[%s544 + $0x228] sm:$0xff]
        %v3305 = vld [vmem:[%s544 + $0x230] sm:$0xff]
        %v3306 = vld [vmem:[%s544 + $0x238] sm:$0xff]
        %v3307 = vld [vmem:[%s544 + $0x240] sm:$0xff]
        %v3308 = vld [vmem:[%s544 + $0x248] sm:$0xff]
        %v3309 = vld [vmem:[%s544 + $0x250] sm:$0xff]
        %v3310 = vld [vmem:[%s544 + $0x258] sm:$0xff]
        %v3311 = vld [vmem:[%s544 + $0x260] sm:$0xff]
        %v3312 = vld [vmem:[%s544 + $0x268] sm:$0xff]
        %v3313 = vld [vmem:[%s544 + $0x270] sm:$0xff]
        %v3314 = vld [vmem:[%s544 + $0x278] sm:$0xff]
        %v3315 = vld [vmem:[%s544 + $0x280] sm:$0xff]
        %v3316 = vld [vmem:[%s544 + $0x288] sm:$0xff]
        %v3317 = vld [vmem:[%s544 + $0x290] sm:$0xff]
        %v3318 = vld [vmem:[%s544 + $0x298] sm:$0xff]
        %v3319 = vld [vmem:[%s544 + $0x2a0] sm:$0xff]
        %v3320 = vld [vmem:[%s544 + $0x2a8] sm:$0xff]
        %v3321 = vld [vmem:[%s544 + $0x2b0] sm:$0xff]
        %v3322 = vld [vmem:[%s544 + $0x2b8] sm:$0xff]
        %v3323 = vld [vmem:[%s544 + $0x2c0] sm:$0xff]
        %v3324 = vld [vmem:[%s544 + $0x2c8] sm:$0xff]
        %v3325 = vld [vmem:[%s544 + $0x2d0] sm:$0xff]
        %v3326 = vld [vmem:[%s544 + $0x2d8] sm:$0xff]
        %v3327 = vld [vmem:[%s544 + $0x2e0] sm:$0xff]
        %v3328 = vld [vmem:[%s544 + $0x2e8] sm:$0xff]
        %v3329 = vld [vmem:[%s544 + $0x2f0] sm:$0xff]
        %v3330 = vld [vmem:[%s544 + $0x2f8] sm:$0xff]
        %v3331 = vld [vmem:[%s544 + $0x300] sm:$0xff]
        %v3332 = vld [vmem:[%s544 + $0x308] sm:$0xff]
        %v3333 = vld [vmem:[%s544 + $0x310] sm:$0xff]
        %v3334 = vld [vmem:[%s544 + $0x318] sm:$0xff]
        %v3335 = vld [vmem:[%s544 + $0x320] sm:$0xff]
        %v3336 = vld [vmem:[%s544 + $0x328] sm:$0xff]
        %v3337 = vld [vmem:[%s544 + $0x330] sm:$0xff]
        %v3338 = vld [vmem:[%s544 + $0x338] sm:$0xff]
        %v3339 = vld [vmem:[%s544 + $0x340] sm:$0xff]
        %v3340 = vld [vmem:[%s544 + $0x348] sm:$0xff]
        %v3341 = vld [vmem:[%s544 + $0x350] sm:$0xff]
        %v3342 = vld [vmem:[%s544 + $0x358] sm:$0xff]
        %v3343 = vld [vmem:[%s544 + $0x360] sm:$0xff]
        %v3344 = vld [vmem:[%s544 + $0x368] sm:$0xff]
        %v3345 = vld [vmem:[%s544 + $0x370] sm:$0xff]
        %v3346 = vld [vmem:[%s544 + $0x378] sm:$0xff]
        %v3347 = vld [vmem:[%s544 + $0x380] sm:$0xff]
        %v3348 = vld [vmem:[%s544 + $0x388] sm:$0xff]
        %v3349 = vld [vmem:[%s544 + $0x390] sm:$0xff]
        %v3350 = vld [vmem:[%s544 + $0x398] sm:$0xff]
        %v3351 = vld [vmem:[%s544 + $0x3a0] sm:$0xff]
        %v3352 = vld [vmem:[%s544 + $0x3a8] sm:$0xff]
        %v3353 = vld [vmem:[%s544 + $0x3b0] sm:$0xff]
        %v3354 = vld [vmem:[%s544 + $0x3b8] sm:$0xff]
        %v3355 = vld [vmem:[%s544 + $0x3c0] sm:$0xff]
        %v3356 = vld [vmem:[%s544 + $0x3c8] sm:$0xff]
        %v3357 = vld [vmem:[%s544 + $0x3d0] sm:$0xff]
        %v3358 = vld [vmem:[%s544 + $0x3d8] sm:$0xff]
        %v3359 = vld [vmem:[%s544 + $0x3e0] sm:$0xff]
        %v3360 = vld [vmem:[%s544 + $0x3e8] sm:$0xff]
        %v3361 = vld [vmem:[%s544 + $0x3f0] sm:$0xff]
        %v3362 = vld [vmem:[%s544 + $0x3f8] sm:$0xff]
        %v3363 = vld [vmem:[%s544 + $0x400] sm:$0xff]
        %v3364 = vld [vmem:[%s544 + $0x408] sm:$0xff]
        %v3365 = vld [vmem:[%s544 + $0x410] sm:$0xff]
        %v3366 = vld [vmem:[%s544 + $0x418] sm:$0xff]
        %v3367 = vld [vmem:[%s544 + $0x420] sm:$0xff]
        %v3368 = vld [vmem:[%s544 + $0x428] sm:$0xff]
        %v3369 = vld [vmem:[%s544 + $0x430] sm:$0xff]
        %v3370 = vld [vmem:[%s544 + $0x438] sm:$0xff]
        %v3371 = vld [vmem:[%s544 + $0x440] sm:$0xff]
        %v3372 = vld [vmem:[%s544 + $0x448] sm:$0xff]
        %v3373 = vld [vmem:[%s544 + $0x450] sm:$0xff]
        %v3374 = vld [vmem:[%s544 + $0x458] sm:$0xff]
        %v3375 = vld [vmem:[%s544 + $0x460] sm:$0xff]
        %v3376 = vld [vmem:[%s544 + $0x468] sm:$0xff]
        %v3377 = vld [vmem:[%s544 + $0x470] sm:$0xff]
        %v3378 = vld [vmem:[%s544 + $0x478] sm:$0xff]
        %v3379 = vld [vmem:[%s544 + $0x480] sm:$0xff]
        %v3380 = vld [vmem:[%s544 + $0x488] sm:$0xff]
        %v3381 = vld [vmem:[%s544 + $0x490] sm:$0xff]
        %v3382 = vld [vmem:[%s544 + $0x498] sm:$0xff]
        %v3383 = vld [vmem:[%s544 + $0x4a0] sm:$0xff]
        %v3384 = vld [vmem:[%s544 + $0x4a8] sm:$0xff]
        %v3385 = vld [vmem:[%s544 + $0x4b0] sm:$0xff]
        %v3386 = vld [vmem:[%s544 + $0x4b8] sm:$0xff]
        %v3387 = vld [vmem:[%s544 + $0x4c0] sm:$0xff]
        %v3388 = vld [vmem:[%s544 + $0x4c8] sm:$0xff]
        %v3389 = vld [vmem:[%s544 + $0x4d0] sm:$0xff]
        %v3390 = vld [vmem:[%s544 + $0x4d8] sm:$0xff]
        %v3391 = vld [vmem:[%s544 + $0x4e0] sm:$0xff]
        %v3392 = vld [vmem:[%s544 + $0x4e8] sm:$0xff]
        %v3393 = vld [vmem:[%s544 + $0x4f0] sm:$0xff]
        %v3394 = vld [vmem:[%s544 + $0x4f8] sm:$0xff]
        %v3395 = vld [vmem:[%s544 + $0x500] sm:$0xff]
        %v3396 = vld [vmem:[%s544 + $0x508] sm:$0xff]
        %v3397 = vld [vmem:[%s544 + $0x510] sm:$0xff]
        %v3398 = vld [vmem:[%s544 + $0x518] sm:$0xff]
        %v3399 = vld [vmem:[%s544 + $0x520] sm:$0xff]
        %v3400 = vld [vmem:[%s544 + $0x528] sm:$0xff]
        %v3401 = vld [vmem:[%s544 + $0x530] sm:$0xff]
        %v3402 = vld [vmem:[%s544 + $0x538] sm:$0xff]
        %v3403 = vld [vmem:[%s544 + $0x540] sm:$0xff]
        %v3404 = vld [vmem:[%s544 + $0x548] sm:$0xff]
        %v3405 = vld [vmem:[%s544 + $0x550] sm:$0xff]
        %v3406 = vld [vmem:[%s544 + $0x558] sm:$0xff]
        %v3407 = vld [vmem:[%s544 + $0x560] sm:$0xff]
        %v3408 = vld [vmem:[%s544 + $0x568] sm:$0xff]
        %v3409 = vld [vmem:[%s544 + $0x570] sm:$0xff]
        %v3410 = vld [vmem:[%s544 + $0x578] sm:$0xff]
        %v3411 = vld [vmem:[%s544 + $0x580] sm:$0xff]
        %v3412 = vld [vmem:[%s544 + $0x588] sm:$0xff]
        %v3413 = vld [vmem:[%s544 + $0x590] sm:$0xff]
        %v3414 = vld [vmem:[%s544 + $0x598] sm:$0xff]
        %v3415 = vld [vmem:[%s544 + $0x5a0] sm:$0xff]
        %v3416 = vld [vmem:[%s544 + $0x5a8] sm:$0xff]
        %v3417 = vld [vmem:[%s544 + $0x5b0] sm:$0xff]
        %v3418 = vld [vmem:[%s544 + $0x5b8] sm:$0xff]
        %v3419 = vld [vmem:[%s544 + $0x5c0] sm:$0xff]
        %v3420 = vld [vmem:[%s544 + $0x5c8] sm:$0xff]
        %v3421 = vld [vmem:[%s544 + $0x5d0] sm:$0xff]
        %v3422 = vld [vmem:[%s544 + $0x5d8] sm:$0xff]
        %v3423 = vld [vmem:[%s544 + $0x5e0] sm:$0xff]
        %v3424 = vld [vmem:[%s544 + $0x5e8] sm:$0xff]
        %v3425 = vld [vmem:[%s544 + $0x5f0] sm:$0xff]
        %v3426 = vld [vmem:[%s544 + $0x5f8] sm:$0xff]
        %v3427 = vld [vmem:[%s544 + $0x600] sm:$0xff]
        %v3428 = vld [vmem:[%s544 + $0x608] sm:$0xff]
        %v3429 = vld [vmem:[%s544 + $0x610] sm:$0xff]
        %v3430 = vld [vmem:[%s544 + $0x618] sm:$0xff]
        %v3431 = vld [vmem:[%s544 + $0x620] sm:$0xff]
        %v3432 = vld [vmem:[%s544 + $0x628] sm:$0xff]
        %v3433 = vld [vmem:[%s544 + $0x630] sm:$0xff]
        %v3434 = vld [vmem:[%s544 + $0x638] sm:$0xff]
        %v3435 = vld [vmem:[%s544 + $0x640] sm:$0xff]
        %v3436 = vld [vmem:[%s544 + $0x648] sm:$0xff]
        %v3437 = vld [vmem:[%s544 + $0x650] sm:$0xff]
        %v3438 = vld [vmem:[%s544 + $0x658] sm:$0xff]
        %v3439 = vld [vmem:[%s544 + $0x660] sm:$0xff]
        %v3440 = vld [vmem:[%s544 + $0x668] sm:$0xff]
        %v3441 = vld [vmem:[%s544 + $0x670] sm:$0xff]
        %v3442 = vld [vmem:[%s544 + $0x678] sm:$0xff]
        %v3443 = vld [vmem:[%s544 + $0x680] sm:$0xff]
        %v3444 = vld [vmem:[%s544 + $0x688] sm:$0xff]
        %v3445 = vld [vmem:[%s544 + $0x690] sm:$0xff]
        %v3446 = vld [vmem:[%s544 + $0x698] sm:$0xff]
        %v3447 = vld [vmem:[%s544 + $0x6a0] sm:$0xff]
        %v3448 = vld [vmem:[%s544 + $0x6a8] sm:$0xff]
        %v3449 = vld [vmem:[%s544 + $0x6b0] sm:$0xff]
        %v3450 = vld [vmem:[%s544 + $0x6b8] sm:$0xff]
        %v3451 = vld [vmem:[%s544 + $0x6c0] sm:$0xff]
        %v3452 = vld [vmem:[%s544 + $0x6c8] sm:$0xff]
        %v3453 = vld [vmem:[%s544 + $0x6d0] sm:$0xff]
        %v3454 = vld [vmem:[%s544 + $0x6d8] sm:$0xff]
        %v3455 = vld [vmem:[%s544 + $0x6e0] sm:$0xff]
        %v3456 = vld [vmem:[%s544 + $0x6e8] sm:$0xff]
        %v3457 = vld [vmem:[%s544 + $0x6f0] sm:$0xff]
        %v3458 = vld [vmem:[%s544 + $0x6f8] sm:$0xff]
        %v3459 = vld [vmem:[%s544 + $0x700] sm:$0xff]
        %v3460 = vld [vmem:[%s544 + $0x708] sm:$0xff]
        %v3461 = vld [vmem:[%s544 + $0x710] sm:$0xff]
        %v3462 = vld [vmem:[%s544 + $0x718] sm:$0xff]
        %v3463 = vld [vmem:[%s544 + $0x720] sm:$0xff]
        %v3464 = vld [vmem:[%s544 + $0x728] sm:$0xff]
        %v3465 = vld [vmem:[%s544 + $0x730] sm:$0xff]
        %v3466 = vld [vmem:[%s544 + $0x738] sm:$0xff]
        %v3467 = vld [vmem:[%s544 + $0x740] sm:$0xff]
        %v3468 = vld [vmem:[%s544 + $0x748] sm:$0xff]
        %v3469 = vld [vmem:[%s544 + $0x750] sm:$0xff]
        %v3470 = vld [vmem:[%s544 + $0x758] sm:$0xff]
        %v3471 = vld [vmem:[%s544 + $0x760] sm:$0xff]
        %v3472 = vld [vmem:[%s544 + $0x768] sm:$0xff]
        %v3473 = vld [vmem:[%s544 + $0x770] sm:$0xff]
        %v3474 = vld [vmem:[%s544 + $0x778] sm:$0xff]
        %v3475 = vld [vmem:[%s544 + $0x780] sm:$0xff]
        %v3476 = vld [vmem:[%s544 + $0x788] sm:$0xff]
        %v3477 = vld [vmem:[%s544 + $0x790] sm:$0xff]
        %v3478 = vld [vmem:[%s544 + $0x798] sm:$0xff]
        %v3479 = vld [vmem:[%s544 + $0x7a0] sm:$0xff]
        %v3480 = vld [vmem:[%s544 + $0x7a8] sm:$0xff]
        %v3481 = vld [vmem:[%s544 + $0x7b0] sm:$0xff]
        %v3482 = vld [vmem:[%s544 + $0x7b8] sm:$0xff]
        %v3483 = vld [vmem:[%s544 + $0x7c0] sm:$0xff]
        %v3484 = vld [vmem:[%s544 + $0x7c8] sm:$0xff]
        %v3485 = vld [vmem:[%s544 + $0x7d0] sm:$0xff]
        %v3486 = vld [vmem:[%s544 + $0x7d8] sm:$0xff]
        %v3487 = vld [vmem:[%s544 + $0x7e0] sm:$0xff]
        %v3488 = vld [vmem:[%s544 + $0x7e8] sm:$0xff]
        %v3489 = vld [vmem:[%s544 + $0x7f0] sm:$0xff]
        %v3490 = vld [vmem:[%s544 + $0x7f8] sm:$0xff]
        %v3491 = vld [vmem:[%s544 + $0x800] sm:$0xff]
        %v3492 = vld [vmem:[%s544 + $0x808] sm:$0xff]
        %v3493 = vld [vmem:[%s544 + $0x810] sm:$0xff]
        %v3494 = vld [vmem:[%s544 + $0x818] sm:$0xff]
        %v3495 = vld [vmem:[%s544 + $0x820] sm:$0xff]
        %v3496 = vld [vmem:[%s544 + $0x828] sm:$0xff]
        %v3497 = vld [vmem:[%s544 + $0x830] sm:$0xff]
        %v3498 = vld [vmem:[%s544 + $0x838] sm:$0xff]
        %v3499 = vld [vmem:[%s544 + $0x840] sm:$0xff]
        %v3500 = vld [vmem:[%s544 + $0x848] sm:$0xff]
        %v3501 = vld [vmem:[%s544 + $0x850] sm:$0xff]
        %v3502 = vld [vmem:[%s544 + $0x858] sm:$0xff]
        %v3503 = vld [vmem:[%s544 + $0x860] sm:$0xff]
        %v3504 = vld [vmem:[%s544 + $0x868] sm:$0xff]
        %v3505 = vld [vmem:[%s544 + $0x870] sm:$0xff]
        %v3506 = vld [vmem:[%s544 + $0x878] sm:$0xff]
        %v3507 = vld [vmem:[%s544 + $0x880] sm:$0xff]
        %v3508 = vld [vmem:[%s544 + $0x888] sm:$0xff]
        %v3509 = vld [vmem:[%s544 + $0x890] sm:$0xff]
        %v3510 = vld [vmem:[%s544 + $0x898] sm:$0xff]
        %v3511 = vld [vmem:[%s544 + $0x8a0] sm:$0xff]
        %v3512 = vld [vmem:[%s544 + $0x8a8] sm:$0xff]
        %v3513 = vld [vmem:[%s544 + $0x8b0] sm:$0xff]
        %v3514 = vld [vmem:[%s544 + $0x8b8] sm:$0xff]
        %v3515 = vld [vmem:[%s544 + $0x8c0] sm:$0xff]
        %v3516 = vld [vmem:[%s544 + $0x8c8] sm:$0xff]
        %v3517 = vld [vmem:[%s544 + $0x8d0] sm:$0xff]
        %v3518 = vld [vmem:[%s544 + $0x8d8] sm:$0xff]
        %v3519 = vld [vmem:[%s544 + $0x8e0] sm:$0xff]
        %v3520 = vld [vmem:[%s544 + $0x8e8] sm:$0xff]
        %v3521 = vld [vmem:[%s544 + $0x8f0] sm:$0xff]
        %v3522 = vld [vmem:[%s544 + $0x8f8] sm:$0xff]
        %v3523 = vld [vmem:[%s544 + $0x900] sm:$0xff]
        %v3524 = vld [vmem:[%s544 + $0x908] sm:$0xff]
        %v3525 = vld [vmem:[%s544 + $0x910] sm:$0xff]
        %v3526 = vld [vmem:[%s544 + $0x918] sm:$0xff]
        %v3527 = vld [vmem:[%s544 + $0x920] sm:$0xff]
        %v3528 = vld [vmem:[%s544 + $0x928] sm:$0xff]
        %v3529 = vld [vmem:[%s544 + $0x930] sm:$0xff]
        %v3530 = vld [vmem:[%s544 + $0x938] sm:$0xff]
        %v3531 = vld [vmem:[%s544 + $0x940] sm:$0xff]
        %v3532 = vld [vmem:[%s544 + $0x948] sm:$0xff]
        %v3533 = vld [vmem:[%s544 + $0x950] sm:$0xff]
        %v3534 = vld [vmem:[%s544 + $0x958] sm:$0xff]
        %v3535 = vld [vmem:[%s544 + $0x960] sm:$0xff]
        %v3536 = vld [vmem:[%s544 + $0x968] sm:$0xff]
        %v3537 = vld [vmem:[%s544 + $0x970] sm:$0xff]
        %v3538 = vld [vmem:[%s544 + $0x978] sm:$0xff]
        %v3539 = vld [vmem:[%s544 + $0x980] sm:$0xff]
        %v3540 = vld [vmem:[%s544 + $0x988] sm:$0xff]
        %v3541 = vld [vmem:[%s544 + $0x990] sm:$0xff]
        %v3542 = vld [vmem:[%s544 + $0x998] sm:$0xff]
        %v3543 = vld [vmem:[%s544 + $0x9a0] sm:$0xff]
        %v3544 = vld [vmem:[%s544 + $0x9a8] sm:$0xff]
        %v3545 = vld [vmem:[%s544 + $0x9b0] sm:$0xff]
        %v3546 = vld [vmem:[%s544 + $0x9b8] sm:$0xff]
        %v3547 = vld [vmem:[%s544 + $0x9c0] sm:$0xff]
        %v3548 = vld [vmem:[%s544 + $0x9c8] sm:$0xff]
        %v3549 = vld [vmem:[%s544 + $0x9d0] sm:$0xff]
        %v3550 = vld [vmem:[%s544 + $0x9d8] sm:$0xff]
        %v3551 = vld [vmem:[%s544 + $0x9e0] sm:$0xff]
        %v3552 = vld [vmem:[%s544 + $0x9e8] sm:$0xff]
        %v3553 = vld [vmem:[%s544 + $0x9f0] sm:$0xff]
        %v3554 = vld [vmem:[%s544 + $0x9f8] sm:$0xff]
        %v3555 = vld [vmem:[%s544 + $0xa00] sm:$0xff]
        %v3556 = vld [vmem:[%s544 + $0xa08] sm:$0xff]
        %v3557 = vld [vmem:[%s544 + $0xa10] sm:$0xff]
        %v3558 = vld [vmem:[%s544 + $0xa18] sm:$0xff]
        %v3559 = vld [vmem:[%s544 + $0xa20] sm:$0xff]
        %v3560 = vld [vmem:[%s544 + $0xa28] sm:$0xff]
        %v3561 = vld [vmem:[%s544 + $0xa30] sm:$0xff]
        %v3562 = vld [vmem:[%s544 + $0xa38] sm:$0xff]
        %v3563 = vld [vmem:[%s544 + $0xa40] sm:$0xff]
        %v3564 = vld [vmem:[%s544 + $0xa48] sm:$0xff]
        %v3565 = vld [vmem:[%s544 + $0xa50] sm:$0xff]
        %v3566 = vld [vmem:[%s544 + $0xa58] sm:$0xff]
        %v3567 = vld [vmem:[%s544 + $0xa60] sm:$0xff]
        %v3568 = vld [vmem:[%s544 + $0xa68] sm:$0xff]
        %v3569 = vld [vmem:[%s544 + $0xa70] sm:$0xff]
        %v3570 = vld [vmem:[%s544 + $0xa78] sm:$0xff]
        %v3571 = vld [vmem:[%s544 + $0xa80] sm:$0xff]
        %v3572 = vld [vmem:[%s544 + $0xa88] sm:$0xff]
        %v3573 = vld [vmem:[%s544 + $0xa90] sm:$0xff]
        %v3574 = vld [vmem:[%s544 + $0xa98] sm:$0xff]
        %v3575 = vld [vmem:[%s544 + $0xaa0] sm:$0xff]
        %v3576 = vld [vmem:[%s544 + $0xaa8] sm:$0xff]
        %v3577 = vld [vmem:[%s544 + $0xab0] sm:$0xff]
        %v3578 = vld [vmem:[%s544 + $0xab8] sm:$0xff]
        %v3579 = vld [vmem:[%s544 + $0xac0] sm:$0xff]
        %v3580 = vld [vmem:[%s544 + $0xac8] sm:$0xff]
        %v3581 = vld [vmem:[%s544 + $0xad0] sm:$0xff]
        %v3582 = vld [vmem:[%s544 + $0xad8] sm:$0xff]
        %v3583 = vld [vmem:[%s544 + $0xae0] sm:$0xff]
        %v3584 = vld [vmem:[%s544 + $0xae8] sm:$0xff]
        %v3585 = vld [vmem:[%s544 + $0xaf0] sm:$0xff]
        %v3586 = vld [vmem:[%s544 + $0xaf8] sm:$0xff]
        %v3587 = vld [vmem:[%s544 + $0xb00] sm:$0xff]
        %v3588 = vld [vmem:[%s544 + $0xb08] sm:$0xff]
        %v3589 = vld [vmem:[%s544 + $0xb10] sm:$0xff]
        %v3590 = vld [vmem:[%s544 + $0xb18] sm:$0xff]
        %v3591 = vld [vmem:[%s544 + $0xb20] sm:$0xff]
        %v3592 = vld [vmem:[%s544 + $0xb28] sm:$0xff]
        %v3593 = vld [vmem:[%s544 + $0xb30] sm:$0xff]
        %v3594 = vld [vmem:[%s544 + $0xb38] sm:$0xff]
        %v3595 = vld [vmem:[%s544 + $0xb40] sm:$0xff]
        %v3596 = vld [vmem:[%s544 + $0xb48] sm:$0xff]
        %v3597 = vld [vmem:[%s544 + $0xb50] sm:$0xff]
        %v3598 = vld [vmem:[%s544 + $0xb58] sm:$0xff]
        %v3599 = vld [vmem:[%s544 + $0xb60] sm:$0xff]
        %v3600 = vld [vmem:[%s544 + $0xb68] sm:$0xff]
        %v3601 = vld [vmem:[%s544 + $0xb70] sm:$0xff]
        %v3602 = vld [vmem:[%s544 + $0xb78] sm:$0xff]
        %v3603 = vld [vmem:[%s544 + $0xb80] sm:$0xff]
        %v3604 = vld [vmem:[%s544 + $0xb88] sm:$0xff]
        %v3605 = vld [vmem:[%s544 + $0xb90] sm:$0xff]
        %v3606 = vld [vmem:[%s544 + $0xb98] sm:$0xff]
        %v3607 = vld [vmem:[%s544 + $0xba0] sm:$0xff]
        %v3608 = vld [vmem:[%s544 + $0xba8] sm:$0xff]
        %v3609 = vld [vmem:[%s544 + $0xbb0] sm:$0xff]
        %v3610 = vld [vmem:[%s544 + $0xbb8] sm:$0xff]
        %v3611 = vld [vmem:[%s544 + $0xbc0] sm:$0xff]
        %v3612 = vld [vmem:[%s544 + $0xbc8] sm:$0xff]
        %v3613 = vld [vmem:[%s544 + $0xbd0] sm:$0xff]
        %v3614 = vld [vmem:[%s544 + $0xbd8] sm:$0xff]
        %v3615 = vld [vmem:[%s544 + $0xbe0] sm:$0xff]
        %v3616 = vld [vmem:[%s544 + $0xbe8] sm:$0xff]
        %v3617 = vld [vmem:[%s544 + $0xbf0] sm:$0xff]
        %v3618 = vld [vmem:[%s544 + $0xbf8] sm:$0xff]
        %v3619 = vld [vmem:[%s544 + $0xc00] sm:$0xff]
        %v3620 = vld [vmem:[%s544 + $0xc08] sm:$0xff]
        %v3621 = vld [vmem:[%s544 + $0xc10] sm:$0xff]
        %v3622 = vld [vmem:[%s544 + $0xc18] sm:$0xff]
        %v3623 = vld [vmem:[%s544 + $0xc20] sm:$0xff]
        %v3624 = vld [vmem:[%s544 + $0xc28] sm:$0xff]
        %v3625 = vld [vmem:[%s544 + $0xc30] sm:$0xff]
        %v3626 = vld [vmem:[%s544 + $0xc38] sm:$0xff]
        %v3627 = vld [vmem:[%s544 + $0xc40] sm:$0xff]
        %v3628 = vld [vmem:[%s544 + $0xc48] sm:$0xff]
        %v3629 = vld [vmem:[%s544 + $0xc50] sm:$0xff]
        %v3630 = vld [vmem:[%s544 + $0xc58] sm:$0xff]
        %v3631 = vld [vmem:[%s544 + $0xc60] sm:$0xff]
        %v3632 = vld [vmem:[%s544 + $0xc68] sm:$0xff]
        %v3633 = vld [vmem:[%s544 + $0xc70] sm:$0xff]
        %v3634 = vld [vmem:[%s544 + $0xc78] sm:$0xff]
        %v3635 = vld [vmem:[%s544 + $0xc80] sm:$0xff]
        %v3636 = vld [vmem:[%s544 + $0xc88] sm:$0xff]
        %v3637 = vld [vmem:[%s544 + $0xc90] sm:$0xff]
        %v3638 = vld [vmem:[%s544 + $0xc98] sm:$0xff]
        %v3639 = vld [vmem:[%s544 + $0xca0] sm:$0xff]
        %v3640 = vld [vmem:[%s544 + $0xca8] sm:$0xff]
        %v3641 = vld [vmem:[%s544 + $0xcb0] sm:$0xff]
        %v3642 = vld [vmem:[%s544 + $0xcb8] sm:$0xff]
        %v3643 = vld [vmem:[%s544 + $0xcc0] sm:$0xff]
        %v3644 = vld [vmem:[%s544 + $0xcc8] sm:$0xff]
        %v3645 = vld [vmem:[%s544 + $0xcd0] sm:$0xff]
        %v3646 = vld [vmem:[%s544 + $0xcd8] sm:$0xff]
        %v3647 = vld [vmem:[%s544 + $0xce0] sm:$0xff]
        %v3648 = vld [vmem:[%s544 + $0xce8] sm:$0xff]
        %v3649 = vld [vmem:[%s544 + $0xcf0] sm:$0xff]
        %v3650 = vld [vmem:[%s544 + $0xcf8] sm:$0xff]
        %v3651 = vld [vmem:[%s544 + $0xd00] sm:$0xff]
        %v3652 = vld [vmem:[%s544 + $0xd08] sm:$0xff]
        %v3653 = vld [vmem:[%s544 + $0xd10] sm:$0xff]
        %v3654 = vld [vmem:[%s544 + $0xd18] sm:$0xff]
        %v3655 = vld [vmem:[%s544 + $0xd20] sm:$0xff]
        %v3656 = vld [vmem:[%s544 + $0xd28] sm:$0xff]
        %v3657 = vld [vmem:[%s544 + $0xd30] sm:$0xff]
        %v3658 = vld [vmem:[%s544 + $0xd38] sm:$0xff]
        %v3659 = vld [vmem:[%s544 + $0xd40] sm:$0xff]
        %v3660 = vld [vmem:[%s544 + $0xd48] sm:$0xff]
        %v3661 = vld [vmem:[%s544 + $0xd50] sm:$0xff]
        %v3662 = vld [vmem:[%s544 + $0xd58] sm:$0xff]
        %v3663 = vld [vmem:[%s544 + $0xd60] sm:$0xff]
        %v3664 = vld [vmem:[%s544 + $0xd68] sm:$0xff]
        %v3665 = vld [vmem:[%s544 + $0xd70] sm:$0xff]
        %v3666 = vld [vmem:[%s544 + $0xd78] sm:$0xff]
        %v3667 = vld [vmem:[%s544 + $0xd80] sm:$0xff]
        %v3668 = vld [vmem:[%s544 + $0xd88] sm:$0xff]
        %v3669 = vld [vmem:[%s544 + $0xd90] sm:$0xff]
        %v3670 = vld [vmem:[%s544 + $0xd98] sm:$0xff]
        %v3671 = vld [vmem:[%s544 + $0xda0] sm:$0xff]
        %v3672 = vld [vmem:[%s544 + $0xda8] sm:$0xff]
        %v3673 = vld [vmem:[%s544 + $0xdb0] sm:$0xff]
        %v3674 = vld [vmem:[%s544 + $0xdb8] sm:$0xff]
        %v3675 = vld [vmem:[%s544 + $0xdc0] sm:$0xff]
        %v3676 = vld [vmem:[%s544 + $0xdc8] sm:$0xff]
        %v3677 = vld [vmem:[%s544 + $0xdd0] sm:$0xff]
        %v3678 = vld [vmem:[%s544 + $0xdd8] sm:$0xff]
        %v3679 = vld [vmem:[%s544 + $0xde0] sm:$0xff]
        %v3680 = vld [vmem:[%s544 + $0xde8] sm:$0xff]
        %v3681 = vld [vmem:[%s544 + $0xdf0] sm:$0xff]
        %v3682 = vld [vmem:[%s544 + $0xdf8] sm:$0xff]
        %v3683 = vld [vmem:[%s544 + $0xe00] sm:$0xff]
        %v3684 = vld [vmem:[%s544 + $0xe08] sm:$0xff]
        %v3685 = vld [vmem:[%s544 + $0xe10] sm:$0xff]
        %v3686 = vld [vmem:[%s544 + $0xe18] sm:$0xff]
        %v3687 = vld [vmem:[%s544 + $0xe20] sm:$0xff]
        %v3688 = vld [vmem:[%s544 + $0xe28] sm:$0xff]
        %v3689 = vld [vmem:[%s544 + $0xe30] sm:$0xff]
        %v3690 = vld [vmem:[%s544 + $0xe38] sm:$0xff]
        %v3691 = vld [vmem:[%s544 + $0xe40] sm:$0xff]
        %v3692 = vld [vmem:[%s544 + $0xe48] sm:$0xff]
        %v3693 = vld [vmem:[%s544 + $0xe50] sm:$0xff]
        %v3694 = vld [vmem:[%s544 + $0xe58] sm:$0xff]
        %v3695 = vld [vmem:[%s544 + $0xe60] sm:$0xff]
        %v3696 = vld [vmem:[%s544 + $0xe68] sm:$0xff]
        %v3697 = vld [vmem:[%s544 + $0xe70] sm:$0xff]
        %v3698 = vld [vmem:[%s544 + $0xe78] sm:$0xff]
        %v3699 = vld [vmem:[%s544 + $0xe80] sm:$0xff]
        %v3700 = vld [vmem:[%s544 + $0xe88] sm:$0xff]
        %v3701 = vld [vmem:[%s544 + $0xe90] sm:$0xff]
        %v3702 = vld [vmem:[%s544 + $0xe98] sm:$0xff]
        %v3703 = vld [vmem:[%s544 + $0xea0] sm:$0xff]
        %v3704 = vld [vmem:[%s544 + $0xea8] sm:$0xff]
        %v3705 = vld [vmem:[%s544 + $0xeb0] sm:$0xff]
        %v3706 = vld [vmem:[%s544 + $0xeb8] sm:$0xff]
        %v3707 = vld [vmem:[%s544 + $0xec0] sm:$0xff]
        %v3708 = vld [vmem:[%s544 + $0xec8] sm:$0xff]
        %v3709 = vld [vmem:[%s544 + $0xed0] sm:$0xff]
        %v3710 = vld [vmem:[%s544 + $0xed8] sm:$0xff]
        %v3711 = vld [vmem:[%s544 + $0xee0] sm:$0xff]
        %v3712 = vld [vmem:[%s544 + $0xee8] sm:$0xff]
        %v3713 = vld [vmem:[%s544 + $0xef0] sm:$0xff]
        %v3714 = vld [vmem:[%s544 + $0xef8] sm:$0xff]
        %v3715 = vld [vmem:[%s544 + $0xf00] sm:$0xff]
        %v3716 = vld [vmem:[%s544 + $0xf08] sm:$0xff]
        %v3717 = vld [vmem:[%s544 + $0xf10] sm:$0xff]
        %v3718 = vld [vmem:[%s544 + $0xf18] sm:$0xff]
        %v3719 = vld [vmem:[%s544 + $0xf20] sm:$0xff]
        %v3720 = vld [vmem:[%s544 + $0xf28] sm:$0xff]
        %v3721 = vld [vmem:[%s544 + $0xf30] sm:$0xff]
        %v3722 = vld [vmem:[%s544 + $0xf38] sm:$0xff]
        %v3723 = vld [vmem:[%s544 + $0xf40] sm:$0xff]
        %v3724 = vld [vmem:[%s544 + $0xf48] sm:$0xff]
        %v3725 = vld [vmem:[%s544 + $0xf50] sm:$0xff]
        %v3726 = vld [vmem:[%s544 + $0xf58] sm:$0xff]
        %v3727 = vld [vmem:[%s544 + $0xf60] sm:$0xff]
        %v3728 = vld [vmem:[%s544 + $0xf68] sm:$0xff]
        %v3729 = vld [vmem:[%s544 + $0xf70] sm:$0xff]
        %v3730 = vld [vmem:[%s544 + $0xf78] sm:$0xff]
        %v3731 = vld [vmem:[%s544 + $0xf80] sm:$0xff]
        %v3732 = vld [vmem:[%s544 + $0xf88] sm:$0xff]
        %v3733 = vld [vmem:[%s544 + $0xf90] sm:$0xff]
        %v3734 = vld [vmem:[%s544 + $0xf98] sm:$0xff]
        %v3735 = vld [vmem:[%s544 + $0xfa0] sm:$0xff]
        %v3736 = vld [vmem:[%s544 + $0xfa8] sm:$0xff]
        %v3737 = vld [vmem:[%s544 + $0xfb0] sm:$0xff]
        %v3738 = vld [vmem:[%s544 + $0xfb8] sm:$0xff]
        %v3739 = vld [vmem:[%s544 + $0xfc0] sm:$0xff]
        %v3740 = vld [vmem:[%s544 + $0xfc8] sm:$0xff]
        %v3741 = vld [vmem:[%s544 + $0xfd0] sm:$0xff]
        %v3742 = vld [vmem:[%s544 + $0xfd8] sm:$0xff]
        %v3743 = vld [vmem:[%s544 + $0xfe0] sm:$0xff]
        %v3744 = vld [vmem:[%s544 + $0xfe8] sm:$0xff]
        %v3745 = vld [vmem:[%s544 + $0xff0] sm:$0xff]
        %v3746 = vld [vmem:[%s544 + $0xff8] sm:$0xff]
        %v3747 = vld [vmem:[#allocation2] sm:$0xff]
        %v3748 = vld [vmem:[#allocation2 + $0x8] sm:$0xff]
        %v3749 = vld [vmem:[#allocation2 + $0x10] sm:$0xff]
        %v3750 = vld [vmem:[#allocation2 + $0x18] sm:$0xff]
        %v3751 = vld [vmem:[#allocation2 + $0x20] sm:$0xff]
        %v3752 = vld [vmem:[#allocation2 + $0x28] sm:$0xff]
        %v3753 = vld [vmem:[#allocation2 + $0x30] sm:$0xff]
        %v3754 = vld [vmem:[#allocation2 + $0x38] sm:$0xff]
        %v3755 = vpack.c.bf16 %v3747, %v3747
        %v3756 = vpack.c.bf16 %v3748, %v3748
        %v3757 = vpack.c.bf16 %v3749, %v3749
        %v3758 = vpack.c.bf16 %v3750, %v3750
        %v3759 = vpack.c.bf16 %v3751, %v3751
        %v3760 = vpack.c.bf16 %v3752, %v3752
        %v3761 = vpack.c.bf16 %v3753, %v3753
        %v3762 = vpack.c.bf16 %v3754, %v3754
        %v3763 = vld [vmem:[%s554] sm:$0xff]
        %v3765 = vperm.slane %v3763, 0
        %v3766 = vperm.slane %v3763, 1
        %v3767 = vperm.slane %v3763, 2
        %v3768 = vperm.slane %v3763, 3
        %v3769 = vperm.slane %v3763, 4
        %v3770 = vperm.slane %v3763, 5
        %v3771 = vperm.slane %v3763, 6
        %v3772 = vperm.slane %v3763, 7
        %v4293 = vunpack.c.l.b16 %v3235
        %v4294 = vunpack.c.h.b16 %v3235
        %v4295 = vunpack.c.l.b16 %v3236
        %v4296 = vunpack.c.h.b16 %v3236
        %v4297 = vunpack.c.l.b16 %v3237
        %v4298 = vunpack.c.h.b16 %v3237
        %v4299 = vunpack.c.l.b16 %v3238
        %v4300 = vunpack.c.h.b16 %v3238
        %v4301 = vunpack.c.l.b16 %v3239
        %v4302 = vunpack.c.h.b16 %v3239
        %v4303 = vunpack.c.l.b16 %v3240
        %v4304 = vunpack.c.h.b16 %v3240
        %v4305 = vunpack.c.l.b16 %v3241
        %v4306 = vunpack.c.h.b16 %v3241
        %v4307 = vunpack.c.l.b16 %v3242
        %v4308 = vunpack.c.h.b16 %v3242
        %v4309 = vunpack.c.l.b16 %v3243
        %v4310 = vunpack.c.h.b16 %v3243
        %v4311 = vunpack.c.l.b16 %v3244
        %v4312 = vunpack.c.h.b16 %v3244
        %v4313 = vunpack.c.l.b16 %v3245
        %v4314 = vunpack.c.h.b16 %v3245
        %v4315 = vunpack.c.l.b16 %v3246
        %v4316 = vunpack.c.h.b16 %v3246
        %v4317 = vunpack.c.l.b16 %v3247
        %v4318 = vunpack.c.h.b16 %v3247
        %v4319 = vunpack.c.l.b16 %v3248
        %v4320 = vunpack.c.h.b16 %v3248
        %v4321 = vunpack.c.l.b16 %v3249
        %v4322 = vunpack.c.h.b16 %v3249
        %v4323 = vunpack.c.l.b16 %v3250
        %v4324 = vunpack.c.h.b16 %v3250
        %v4325 = vunpack.c.l.b16 %v3251
        %v4326 = vunpack.c.h.b16 %v3251
        %v4327 = vunpack.c.l.b16 %v3252
        %v4328 = vunpack.c.h.b16 %v3252
        %v4329 = vunpack.c.l.b16 %v3253
        %v4330 = vunpack.c.h.b16 %v3253
        %v4331 = vunpack.c.l.b16 %v3254
        %v4332 = vunpack.c.h.b16 %v3254
        %v4333 = vunpack.c.l.b16 %v3255
        %v4334 = vunpack.c.h.b16 %v3255
        %v4335 = vunpack.c.l.b16 %v3256
        %v4336 = vunpack.c.h.b16 %v3256
        %v4337 = vunpack.c.l.b16 %v3257
        %v4338 = vunpack.c.h.b16 %v3257
        %v4339 = vunpack.c.l.b16 %v3258
        %v4340 = vunpack.c.h.b16 %v3258
        %v4341 = vunpack.c.l.b16 %v3259
        %v4342 = vunpack.c.h.b16 %v3259
        %v4343 = vunpack.c.l.b16 %v3260
        %v4344 = vunpack.c.h.b16 %v3260
        %v4345 = vunpack.c.l.b16 %v3261
        %v4346 = vunpack.c.h.b16 %v3261
        %v4347 = vunpack.c.l.b16 %v3262
        %v4348 = vunpack.c.h.b16 %v3262
        %v4349 = vunpack.c.l.b16 %v3263
        %v4350 = vunpack.c.h.b16 %v3263
        %v4351 = vunpack.c.l.b16 %v3264
        %v4352 = vunpack.c.h.b16 %v3264
        %v4353 = vunpack.c.l.b16 %v3265
        %v4354 = vunpack.c.h.b16 %v3265
        %v4355 = vunpack.c.l.b16 %v3266
        %v4356 = vunpack.c.h.b16 %v3266
        %v4357 = vunpack.c.l.b16 %v3267
        %v4358 = vunpack.c.h.b16 %v3267
        %v4359 = vunpack.c.l.b16 %v3268
        %v4360 = vunpack.c.h.b16 %v3268
        %v4361 = vunpack.c.l.b16 %v3269
        %v4362 = vunpack.c.h.b16 %v3269
        %v4363 = vunpack.c.l.b16 %v3270
        %v4364 = vunpack.c.h.b16 %v3270
        %v4365 = vunpack.c.l.b16 %v3271
        %v4366 = vunpack.c.h.b16 %v3271
        %v4367 = vunpack.c.l.b16 %v3272
        %v4368 = vunpack.c.h.b16 %v3272
        %v4369 = vunpack.c.l.b16 %v3273
        %v4370 = vunpack.c.h.b16 %v3273
        %v4371 = vunpack.c.l.b16 %v3274
        %v4372 = vunpack.c.h.b16 %v3274
        %v4373 = vunpack.c.l.b16 %v3275
        %v4374 = vunpack.c.h.b16 %v3275
        %v4375 = vunpack.c.l.b16 %v3276
        %v4376 = vunpack.c.h.b16 %v3276
        %v4377 = vunpack.c.l.b16 %v3277
        %v4378 = vunpack.c.h.b16 %v3277
        %v4379 = vunpack.c.l.b16 %v3278
        %v4380 = vunpack.c.h.b16 %v3278
        %v4381 = vunpack.c.l.b16 %v3279
        %v4382 = vunpack.c.h.b16 %v3279
        %v4383 = vunpack.c.l.b16 %v3280
        %v4384 = vunpack.c.h.b16 %v3280
        %v4385 = vunpack.c.l.b16 %v3281
        %v4386 = vunpack.c.h.b16 %v3281
        %v4387 = vunpack.c.l.b16 %v3282
        %v4388 = vunpack.c.h.b16 %v3282
        %v4389 = vunpack.c.l.b16 %v3283
        %v4390 = vunpack.c.h.b16 %v3283
        %v4391 = vunpack.c.l.b16 %v3284
        %v4392 = vunpack.c.h.b16 %v3284
        %v4393 = vunpack.c.l.b16 %v3285
        %v4394 = vunpack.c.h.b16 %v3285
        %v4395 = vunpack.c.l.b16 %v3286
        %v4396 = vunpack.c.h.b16 %v3286
        %v4397 = vunpack.c.l.b16 %v3287
        %v4398 = vunpack.c.h.b16 %v3287
        %v4399 = vunpack.c.l.b16 %v3288
        %v4400 = vunpack.c.h.b16 %v3288
        %v4401 = vunpack.c.l.b16 %v3289
        %v4402 = vunpack.c.h.b16 %v3289
        %v4403 = vunpack.c.l.b16 %v3290
        %v4404 = vunpack.c.h.b16 %v3290
        %v4405 = vunpack.c.l.b16 %v3291
        %v4406 = vunpack.c.h.b16 %v3291
        %v4407 = vunpack.c.l.b16 %v3292
        %v4408 = vunpack.c.h.b16 %v3292
        %v4409 = vunpack.c.l.b16 %v3293
        %v4410 = vunpack.c.h.b16 %v3293
        %v4411 = vunpack.c.l.b16 %v3294
        %v4412 = vunpack.c.h.b16 %v3294
        %v4413 = vunpack.c.l.b16 %v3295
        %v4414 = vunpack.c.h.b16 %v3295
        %v4415 = vunpack.c.l.b16 %v3296
        %v4416 = vunpack.c.h.b16 %v3296
        %v4417 = vunpack.c.l.b16 %v3297
        %v4418 = vunpack.c.h.b16 %v3297
        %v4419 = vunpack.c.l.b16 %v3298
        %v4420 = vunpack.c.h.b16 %v3298
        %v4421 = vunpack.c.l.b16 %v3299
        %v4422 = vunpack.c.h.b16 %v3299
        %v4423 = vunpack.c.l.b16 %v3300
        %v4424 = vunpack.c.h.b16 %v3300
        %v4425 = vunpack.c.l.b16 %v3301
        %v4426 = vunpack.c.h.b16 %v3301
        %v4427 = vunpack.c.l.b16 %v3302
        %v4428 = vunpack.c.h.b16 %v3302
        %v4429 = vunpack.c.l.b16 %v3303
        %v4430 = vunpack.c.h.b16 %v3303
        %v4431 = vunpack.c.l.b16 %v3304
        %v4432 = vunpack.c.h.b16 %v3304
        %v4433 = vunpack.c.l.b16 %v3305
        %v4434 = vunpack.c.h.b16 %v3305
        %v4435 = vunpack.c.l.b16 %v3306
        %v4436 = vunpack.c.h.b16 %v3306
        %v4437 = vunpack.c.l.b16 %v3307
        %v4438 = vunpack.c.h.b16 %v3307
        %v4439 = vunpack.c.l.b16 %v3308
        %v4440 = vunpack.c.h.b16 %v3308
        %v4441 = vunpack.c.l.b16 %v3309
        %v4442 = vunpack.c.h.b16 %v3309
        %v4443 = vunpack.c.l.b16 %v3310
        %v4444 = vunpack.c.h.b16 %v3310
        %v4445 = vunpack.c.l.b16 %v3311
        %v4446 = vunpack.c.h.b16 %v3311
        %v4447 = vunpack.c.l.b16 %v3312
        %v4448 = vunpack.c.h.b16 %v3312
        %v4449 = vunpack.c.l.b16 %v3313
        %v4450 = vunpack.c.h.b16 %v3313
        %v4451 = vunpack.c.l.b16 %v3314
        %v4452 = vunpack.c.h.b16 %v3314
        %v4453 = vunpack.c.l.b16 %v3315
        %v4454 = vunpack.c.h.b16 %v3315
        %v4455 = vunpack.c.l.b16 %v3316
        %v4456 = vunpack.c.h.b16 %v3316
        %v4457 = vunpack.c.l.b16 %v3317
        %v4458 = vunpack.c.h.b16 %v3317
        %v4459 = vunpack.c.l.b16 %v3318
        %v4460 = vunpack.c.h.b16 %v3318
        %v4461 = vunpack.c.l.b16 %v3319
        %v4462 = vunpack.c.h.b16 %v3319
        %v4463 = vunpack.c.l.b16 %v3320
        %v4464 = vunpack.c.h.b16 %v3320
        %v4465 = vunpack.c.l.b16 %v3321
        %v4466 = vunpack.c.h.b16 %v3321
        %v4467 = vunpack.c.l.b16 %v3322
        %v4468 = vunpack.c.h.b16 %v3322
        %v4469 = vunpack.c.l.b16 %v3323
        %v4470 = vunpack.c.h.b16 %v3323
        %v4471 = vunpack.c.l.b16 %v3324
        %v4472 = vunpack.c.h.b16 %v3324
        %v4473 = vunpack.c.l.b16 %v3325
        %v4474 = vunpack.c.h.b16 %v3325
        %v4475 = vunpack.c.l.b16 %v3326
        %v4476 = vunpack.c.h.b16 %v3326
        %v4477 = vunpack.c.l.b16 %v3327
        %v4478 = vunpack.c.h.b16 %v3327
        %v4479 = vunpack.c.l.b16 %v3328
        %v4480 = vunpack.c.h.b16 %v3328
        %v4481 = vunpack.c.l.b16 %v3329
        %v4482 = vunpack.c.h.b16 %v3329
        %v4483 = vunpack.c.l.b16 %v3330
        %v4484 = vunpack.c.h.b16 %v3330
        %v4485 = vunpack.c.l.b16 %v3331
        %v4486 = vunpack.c.h.b16 %v3331
        %v4487 = vunpack.c.l.b16 %v3332
        %v4488 = vunpack.c.h.b16 %v3332
        %v4489 = vunpack.c.l.b16 %v3333
        %v4490 = vunpack.c.h.b16 %v3333
        %v4491 = vunpack.c.l.b16 %v3334
        %v4492 = vunpack.c.h.b16 %v3334
        %v4493 = vunpack.c.l.b16 %v3335
        %v4494 = vunpack.c.h.b16 %v3335
        %v4495 = vunpack.c.l.b16 %v3336
        %v4496 = vunpack.c.h.b16 %v3336
        %v4497 = vunpack.c.l.b16 %v3337
        %v4498 = vunpack.c.h.b16 %v3337
        %v4499 = vunpack.c.l.b16 %v3338
        %v4500 = vunpack.c.h.b16 %v3338
        %v4501 = vunpack.c.l.b16 %v3339
        %v4502 = vunpack.c.h.b16 %v3339
        %v4503 = vunpack.c.l.b16 %v3340
        %v4504 = vunpack.c.h.b16 %v3340
        %v4505 = vunpack.c.l.b16 %v3341
        %v4506 = vunpack.c.h.b16 %v3341
        %v4507 = vunpack.c.l.b16 %v3342
        %v4508 = vunpack.c.h.b16 %v3342
        %v4509 = vunpack.c.l.b16 %v3343
        %v4510 = vunpack.c.h.b16 %v3343
        %v4511 = vunpack.c.l.b16 %v3344
        %v4512 = vunpack.c.h.b16 %v3344
        %v4513 = vunpack.c.l.b16 %v3345
        %v4514 = vunpack.c.h.b16 %v3345
        %v4515 = vunpack.c.l.b16 %v3346
        %v4516 = vunpack.c.h.b16 %v3346
        %v4517 = vunpack.c.l.b16 %v3347
        %v4518 = vunpack.c.h.b16 %v3347
        %v4519 = vunpack.c.l.b16 %v3348
        %v4520 = vunpack.c.h.b16 %v3348
        %v4521 = vunpack.c.l.b16 %v3349
        %v4522 = vunpack.c.h.b16 %v3349
        %v4523 = vunpack.c.l.b16 %v3350
        %v4524 = vunpack.c.h.b16 %v3350
        %v4525 = vunpack.c.l.b16 %v3351
        %v4526 = vunpack.c.h.b16 %v3351
        %v4527 = vunpack.c.l.b16 %v3352
        %v4528 = vunpack.c.h.b16 %v3352
        %v4529 = vunpack.c.l.b16 %v3353
        %v4530 = vunpack.c.h.b16 %v3353
        %v4531 = vunpack.c.l.b16 %v3354
        %v4532 = vunpack.c.h.b16 %v3354
        %v4533 = vunpack.c.l.b16 %v3355
        %v4534 = vunpack.c.h.b16 %v3355
        %v4535 = vunpack.c.l.b16 %v3356
        %v4536 = vunpack.c.h.b16 %v3356
        %v4537 = vunpack.c.l.b16 %v3357
        %v4538 = vunpack.c.h.b16 %v3357
        %v4539 = vunpack.c.l.b16 %v3358
        %v4540 = vunpack.c.h.b16 %v3358
        %v4541 = vunpack.c.l.b16 %v3359
        %v4542 = vunpack.c.h.b16 %v3359
        %v4543 = vunpack.c.l.b16 %v3360
        %v4544 = vunpack.c.h.b16 %v3360
        %v4545 = vunpack.c.l.b16 %v3361
        %v4546 = vunpack.c.h.b16 %v3361
        %v4547 = vunpack.c.l.b16 %v3362
        %v4548 = vunpack.c.h.b16 %v3362
        %v4549 = vunpack.c.l.b16 %v3363
        %v4550 = vunpack.c.h.b16 %v3363
        %v4551 = vunpack.c.l.b16 %v3364
        %v4552 = vunpack.c.h.b16 %v3364
        %v4553 = vunpack.c.l.b16 %v3365
        %v4554 = vunpack.c.h.b16 %v3365
        %v4555 = vunpack.c.l.b16 %v3366
        %v4556 = vunpack.c.h.b16 %v3366
        %v4557 = vunpack.c.l.b16 %v3367
        %v4558 = vunpack.c.h.b16 %v3367
        %v4559 = vunpack.c.l.b16 %v3368
        %v4560 = vunpack.c.h.b16 %v3368
        %v4561 = vunpack.c.l.b16 %v3369
        %v4562 = vunpack.c.h.b16 %v3369
        %v4563 = vunpack.c.l.b16 %v3370
        %v4564 = vunpack.c.h.b16 %v3370
        %v4565 = vunpack.c.l.b16 %v3371
        %v4566 = vunpack.c.h.b16 %v3371
        %v4567 = vunpack.c.l.b16 %v3372
        %v4568 = vunpack.c.h.b16 %v3372
        %v4569 = vunpack.c.l.b16 %v3373
        %v4570 = vunpack.c.h.b16 %v3373
        %v4571 = vunpack.c.l.b16 %v3374
        %v4572 = vunpack.c.h.b16 %v3374
        %v4573 = vunpack.c.l.b16 %v3375
        %v4574 = vunpack.c.h.b16 %v3375
        %v4575 = vunpack.c.l.b16 %v3376
        %v4576 = vunpack.c.h.b16 %v3376
        %v4577 = vunpack.c.l.b16 %v3377
        %v4578 = vunpack.c.h.b16 %v3377
        %v4579 = vunpack.c.l.b16 %v3378
        %v4580 = vunpack.c.h.b16 %v3378
        %v4581 = vunpack.c.l.b16 %v3379
        %v4582 = vunpack.c.h.b16 %v3379
        %v4583 = vunpack.c.l.b16 %v3380
        %v4584 = vunpack.c.h.b16 %v3380
        %v4585 = vunpack.c.l.b16 %v3381
        %v4586 = vunpack.c.h.b16 %v3381
        %v4587 = vunpack.c.l.b16 %v3382
        %v4588 = vunpack.c.h.b16 %v3382
        %v4589 = vunpack.c.l.b16 %v3383
        %v4590 = vunpack.c.h.b16 %v3383
        %v4591 = vunpack.c.l.b16 %v3384
        %v4592 = vunpack.c.h.b16 %v3384
        %v4593 = vunpack.c.l.b16 %v3385
        %v4594 = vunpack.c.h.b16 %v3385
        %v4595 = vunpack.c.l.b16 %v3386
        %v4596 = vunpack.c.h.b16 %v3386
        %v4597 = vunpack.c.l.b16 %v3387
        %v4598 = vunpack.c.h.b16 %v3387
        %v4599 = vunpack.c.l.b16 %v3388
        %v4600 = vunpack.c.h.b16 %v3388
        %v4601 = vunpack.c.l.b16 %v3389
        %v4602 = vunpack.c.h.b16 %v3389
        %v4603 = vunpack.c.l.b16 %v3390
        %v4604 = vunpack.c.h.b16 %v3390
        %v4605 = vunpack.c.l.b16 %v3391
        %v4606 = vunpack.c.h.b16 %v3391
        %v4607 = vunpack.c.l.b16 %v3392
        %v4608 = vunpack.c.h.b16 %v3392
        %v4609 = vunpack.c.l.b16 %v3393
        %v4610 = vunpack.c.h.b16 %v3393
        %v4611 = vunpack.c.l.b16 %v3394
        %v4612 = vunpack.c.h.b16 %v3394
        %v4613 = vunpack.c.l.b16 %v3395
        %v4614 = vunpack.c.h.b16 %v3395
        %v4615 = vunpack.c.l.b16 %v3396
        %v4616 = vunpack.c.h.b16 %v3396
        %v4617 = vunpack.c.l.b16 %v3397
        %v4618 = vunpack.c.h.b16 %v3397
        %v4619 = vunpack.c.l.b16 %v3398
        %v4620 = vunpack.c.h.b16 %v3398
        %v4621 = vunpack.c.l.b16 %v3399
        %v4622 = vunpack.c.h.b16 %v3399
        %v4623 = vunpack.c.l.b16 %v3400
        %v4624 = vunpack.c.h.b16 %v3400
        %v4625 = vunpack.c.l.b16 %v3401
        %v4626 = vunpack.c.h.b16 %v3401
        %v4627 = vunpack.c.l.b16 %v3402
        %v4628 = vunpack.c.h.b16 %v3402
        %v4629 = vunpack.c.l.b16 %v3403
        %v4630 = vunpack.c.h.b16 %v3403
        %v4631 = vunpack.c.l.b16 %v3404
        %v4632 = vunpack.c.h.b16 %v3404
        %v4633 = vunpack.c.l.b16 %v3405
        %v4634 = vunpack.c.h.b16 %v3405
        %v4635 = vunpack.c.l.b16 %v3406
        %v4636 = vunpack.c.h.b16 %v3406
        %v4637 = vunpack.c.l.b16 %v3407
        %v4638 = vunpack.c.h.b16 %v3407
        %v4639 = vunpack.c.l.b16 %v3408
        %v4640 = vunpack.c.h.b16 %v3408
        %v4641 = vunpack.c.l.b16 %v3409
        %v4642 = vunpack.c.h.b16 %v3409
        %v4643 = vunpack.c.l.b16 %v3410
        %v4644 = vunpack.c.h.b16 %v3410
        %v4645 = vunpack.c.l.b16 %v3411
        %v4646 = vunpack.c.h.b16 %v3411
        %v4647 = vunpack.c.l.b16 %v3412
        %v4648 = vunpack.c.h.b16 %v3412
        %v4649 = vunpack.c.l.b16 %v3413
        %v4650 = vunpack.c.h.b16 %v3413
        %v4651 = vunpack.c.l.b16 %v3414
        %v4652 = vunpack.c.h.b16 %v3414
        %v4653 = vunpack.c.l.b16 %v3415
        %v4654 = vunpack.c.h.b16 %v3415
        %v4655 = vunpack.c.l.b16 %v3416
        %v4656 = vunpack.c.h.b16 %v3416
        %v4657 = vunpack.c.l.b16 %v3417
        %v4658 = vunpack.c.h.b16 %v3417
        %v4659 = vunpack.c.l.b16 %v3418
        %v4660 = vunpack.c.h.b16 %v3418
        %v4661 = vunpack.c.l.b16 %v3419
        %v4662 = vunpack.c.h.b16 %v3419
        %v4663 = vunpack.c.l.b16 %v3420
        %v4664 = vunpack.c.h.b16 %v3420
        %v4665 = vunpack.c.l.b16 %v3421
        %v4666 = vunpack.c.h.b16 %v3421
        %v4667 = vunpack.c.l.b16 %v3422
        %v4668 = vunpack.c.h.b16 %v3422
        %v4669 = vunpack.c.l.b16 %v3423
        %v4670 = vunpack.c.h.b16 %v3423
        %v4671 = vunpack.c.l.b16 %v3424
        %v4672 = vunpack.c.h.b16 %v3424
        %v4673 = vunpack.c.l.b16 %v3425
        %v4674 = vunpack.c.h.b16 %v3425
        %v4675 = vunpack.c.l.b16 %v3426
        %v4676 = vunpack.c.h.b16 %v3426
        %v4677 = vunpack.c.l.b16 %v3427
        %v4678 = vunpack.c.h.b16 %v3427
        %v4679 = vunpack.c.l.b16 %v3428
        %v4680 = vunpack.c.h.b16 %v3428
        %v4681 = vunpack.c.l.b16 %v3429
        %v4682 = vunpack.c.h.b16 %v3429
        %v4683 = vunpack.c.l.b16 %v3430
        %v4684 = vunpack.c.h.b16 %v3430
        %v4685 = vunpack.c.l.b16 %v3431
        %v4686 = vunpack.c.h.b16 %v3431
        %v4687 = vunpack.c.l.b16 %v3432
        %v4688 = vunpack.c.h.b16 %v3432
        %v4689 = vunpack.c.l.b16 %v3433
        %v4690 = vunpack.c.h.b16 %v3433
        %v4691 = vunpack.c.l.b16 %v3434
        %v4692 = vunpack.c.h.b16 %v3434
        %v4693 = vunpack.c.l.b16 %v3435
        %v4694 = vunpack.c.h.b16 %v3435
        %v4695 = vunpack.c.l.b16 %v3436
        %v4696 = vunpack.c.h.b16 %v3436
        %v4697 = vunpack.c.l.b16 %v3437
        %v4698 = vunpack.c.h.b16 %v3437
        %v4699 = vunpack.c.l.b16 %v3438
        %v4700 = vunpack.c.h.b16 %v3438
        %v4701 = vunpack.c.l.b16 %v3439
        %v4702 = vunpack.c.h.b16 %v3439
        %v4703 = vunpack.c.l.b16 %v3440
        %v4704 = vunpack.c.h.b16 %v3440
        %v4705 = vunpack.c.l.b16 %v3441
        %v4706 = vunpack.c.h.b16 %v3441
        %v4707 = vunpack.c.l.b16 %v3442
        %v4708 = vunpack.c.h.b16 %v3442
        %v4709 = vunpack.c.l.b16 %v3443
        %v4710 = vunpack.c.h.b16 %v3443
        %v4711 = vunpack.c.l.b16 %v3444
        %v4712 = vunpack.c.h.b16 %v3444
        %v4713 = vunpack.c.l.b16 %v3445
        %v4714 = vunpack.c.h.b16 %v3445
        %v4715 = vunpack.c.l.b16 %v3446
        %v4716 = vunpack.c.h.b16 %v3446
        %v4717 = vunpack.c.l.b16 %v3447
        %v4718 = vunpack.c.h.b16 %v3447
        %v4719 = vunpack.c.l.b16 %v3448
        %v4720 = vunpack.c.h.b16 %v3448
        %v4721 = vunpack.c.l.b16 %v3449
        %v4722 = vunpack.c.h.b16 %v3449
        %v4723 = vunpack.c.l.b16 %v3450
        %v4724 = vunpack.c.h.b16 %v3450
        %v4725 = vunpack.c.l.b16 %v3451
        %v4726 = vunpack.c.h.b16 %v3451
        %v4727 = vunpack.c.l.b16 %v3452
        %v4728 = vunpack.c.h.b16 %v3452
        %v4729 = vunpack.c.l.b16 %v3453
        %v4730 = vunpack.c.h.b16 %v3453
        %v4731 = vunpack.c.l.b16 %v3454
        %v4732 = vunpack.c.h.b16 %v3454
        %v4733 = vunpack.c.l.b16 %v3455
        %v4734 = vunpack.c.h.b16 %v3455
        %v4735 = vunpack.c.l.b16 %v3456
        %v4736 = vunpack.c.h.b16 %v3456
        %v4737 = vunpack.c.l.b16 %v3457
        %v4738 = vunpack.c.h.b16 %v3457
        %v4739 = vunpack.c.l.b16 %v3458
        %v4740 = vunpack.c.h.b16 %v3458
        %v4741 = vunpack.c.l.b16 %v3459
        %v4742 = vunpack.c.h.b16 %v3459
        %v4743 = vunpack.c.l.b16 %v3460
        %v4744 = vunpack.c.h.b16 %v3460
        %v4745 = vunpack.c.l.b16 %v3461
        %v4746 = vunpack.c.h.b16 %v3461
        %v4747 = vunpack.c.l.b16 %v3462
        %v4748 = vunpack.c.h.b16 %v3462
        %v4749 = vunpack.c.l.b16 %v3463
        %v4750 = vunpack.c.h.b16 %v3463
        %v4751 = vunpack.c.l.b16 %v3464
        %v4752 = vunpack.c.h.b16 %v3464
        %v4753 = vunpack.c.l.b16 %v3465
        %v4754 = vunpack.c.h.b16 %v3465
        %v4755 = vunpack.c.l.b16 %v3466
        %v4756 = vunpack.c.h.b16 %v3466
        %v4757 = vunpack.c.l.b16 %v3467
        %v4758 = vunpack.c.h.b16 %v3467
        %v4759 = vunpack.c.l.b16 %v3468
        %v4760 = vunpack.c.h.b16 %v3468
        %v4761 = vunpack.c.l.b16 %v3469
        %v4762 = vunpack.c.h.b16 %v3469
        %v4763 = vunpack.c.l.b16 %v3470
        %v4764 = vunpack.c.h.b16 %v3470
        %v4765 = vunpack.c.l.b16 %v3471
        %v4766 = vunpack.c.h.b16 %v3471
        %v4767 = vunpack.c.l.b16 %v3472
        %v4768 = vunpack.c.h.b16 %v3472
        %v4769 = vunpack.c.l.b16 %v3473
        %v4770 = vunpack.c.h.b16 %v3473
        %v4771 = vunpack.c.l.b16 %v3474
        %v4772 = vunpack.c.h.b16 %v3474
        %v4773 = vunpack.c.l.b16 %v3475
        %v4774 = vunpack.c.h.b16 %v3475
        %v4775 = vunpack.c.l.b16 %v3476
        %v4776 = vunpack.c.h.b16 %v3476
        %v4777 = vunpack.c.l.b16 %v3477
        %v4778 = vunpack.c.h.b16 %v3477
        %v4779 = vunpack.c.l.b16 %v3478
        %v4780 = vunpack.c.h.b16 %v3478
        %v4781 = vunpack.c.l.b16 %v3479
        %v4782 = vunpack.c.h.b16 %v3479
        %v4783 = vunpack.c.l.b16 %v3480
        %v4784 = vunpack.c.h.b16 %v3480
        %v4785 = vunpack.c.l.b16 %v3481
        %v4786 = vunpack.c.h.b16 %v3481
        %v4787 = vunpack.c.l.b16 %v3482
        %v4788 = vunpack.c.h.b16 %v3482
        %v4789 = vunpack.c.l.b16 %v3483
        %v4790 = vunpack.c.h.b16 %v3483
        %v4791 = vunpack.c.l.b16 %v3484
        %v4792 = vunpack.c.h.b16 %v3484
        %v4793 = vunpack.c.l.b16 %v3485
        %v4794 = vunpack.c.h.b16 %v3485
        %v4795 = vunpack.c.l.b16 %v3486
        %v4796 = vunpack.c.h.b16 %v3486
        %v4797 = vunpack.c.l.b16 %v3487
        %v4798 = vunpack.c.h.b16 %v3487
        %v4799 = vunpack.c.l.b16 %v3488
        %v4800 = vunpack.c.h.b16 %v3488
        %v4801 = vunpack.c.l.b16 %v3489
        %v4802 = vunpack.c.h.b16 %v3489
        %v4803 = vunpack.c.l.b16 %v3490
        %v4804 = vunpack.c.h.b16 %v3490
        %v4805 = vunpack.c.l.b16 %v3491
        %v4806 = vunpack.c.h.b16 %v3491
        %v4807 = vunpack.c.l.b16 %v3492
        %v4808 = vunpack.c.h.b16 %v3492
        %v4809 = vunpack.c.l.b16 %v3493
        %v4810 = vunpack.c.h.b16 %v3493
        %v4811 = vunpack.c.l.b16 %v3494
        %v4812 = vunpack.c.h.b16 %v3494
        %v4813 = vunpack.c.l.b16 %v3495
        %v4814 = vunpack.c.h.b16 %v3495
        %v4815 = vunpack.c.l.b16 %v3496
        %v4816 = vunpack.c.h.b16 %v3496
        %v4817 = vunpack.c.l.b16 %v3497
        %v4818 = vunpack.c.h.b16 %v3497
        %v4819 = vunpack.c.l.b16 %v3498
        %v4820 = vunpack.c.h.b16 %v3498
        %v4821 = vunpack.c.l.b16 %v3499
        %v4822 = vunpack.c.h.b16 %v3499
        %v4823 = vunpack.c.l.b16 %v3500
        %v4824 = vunpack.c.h.b16 %v3500
        %v4825 = vunpack.c.l.b16 %v3501
        %v4826 = vunpack.c.h.b16 %v3501
        %v4827 = vunpack.c.l.b16 %v3502
        %v4828 = vunpack.c.h.b16 %v3502
        %v4829 = vunpack.c.l.b16 %v3503
        %v4830 = vunpack.c.h.b16 %v3503
        %v4831 = vunpack.c.l.b16 %v3504
        %v4832 = vunpack.c.h.b16 %v3504
        %v4833 = vunpack.c.l.b16 %v3505
        %v4834 = vunpack.c.h.b16 %v3505
        %v4835 = vunpack.c.l.b16 %v3506
        %v4836 = vunpack.c.h.b16 %v3506
        %v4837 = vunpack.c.l.b16 %v3507
        %v4838 = vunpack.c.h.b16 %v3507
        %v4839 = vunpack.c.l.b16 %v3508
        %v4840 = vunpack.c.h.b16 %v3508
        %v4841 = vunpack.c.l.b16 %v3509
        %v4842 = vunpack.c.h.b16 %v3509
        %v4843 = vunpack.c.l.b16 %v3510
        %v4844 = vunpack.c.h.b16 %v3510
        %v4845 = vunpack.c.l.b16 %v3511
        %v4846 = vunpack.c.h.b16 %v3511
        %v4847 = vunpack.c.l.b16 %v3512
        %v4848 = vunpack.c.h.b16 %v3512
        %v4849 = vunpack.c.l.b16 %v3513
        %v4850 = vunpack.c.h.b16 %v3513
        %v4851 = vunpack.c.l.b16 %v3514
        %v4852 = vunpack.c.h.b16 %v3514
        %v4853 = vunpack.c.l.b16 %v3515
        %v4854 = vunpack.c.h.b16 %v3515
        %v4855 = vunpack.c.l.b16 %v3516
        %v4856 = vunpack.c.h.b16 %v3516
        %v4857 = vunpack.c.l.b16 %v3517
        %v4858 = vunpack.c.h.b16 %v3517
        %v4859 = vunpack.c.l.b16 %v3518
        %v4860 = vunpack.c.h.b16 %v3518
        %v4861 = vunpack.c.l.b16 %v3519
        %v4862 = vunpack.c.h.b16 %v3519
        %v4863 = vunpack.c.l.b16 %v3520
        %v4864 = vunpack.c.h.b16 %v3520
        %v4865 = vunpack.c.l.b16 %v3521
        %v4866 = vunpack.c.h.b16 %v3521
        %v4867 = vunpack.c.l.b16 %v3522
        %v4868 = vunpack.c.h.b16 %v3522
        %v4869 = vunpack.c.l.b16 %v3523
        %v4870 = vunpack.c.h.b16 %v3523
        %v4871 = vunpack.c.l.b16 %v3524
        %v4872 = vunpack.c.h.b16 %v3524
        %v4873 = vunpack.c.l.b16 %v3525
        %v4874 = vunpack.c.h.b16 %v3525
        %v4875 = vunpack.c.l.b16 %v3526
        %v4876 = vunpack.c.h.b16 %v3526
        %v4877 = vunpack.c.l.b16 %v3527
        %v4878 = vunpack.c.h.b16 %v3527
        %v4879 = vunpack.c.l.b16 %v3528
        %v4880 = vunpack.c.h.b16 %v3528
        %v4881 = vunpack.c.l.b16 %v3529
        %v4882 = vunpack.c.h.b16 %v3529
        %v4883 = vunpack.c.l.b16 %v3530
        %v4884 = vunpack.c.h.b16 %v3530
        %v4885 = vunpack.c.l.b16 %v3531
        %v4886 = vunpack.c.h.b16 %v3531
        %v4887 = vunpack.c.l.b16 %v3532
        %v4888 = vunpack.c.h.b16 %v3532
        %v4889 = vunpack.c.l.b16 %v3533
        %v4890 = vunpack.c.h.b16 %v3533
        %v4891 = vunpack.c.l.b16 %v3534
        %v4892 = vunpack.c.h.b16 %v3534
        %v4893 = vunpack.c.l.b16 %v3535
        %v4894 = vunpack.c.h.b16 %v3535
        %v4895 = vunpack.c.l.b16 %v3536
        %v4896 = vunpack.c.h.b16 %v3536
        %v4897 = vunpack.c.l.b16 %v3537
        %v4898 = vunpack.c.h.b16 %v3537
        %v4899 = vunpack.c.l.b16 %v3538
        %v4900 = vunpack.c.h.b16 %v3538
        %v4901 = vunpack.c.l.b16 %v3539
        %v4902 = vunpack.c.h.b16 %v3539
        %v4903 = vunpack.c.l.b16 %v3540
        %v4904 = vunpack.c.h.b16 %v3540
        %v4905 = vunpack.c.l.b16 %v3541
        %v4906 = vunpack.c.h.b16 %v3541
        %v4907 = vunpack.c.l.b16 %v3542
        %v4908 = vunpack.c.h.b16 %v3542
        %v4909 = vunpack.c.l.b16 %v3543
        %v4910 = vunpack.c.h.b16 %v3543
        %v4911 = vunpack.c.l.b16 %v3544
        %v4912 = vunpack.c.h.b16 %v3544
        %v4913 = vunpack.c.l.b16 %v3545
        %v4914 = vunpack.c.h.b16 %v3545
        %v4915 = vunpack.c.l.b16 %v3546
        %v4916 = vunpack.c.h.b16 %v3546
        %v4917 = vunpack.c.l.b16 %v3547
        %v4918 = vunpack.c.h.b16 %v3547
        %v4919 = vunpack.c.l.b16 %v3548
        %v4920 = vunpack.c.h.b16 %v3548
        %v4921 = vunpack.c.l.b16 %v3549
        %v4922 = vunpack.c.h.b16 %v3549
        %v4923 = vunpack.c.l.b16 %v3550
        %v4924 = vunpack.c.h.b16 %v3550
        %v4925 = vunpack.c.l.b16 %v3551
        %v4926 = vunpack.c.h.b16 %v3551
        %v4927 = vunpack.c.l.b16 %v3552
        %v4928 = vunpack.c.h.b16 %v3552
        %v4929 = vunpack.c.l.b16 %v3553
        %v4930 = vunpack.c.h.b16 %v3553
        %v4931 = vunpack.c.l.b16 %v3554
        %v4932 = vunpack.c.h.b16 %v3554
        %v4933 = vunpack.c.l.b16 %v3555
        %v4934 = vunpack.c.h.b16 %v3555
        %v4935 = vunpack.c.l.b16 %v3556
        %v4936 = vunpack.c.h.b16 %v3556
        %v4937 = vunpack.c.l.b16 %v3557
        %v4938 = vunpack.c.h.b16 %v3557
        %v4939 = vunpack.c.l.b16 %v3558
        %v4940 = vunpack.c.h.b16 %v3558
        %v4941 = vunpack.c.l.b16 %v3559
        %v4942 = vunpack.c.h.b16 %v3559
        %v4943 = vunpack.c.l.b16 %v3560
        %v4944 = vunpack.c.h.b16 %v3560
        %v4945 = vunpack.c.l.b16 %v3561
        %v4946 = vunpack.c.h.b16 %v3561
        %v4947 = vunpack.c.l.b16 %v3562
        %v4948 = vunpack.c.h.b16 %v3562
        %v4949 = vunpack.c.l.b16 %v3563
        %v4950 = vunpack.c.h.b16 %v3563
        %v4951 = vunpack.c.l.b16 %v3564
        %v4952 = vunpack.c.h.b16 %v3564
        %v4953 = vunpack.c.l.b16 %v3565
        %v4954 = vunpack.c.h.b16 %v3565
        %v4955 = vunpack.c.l.b16 %v3566
        %v4956 = vunpack.c.h.b16 %v3566
        %v4957 = vunpack.c.l.b16 %v3567
        %v4958 = vunpack.c.h.b16 %v3567
        %v4959 = vunpack.c.l.b16 %v3568
        %v4960 = vunpack.c.h.b16 %v3568
        %v4961 = vunpack.c.l.b16 %v3569
        %v4962 = vunpack.c.h.b16 %v3569
        %v4963 = vunpack.c.l.b16 %v3570
        %v4964 = vunpack.c.h.b16 %v3570
        %v4965 = vunpack.c.l.b16 %v3571
        %v4966 = vunpack.c.h.b16 %v3571
        %v4967 = vunpack.c.l.b16 %v3572
        %v4968 = vunpack.c.h.b16 %v3572
        %v4969 = vunpack.c.l.b16 %v3573
        %v4970 = vunpack.c.h.b16 %v3573
        %v4971 = vunpack.c.l.b16 %v3574
        %v4972 = vunpack.c.h.b16 %v3574
        %v4973 = vunpack.c.l.b16 %v3575
        %v4974 = vunpack.c.h.b16 %v3575
        %v4975 = vunpack.c.l.b16 %v3576
        %v4976 = vunpack.c.h.b16 %v3576
        %v4977 = vunpack.c.l.b16 %v3577
        %v4978 = vunpack.c.h.b16 %v3577
        %v4979 = vunpack.c.l.b16 %v3578
        %v4980 = vunpack.c.h.b16 %v3578
        %v4981 = vunpack.c.l.b16 %v3579
        %v4982 = vunpack.c.h.b16 %v3579
        %v4983 = vunpack.c.l.b16 %v3580
        %v4984 = vunpack.c.h.b16 %v3580
        %v4985 = vunpack.c.l.b16 %v3581
        %v4986 = vunpack.c.h.b16 %v3581
        %v4987 = vunpack.c.l.b16 %v3582
        %v4988 = vunpack.c.h.b16 %v3582
        %v4989 = vunpack.c.l.b16 %v3583
        %v4990 = vunpack.c.h.b16 %v3583
        %v4991 = vunpack.c.l.b16 %v3584
        %v4992 = vunpack.c.h.b16 %v3584
        %v4993 = vunpack.c.l.b16 %v3585
        %v4994 = vunpack.c.h.b16 %v3585
        %v4995 = vunpack.c.l.b16 %v3586
        %v4996 = vunpack.c.h.b16 %v3586
        %v4997 = vunpack.c.l.b16 %v3587
        %v4998 = vunpack.c.h.b16 %v3587
        %v4999 = vunpack.c.l.b16 %v3588
        %v5000 = vunpack.c.h.b16 %v3588
        %v5001 = vunpack.c.l.b16 %v3589
        %v5002 = vunpack.c.h.b16 %v3589
        %v5003 = vunpack.c.l.b16 %v3590
        %v5004 = vunpack.c.h.b16 %v3590
        %v5005 = vunpack.c.l.b16 %v3591
        %v5006 = vunpack.c.h.b16 %v3591
        %v5007 = vunpack.c.l.b16 %v3592
        %v5008 = vunpack.c.h.b16 %v3592
        %v5009 = vunpack.c.l.b16 %v3593
        %v5010 = vunpack.c.h.b16 %v3593
        %v5011 = vunpack.c.l.b16 %v3594
        %v5012 = vunpack.c.h.b16 %v3594
        %v5013 = vunpack.c.l.b16 %v3595
        %v5014 = vunpack.c.h.b16 %v3595
        %v5015 = vunpack.c.l.b16 %v3596
        %v5016 = vunpack.c.h.b16 %v3596
        %v5017 = vunpack.c.l.b16 %v3597
        %v5018 = vunpack.c.h.b16 %v3597
        %v5019 = vunpack.c.l.b16 %v3598
        %v5020 = vunpack.c.h.b16 %v3598
        %v5021 = vunpack.c.l.b16 %v3599
        %v5022 = vunpack.c.h.b16 %v3599
        %v5023 = vunpack.c.l.b16 %v3600
        %v5024 = vunpack.c.h.b16 %v3600
        %v5025 = vunpack.c.l.b16 %v3601
        %v5026 = vunpack.c.h.b16 %v3601
        %v5027 = vunpack.c.l.b16 %v3602
        %v5028 = vunpack.c.h.b16 %v3602
        %v5029 = vunpack.c.l.b16 %v3603
        %v5030 = vunpack.c.h.b16 %v3603
        %v5031 = vunpack.c.l.b16 %v3604
        %v5032 = vunpack.c.h.b16 %v3604
        %v5033 = vunpack.c.l.b16 %v3605
        %v5034 = vunpack.c.h.b16 %v3605
        %v5035 = vunpack.c.l.b16 %v3606
        %v5036 = vunpack.c.h.b16 %v3606
        %v5037 = vunpack.c.l.b16 %v3607
        %v5038 = vunpack.c.h.b16 %v3607
        %v5039 = vunpack.c.l.b16 %v3608
        %v5040 = vunpack.c.h.b16 %v3608
        %v5041 = vunpack.c.l.b16 %v3609
        %v5042 = vunpack.c.h.b16 %v3609
        %v5043 = vunpack.c.l.b16 %v3610
        %v5044 = vunpack.c.h.b16 %v3610
        %v5045 = vunpack.c.l.b16 %v3611
        %v5046 = vunpack.c.h.b16 %v3611
        %v5047 = vunpack.c.l.b16 %v3612
        %v5048 = vunpack.c.h.b16 %v3612
        %v5049 = vunpack.c.l.b16 %v3613
        %v5050 = vunpack.c.h.b16 %v3613
        %v5051 = vunpack.c.l.b16 %v3614
        %v5052 = vunpack.c.h.b16 %v3614
        %v5053 = vunpack.c.l.b16 %v3615
        %v5054 = vunpack.c.h.b16 %v3615
        %v5055 = vunpack.c.l.b16 %v3616
        %v5056 = vunpack.c.h.b16 %v3616
        %v5057 = vunpack.c.l.b16 %v3617
        %v5058 = vunpack.c.h.b16 %v3617
        %v5059 = vunpack.c.l.b16 %v3618
        %v5060 = vunpack.c.h.b16 %v3618
        %v5061 = vunpack.c.l.b16 %v3619
        %v5062 = vunpack.c.h.b16 %v3619
        %v5063 = vunpack.c.l.b16 %v3620
        %v5064 = vunpack.c.h.b16 %v3620
        %v5065 = vunpack.c.l.b16 %v3621
        %v5066 = vunpack.c.h.b16 %v3621
        %v5067 = vunpack.c.l.b16 %v3622
        %v5068 = vunpack.c.h.b16 %v3622
        %v5069 = vunpack.c.l.b16 %v3623
        %v5070 = vunpack.c.h.b16 %v3623
        %v5071 = vunpack.c.l.b16 %v3624
        %v5072 = vunpack.c.h.b16 %v3624
        %v5073 = vunpack.c.l.b16 %v3625
        %v5074 = vunpack.c.h.b16 %v3625
        %v5075 = vunpack.c.l.b16 %v3626
        %v5076 = vunpack.c.h.b16 %v3626
        %v5077 = vunpack.c.l.b16 %v3627
        %v5078 = vunpack.c.h.b16 %v3627
        %v5079 = vunpack.c.l.b16 %v3628
        %v5080 = vunpack.c.h.b16 %v3628
        %v5081 = vunpack.c.l.b16 %v3629
        %v5082 = vunpack.c.h.b16 %v3629
        %v5083 = vunpack.c.l.b16 %v3630
        %v5084 = vunpack.c.h.b16 %v3630
        %v5085 = vunpack.c.l.b16 %v3631
        %v5086 = vunpack.c.h.b16 %v3631
        %v5087 = vunpack.c.l.b16 %v3632
        %v5088 = vunpack.c.h.b16 %v3632
        %v5089 = vunpack.c.l.b16 %v3633
        %v5090 = vunpack.c.h.b16 %v3633
        %v5091 = vunpack.c.l.b16 %v3634
        %v5092 = vunpack.c.h.b16 %v3634
        %v5093 = vunpack.c.l.b16 %v3635
        %v5094 = vunpack.c.h.b16 %v3635
        %v5095 = vunpack.c.l.b16 %v3636
        %v5096 = vunpack.c.h.b16 %v3636
        %v5097 = vunpack.c.l.b16 %v3637
        %v5098 = vunpack.c.h.b16 %v3637
        %v5099 = vunpack.c.l.b16 %v3638
        %v5100 = vunpack.c.h.b16 %v3638
        %v5101 = vunpack.c.l.b16 %v3639
        %v5102 = vunpack.c.h.b16 %v3639
        %v5103 = vunpack.c.l.b16 %v3640
        %v5104 = vunpack.c.h.b16 %v3640
        %v5105 = vunpack.c.l.b16 %v3641
        %v5106 = vunpack.c.h.b16 %v3641
        %v5107 = vunpack.c.l.b16 %v3642
        %v5108 = vunpack.c.h.b16 %v3642
        %v5109 = vunpack.c.l.b16 %v3643
        %v5110 = vunpack.c.h.b16 %v3643
        %v5111 = vunpack.c.l.b16 %v3644
        %v5112 = vunpack.c.h.b16 %v3644
        %v5113 = vunpack.c.l.b16 %v3645
        %v5114 = vunpack.c.h.b16 %v3645
        %v5115 = vunpack.c.l.b16 %v3646
        %v5116 = vunpack.c.h.b16 %v3646
        %v5117 = vunpack.c.l.b16 %v3647
        %v5118 = vunpack.c.h.b16 %v3647
        %v5119 = vunpack.c.l.b16 %v3648
        %v5120 = vunpack.c.h.b16 %v3648
        %v5121 = vunpack.c.l.b16 %v3649
        %v5122 = vunpack.c.h.b16 %v3649
        %v5123 = vunpack.c.l.b16 %v3650
        %v5124 = vunpack.c.h.b16 %v3650
        %v5125 = vunpack.c.l.b16 %v3651
        %v5126 = vunpack.c.h.b16 %v3651
        %v5127 = vunpack.c.l.b16 %v3652
        %v5128 = vunpack.c.h.b16 %v3652
        %v5129 = vunpack.c.l.b16 %v3653
        %v5130 = vunpack.c.h.b16 %v3653
        %v5131 = vunpack.c.l.b16 %v3654
        %v5132 = vunpack.c.h.b16 %v3654
        %v5133 = vunpack.c.l.b16 %v3655
        %v5134 = vunpack.c.h.b16 %v3655
        %v5135 = vunpack.c.l.b16 %v3656
        %v5136 = vunpack.c.h.b16 %v3656
        %v5137 = vunpack.c.l.b16 %v3657
        %v5138 = vunpack.c.h.b16 %v3657
        %v5139 = vunpack.c.l.b16 %v3658
        %v5140 = vunpack.c.h.b16 %v3658
        %v5141 = vunpack.c.l.b16 %v3659
        %v5142 = vunpack.c.h.b16 %v3659
        %v5143 = vunpack.c.l.b16 %v3660
        %v5144 = vunpack.c.h.b16 %v3660
        %v5145 = vunpack.c.l.b16 %v3661
        %v5146 = vunpack.c.h.b16 %v3661
        %v5147 = vunpack.c.l.b16 %v3662
        %v5148 = vunpack.c.h.b16 %v3662
        %v5149 = vunpack.c.l.b16 %v3663
        %v5150 = vunpack.c.h.b16 %v3663
        %v5151 = vunpack.c.l.b16 %v3664
        %v5152 = vunpack.c.h.b16 %v3664
        %v5153 = vunpack.c.l.b16 %v3665
        %v5154 = vunpack.c.h.b16 %v3665
        %v5155 = vunpack.c.l.b16 %v3666
        %v5156 = vunpack.c.h.b16 %v3666
        %v5157 = vunpack.c.l.b16 %v3667
        %v5158 = vunpack.c.h.b16 %v3667
        %v5159 = vunpack.c.l.b16 %v3668
        %v5160 = vunpack.c.h.b16 %v3668
        %v5161 = vunpack.c.l.b16 %v3669
        %v5162 = vunpack.c.h.b16 %v3669
        %v5163 = vunpack.c.l.b16 %v3670
        %v5164 = vunpack.c.h.b16 %v3670
        %v5165 = vunpack.c.l.b16 %v3671
        %v5166 = vunpack.c.h.b16 %v3671
        %v5167 = vunpack.c.l.b16 %v3672
        %v5168 = vunpack.c.h.b16 %v3672
        %v5169 = vunpack.c.l.b16 %v3673
        %v5170 = vunpack.c.h.b16 %v3673
        %v5171 = vunpack.c.l.b16 %v3674
        %v5172 = vunpack.c.h.b16 %v3674
        %v5173 = vunpack.c.l.b16 %v3675
        %v5174 = vunpack.c.h.b16 %v3675
        %v5175 = vunpack.c.l.b16 %v3676
        %v5176 = vunpack.c.h.b16 %v3676
        %v5177 = vunpack.c.l.b16 %v3677
        %v5178 = vunpack.c.h.b16 %v3677
        %v5179 = vunpack.c.l.b16 %v3678
        %v5180 = vunpack.c.h.b16 %v3678
        %v5181 = vunpack.c.l.b16 %v3679
        %v5182 = vunpack.c.h.b16 %v3679
        %v5183 = vunpack.c.l.b16 %v3680
        %v5184 = vunpack.c.h.b16 %v3680
        %v5185 = vunpack.c.l.b16 %v3681
        %v5186 = vunpack.c.h.b16 %v3681
        %v5187 = vunpack.c.l.b16 %v3682
        %v5188 = vunpack.c.h.b16 %v3682
        %v5189 = vunpack.c.l.b16 %v3683
        %v5190 = vunpack.c.h.b16 %v3683
        %v5191 = vunpack.c.l.b16 %v3684
        %v5192 = vunpack.c.h.b16 %v3684
        %v5193 = vunpack.c.l.b16 %v3685
        %v5194 = vunpack.c.h.b16 %v3685
        %v5195 = vunpack.c.l.b16 %v3686
        %v5196 = vunpack.c.h.b16 %v3686
        %v5197 = vunpack.c.l.b16 %v3687
        %v5198 = vunpack.c.h.b16 %v3687
        %v5199 = vunpack.c.l.b16 %v3688
        %v5200 = vunpack.c.h.b16 %v3688
        %v5201 = vunpack.c.l.b16 %v3689
        %v5202 = vunpack.c.h.b16 %v3689
        %v5203 = vunpack.c.l.b16 %v3690
        %v5204 = vunpack.c.h.b16 %v3690
        %v5205 = vunpack.c.l.b16 %v3691
        %v5206 = vunpack.c.h.b16 %v3691
        %v5207 = vunpack.c.l.b16 %v3692
        %v5208 = vunpack.c.h.b16 %v3692
        %v5209 = vunpack.c.l.b16 %v3693
        %v5210 = vunpack.c.h.b16 %v3693
        %v5211 = vunpack.c.l.b16 %v3694
        %v5212 = vunpack.c.h.b16 %v3694
        %v5213 = vunpack.c.l.b16 %v3695
        %v5214 = vunpack.c.h.b16 %v3695
        %v5215 = vunpack.c.l.b16 %v3696
        %v5216 = vunpack.c.h.b16 %v3696
        %v5217 = vunpack.c.l.b16 %v3697
        %v5218 = vunpack.c.h.b16 %v3697
        %v5219 = vunpack.c.l.b16 %v3698
        %v5220 = vunpack.c.h.b16 %v3698
        %v5221 = vunpack.c.l.b16 %v3699
        %v5222 = vunpack.c.h.b16 %v3699
        %v5223 = vunpack.c.l.b16 %v3700
        %v5224 = vunpack.c.h.b16 %v3700
        %v5225 = vunpack.c.l.b16 %v3701
        %v5226 = vunpack.c.h.b16 %v3701
        %v5227 = vunpack.c.l.b16 %v3702
        %v5228 = vunpack.c.h.b16 %v3702
        %v5229 = vunpack.c.l.b16 %v3703
        %v5230 = vunpack.c.h.b16 %v3703
        %v5231 = vunpack.c.l.b16 %v3704
        %v5232 = vunpack.c.h.b16 %v3704
        %v5233 = vunpack.c.l.b16 %v3705
        %v5234 = vunpack.c.h.b16 %v3705
        %v5235 = vunpack.c.l.b16 %v3706
        %v5236 = vunpack.c.h.b16 %v3706
        %v5237 = vunpack.c.l.b16 %v3707
        %v5238 = vunpack.c.h.b16 %v3707
        %v5239 = vunpack.c.l.b16 %v3708
        %v5240 = vunpack.c.h.b16 %v3708
        %v5241 = vunpack.c.l.b16 %v3709
        %v5242 = vunpack.c.h.b16 %v3709
        %v5243 = vunpack.c.l.b16 %v3710
        %v5244 = vunpack.c.h.b16 %v3710
        %v5245 = vunpack.c.l.b16 %v3711
        %v5246 = vunpack.c.h.b16 %v3711
        %v5247 = vunpack.c.l.b16 %v3712
        %v5248 = vunpack.c.h.b16 %v3712
        %v5249 = vunpack.c.l.b16 %v3713
        %v5250 = vunpack.c.h.b16 %v3713
        %v5251 = vunpack.c.l.b16 %v3714
        %v5252 = vunpack.c.h.b16 %v3714
        %v5253 = vunpack.c.l.b16 %v3715
        %v5254 = vunpack.c.h.b16 %v3715
        %v5255 = vunpack.c.l.b16 %v3716
        %v5256 = vunpack.c.h.b16 %v3716
        %v5257 = vunpack.c.l.b16 %v3717
        %v5258 = vunpack.c.h.b16 %v3717
        %v5259 = vunpack.c.l.b16 %v3718
        %v5260 = vunpack.c.h.b16 %v3718
        %v5261 = vunpack.c.l.b16 %v3719
        %v5262 = vunpack.c.h.b16 %v3719
        %v5263 = vunpack.c.l.b16 %v3720
        %v5264 = vunpack.c.h.b16 %v3720
        %v5265 = vunpack.c.l.b16 %v3721
        %v5266 = vunpack.c.h.b16 %v3721
        %v5267 = vunpack.c.l.b16 %v3722
        %v5268 = vunpack.c.h.b16 %v3722
        %v5269 = vunpack.c.l.b16 %v3723
        %v5270 = vunpack.c.h.b16 %v3723
        %v5271 = vunpack.c.l.b16 %v3724
        %v5272 = vunpack.c.h.b16 %v3724
        %v5273 = vunpack.c.l.b16 %v3725
        %v5274 = vunpack.c.h.b16 %v3725
        %v5275 = vunpack.c.l.b16 %v3726
        %v5276 = vunpack.c.h.b16 %v3726
        %v5277 = vunpack.c.l.b16 %v3727
        %v5278 = vunpack.c.h.b16 %v3727
        %v5279 = vunpack.c.l.b16 %v3728
        %v5280 = vunpack.c.h.b16 %v3728
        %v5281 = vunpack.c.l.b16 %v3729
        %v5282 = vunpack.c.h.b16 %v3729
        %v5283 = vunpack.c.l.b16 %v3730
        %v5284 = vunpack.c.h.b16 %v3730
        %v5285 = vunpack.c.l.b16 %v3731
        %v5286 = vunpack.c.h.b16 %v3731
        %v5287 = vunpack.c.l.b16 %v3732
        %v5288 = vunpack.c.h.b16 %v3732
        %v5289 = vunpack.c.l.b16 %v3733
        %v5290 = vunpack.c.h.b16 %v3733
        %v5291 = vunpack.c.l.b16 %v3734
        %v5292 = vunpack.c.h.b16 %v3734
        %v5293 = vunpack.c.l.b16 %v3735
        %v5294 = vunpack.c.h.b16 %v3735
        %v5295 = vunpack.c.l.b16 %v3736
        %v5296 = vunpack.c.h.b16 %v3736
        %v5297 = vunpack.c.l.b16 %v3737
        %v5298 = vunpack.c.h.b16 %v3737
        %v5299 = vunpack.c.l.b16 %v3738
        %v5300 = vunpack.c.h.b16 %v3738
        %v5301 = vunpack.c.l.b16 %v3739
        %v5302 = vunpack.c.h.b16 %v3739
        %v5303 = vunpack.c.l.b16 %v3740
        %v5304 = vunpack.c.h.b16 %v3740
        %v5305 = vunpack.c.l.b16 %v3741
        %v5306 = vunpack.c.h.b16 %v3741
        %v5307 = vunpack.c.l.b16 %v3742
        %v5308 = vunpack.c.h.b16 %v3742
        %v5309 = vunpack.c.l.b16 %v3743
        %v5310 = vunpack.c.h.b16 %v3743
        %v5311 = vunpack.c.l.b16 %v3744
        %v5312 = vunpack.c.h.b16 %v3744
        %v5313 = vunpack.c.l.b16 %v3745
        %v5314 = vunpack.c.h.b16 %v3745
        %v5315 = vunpack.c.l.b16 %v3746
        %v5316 = vunpack.c.h.b16 %v3746
        %v5317 = vpack.c.b16 %v4301, %v4293
        %v5318 = vpack.c.b16 %v4302, %v4294
        %v5319 = vpack.c.b16 %v4303, %v4295
        %v5320 = vpack.c.b16 %v4304, %v4296
        %v5321 = vpack.c.b16 %v4305, %v4297
        %v5322 = vpack.c.b16 %v4306, %v4298
        %v5323 = vpack.c.b16 %v4307, %v4299
        %v5324 = vpack.c.b16 %v4308, %v4300
        %v5325 = vpack.c.b16 %v4317, %v4309
        %v5326 = vpack.c.b16 %v4318, %v4310
        %v5327 = vpack.c.b16 %v4319, %v4311
        %v5328 = vpack.c.b16 %v4320, %v4312
        %v5329 = vpack.c.b16 %v4321, %v4313
        %v5330 = vpack.c.b16 %v4322, %v4314
        %v5331 = vpack.c.b16 %v4323, %v4315
        %v5332 = vpack.c.b16 %v4324, %v4316
        %v5333 = vpack.c.b16 %v4333, %v4325
        %v5334 = vpack.c.b16 %v4334, %v4326
        %v5335 = vpack.c.b16 %v4335, %v4327
        %v5336 = vpack.c.b16 %v4336, %v4328
        %v5337 = vpack.c.b16 %v4337, %v4329
        %v5338 = vpack.c.b16 %v4338, %v4330
        %v5339 = vpack.c.b16 %v4339, %v4331
        %v5340 = vpack.c.b16 %v4340, %v4332
        %v5341 = vpack.c.b16 %v4349, %v4341
        %v5342 = vpack.c.b16 %v4350, %v4342
        %v5343 = vpack.c.b16 %v4351, %v4343
        %v5344 = vpack.c.b16 %v4352, %v4344
        %v5345 = vpack.c.b16 %v4353, %v4345
        %v5346 = vpack.c.b16 %v4354, %v4346
        %v5347 = vpack.c.b16 %v4355, %v4347
        %v5348 = vpack.c.b16 %v4356, %v4348
        %v5349 = vpack.c.b16 %v4365, %v4357
        %v5350 = vpack.c.b16 %v4366, %v4358
        %v5351 = vpack.c.b16 %v4367, %v4359
        %v5352 = vpack.c.b16 %v4368, %v4360
        %v5353 = vpack.c.b16 %v4369, %v4361
        %v5354 = vpack.c.b16 %v4370, %v4362
        %v5355 = vpack.c.b16 %v4371, %v4363
        %v5356 = vpack.c.b16 %v4372, %v4364
        %v5357 = vpack.c.b16 %v4381, %v4373
        %v5358 = vpack.c.b16 %v4382, %v4374
        %v5359 = vpack.c.b16 %v4383, %v4375
        %v5360 = vpack.c.b16 %v4384, %v4376
        %v5361 = vpack.c.b16 %v4385, %v4377
        %v5362 = vpack.c.b16 %v4386, %v4378
        %v5363 = vpack.c.b16 %v4387, %v4379
        %v5364 = vpack.c.b16 %v4388, %v4380
        %v5365 = vpack.c.b16 %v4397, %v4389
        %v5366 = vpack.c.b16 %v4398, %v4390
        %v5367 = vpack.c.b16 %v4399, %v4391
        %v5368 = vpack.c.b16 %v4400, %v4392
        %v5369 = vpack.c.b16 %v4401, %v4393
        %v5370 = vpack.c.b16 %v4402, %v4394
        %v5371 = vpack.c.b16 %v4403, %v4395
        %v5372 = vpack.c.b16 %v4404, %v4396
        %v5373 = vpack.c.b16 %v4413, %v4405
        %v5374 = vpack.c.b16 %v4414, %v4406
        %v5375 = vpack.c.b16 %v4415, %v4407
        %v5376 = vpack.c.b16 %v4416, %v4408
        %v5377 = vpack.c.b16 %v4417, %v4409
        %v5378 = vpack.c.b16 %v4418, %v4410
        %v5379 = vpack.c.b16 %v4419, %v4411
        %v5380 = vpack.c.b16 %v4420, %v4412
        %v5381 = vpack.c.b16 %v4429, %v4421
        %v5382 = vpack.c.b16 %v4430, %v4422
        %v5383 = vpack.c.b16 %v4431, %v4423
        %v5384 = vpack.c.b16 %v4432, %v4424
        %v5385 = vpack.c.b16 %v4433, %v4425
        %v5386 = vpack.c.b16 %v4434, %v4426
        %v5387 = vpack.c.b16 %v4435, %v4427
        %v5388 = vpack.c.b16 %v4436, %v4428
        %v5389 = vpack.c.b16 %v4445, %v4437
        %v5390 = vpack.c.b16 %v4446, %v4438
        %v5391 = vpack.c.b16 %v4447, %v4439
        %v5392 = vpack.c.b16 %v4448, %v4440
        %v5393 = vpack.c.b16 %v4449, %v4441
        %v5394 = vpack.c.b16 %v4450, %v4442
        %v5395 = vpack.c.b16 %v4451, %v4443
        %v5396 = vpack.c.b16 %v4452, %v4444
        %v5397 = vpack.c.b16 %v4461, %v4453
        %v5398 = vpack.c.b16 %v4462, %v4454
        %v5399 = vpack.c.b16 %v4463, %v4455
        %v5400 = vpack.c.b16 %v4464, %v4456
        %v5401 = vpack.c.b16 %v4465, %v4457
        %v5402 = vpack.c.b16 %v4466, %v4458
        %v5403 = vpack.c.b16 %v4467, %v4459
        %v5404 = vpack.c.b16 %v4468, %v4460
        %v5405 = vpack.c.b16 %v4477, %v4469
        %v5406 = vpack.c.b16 %v4478, %v4470
        %v5407 = vpack.c.b16 %v4479, %v4471
        %v5408 = vpack.c.b16 %v4480, %v4472
        %v5409 = vpack.c.b16 %v4481, %v4473
        %v5410 = vpack.c.b16 %v4482, %v4474
        %v5411 = vpack.c.b16 %v4483, %v4475
        %v5412 = vpack.c.b16 %v4484, %v4476
        %v5413 = vpack.c.b16 %v4493, %v4485
        %v5414 = vpack.c.b16 %v4494, %v4486
        %v5415 = vpack.c.b16 %v4495, %v4487
        %v5416 = vpack.c.b16 %v4496, %v4488
        %v5417 = vpack.c.b16 %v4497, %v4489
        %v5418 = vpack.c.b16 %v4498, %v4490
        %v5419 = vpack.c.b16 %v4499, %v4491
        %v5420 = vpack.c.b16 %v4500, %v4492
        %v5421 = vpack.c.b16 %v4509, %v4501
        %v5422 = vpack.c.b16 %v4510, %v4502
        %v5423 = vpack.c.b16 %v4511, %v4503
        %v5424 = vpack.c.b16 %v4512, %v4504
        %v5425 = vpack.c.b16 %v4513, %v4505
        %v5426 = vpack.c.b16 %v4514, %v4506
        %v5427 = vpack.c.b16 %v4515, %v4507
        %v5428 = vpack.c.b16 %v4516, %v4508
        %v5429 = vpack.c.b16 %v4525, %v4517
        %v5430 = vpack.c.b16 %v4526, %v4518
        %v5431 = vpack.c.b16 %v4527, %v4519
        %v5432 = vpack.c.b16 %v4528, %v4520
        %v5433 = vpack.c.b16 %v4529, %v4521
        %v5434 = vpack.c.b16 %v4530, %v4522
        %v5435 = vpack.c.b16 %v4531, %v4523
        %v5436 = vpack.c.b16 %v4532, %v4524
        %v5437 = vpack.c.b16 %v4541, %v4533
        %v5438 = vpack.c.b16 %v4542, %v4534
        %v5439 = vpack.c.b16 %v4543, %v4535
        %v5440 = vpack.c.b16 %v4544, %v4536
        %v5441 = vpack.c.b16 %v4545, %v4537
        %v5442 = vpack.c.b16 %v4546, %v4538
        %v5443 = vpack.c.b16 %v4547, %v4539
        %v5444 = vpack.c.b16 %v4548, %v4540
        %v5445 = vpack.c.b16 %v4557, %v4549
        %v5446 = vpack.c.b16 %v4558, %v4550
        %v5447 = vpack.c.b16 %v4559, %v4551
        %v5448 = vpack.c.b16 %v4560, %v4552
        %v5449 = vpack.c.b16 %v4561, %v4553
        %v5450 = vpack.c.b16 %v4562, %v4554
        %v5451 = vpack.c.b16 %v4563, %v4555
        %v5452 = vpack.c.b16 %v4564, %v4556
        %v5453 = vpack.c.b16 %v4573, %v4565
        %v5454 = vpack.c.b16 %v4574, %v4566
        %v5455 = vpack.c.b16 %v4575, %v4567
        %v5456 = vpack.c.b16 %v4576, %v4568
        %v5457 = vpack.c.b16 %v4577, %v4569
        %v5458 = vpack.c.b16 %v4578, %v4570
        %v5459 = vpack.c.b16 %v4579, %v4571
        %v5460 = vpack.c.b16 %v4580, %v4572
        %v5461 = vpack.c.b16 %v4589, %v4581
        %v5462 = vpack.c.b16 %v4590, %v4582
        %v5463 = vpack.c.b16 %v4591, %v4583
        %v5464 = vpack.c.b16 %v4592, %v4584
        %v5465 = vpack.c.b16 %v4593, %v4585
        %v5466 = vpack.c.b16 %v4594, %v4586
        %v5467 = vpack.c.b16 %v4595, %v4587
        %v5468 = vpack.c.b16 %v4596, %v4588
        %v5469 = vpack.c.b16 %v4605, %v4597
        %v5470 = vpack.c.b16 %v4606, %v4598
        %v5471 = vpack.c.b16 %v4607, %v4599
        %v5472 = vpack.c.b16 %v4608, %v4600
        %v5473 = vpack.c.b16 %v4609, %v4601
        %v5474 = vpack.c.b16 %v4610, %v4602
        %v5475 = vpack.c.b16 %v4611, %v4603
        %v5476 = vpack.c.b16 %v4612, %v4604
        %v5477 = vpack.c.b16 %v4621, %v4613
        %v5478 = vpack.c.b16 %v4622, %v4614
        %v5479 = vpack.c.b16 %v4623, %v4615
        %v5480 = vpack.c.b16 %v4624, %v4616
        %v5481 = vpack.c.b16 %v4625, %v4617
        %v5482 = vpack.c.b16 %v4626, %v4618
        %v5483 = vpack.c.b16 %v4627, %v4619
        %v5484 = vpack.c.b16 %v4628, %v4620
        %v5485 = vpack.c.b16 %v4637, %v4629
        %v5486 = vpack.c.b16 %v4638, %v4630
        %v5487 = vpack.c.b16 %v4639, %v4631
        %v5488 = vpack.c.b16 %v4640, %v4632
        %v5489 = vpack.c.b16 %v4641, %v4633
        %v5490 = vpack.c.b16 %v4642, %v4634
        %v5491 = vpack.c.b16 %v4643, %v4635
        %v5492 = vpack.c.b16 %v4644, %v4636
        %v5493 = vpack.c.b16 %v4653, %v4645
        %v5494 = vpack.c.b16 %v4654, %v4646
        %v5495 = vpack.c.b16 %v4655, %v4647
        %v5496 = vpack.c.b16 %v4656, %v4648
        %v5497 = vpack.c.b16 %v4657, %v4649
        %v5498 = vpack.c.b16 %v4658, %v4650
        %v5499 = vpack.c.b16 %v4659, %v4651
        %v5500 = vpack.c.b16 %v4660, %v4652
        %v5501 = vpack.c.b16 %v4669, %v4661
        %v5502 = vpack.c.b16 %v4670, %v4662
        %v5503 = vpack.c.b16 %v4671, %v4663
        %v5504 = vpack.c.b16 %v4672, %v4664
        %v5505 = vpack.c.b16 %v4673, %v4665
        %v5506 = vpack.c.b16 %v4674, %v4666
        %v5507 = vpack.c.b16 %v4675, %v4667
        %v5508 = vpack.c.b16 %v4676, %v4668
        %v5509 = vpack.c.b16 %v4685, %v4677
        %v5510 = vpack.c.b16 %v4686, %v4678
        %v5511 = vpack.c.b16 %v4687, %v4679
        %v5512 = vpack.c.b16 %v4688, %v4680
        %v5513 = vpack.c.b16 %v4689, %v4681
        %v5514 = vpack.c.b16 %v4690, %v4682
        %v5515 = vpack.c.b16 %v4691, %v4683
        %v5516 = vpack.c.b16 %v4692, %v4684
        %v5517 = vpack.c.b16 %v4701, %v4693
        %v5518 = vpack.c.b16 %v4702, %v4694
        %v5519 = vpack.c.b16 %v4703, %v4695
        %v5520 = vpack.c.b16 %v4704, %v4696
        %v5521 = vpack.c.b16 %v4705, %v4697
        %v5522 = vpack.c.b16 %v4706, %v4698
        %v5523 = vpack.c.b16 %v4707, %v4699
        %v5524 = vpack.c.b16 %v4708, %v4700
        %v5525 = vpack.c.b16 %v4717, %v4709
        %v5526 = vpack.c.b16 %v4718, %v4710
        %v5527 = vpack.c.b16 %v4719, %v4711
        %v5528 = vpack.c.b16 %v4720, %v4712
        %v5529 = vpack.c.b16 %v4721, %v4713
        %v5530 = vpack.c.b16 %v4722, %v4714
        %v5531 = vpack.c.b16 %v4723, %v4715
        %v5532 = vpack.c.b16 %v4724, %v4716
        %v5533 = vpack.c.b16 %v4733, %v4725
        %v5534 = vpack.c.b16 %v4734, %v4726
        %v5535 = vpack.c.b16 %v4735, %v4727
        %v5536 = vpack.c.b16 %v4736, %v4728
        %v5537 = vpack.c.b16 %v4737, %v4729
        %v5538 = vpack.c.b16 %v4738, %v4730
        %v5539 = vpack.c.b16 %v4739, %v4731
        %v5540 = vpack.c.b16 %v4740, %v4732
        %v5541 = vpack.c.b16 %v4749, %v4741
        %v5542 = vpack.c.b16 %v4750, %v4742
        %v5543 = vpack.c.b16 %v4751, %v4743
        %v5544 = vpack.c.b16 %v4752, %v4744
        %v5545 = vpack.c.b16 %v4753, %v4745
        %v5546 = vpack.c.b16 %v4754, %v4746
        %v5547 = vpack.c.b16 %v4755, %v4747
        %v5548 = vpack.c.b16 %v4756, %v4748
        %v5549 = vpack.c.b16 %v4765, %v4757
        %v5550 = vpack.c.b16 %v4766, %v4758
        %v5551 = vpack.c.b16 %v4767, %v4759
        %v5552 = vpack.c.b16 %v4768, %v4760
        %v5553 = vpack.c.b16 %v4769, %v4761
        %v5554 = vpack.c.b16 %v4770, %v4762
        %v5555 = vpack.c.b16 %v4771, %v4763
        %v5556 = vpack.c.b16 %v4772, %v4764
        %v5557 = vpack.c.b16 %v4781, %v4773
        %v5558 = vpack.c.b16 %v4782, %v4774
        %v5559 = vpack.c.b16 %v4783, %v4775
        %v5560 = vpack.c.b16 %v4784, %v4776
        %v5561 = vpack.c.b16 %v4785, %v4777
        %v5562 = vpack.c.b16 %v4786, %v4778
        %v5563 = vpack.c.b16 %v4787, %v4779
        %v5564 = vpack.c.b16 %v4788, %v4780
        %v5565 = vpack.c.b16 %v4797, %v4789
        %v5566 = vpack.c.b16 %v4798, %v4790
        %v5567 = vpack.c.b16 %v4799, %v4791
        %v5568 = vpack.c.b16 %v4800, %v4792
        %v5569 = vpack.c.b16 %v4801, %v4793
        %v5570 = vpack.c.b16 %v4802, %v4794
        %v5571 = vpack.c.b16 %v4803, %v4795
        %v5572 = vpack.c.b16 %v4804, %v4796
        %v5573 = vpack.c.b16 %v4813, %v4805
        %v5574 = vpack.c.b16 %v4814, %v4806
        %v5575 = vpack.c.b16 %v4815, %v4807
        %v5576 = vpack.c.b16 %v4816, %v4808
        %v5577 = vpack.c.b16 %v4817, %v4809
        %v5578 = vpack.c.b16 %v4818, %v4810
        %v5579 = vpack.c.b16 %v4819, %v4811
        %v5580 = vpack.c.b16 %v4820, %v4812
        %v5581 = vpack.c.b16 %v4829, %v4821
        %v5582 = vpack.c.b16 %v4830, %v4822
        %v5583 = vpack.c.b16 %v4831, %v4823
        %v5584 = vpack.c.b16 %v4832, %v4824
        %v5585 = vpack.c.b16 %v4833, %v4825
        %v5586 = vpack.c.b16 %v4834, %v4826
        %v5587 = vpack.c.b16 %v4835, %v4827
        %v5588 = vpack.c.b16 %v4836, %v4828
        %v5589 = vpack.c.b16 %v4845, %v4837
        %v5590 = vpack.c.b16 %v4846, %v4838
        %v5591 = vpack.c.b16 %v4847, %v4839
        %v5592 = vpack.c.b16 %v4848, %v4840
        %v5593 = vpack.c.b16 %v4849, %v4841
        %v5594 = vpack.c.b16 %v4850, %v4842
        %v5595 = vpack.c.b16 %v4851, %v4843
        %v5596 = vpack.c.b16 %v4852, %v4844
        %v5597 = vpack.c.b16 %v4861, %v4853
        %v5598 = vpack.c.b16 %v4862, %v4854
        %v5599 = vpack.c.b16 %v4863, %v4855
        %v5600 = vpack.c.b16 %v4864, %v4856
        %v5601 = vpack.c.b16 %v4865, %v4857
        %v5602 = vpack.c.b16 %v4866, %v4858
        %v5603 = vpack.c.b16 %v4867, %v4859
        %v5604 = vpack.c.b16 %v4868, %v4860
        %v5605 = vpack.c.b16 %v4877, %v4869
        %v5606 = vpack.c.b16 %v4878, %v4870
        %v5607 = vpack.c.b16 %v4879, %v4871
        %v5608 = vpack.c.b16 %v4880, %v4872
        %v5609 = vpack.c.b16 %v4881, %v4873
        %v5610 = vpack.c.b16 %v4882, %v4874
        %v5611 = vpack.c.b16 %v4883, %v4875
        %v5612 = vpack.c.b16 %v4884, %v4876
        %v5613 = vpack.c.b16 %v4893, %v4885
        %v5614 = vpack.c.b16 %v4894, %v4886
        %v5615 = vpack.c.b16 %v4895, %v4887
        %v5616 = vpack.c.b16 %v4896, %v4888
        %v5617 = vpack.c.b16 %v4897, %v4889
        %v5618 = vpack.c.b16 %v4898, %v4890
        %v5619 = vpack.c.b16 %v4899, %v4891
        %v5620 = vpack.c.b16 %v4900, %v4892
        %v5621 = vpack.c.b16 %v4909, %v4901
        %v5622 = vpack.c.b16 %v4910, %v4902
        %v5623 = vpack.c.b16 %v4911, %v4903
        %v5624 = vpack.c.b16 %v4912, %v4904
        %v5625 = vpack.c.b16 %v4913, %v4905
        %v5626 = vpack.c.b16 %v4914, %v4906
        %v5627 = vpack.c.b16 %v4915, %v4907
        %v5628 = vpack.c.b16 %v4916, %v4908
        %v5629 = vpack.c.b16 %v4925, %v4917
        %v5630 = vpack.c.b16 %v4926, %v4918
        %v5631 = vpack.c.b16 %v4927, %v4919
        %v5632 = vpack.c.b16 %v4928, %v4920
        %v5633 = vpack.c.b16 %v4929, %v4921
        %v5634 = vpack.c.b16 %v4930, %v4922
        %v5635 = vpack.c.b16 %v4931, %v4923
        %v5636 = vpack.c.b16 %v4932, %v4924
        %v5637 = vpack.c.b16 %v4941, %v4933
        %v5638 = vpack.c.b16 %v4942, %v4934
        %v5639 = vpack.c.b16 %v4943, %v4935
        %v5640 = vpack.c.b16 %v4944, %v4936
        %v5641 = vpack.c.b16 %v4945, %v4937
        %v5642 = vpack.c.b16 %v4946, %v4938
        %v5643 = vpack.c.b16 %v4947, %v4939
        %v5644 = vpack.c.b16 %v4948, %v4940
        %v5645 = vpack.c.b16 %v4957, %v4949
        %v5646 = vpack.c.b16 %v4958, %v4950
        %v5647 = vpack.c.b16 %v4959, %v4951
        %v5648 = vpack.c.b16 %v4960, %v4952
        %v5649 = vpack.c.b16 %v4961, %v4953
        %v5650 = vpack.c.b16 %v4962, %v4954
        %v5651 = vpack.c.b16 %v4963, %v4955
        %v5652 = vpack.c.b16 %v4964, %v4956
        %v5653 = vpack.c.b16 %v4973, %v4965
        %v5654 = vpack.c.b16 %v4974, %v4966
        %v5655 = vpack.c.b16 %v4975, %v4967
        %v5656 = vpack.c.b16 %v4976, %v4968
        %v5657 = vpack.c.b16 %v4977, %v4969
        %v5658 = vpack.c.b16 %v4978, %v4970
        %v5659 = vpack.c.b16 %v4979, %v4971
        %v5660 = vpack.c.b16 %v4980, %v4972
        %v5661 = vpack.c.b16 %v4989, %v4981
        %v5662 = vpack.c.b16 %v4990, %v4982
        %v5663 = vpack.c.b16 %v4991, %v4983
        %v5664 = vpack.c.b16 %v4992, %v4984
        %v5665 = vpack.c.b16 %v4993, %v4985
        %v5666 = vpack.c.b16 %v4994, %v4986
        %v5667 = vpack.c.b16 %v4995, %v4987
        %v5668 = vpack.c.b16 %v4996, %v4988
        %v5669 = vpack.c.b16 %v5005, %v4997
        %v5670 = vpack.c.b16 %v5006, %v4998
        %v5671 = vpack.c.b16 %v5007, %v4999
        %v5672 = vpack.c.b16 %v5008, %v5000
        %v5673 = vpack.c.b16 %v5009, %v5001
        %v5674 = vpack.c.b16 %v5010, %v5002
        %v5675 = vpack.c.b16 %v5011, %v5003
        %v5676 = vpack.c.b16 %v5012, %v5004
        %v5677 = vpack.c.b16 %v5021, %v5013
        %v5678 = vpack.c.b16 %v5022, %v5014
        %v5679 = vpack.c.b16 %v5023, %v5015
        %v5680 = vpack.c.b16 %v5024, %v5016
        %v5681 = vpack.c.b16 %v5025, %v5017
        %v5682 = vpack.c.b16 %v5026, %v5018
        %v5683 = vpack.c.b16 %v5027, %v5019
        %v5684 = vpack.c.b16 %v5028, %v5020
        %v5685 = vpack.c.b16 %v5037, %v5029
        %v5686 = vpack.c.b16 %v5038, %v5030
        %v5687 = vpack.c.b16 %v5039, %v5031
        %v5688 = vpack.c.b16 %v5040, %v5032
        %v5689 = vpack.c.b16 %v5041, %v5033
        %v5690 = vpack.c.b16 %v5042, %v5034
        %v5691 = vpack.c.b16 %v5043, %v5035
        %v5692 = vpack.c.b16 %v5044, %v5036
        %v5693 = vpack.c.b16 %v5053, %v5045
        %v5694 = vpack.c.b16 %v5054, %v5046
        %v5695 = vpack.c.b16 %v5055, %v5047
        %v5696 = vpack.c.b16 %v5056, %v5048
        %v5697 = vpack.c.b16 %v5057, %v5049
        %v5698 = vpack.c.b16 %v5058, %v5050
        %v5699 = vpack.c.b16 %v5059, %v5051
        %v5700 = vpack.c.b16 %v5060, %v5052
        %v5701 = vpack.c.b16 %v5069, %v5061
        %v5702 = vpack.c.b16 %v5070, %v5062
        %v5703 = vpack.c.b16 %v5071, %v5063
        %v5704 = vpack.c.b16 %v5072, %v5064
        %v5705 = vpack.c.b16 %v5073, %v5065
        %v5706 = vpack.c.b16 %v5074, %v5066
        %v5707 = vpack.c.b16 %v5075, %v5067
        %v5708 = vpack.c.b16 %v5076, %v5068
        %v5709 = vpack.c.b16 %v5085, %v5077
        %v5710 = vpack.c.b16 %v5086, %v5078
        %v5711 = vpack.c.b16 %v5087, %v5079
        %v5712 = vpack.c.b16 %v5088, %v5080
        %v5713 = vpack.c.b16 %v5089, %v5081
        %v5714 = vpack.c.b16 %v5090, %v5082
        %v5715 = vpack.c.b16 %v5091, %v5083
        %v5716 = vpack.c.b16 %v5092, %v5084
        %v5717 = vpack.c.b16 %v5101, %v5093
        %v5718 = vpack.c.b16 %v5102, %v5094
        %v5719 = vpack.c.b16 %v5103, %v5095
        %v5720 = vpack.c.b16 %v5104, %v5096
        %v5721 = vpack.c.b16 %v5105, %v5097
        %v5722 = vpack.c.b16 %v5106, %v5098
        %v5723 = vpack.c.b16 %v5107, %v5099
        %v5724 = vpack.c.b16 %v5108, %v5100
        %v5725 = vpack.c.b16 %v5117, %v5109
        %v5726 = vpack.c.b16 %v5118, %v5110
        %v5727 = vpack.c.b16 %v5119, %v5111
        %v5728 = vpack.c.b16 %v5120, %v5112
        %v5729 = vpack.c.b16 %v5121, %v5113
        %v5730 = vpack.c.b16 %v5122, %v5114
        %v5731 = vpack.c.b16 %v5123, %v5115
        %v5732 = vpack.c.b16 %v5124, %v5116
        %v5733 = vpack.c.b16 %v5133, %v5125
        %v5734 = vpack.c.b16 %v5134, %v5126
        %v5735 = vpack.c.b16 %v5135, %v5127
        %v5736 = vpack.c.b16 %v5136, %v5128
        %v5737 = vpack.c.b16 %v5137, %v5129
        %v5738 = vpack.c.b16 %v5138, %v5130
        %v5739 = vpack.c.b16 %v5139, %v5131
        %v5740 = vpack.c.b16 %v5140, %v5132
        %v5741 = vpack.c.b16 %v5149, %v5141
        %v5742 = vpack.c.b16 %v5150, %v5142
        %v5743 = vpack.c.b16 %v5151, %v5143
        %v5744 = vpack.c.b16 %v5152, %v5144
        %v5745 = vpack.c.b16 %v5153, %v5145
        %v5746 = vpack.c.b16 %v5154, %v5146
        %v5747 = vpack.c.b16 %v5155, %v5147
        %v5748 = vpack.c.b16 %v5156, %v5148
        %v5749 = vpack.c.b16 %v5165, %v5157
        %v5750 = vpack.c.b16 %v5166, %v5158
        %v5751 = vpack.c.b16 %v5167, %v5159
        %v5752 = vpack.c.b16 %v5168, %v5160
        %v5753 = vpack.c.b16 %v5169, %v5161
        %v5754 = vpack.c.b16 %v5170, %v5162
        %v5755 = vpack.c.b16 %v5171, %v5163
        %v5756 = vpack.c.b16 %v5172, %v5164
        %v5757 = vpack.c.b16 %v5181, %v5173
        %v5758 = vpack.c.b16 %v5182, %v5174
        %v5759 = vpack.c.b16 %v5183, %v5175
        %v5760 = vpack.c.b16 %v5184, %v5176
        %v5761 = vpack.c.b16 %v5185, %v5177
        %v5762 = vpack.c.b16 %v5186, %v5178
        %v5763 = vpack.c.b16 %v5187, %v5179
        %v5764 = vpack.c.b16 %v5188, %v5180
        %v5765 = vpack.c.b16 %v5197, %v5189
        %v5766 = vpack.c.b16 %v5198, %v5190
        %v5767 = vpack.c.b16 %v5199, %v5191
        %v5768 = vpack.c.b16 %v5200, %v5192
        %v5769 = vpack.c.b16 %v5201, %v5193
        %v5770 = vpack.c.b16 %v5202, %v5194
        %v5771 = vpack.c.b16 %v5203, %v5195
        %v5772 = vpack.c.b16 %v5204, %v5196
        %v5773 = vpack.c.b16 %v5213, %v5205
        %v5774 = vpack.c.b16 %v5214, %v5206
        %v5775 = vpack.c.b16 %v5215, %v5207
        %v5776 = vpack.c.b16 %v5216, %v5208
        %v5777 = vpack.c.b16 %v5217, %v5209
        %v5778 = vpack.c.b16 %v5218, %v5210
        %v5779 = vpack.c.b16 %v5219, %v5211
        %v5780 = vpack.c.b16 %v5220, %v5212
        %v5781 = vpack.c.b16 %v5229, %v5221
        %v5782 = vpack.c.b16 %v5230, %v5222
        %v5783 = vpack.c.b16 %v5231, %v5223
        %v5784 = vpack.c.b16 %v5232, %v5224
        %v5785 = vpack.c.b16 %v5233, %v5225
        %v5786 = vpack.c.b16 %v5234, %v5226
        %v5787 = vpack.c.b16 %v5235, %v5227
        %v5788 = vpack.c.b16 %v5236, %v5228
        %v5789 = vpack.c.b16 %v5245, %v5237
        %v5790 = vpack.c.b16 %v5246, %v5238
        %v5791 = vpack.c.b16 %v5247, %v5239
        %v5792 = vpack.c.b16 %v5248, %v5240
        %v5793 = vpack.c.b16 %v5249, %v5241
        %v5794 = vpack.c.b16 %v5250, %v5242
        %v5795 = vpack.c.b16 %v5251, %v5243
        %v5796 = vpack.c.b16 %v5252, %v5244
        %v5797 = vpack.c.b16 %v5261, %v5253
        %v5798 = vpack.c.b16 %v5262, %v5254
        %v5799 = vpack.c.b16 %v5263, %v5255
        %v5800 = vpack.c.b16 %v5264, %v5256
        %v5801 = vpack.c.b16 %v5265, %v5257
        %v5802 = vpack.c.b16 %v5266, %v5258
        %v5803 = vpack.c.b16 %v5267, %v5259
        %v5804 = vpack.c.b16 %v5268, %v5260
        %v5805 = vpack.c.b16 %v5277, %v5269
        %v5806 = vpack.c.b16 %v5278, %v5270
        %v5807 = vpack.c.b16 %v5279, %v5271
        %v5808 = vpack.c.b16 %v5280, %v5272
        %v5809 = vpack.c.b16 %v5281, %v5273
        %v5810 = vpack.c.b16 %v5282, %v5274
        %v5811 = vpack.c.b16 %v5283, %v5275
        %v5812 = vpack.c.b16 %v5284, %v5276
        %v5813 = vpack.c.b16 %v5293, %v5285
        %v5814 = vpack.c.b16 %v5294, %v5286
        %v5815 = vpack.c.b16 %v5295, %v5287
        %v5816 = vpack.c.b16 %v5296, %v5288
        %v5817 = vpack.c.b16 %v5297, %v5289
        %v5818 = vpack.c.b16 %v5298, %v5290
        %v5819 = vpack.c.b16 %v5299, %v5291
        %v5820 = vpack.c.b16 %v5300, %v5292
        %v5821 = vpack.c.b16 %v5309, %v5301
        %v5822 = vpack.c.b16 %v5310, %v5302
        %v5823 = vpack.c.b16 %v5311, %v5303
        %v5824 = vpack.c.b16 %v5312, %v5304
        %v5825 = vpack.c.b16 %v5313, %v5305
        %v5826 = vpack.c.b16 %v5314, %v5306
        %v5827 = vpack.c.b16 %v5315, %v5307
        %v5828 = vpack.c.b16 %v5316, %v5308
        %6341 = vmatpush.bf16.msra.mxu0 %v5373
        %6342 = vmatpush.bf16.msra.mxu0 %v5365
        %6343 = vmatpush.bf16.msra.mxu0 %v5357
        %6344 = vmatpush.bf16.msra.mxu0 %v5349
        %6345 = vmatpush.bf16.msra.mxu0 %v5341
        %6346 = vmatpush.bf16.msra.mxu0 %v5333
        %6347 = vmatpush.bf16.msra.mxu0 %v5325
        %6348 = vmatpush.bf16.msra.mxu0 %v5317
        %6349 = vmatmul.bf16.gmra.mxu0 %v3755
        %v6350 = vpop.f32.mrf.mxu0
        %v6351 = vadd.f32 %v3765, %v6350
        %v6352 = vpop.f32.mrf.mxu0
        %6353 = vdwg.mxu0
        %6354 = vmatpush.bf16.msra.mxu0 %v5437
        %6355 = vmatpush.bf16.msra.mxu0 %v5429
        %6356 = vmatpush.bf16.msra.mxu0 %v5421
        %6357 = vmatpush.bf16.msra.mxu0 %v5413
        %6358 = vmatpush.bf16.msra.mxu0 %v5405
        %6359 = vmatpush.bf16.msra.mxu0 %v5397
        %6360 = vmatpush.bf16.msra.mxu0 %v5389
        %6361 = vmatpush.bf16.msra.mxu0 %v5381
        %6362 = vmatmul.bf16.gmra.mxu0 %v3756
        %v6363 = vpop.f32.mrf.mxu0
        %v6364 = vadd.f32 %v6351, %v6363
        %v6365 = vpop.f32.mrf.mxu0
        %6366 = vdwg.mxu0
        %6367 = vmatpush.bf16.msra.mxu0 %v5501
        %6368 = vmatpush.bf16.msra.mxu0 %v5493
        %6369 = vmatpush.bf16.msra.mxu0 %v5485
        %6370 = vmatpush.bf16.msra.mxu0 %v5477
        %6371 = vmatpush.bf16.msra.mxu0 %v5469
        %6372 = vmatpush.bf16.msra.mxu0 %v5461
        %6373 = vmatpush.bf16.msra.mxu0 %v5453
        %6374 = vmatpush.bf16.msra.mxu0 %v5445
        %6375 = vmatmul.bf16.gmra.mxu0 %v3757
        %v6376 = vpop.f32.mrf.mxu0
        %v6377 = vadd.f32 %v6364, %v6376
        %v6378 = vpop.f32.mrf.mxu0
        %6379 = vdwg.mxu0
        %6380 = vmatpush.bf16.msra.mxu0 %v5565
        %6381 = vmatpush.bf16.msra.mxu0 %v5557
        %6382 = vmatpush.bf16.msra.mxu0 %v5549
        %6383 = vmatpush.bf16.msra.mxu0 %v5541
        %6384 = vmatpush.bf16.msra.mxu0 %v5533
        %6385 = vmatpush.bf16.msra.mxu0 %v5525
        %6386 = vmatpush.bf16.msra.mxu0 %v5517
        %6387 = vmatpush.bf16.msra.mxu0 %v5509
        %6388 = vmatmul.bf16.gmra.mxu0 %v3758
        %v6389 = vpop.f32.mrf.mxu0
        %v6390 = vadd.f32 %v6377, %v6389
        %v6391 = vpop.f32.mrf.mxu0
        %6392 = vdwg.mxu0
        %6393 = vmatpush.bf16.msra.mxu0 %v5629
        %6394 = vmatpush.bf16.msra.mxu0 %v5621
        %6395 = vmatpush.bf16.msra.mxu0 %v5613
        %6396 = vmatpush.bf16.msra.mxu0 %v5605
        %6397 = vmatpush.bf16.msra.mxu0 %v5597
        %6398 = vmatpush.bf16.msra.mxu0 %v5589
        %6399 = vmatpush.bf16.msra.mxu0 %v5581
        %6400 = vmatpush.bf16.msra.mxu0 %v5573
        %6401 = vmatmul.bf16.gmra.mxu0 %v3759
        %v6402 = vpop.f32.mrf.mxu0
        %v6403 = vadd.f32 %v6390, %v6402
        %v6404 = vpop.f32.mrf.mxu0
        %6405 = vdwg.mxu0
        %6406 = vmatpush.bf16.msra.mxu0 %v5693
        %6407 = vmatpush.bf16.msra.mxu0 %v5685
        %6408 = vmatpush.bf16.msra.mxu0 %v5677
        %6409 = vmatpush.bf16.msra.mxu0 %v5669
        %6410 = vmatpush.bf16.msra.mxu0 %v5661
        %6411 = vmatpush.bf16.msra.mxu0 %v5653
        %6412 = vmatpush.bf16.msra.mxu0 %v5645
        %6413 = vmatpush.bf16.msra.mxu0 %v5637
        %6414 = vmatmul.bf16.gmra.mxu0 %v3760
        %v6415 = vpop.f32.mrf.mxu0
        %v6416 = vadd.f32 %v6403, %v6415
        %v6417 = vpop.f32.mrf.mxu0
        %6418 = vdwg.mxu0
        %6419 = vmatpush.bf16.msra.mxu0 %v5757
        %6420 = vmatpush.bf16.msra.mxu0 %v5749
        %6421 = vmatpush.bf16.msra.mxu0 %v5741
        %6422 = vmatpush.bf16.msra.mxu0 %v5733
        %6423 = vmatpush.bf16.msra.mxu0 %v5725
        %6424 = vmatpush.bf16.msra.mxu0 %v5717
        %6425 = vmatpush.bf16.msra.mxu0 %v5709
        %6426 = vmatpush.bf16.msra.mxu0 %v5701
        %6427 = vmatmul.bf16.gmra.mxu0 %v3761
        %v6428 = vpop.f32.mrf.mxu0
        %v6429 = vadd.f32 %v6416, %v6428
        %v6430 = vpop.f32.mrf.mxu0
        %6431 = vdwg.mxu0
        %6432 = vmatpush.bf16.msra.mxu0 %v5821
        %6433 = vmatpush.bf16.msra.mxu0 %v5813
        %6434 = vmatpush.bf16.msra.mxu0 %v5805
        %6435 = vmatpush.bf16.msra.mxu0 %v5797
        %6436 = vmatpush.bf16.msra.mxu0 %v5789
        %6437 = vmatpush.bf16.msra.mxu0 %v5781
        %6438 = vmatpush.bf16.msra.mxu0 %v5773
        %6439 = vmatpush.bf16.msra.mxu0 %v5765
        %6440 = vmatmul.bf16.gmra.mxu0 %v3762
        %v6441 = vpop.f32.mrf.mxu0
        %v6442 = vadd.f32 %v6429, %v6441
        %v6443 = vpop.f32.mrf.mxu0
        %6444 = vdwg.mxu0
        %6445 = vmatpush.bf16.msra.mxu0 %v5374
        %6446 = vmatpush.bf16.msra.mxu0 %v5366
        %6447 = vmatpush.bf16.msra.mxu0 %v5358
        %6448 = vmatpush.bf16.msra.mxu0 %v5350
        %6449 = vmatpush.bf16.msra.mxu0 %v5342
        %6450 = vmatpush.bf16.msra.mxu0 %v5334
        %6451 = vmatpush.bf16.msra.mxu0 %v5326
        %6452 = vmatpush.bf16.msra.mxu0 %v5318
        %6453 = vmatmul.bf16.gmra.mxu0 %v3755
        %v6454 = vpop.f32.mrf.mxu0
        %v6455 = vadd.f32 %v3766, %v6454
        %v6456 = vpop.f32.mrf.mxu0
        %6457 = vdwg.mxu0
        %6458 = vmatpush.bf16.msra.mxu0 %v5438
        %6459 = vmatpush.bf16.msra.mxu0 %v5430
        %6460 = vmatpush.bf16.msra.mxu0 %v5422
        %6461 = vmatpush.bf16.msra.mxu0 %v5414
        %6462 = vmatpush.bf16.msra.mxu0 %v5406
        %6463 = vmatpush.bf16.msra.mxu0 %v5398
        %6464 = vmatpush.bf16.msra.mxu0 %v5390
        %6465 = vmatpush.bf16.msra.mxu0 %v5382
        %6466 = vmatmul.bf16.gmra.mxu0 %v3756
        %v6467 = vpop.f32.mrf.mxu0
        %v6468 = vadd.f32 %v6455, %v6467
        %v6469 = vpop.f32.mrf.mxu0
        %6470 = vdwg.mxu0
        %6471 = vmatpush.bf16.msra.mxu0 %v5502
        %6472 = vmatpush.bf16.msra.mxu0 %v5494
        %6473 = vmatpush.bf16.msra.mxu0 %v5486
        %6474 = vmatpush.bf16.msra.mxu0 %v5478
        %6475 = vmatpush.bf16.msra.mxu0 %v5470
        %6476 = vmatpush.bf16.msra.mxu0 %v5462
        %6477 = vmatpush.bf16.msra.mxu0 %v5454
        %6478 = vmatpush.bf16.msra.mxu0 %v5446
        %6479 = vmatmul.bf16.gmra.mxu0 %v3757
        %v6480 = vpop.f32.mrf.mxu0
        %v6481 = vadd.f32 %v6468, %v6480
        %v6482 = vpop.f32.mrf.mxu0
        %6483 = vdwg.mxu0
        %6484 = vmatpush.bf16.msra.mxu0 %v5566
        %6485 = vmatpush.bf16.msra.mxu0 %v5558
        %6486 = vmatpush.bf16.msra.mxu0 %v5550
        %6487 = vmatpush.bf16.msra.mxu0 %v5542
        %6488 = vmatpush.bf16.msra.mxu0 %v5534
        %6489 = vmatpush.bf16.msra.mxu0 %v5526
        %6490 = vmatpush.bf16.msra.mxu0 %v5518
        %6491 = vmatpush.bf16.msra.mxu0 %v5510
        %6492 = vmatmul.bf16.gmra.mxu0 %v3758
        %v6493 = vpop.f32.mrf.mxu0
        %v6494 = vadd.f32 %v6481, %v6493
        %v6495 = vpop.f32.mrf.mxu0
        %6496 = vdwg.mxu0
        %6497 = vmatpush.bf16.msra.mxu0 %v5630
        %6498 = vmatpush.bf16.msra.mxu0 %v5622
        %6499 = vmatpush.bf16.msra.mxu0 %v5614
        %6500 = vmatpush.bf16.msra.mxu0 %v5606
        %6501 = vmatpush.bf16.msra.mxu0 %v5598
        %6502 = vmatpush.bf16.msra.mxu0 %v5590
        %6503 = vmatpush.bf16.msra.mxu0 %v5582
        %6504 = vmatpush.bf16.msra.mxu0 %v5574
        %6505 = vmatmul.bf16.gmra.mxu0 %v3759
        %v6506 = vpop.f32.mrf.mxu0
        %v6507 = vadd.f32 %v6494, %v6506
        %v6508 = vpop.f32.mrf.mxu0
        %6509 = vdwg.mxu0
        %6510 = vmatpush.bf16.msra.mxu0 %v5694
        %6511 = vmatpush.bf16.msra.mxu0 %v5686
        %6512 = vmatpush.bf16.msra.mxu0 %v5678
        %6513 = vmatpush.bf16.msra.mxu0 %v5670
        %6514 = vmatpush.bf16.msra.mxu0 %v5662
        %6515 = vmatpush.bf16.msra.mxu0 %v5654
        %6516 = vmatpush.bf16.msra.mxu0 %v5646
        %6517 = vmatpush.bf16.msra.mxu0 %v5638
        %6518 = vmatmul.bf16.gmra.mxu0 %v3760
        %v6519 = vpop.f32.mrf.mxu0
        %v6520 = vadd.f32 %v6507, %v6519
        %v6521 = vpop.f32.mrf.mxu0
        %6522 = vdwg.mxu0
        %6523 = vmatpush.bf16.msra.mxu0 %v5758
        %6524 = vmatpush.bf16.msra.mxu0 %v5750
        %6525 = vmatpush.bf16.msra.mxu0 %v5742
        %6526 = vmatpush.bf16.msra.mxu0 %v5734
        %6527 = vmatpush.bf16.msra.mxu0 %v5726
        %6528 = vmatpush.bf16.msra.mxu0 %v5718
        %6529 = vmatpush.bf16.msra.mxu0 %v5710
        %6530 = vmatpush.bf16.msra.mxu0 %v5702
        %6531 = vmatmul.bf16.gmra.mxu0 %v3761
        %v6532 = vpop.f32.mrf.mxu0
        %v6533 = vadd.f32 %v6520, %v6532
        %v6534 = vpop.f32.mrf.mxu0
        %6535 = vdwg.mxu0
        %6536 = vmatpush.bf16.msra.mxu0 %v5822
        %6537 = vmatpush.bf16.msra.mxu0 %v5814
        %6538 = vmatpush.bf16.msra.mxu0 %v5806
        %6539 = vmatpush.bf16.msra.mxu0 %v5798
        %6540 = vmatpush.bf16.msra.mxu0 %v5790
        %6541 = vmatpush.bf16.msra.mxu0 %v5782
        %6542 = vmatpush.bf16.msra.mxu0 %v5774
        %6543 = vmatpush.bf16.msra.mxu0 %v5766
        %6544 = vmatmul.bf16.gmra.mxu0 %v3762
        %v6545 = vpop.f32.mrf.mxu0
        %v6546 = vadd.f32 %v6533, %v6545
        %v6547 = vpop.f32.mrf.mxu0
        %6548 = vdwg.mxu0
        %6549 = vmatpush.bf16.msra.mxu0 %v5375
        %6550 = vmatpush.bf16.msra.mxu0 %v5367
        %6551 = vmatpush.bf16.msra.mxu0 %v5359
        %6552 = vmatpush.bf16.msra.mxu0 %v5351
        %6553 = vmatpush.bf16.msra.mxu0 %v5343
        %6554 = vmatpush.bf16.msra.mxu0 %v5335
        %6555 = vmatpush.bf16.msra.mxu0 %v5327
        %6556 = vmatpush.bf16.msra.mxu0 %v5319
        %6557 = vmatmul.bf16.gmra.mxu0 %v3755
        %v6558 = vpop.f32.mrf.mxu0
        %v6559 = vadd.f32 %v3767, %v6558
        %v6560 = vpop.f32.mrf.mxu0
        %6561 = vdwg.mxu0
        %6562 = vmatpush.bf16.msra.mxu0 %v5439
        %6563 = vmatpush.bf16.msra.mxu0 %v5431
        %6564 = vmatpush.bf16.msra.mxu0 %v5423
        %6565 = vmatpush.bf16.msra.mxu0 %v5415
        %6566 = vmatpush.bf16.msra.mxu0 %v5407
        %6567 = vmatpush.bf16.msra.mxu0 %v5399
        %6568 = vmatpush.bf16.msra.mxu0 %v5391
        %6569 = vmatpush.bf16.msra.mxu0 %v5383
        %6570 = vmatmul.bf16.gmra.mxu0 %v3756
        %v6571 = vpop.f32.mrf.mxu0
        %v6572 = vadd.f32 %v6559, %v6571
        %v6573 = vpop.f32.mrf.mxu0
        %6574 = vdwg.mxu0
        %6575 = vmatpush.bf16.msra.mxu0 %v5503
        %6576 = vmatpush.bf16.msra.mxu0 %v5495
        %6577 = vmatpush.bf16.msra.mxu0 %v5487
        %6578 = vmatpush.bf16.msra.mxu0 %v5479
        %6579 = vmatpush.bf16.msra.mxu0 %v5471
        %6580 = vmatpush.bf16.msra.mxu0 %v5463
        %6581 = vmatpush.bf16.msra.mxu0 %v5455
        %6582 = vmatpush.bf16.msra.mxu0 %v5447
        %6583 = vmatmul.bf16.gmra.mxu0 %v3757
        %v6584 = vpop.f32.mrf.mxu0
        %v6585 = vadd.f32 %v6572, %v6584
        %v6586 = vpop.f32.mrf.mxu0
        %6587 = vdwg.mxu0
        %6588 = vmatpush.bf16.msra.mxu0 %v5567
        %6589 = vmatpush.bf16.msra.mxu0 %v5559
        %6590 = vmatpush.bf16.msra.mxu0 %v5551
        %6591 = vmatpush.bf16.msra.mxu0 %v5543
        %6592 = vmatpush.bf16.msra.mxu0 %v5535
        %6593 = vmatpush.bf16.msra.mxu0 %v5527
        %6594 = vmatpush.bf16.msra.mxu0 %v5519
        %6595 = vmatpush.bf16.msra.mxu0 %v5511
        %6596 = vmatmul.bf16.gmra.mxu0 %v3758
        %v6597 = vpop.f32.mrf.mxu0
        %v6598 = vadd.f32 %v6585, %v6597
        %v6599 = vpop.f32.mrf.mxu0
        %6600 = vdwg.mxu0
        %6601 = vmatpush.bf16.msra.mxu0 %v5631
        %6602 = vmatpush.bf16.msra.mxu0 %v5623
        %6603 = vmatpush.bf16.msra.mxu0 %v5615
        %6604 = vmatpush.bf16.msra.mxu0 %v5607
        %6605 = vmatpush.bf16.msra.mxu0 %v5599
        %6606 = vmatpush.bf16.msra.mxu0 %v5591
        %6607 = vmatpush.bf16.msra.mxu0 %v5583
        %6608 = vmatpush.bf16.msra.mxu0 %v5575
        %6609 = vmatmul.bf16.gmra.mxu0 %v3759
        %v6610 = vpop.f32.mrf.mxu0
        %v6611 = vadd.f32 %v6598, %v6610
        %v6612 = vpop.f32.mrf.mxu0
        %6613 = vdwg.mxu0
        %6614 = vmatpush.bf16.msra.mxu0 %v5695
        %6615 = vmatpush.bf16.msra.mxu0 %v5687
        %6616 = vmatpush.bf16.msra.mxu0 %v5679
        %6617 = vmatpush.bf16.msra.mxu0 %v5671
        %6618 = vmatpush.bf16.msra.mxu0 %v5663
        %6619 = vmatpush.bf16.msra.mxu0 %v5655
        %6620 = vmatpush.bf16.msra.mxu0 %v5647
        %6621 = vmatpush.bf16.msra.mxu0 %v5639
        %6622 = vmatmul.bf16.gmra.mxu0 %v3760
        %v6623 = vpop.f32.mrf.mxu0
        %v6624 = vadd.f32 %v6611, %v6623
        %v6625 = vpop.f32.mrf.mxu0
        %6626 = vdwg.mxu0
        %6627 = vmatpush.bf16.msra.mxu0 %v5759
        %6628 = vmatpush.bf16.msra.mxu0 %v5751
        %6629 = vmatpush.bf16.msra.mxu0 %v5743
        %6630 = vmatpush.bf16.msra.mxu0 %v5735
        %6631 = vmatpush.bf16.msra.mxu0 %v5727
        %6632 = vmatpush.bf16.msra.mxu0 %v5719
        %6633 = vmatpush.bf16.msra.mxu0 %v5711
        %6634 = vmatpush.bf16.msra.mxu0 %v5703
        %6635 = vmatmul.bf16.gmra.mxu0 %v3761
        %v6636 = vpop.f32.mrf.mxu0
        %v6637 = vadd.f32 %v6624, %v6636
        %v6638 = vpop.f32.mrf.mxu0
        %6639 = vdwg.mxu0
        %6640 = vmatpush.bf16.msra.mxu0 %v5823
        %6641 = vmatpush.bf16.msra.mxu0 %v5815
        %6642 = vmatpush.bf16.msra.mxu0 %v5807
        %6643 = vmatpush.bf16.msra.mxu0 %v5799
        %6644 = vmatpush.bf16.msra.mxu0 %v5791
        %6645 = vmatpush.bf16.msra.mxu0 %v5783
        %6646 = vmatpush.bf16.msra.mxu0 %v5775
        %6647 = vmatpush.bf16.msra.mxu0 %v5767
        %6648 = vmatmul.bf16.gmra.mxu0 %v3762
        %v6649 = vpop.f32.mrf.mxu0
        %v6650 = vadd.f32 %v6637, %v6649
        %v6651 = vpop.f32.mrf.mxu0
        %6652 = vdwg.mxu0
        %6653 = vmatpush.bf16.msra.mxu0 %v5376
        %6654 = vmatpush.bf16.msra.mxu0 %v5368
        %6655 = vmatpush.bf16.msra.mxu0 %v5360
        %6656 = vmatpush.bf16.msra.mxu0 %v5352
        %6657 = vmatpush.bf16.msra.mxu0 %v5344
        %6658 = vmatpush.bf16.msra.mxu0 %v5336
        %6659 = vmatpush.bf16.msra.mxu0 %v5328
        %6660 = vmatpush.bf16.msra.mxu0 %v5320
        %6661 = vmatmul.bf16.gmra.mxu0 %v3755
        %v6662 = vpop.f32.mrf.mxu0
        %v6663 = vadd.f32 %v3768, %v6662
        %v6664 = vpop.f32.mrf.mxu0
        %6665 = vdwg.mxu0
        %6666 = vmatpush.bf16.msra.mxu0 %v5440
        %6667 = vmatpush.bf16.msra.mxu0 %v5432
        %6668 = vmatpush.bf16.msra.mxu0 %v5424
        %6669 = vmatpush.bf16.msra.mxu0 %v5416
        %6670 = vmatpush.bf16.msra.mxu0 %v5408
        %6671 = vmatpush.bf16.msra.mxu0 %v5400
        %6672 = vmatpush.bf16.msra.mxu0 %v5392
        %6673 = vmatpush.bf16.msra.mxu0 %v5384
        %6674 = vmatmul.bf16.gmra.mxu0 %v3756
        %v6675 = vpop.f32.mrf.mxu0
        %v6676 = vadd.f32 %v6663, %v6675
        %v6677 = vpop.f32.mrf.mxu0
        %6678 = vdwg.mxu0
        %6679 = vmatpush.bf16.msra.mxu0 %v5504
        %6680 = vmatpush.bf16.msra.mxu0 %v5496
        %6681 = vmatpush.bf16.msra.mxu0 %v5488
        %6682 = vmatpush.bf16.msra.mxu0 %v5480
        %6683 = vmatpush.bf16.msra.mxu0 %v5472
        %6684 = vmatpush.bf16.msra.mxu0 %v5464
        %6685 = vmatpush.bf16.msra.mxu0 %v5456
        %6686 = vmatpush.bf16.msra.mxu0 %v5448
        %6687 = vmatmul.bf16.gmra.mxu0 %v3757
        %v6688 = vpop.f32.mrf.mxu0
        %v6689 = vadd.f32 %v6676, %v6688
        %v6690 = vpop.f32.mrf.mxu0
        %6691 = vdwg.mxu0
        %6692 = vmatpush.bf16.msra.mxu0 %v5568
        %6693 = vmatpush.bf16.msra.mxu0 %v5560
        %6694 = vmatpush.bf16.msra.mxu0 %v5552
        %6695 = vmatpush.bf16.msra.mxu0 %v5544
        %6696 = vmatpush.bf16.msra.mxu0 %v5536
        %6697 = vmatpush.bf16.msra.mxu0 %v5528
        %6698 = vmatpush.bf16.msra.mxu0 %v5520
        %6699 = vmatpush.bf16.msra.mxu0 %v5512
        %6700 = vmatmul.bf16.gmra.mxu0 %v3758
        %v6701 = vpop.f32.mrf.mxu0
        %v6702 = vadd.f32 %v6689, %v6701
        %v6703 = vpop.f32.mrf.mxu0
        %6704 = vdwg.mxu0
        %6705 = vmatpush.bf16.msra.mxu0 %v5632
        %6706 = vmatpush.bf16.msra.mxu0 %v5624
        %6707 = vmatpush.bf16.msra.mxu0 %v5616
        %6708 = vmatpush.bf16.msra.mxu0 %v5608
        %6709 = vmatpush.bf16.msra.mxu0 %v5600
        %6710 = vmatpush.bf16.msra.mxu0 %v5592
        %6711 = vmatpush.bf16.msra.mxu0 %v5584
        %6712 = vmatpush.bf16.msra.mxu0 %v5576
        %6713 = vmatmul.bf16.gmra.mxu0 %v3759
        %v6714 = vpop.f32.mrf.mxu0
        %v6715 = vadd.f32 %v6702, %v6714
        %v6716 = vpop.f32.mrf.mxu0
        %6717 = vdwg.mxu0
        %6718 = vmatpush.bf16.msra.mxu0 %v5696
        %6719 = vmatpush.bf16.msra.mxu0 %v5688
        %6720 = vmatpush.bf16.msra.mxu0 %v5680
        %6721 = vmatpush.bf16.msra.mxu0 %v5672
        %6722 = vmatpush.bf16.msra.mxu0 %v5664
        %6723 = vmatpush.bf16.msra.mxu0 %v5656
        %6724 = vmatpush.bf16.msra.mxu0 %v5648
        %6725 = vmatpush.bf16.msra.mxu0 %v5640
        %6726 = vmatmul.bf16.gmra.mxu0 %v3760
        %v6727 = vpop.f32.mrf.mxu0
        %v6728 = vadd.f32 %v6715, %v6727
        %v6729 = vpop.f32.mrf.mxu0
        %6730 = vdwg.mxu0
        %6731 = vmatpush.bf16.msra.mxu0 %v5760
        %6732 = vmatpush.bf16.msra.mxu0 %v5752
        %6733 = vmatpush.bf16.msra.mxu0 %v5744
        %6734 = vmatpush.bf16.msra.mxu0 %v5736
        %6735 = vmatpush.bf16.msra.mxu0 %v5728
        %6736 = vmatpush.bf16.msra.mxu0 %v5720
        %6737 = vmatpush.bf16.msra.mxu0 %v5712
        %6738 = vmatpush.bf16.msra.mxu0 %v5704
        %6739 = vmatmul.bf16.gmra.mxu0 %v3761
        %v6740 = vpop.f32.mrf.mxu0
        %v6741 = vadd.f32 %v6728, %v6740
        %v6742 = vpop.f32.mrf.mxu0
        %6743 = vdwg.mxu0
        %6744 = vmatpush.bf16.msra.mxu0 %v5824
        %6745 = vmatpush.bf16.msra.mxu0 %v5816
        %6746 = vmatpush.bf16.msra.mxu0 %v5808
        %6747 = vmatpush.bf16.msra.mxu0 %v5800
        %6748 = vmatpush.bf16.msra.mxu0 %v5792
        %6749 = vmatpush.bf16.msra.mxu0 %v5784
        %6750 = vmatpush.bf16.msra.mxu0 %v5776
        %6751 = vmatpush.bf16.msra.mxu0 %v5768
        %6752 = vmatmul.bf16.gmra.mxu0 %v3762
        %v6753 = vpop.f32.mrf.mxu0
        %v6754 = vadd.f32 %v6741, %v6753
        %v6755 = vpop.f32.mrf.mxu0
        %6756 = vdwg.mxu0
        %6757 = vmatpush.bf16.msra.mxu0 %v5377
        %6758 = vmatpush.bf16.msra.mxu0 %v5369
        %6759 = vmatpush.bf16.msra.mxu0 %v5361
        %6760 = vmatpush.bf16.msra.mxu0 %v5353
        %6761 = vmatpush.bf16.msra.mxu0 %v5345
        %6762 = vmatpush.bf16.msra.mxu0 %v5337
        %6763 = vmatpush.bf16.msra.mxu0 %v5329
        %6764 = vmatpush.bf16.msra.mxu0 %v5321
        %6765 = vmatmul.bf16.gmra.mxu0 %v3755
        %v6766 = vpop.f32.mrf.mxu0
        %v6767 = vadd.f32 %v3769, %v6766
        %v6768 = vpop.f32.mrf.mxu0
        %6769 = vdwg.mxu0
        %6770 = vmatpush.bf16.msra.mxu0 %v5441
        %6771 = vmatpush.bf16.msra.mxu0 %v5433
        %6772 = vmatpush.bf16.msra.mxu0 %v5425
        %6773 = vmatpush.bf16.msra.mxu0 %v5417
        %6774 = vmatpush.bf16.msra.mxu0 %v5409
        %6775 = vmatpush.bf16.msra.mxu0 %v5401
        %6776 = vmatpush.bf16.msra.mxu0 %v5393
        %6777 = vmatpush.bf16.msra.mxu0 %v5385
        %6778 = vmatmul.bf16.gmra.mxu0 %v3756
        %v6779 = vpop.f32.mrf.mxu0
        %v6780 = vadd.f32 %v6767, %v6779
        %v6781 = vpop.f32.mrf.mxu0
        %6782 = vdwg.mxu0
        %6783 = vmatpush.bf16.msra.mxu0 %v5505
        %6784 = vmatpush.bf16.msra.mxu0 %v5497
        %6785 = vmatpush.bf16.msra.mxu0 %v5489
        %6786 = vmatpush.bf16.msra.mxu0 %v5481
        %6787 = vmatpush.bf16.msra.mxu0 %v5473
        %6788 = vmatpush.bf16.msra.mxu0 %v5465
        %6789 = vmatpush.bf16.msra.mxu0 %v5457
        %6790 = vmatpush.bf16.msra.mxu0 %v5449
        %6791 = vmatmul.bf16.gmra.mxu0 %v3757
        %v6792 = vpop.f32.mrf.mxu0
        %v6793 = vadd.f32 %v6780, %v6792
        %v6794 = vpop.f32.mrf.mxu0
        %6795 = vdwg.mxu0
        %6796 = vmatpush.bf16.msra.mxu0 %v5569
        %6797 = vmatpush.bf16.msra.mxu0 %v5561
        %6798 = vmatpush.bf16.msra.mxu0 %v5553
        %6799 = vmatpush.bf16.msra.mxu0 %v5545
        %6800 = vmatpush.bf16.msra.mxu0 %v5537
        %6801 = vmatpush.bf16.msra.mxu0 %v5529
        %6802 = vmatpush.bf16.msra.mxu0 %v5521
        %6803 = vmatpush.bf16.msra.mxu0 %v5513
        %6804 = vmatmul.bf16.gmra.mxu0 %v3758
        %v6805 = vpop.f32.mrf.mxu0
        %v6806 = vadd.f32 %v6793, %v6805
        %v6807 = vpop.f32.mrf.mxu0
        %6808 = vdwg.mxu0
        %6809 = vmatpush.bf16.msra.mxu0 %v5633
        %6810 = vmatpush.bf16.msra.mxu0 %v5625
        %6811 = vmatpush.bf16.msra.mxu0 %v5617
        %6812 = vmatpush.bf16.msra.mxu0 %v5609
        %6813 = vmatpush.bf16.msra.mxu0 %v5601
        %6814 = vmatpush.bf16.msra.mxu0 %v5593
        %6815 = vmatpush.bf16.msra.mxu0 %v5585
        %6816 = vmatpush.bf16.msra.mxu0 %v5577
        %6817 = vmatmul.bf16.gmra.mxu0 %v3759
        %v6818 = vpop.f32.mrf.mxu0
        %v6819 = vadd.f32 %v6806, %v6818
        %v6820 = vpop.f32.mrf.mxu0
        %6821 = vdwg.mxu0
        %6822 = vmatpush.bf16.msra.mxu0 %v5697
        %6823 = vmatpush.bf16.msra.mxu0 %v5689
        %6824 = vmatpush.bf16.msra.mxu0 %v5681
        %6825 = vmatpush.bf16.msra.mxu0 %v5673
        %6826 = vmatpush.bf16.msra.mxu0 %v5665
        %6827 = vmatpush.bf16.msra.mxu0 %v5657
        %6828 = vmatpush.bf16.msra.mxu0 %v5649
        %6829 = vmatpush.bf16.msra.mxu0 %v5641
        %6830 = vmatmul.bf16.gmra.mxu0 %v3760
        %v6831 = vpop.f32.mrf.mxu0
        %v6832 = vadd.f32 %v6819, %v6831
        %v6833 = vpop.f32.mrf.mxu0
        %6834 = vdwg.mxu0
        %6835 = vmatpush.bf16.msra.mxu0 %v5761
        %6836 = vmatpush.bf16.msra.mxu0 %v5753
        %6837 = vmatpush.bf16.msra.mxu0 %v5745
        %6838 = vmatpush.bf16.msra.mxu0 %v5737
        %6839 = vmatpush.bf16.msra.mxu0 %v5729
        %6840 = vmatpush.bf16.msra.mxu0 %v5721
        %6841 = vmatpush.bf16.msra.mxu0 %v5713
        %6842 = vmatpush.bf16.msra.mxu0 %v5705
        %6843 = vmatmul.bf16.gmra.mxu0 %v3761
        %v6844 = vpop.f32.mrf.mxu0
        %v6845 = vadd.f32 %v6832, %v6844
        %v6846 = vpop.f32.mrf.mxu0
        %6847 = vdwg.mxu0
        %6848 = vmatpush.bf16.msra.mxu0 %v5825
        %6849 = vmatpush.bf16.msra.mxu0 %v5817
        %6850 = vmatpush.bf16.msra.mxu0 %v5809
        %6851 = vmatpush.bf16.msra.mxu0 %v5801
        %6852 = vmatpush.bf16.msra.mxu0 %v5793
        %6853 = vmatpush.bf16.msra.mxu0 %v5785
        %6854 = vmatpush.bf16.msra.mxu0 %v5777
        %6855 = vmatpush.bf16.msra.mxu0 %v5769
        %6856 = vmatmul.bf16.gmra.mxu0 %v3762
        %v6857 = vpop.f32.mrf.mxu0
        %v6858 = vadd.f32 %v6845, %v6857
        %v6859 = vpop.f32.mrf.mxu0
        %6860 = vdwg.mxu0
        %6861 = vmatpush.bf16.msra.mxu0 %v5378
        %6862 = vmatpush.bf16.msra.mxu0 %v5370
        %6863 = vmatpush.bf16.msra.mxu0 %v5362
        %6864 = vmatpush.bf16.msra.mxu0 %v5354
        %6865 = vmatpush.bf16.msra.mxu0 %v5346
        %6866 = vmatpush.bf16.msra.mxu0 %v5338
        %6867 = vmatpush.bf16.msra.mxu0 %v5330
        %6868 = vmatpush.bf16.msra.mxu0 %v5322
        %6869 = vmatmul.bf16.gmra.mxu0 %v3755
        %v6870 = vpop.f32.mrf.mxu0
        %v6871 = vadd.f32 %v3770, %v6870
        %v6872 = vpop.f32.mrf.mxu0
        %6873 = vdwg.mxu0
        %6874 = vmatpush.bf16.msra.mxu0 %v5442
        %6875 = vmatpush.bf16.msra.mxu0 %v5434
        %6876 = vmatpush.bf16.msra.mxu0 %v5426
        %6877 = vmatpush.bf16.msra.mxu0 %v5418
        %6878 = vmatpush.bf16.msra.mxu0 %v5410
        %6879 = vmatpush.bf16.msra.mxu0 %v5402
        %6880 = vmatpush.bf16.msra.mxu0 %v5394
        %6881 = vmatpush.bf16.msra.mxu0 %v5386
        %6882 = vmatmul.bf16.gmra.mxu0 %v3756
        %v6883 = vpop.f32.mrf.mxu0
        %v6884 = vadd.f32 %v6871, %v6883
        %v6885 = vpop.f32.mrf.mxu0
        %6886 = vdwg.mxu0
        %6887 = vmatpush.bf16.msra.mxu0 %v5506
        %6888 = vmatpush.bf16.msra.mxu0 %v5498
        %6889 = vmatpush.bf16.msra.mxu0 %v5490
        %6890 = vmatpush.bf16.msra.mxu0 %v5482
        %6891 = vmatpush.bf16.msra.mxu0 %v5474
        %6892 = vmatpush.bf16.msra.mxu0 %v5466
        %6893 = vmatpush.bf16.msra.mxu0 %v5458
        %6894 = vmatpush.bf16.msra.mxu0 %v5450
        %6895 = vmatmul.bf16.gmra.mxu0 %v3757
        %v6896 = vpop.f32.mrf.mxu0
        %v6897 = vadd.f32 %v6884, %v6896
        %v6898 = vpop.f32.mrf.mxu0
        %6899 = vdwg.mxu0
        %6900 = vmatpush.bf16.msra.mxu0 %v5570
        %6901 = vmatpush.bf16.msra.mxu0 %v5562
        %6902 = vmatpush.bf16.msra.mxu0 %v5554
        %6903 = vmatpush.bf16.msra.mxu0 %v5546
        %6904 = vmatpush.bf16.msra.mxu0 %v5538
        %6905 = vmatpush.bf16.msra.mxu0 %v5530
        %6906 = vmatpush.bf16.msra.mxu0 %v5522
        %6907 = vmatpush.bf16.msra.mxu0 %v5514
        %6908 = vmatmul.bf16.gmra.mxu0 %v3758
        %v6909 = vpop.f32.mrf.mxu0
        %v6910 = vadd.f32 %v6897, %v6909
        %v6911 = vpop.f32.mrf.mxu0
        %6912 = vdwg.mxu0
        %6913 = vmatpush.bf16.msra.mxu0 %v5634
        %6914 = vmatpush.bf16.msra.mxu0 %v5626
        %6915 = vmatpush.bf16.msra.mxu0 %v5618
        %6916 = vmatpush.bf16.msra.mxu0 %v5610
        %6917 = vmatpush.bf16.msra.mxu0 %v5602
        %6918 = vmatpush.bf16.msra.mxu0 %v5594
        %6919 = vmatpush.bf16.msra.mxu0 %v5586
        %6920 = vmatpush.bf16.msra.mxu0 %v5578
        %6921 = vmatmul.bf16.gmra.mxu0 %v3759
        %v6922 = vpop.f32.mrf.mxu0
        %v6923 = vadd.f32 %v6910, %v6922
        %v6924 = vpop.f32.mrf.mxu0
        %6925 = vdwg.mxu0
        %6926 = vmatpush.bf16.msra.mxu0 %v5698
        %6927 = vmatpush.bf16.msra.mxu0 %v5690
        %6928 = vmatpush.bf16.msra.mxu0 %v5682
        %6929 = vmatpush.bf16.msra.mxu0 %v5674
        %6930 = vmatpush.bf16.msra.mxu0 %v5666
        %6931 = vmatpush.bf16.msra.mxu0 %v5658
        %6932 = vmatpush.bf16.msra.mxu0 %v5650
        %6933 = vmatpush.bf16.msra.mxu0 %v5642
        %6934 = vmatmul.bf16.gmra.mxu0 %v3760
        %v6935 = vpop.f32.mrf.mxu0
        %v6936 = vadd.f32 %v6923, %v6935
        %v6937 = vpop.f32.mrf.mxu0
        %6938 = vdwg.mxu0
        %6939 = vmatpush.bf16.msra.mxu0 %v5762
        %6940 = vmatpush.bf16.msra.mxu0 %v5754
        %6941 = vmatpush.bf16.msra.mxu0 %v5746
        %6942 = vmatpush.bf16.msra.mxu0 %v5738
        %6943 = vmatpush.bf16.msra.mxu0 %v5730
        %6944 = vmatpush.bf16.msra.mxu0 %v5722
        %6945 = vmatpush.bf16.msra.mxu0 %v5714
        %6946 = vmatpush.bf16.msra.mxu0 %v5706
        %6947 = vmatmul.bf16.gmra.mxu0 %v3761
        %v6948 = vpop.f32.mrf.mxu0
        %v6949 = vadd.f32 %v6936, %v6948
        %v6950 = vpop.f32.mrf.mxu0
        %6951 = vdwg.mxu0
        %6952 = vmatpush.bf16.msra.mxu0 %v5826
        %6953 = vmatpush.bf16.msra.mxu0 %v5818
        %6954 = vmatpush.bf16.msra.mxu0 %v5810
        %6955 = vmatpush.bf16.msra.mxu0 %v5802
        %6956 = vmatpush.bf16.msra.mxu0 %v5794
        %6957 = vmatpush.bf16.msra.mxu0 %v5786
        %6958 = vmatpush.bf16.msra.mxu0 %v5778
        %6959 = vmatpush.bf16.msra.mxu0 %v5770
        %6960 = vmatmul.bf16.gmra.mxu0 %v3762
        %v6961 = vpop.f32.mrf.mxu0
        %v6962 = vadd.f32 %v6949, %v6961
        %v6963 = vpop.f32.mrf.mxu0
        %6964 = vdwg.mxu0
        %6965 = vmatpush.bf16.msra.mxu0 %v5379
        %6966 = vmatpush.bf16.msra.mxu0 %v5371
        %6967 = vmatpush.bf16.msra.mxu0 %v5363
        %6968 = vmatpush.bf16.msra.mxu0 %v5355
        %6969 = vmatpush.bf16.msra.mxu0 %v5347
        %6970 = vmatpush.bf16.msra.mxu0 %v5339
        %6971 = vmatpush.bf16.msra.mxu0 %v5331
        %6972 = vmatpush.bf16.msra.mxu0 %v5323
        %6973 = vmatmul.bf16.gmra.mxu0 %v3755
        %v6974 = vpop.f32.mrf.mxu0
        %v6975 = vadd.f32 %v3771, %v6974
        %v6976 = vpop.f32.mrf.mxu0
        %6977 = vdwg.mxu0
        %6978 = vmatpush.bf16.msra.mxu0 %v5443
        %6979 = vmatpush.bf16.msra.mxu0 %v5435
        %6980 = vmatpush.bf16.msra.mxu0 %v5427
        %6981 = vmatpush.bf16.msra.mxu0 %v5419
        %6982 = vmatpush.bf16.msra.mxu0 %v5411
        %6983 = vmatpush.bf16.msra.mxu0 %v5403
        %6984 = vmatpush.bf16.msra.mxu0 %v5395
        %6985 = vmatpush.bf16.msra.mxu0 %v5387
        %6986 = vmatmul.bf16.gmra.mxu0 %v3756
        %v6987 = vpop.f32.mrf.mxu0
        %v6988 = vadd.f32 %v6975, %v6987
        %v6989 = vpop.f32.mrf.mxu0
        %6990 = vdwg.mxu0
        %6991 = vmatpush.bf16.msra.mxu0 %v5507
        %6992 = vmatpush.bf16.msra.mxu0 %v5499
        %6993 = vmatpush.bf16.msra.mxu0 %v5491
        %6994 = vmatpush.bf16.msra.mxu0 %v5483
        %6995 = vmatpush.bf16.msra.mxu0 %v5475
        %6996 = vmatpush.bf16.msra.mxu0 %v5467
        %6997 = vmatpush.bf16.msra.mxu0 %v5459
        %6998 = vmatpush.bf16.msra.mxu0 %v5451
        %6999 = vmatmul.bf16.gmra.mxu0 %v3757
        %v7000 = vpop.f32.mrf.mxu0
        %v7001 = vadd.f32 %v6988, %v7000
        %v7002 = vpop.f32.mrf.mxu0
        %7003 = vdwg.mxu0
        %7004 = vmatpush.bf16.msra.mxu0 %v5571
        %7005 = vmatpush.bf16.msra.mxu0 %v5563
        %7006 = vmatpush.bf16.msra.mxu0 %v5555
        %7007 = vmatpush.bf16.msra.mxu0 %v5547
        %7008 = vmatpush.bf16.msra.mxu0 %v5539
        %7009 = vmatpush.bf16.msra.mxu0 %v5531
        %7010 = vmatpush.bf16.msra.mxu0 %v5523
        %7011 = vmatpush.bf16.msra.mxu0 %v5515
        %7012 = vmatmul.bf16.gmra.mxu0 %v3758
        %v7013 = vpop.f32.mrf.mxu0
        %v7014 = vadd.f32 %v7001, %v7013
        %v7015 = vpop.f32.mrf.mxu0
        %7016 = vdwg.mxu0
        %7017 = vmatpush.bf16.msra.mxu0 %v5635
        %7018 = vmatpush.bf16.msra.mxu0 %v5627
        %7019 = vmatpush.bf16.msra.mxu0 %v5619
        %7020 = vmatpush.bf16.msra.mxu0 %v5611
        %7021 = vmatpush.bf16.msra.mxu0 %v5603
        %7022 = vmatpush.bf16.msra.mxu0 %v5595
        %7023 = vmatpush.bf16.msra.mxu0 %v5587
        %7024 = vmatpush.bf16.msra.mxu0 %v5579
        %7025 = vmatmul.bf16.gmra.mxu0 %v3759
        %v7026 = vpop.f32.mrf.mxu0
        %v7027 = vadd.f32 %v7014, %v7026
        %v7028 = vpop.f32.mrf.mxu0
        %7029 = vdwg.mxu0
        %7030 = vmatpush.bf16.msra.mxu0 %v5699
        %7031 = vmatpush.bf16.msra.mxu0 %v5691
        %7032 = vmatpush.bf16.msra.mxu0 %v5683
        %7033 = vmatpush.bf16.msra.mxu0 %v5675
        %7034 = vmatpush.bf16.msra.mxu0 %v5667
        %7035 = vmatpush.bf16.msra.mxu0 %v5659
        %7036 = vmatpush.bf16.msra.mxu0 %v5651
        %7037 = vmatpush.bf16.msra.mxu0 %v5643
        %7038 = vmatmul.bf16.gmra.mxu0 %v3760
        %v7039 = vpop.f32.mrf.mxu0
        %v7040 = vadd.f32 %v7027, %v7039
        %v7041 = vpop.f32.mrf.mxu0
        %7042 = vdwg.mxu0
        %7043 = vmatpush.bf16.msra.mxu0 %v5763
        %7044 = vmatpush.bf16.msra.mxu0 %v5755
        %7045 = vmatpush.bf16.msra.mxu0 %v5747
        %7046 = vmatpush.bf16.msra.mxu0 %v5739
        %7047 = vmatpush.bf16.msra.mxu0 %v5731
        %7048 = vmatpush.bf16.msra.mxu0 %v5723
        %7049 = vmatpush.bf16.msra.mxu0 %v5715
        %7050 = vmatpush.bf16.msra.mxu0 %v5707
        %7051 = vmatmul.bf16.gmra.mxu0 %v3761
        %v7052 = vpop.f32.mrf.mxu0
        %v7053 = vadd.f32 %v7040, %v7052
        %v7054 = vpop.f32.mrf.mxu0
        %7055 = vdwg.mxu0
        %7056 = vmatpush.bf16.msra.mxu0 %v5827
        %7057 = vmatpush.bf16.msra.mxu0 %v5819
        %7058 = vmatpush.bf16.msra.mxu0 %v5811
        %7059 = vmatpush.bf16.msra.mxu0 %v5803
        %7060 = vmatpush.bf16.msra.mxu0 %v5795
        %7061 = vmatpush.bf16.msra.mxu0 %v5787
        %7062 = vmatpush.bf16.msra.mxu0 %v5779
        %7063 = vmatpush.bf16.msra.mxu0 %v5771
        %7064 = vmatmul.bf16.gmra.mxu0 %v3762
        %v7065 = vpop.f32.mrf.mxu0
        %v7066 = vadd.f32 %v7053, %v7065
        %v7067 = vpop.f32.mrf.mxu0
        %7068 = vdwg.mxu0
        %7069 = vmatpush.bf16.msra.mxu0 %v5380
        %7070 = vmatpush.bf16.msra.mxu0 %v5372
        %7071 = vmatpush.bf16.msra.mxu0 %v5364
        %7072 = vmatpush.bf16.msra.mxu0 %v5356
        %7073 = vmatpush.bf16.msra.mxu0 %v5348
        %7074 = vmatpush.bf16.msra.mxu0 %v5340
        %7075 = vmatpush.bf16.msra.mxu0 %v5332
        %7076 = vmatpush.bf16.msra.mxu0 %v5324
        %7077 = vmatmul.bf16.gmra.mxu0 %v3755
        %v7078 = vpop.f32.mrf.mxu0
        %v7079 = vadd.f32 %v3772, %v7078
        %v7080 = vpop.f32.mrf.mxu0
        %7081 = vdwg.mxu0
        %7082 = vmatpush.bf16.msra.mxu0 %v5444
        %7083 = vmatpush.bf16.msra.mxu0 %v5436
        %7084 = vmatpush.bf16.msra.mxu0 %v5428
        %7085 = vmatpush.bf16.msra.mxu0 %v5420
        %7086 = vmatpush.bf16.msra.mxu0 %v5412
        %7087 = vmatpush.bf16.msra.mxu0 %v5404
        %7088 = vmatpush.bf16.msra.mxu0 %v5396
        %7089 = vmatpush.bf16.msra.mxu0 %v5388
        %7090 = vmatmul.bf16.gmra.mxu0 %v3756
        %v7091 = vpop.f32.mrf.mxu0
        %v7092 = vadd.f32 %v7079, %v7091
        %v7093 = vpop.f32.mrf.mxu0
        %7094 = vdwg.mxu0
        %7095 = vmatpush.bf16.msra.mxu0 %v5508
        %7096 = vmatpush.bf16.msra.mxu0 %v5500
        %7097 = vmatpush.bf16.msra.mxu0 %v5492
        %7098 = vmatpush.bf16.msra.mxu0 %v5484
        %7099 = vmatpush.bf16.msra.mxu0 %v5476
        %7100 = vmatpush.bf16.msra.mxu0 %v5468
        %7101 = vmatpush.bf16.msra.mxu0 %v5460
        %7102 = vmatpush.bf16.msra.mxu0 %v5452
        %7103 = vmatmul.bf16.gmra.mxu0 %v3757
        %v7104 = vpop.f32.mrf.mxu0
        %v7105 = vadd.f32 %v7092, %v7104
        %v7106 = vpop.f32.mrf.mxu0
        %7107 = vdwg.mxu0
        %7108 = vmatpush.bf16.msra.mxu0 %v5572
        %7109 = vmatpush.bf16.msra.mxu0 %v5564
        %7110 = vmatpush.bf16.msra.mxu0 %v5556
        %7111 = vmatpush.bf16.msra.mxu0 %v5548
        %7112 = vmatpush.bf16.msra.mxu0 %v5540
        %7113 = vmatpush.bf16.msra.mxu0 %v5532
        %7114 = vmatpush.bf16.msra.mxu0 %v5524
        %7115 = vmatpush.bf16.msra.mxu0 %v5516
        %7116 = vmatmul.bf16.gmra.mxu0 %v3758
        %v7117 = vpop.f32.mrf.mxu0
        %v7118 = vadd.f32 %v7105, %v7117
        %v7119 = vpop.f32.mrf.mxu0
        %7120 = vdwg.mxu0
        %7121 = vmatpush.bf16.msra.mxu0 %v5636
        %7122 = vmatpush.bf16.msra.mxu0 %v5628
        %7123 = vmatpush.bf16.msra.mxu0 %v5620
        %7124 = vmatpush.bf16.msra.mxu0 %v5612
        %7125 = vmatpush.bf16.msra.mxu0 %v5604
        %7126 = vmatpush.bf16.msra.mxu0 %v5596
        %7127 = vmatpush.bf16.msra.mxu0 %v5588
        %7128 = vmatpush.bf16.msra.mxu0 %v5580
        %7129 = vmatmul.bf16.gmra.mxu0 %v3759
        %v7130 = vpop.f32.mrf.mxu0
        %v7131 = vadd.f32 %v7118, %v7130
        %v7132 = vpop.f32.mrf.mxu0
        %7133 = vdwg.mxu0
        %7134 = vmatpush.bf16.msra.mxu0 %v5700
        %7135 = vmatpush.bf16.msra.mxu0 %v5692
        %7136 = vmatpush.bf16.msra.mxu0 %v5684
        %7137 = vmatpush.bf16.msra.mxu0 %v5676
        %7138 = vmatpush.bf16.msra.mxu0 %v5668
        %7139 = vmatpush.bf16.msra.mxu0 %v5660
        %7140 = vmatpush.bf16.msra.mxu0 %v5652
        %7141 = vmatpush.bf16.msra.mxu0 %v5644
        %7142 = vmatmul.bf16.gmra.mxu0 %v3760
        %v7143 = vpop.f32.mrf.mxu0
        %v7144 = vadd.f32 %v7131, %v7143
        %v7145 = vpop.f32.mrf.mxu0
        %7146 = vdwg.mxu0
        %7147 = vmatpush.bf16.msra.mxu0 %v5764
        %7148 = vmatpush.bf16.msra.mxu0 %v5756
        %7149 = vmatpush.bf16.msra.mxu0 %v5748
        %7150 = vmatpush.bf16.msra.mxu0 %v5740
        %7151 = vmatpush.bf16.msra.mxu0 %v5732
        %7152 = vmatpush.bf16.msra.mxu0 %v5724
        %7153 = vmatpush.bf16.msra.mxu0 %v5716
        %7154 = vmatpush.bf16.msra.mxu0 %v5708
        %7155 = vmatmul.bf16.gmra.mxu0 %v3761
        %v7156 = vpop.f32.mrf.mxu0
        %v7157 = vadd.f32 %v7144, %v7156
        %v7158 = vpop.f32.mrf.mxu0
        %7159 = vdwg.mxu0
        %7160 = vmatpush.bf16.msra.mxu0 %v5828
        %7161 = vmatpush.bf16.msra.mxu0 %v5820
        %7162 = vmatpush.bf16.msra.mxu0 %v5812
        %7163 = vmatpush.bf16.msra.mxu0 %v5804
        %7164 = vmatpush.bf16.msra.mxu0 %v5796
        %7165 = vmatpush.bf16.msra.mxu0 %v5788
        %7166 = vmatpush.bf16.msra.mxu0 %v5780
        %7167 = vmatpush.bf16.msra.mxu0 %v5772
        %7168 = vmatmul.bf16.gmra.mxu0 %v3762
        %v7169 = vpop.f32.mrf.mxu0
        %v7170 = vadd.f32 %v7157, %v7169
        %v7171 = vpop.f32.mrf.mxu0
        %7172 = vdwg.mxu0
        %v7173 = vmax.f32 %v6442, 0.0
        %v7174 = vmax.f32 %v6546, 0.0
        %v7175 = vmax.f32 %v6650, 0.0
        %v7176 = vmax.f32 %v6754, 0.0
        %v7177 = vmax.f32 %v6858, 0.0
        %v7178 = vmax.f32 %v6962, 0.0
        %v7179 = vmax.f32 %v7066, 0.0
        %v7180 = vmax.f32 %v7170, 0.0
        %7181 = vst [vmem:[#allocation2] sm:$0xff] %v7173
        %7182 = vst [vmem:[#allocation2 + $0x8] sm:$0xff] %v7174
        %7183 = vst [vmem:[#allocation2 + $0x10] sm:$0xff] %v7175
        %7184 = vst [vmem:[#allocation2 + $0x18] sm:$0xff] %v7176
        %7185 = vst [vmem:[#allocation2 + $0x20] sm:$0xff] %v7177
        %7186 = vst [vmem:[#allocation2 + $0x28] sm:$0xff] %v7178
        %7187 = vst [vmem:[#allocation2 + $0x30] sm:$0xff] %v7179
        %7188 = vst [vmem:[#allocation2 + $0x38] sm:$0xff] %v7180
        %p7189 = scmp.eq.s32.totalorder %s28, 7
        // Predicated region
        $region117: #{fused_forward.1} parent=67 // pred_check
          %p7190 = pneg %p7189
        $region118: #{fused_forward.1} parent=67 // pred_check_branch
          %7192 = sbr.rel (%p7190) target = $region120
        $region119: #{fused_forward.1} parent=67 // pred_region
          %v7193 = vld [vmem:[#allocation2] sm:$0xff]
          %v7194 = vld [vmem:[#allocation2 + $0x8] sm:$0xff]
          %v7195 = vld [vmem:[#allocation2 + $0x10] sm:$0xff]
          %v7196 = vld [vmem:[#allocation2 + $0x18] sm:$0xff]
          %v7197 = vld [vmem:[#allocation2 + $0x20] sm:$0xff]
          %v7198 = vld [vmem:[#allocation2 + $0x28] sm:$0xff]
          %v7199 = vld [vmem:[#allocation2 + $0x30] sm:$0xff]
          %v7200 = vld [vmem:[#allocation2 + $0x38] sm:$0xff]
          %v7201 = vld [vmem:[#allocation8] sm:$0xff]
          %v7202 = vld [vmem:[#allocation8 + $0x8] sm:$0xff]
          %v7203 = vld [vmem:[#allocation8 + $0x10] sm:$0xff]
          %v7204 = vld [vmem:[#allocation8 + $0x18] sm:$0xff]
          %v7205 = vld [vmem:[#allocation8 + $0x20] sm:$0xff]
          %v7206 = vld [vmem:[#allocation8 + $0x28] sm:$0xff]
          %v7207 = vld [vmem:[#allocation8 + $0x30] sm:$0xff]
          %v7208 = vld [vmem:[#allocation8 + $0x38] sm:$0xff]
          %v7209 = vld [vmem:[#allocation8 + $0x40] sm:$0xff]
          %v7210 = vld [vmem:[#allocation8 + $0x48] sm:$0xff]
          %v7211 = vld [vmem:[#allocation8 + $0x50] sm:$0xff]
          %v7212 = vld [vmem:[#allocation8 + $0x58] sm:$0xff]
          %v7213 = vld [vmem:[#allocation8 + $0x60] sm:$0xff]
          %v7214 = vld [vmem:[#allocation8 + $0x68] sm:$0xff]
          %v7215 = vld [vmem:[#allocation8 + $0x70] sm:$0xff]
          %v7216 = vld [vmem:[#allocation8 + $0x78] sm:$0xff]
          %v7217 = vld [vmem:[#allocation8 + $0x80] sm:$0xff]
          %v7218 = vld [vmem:[#allocation8 + $0x88] sm:$0xff]
          %v7219 = vld [vmem:[#allocation8 + $0x90] sm:$0xff]
          %v7220 = vld [vmem:[#allocation8 + $0x98] sm:$0xff]
          %v7221 = vld [vmem:[#allocation8 + $0xa0] sm:$0xff]
          %v7222 = vld [vmem:[#allocation8 + $0xa8] sm:$0xff]
          %v7223 = vld [vmem:[#allocation8 + $0xb0] sm:$0xff]
          %v7224 = vld [vmem:[#allocation8 + $0xb8] sm:$0xff]
          %v7225 = vld [vmem:[#allocation8 + $0xc0] sm:$0xff]
          %v7226 = vld [vmem:[#allocation8 + $0xc8] sm:$0xff]
          %v7227 = vld [vmem:[#allocation8 + $0xd0] sm:$0xff]
          %v7228 = vld [vmem:[#allocation8 + $0xd8] sm:$0xff]
          %v7229 = vld [vmem:[#allocation8 + $0xe0] sm:$0xff]
          %v7230 = vld [vmem:[#allocation8 + $0xe8] sm:$0xff]
          %v7231 = vld [vmem:[#allocation8 + $0xf0] sm:$0xff]
          %v7232 = vld [vmem:[#allocation8 + $0xf8] sm:$0xff]
          %v7233 = vld [vmem:[#allocation8 + $0x100] sm:$0xff]
          %v7234 = vld [vmem:[#allocation8 + $0x108] sm:$0xff]
          %v7235 = vld [vmem:[#allocation8 + $0x110] sm:$0xff]
          %v7236 = vld [vmem:[#allocation8 + $0x118] sm:$0xff]
          %v7237 = vld [vmem:[#allocation8 + $0x120] sm:$0xff]
          %v7238 = vld [vmem:[#allocation8 + $0x128] sm:$0xff]
          %v7239 = vld [vmem:[#allocation8 + $0x130] sm:$0xff]
          %v7240 = vld [vmem:[#allocation8 + $0x138] sm:$0xff]
          %v7241 = vld [vmem:[#allocation8 + $0x140] sm:$0xff]
          %v7242 = vld [vmem:[#allocation8 + $0x148] sm:$0xff]
          %v7243 = vld [vmem:[#allocation8 + $0x150] sm:$0xff]
          %v7244 = vld [vmem:[#allocation8 + $0x158] sm:$0xff]
          %v7245 = vld [vmem:[#allocation8 + $0x160] sm:$0xff]
          %v7246 = vld [vmem:[#allocation8 + $0x168] sm:$0xff]
          %v7247 = vld [vmem:[#allocation8 + $0x170] sm:$0xff]
          %v7248 = vld [vmem:[#allocation8 + $0x178] sm:$0xff]
          %v7249 = vld [vmem:[#allocation8 + $0x180] sm:$0xff]
          %v7250 = vld [vmem:[#allocation8 + $0x188] sm:$0xff]
          %v7251 = vld [vmem:[#allocation8 + $0x190] sm:$0xff]
          %v7252 = vld [vmem:[#allocation8 + $0x198] sm:$0xff]
          %v7253 = vld [vmem:[#allocation8 + $0x1a0] sm:$0xff]
          %v7254 = vld [vmem:[#allocation8 + $0x1a8] sm:$0xff]
          %v7255 = vld [vmem:[#allocation8 + $0x1b0] sm:$0xff]
          %v7256 = vld [vmem:[#allocation8 + $0x1b8] sm:$0xff]
          %v7257 = vld [vmem:[#allocation8 + $0x1c0] sm:$0xff]
          %v7258 = vld [vmem:[#allocation8 + $0x1c8] sm:$0xff]
          %v7259 = vld [vmem:[#allocation8 + $0x1d0] sm:$0xff]
          %v7260 = vld [vmem:[#allocation8 + $0x1d8] sm:$0xff]
          %v7261 = vld [vmem:[#allocation8 + $0x1e0] sm:$0xff]
          %v7262 = vld [vmem:[#allocation8 + $0x1e8] sm:$0xff]
          %v7263 = vld [vmem:[#allocation8 + $0x1f0] sm:$0xff]
          %v7264 = vld [vmem:[#allocation8 + $0x1f8] sm:$0xff]
          %v7265 = vld [vmem:[#allocation8 + $0x200] sm:$0xff]
          %v7266 = vld [vmem:[#allocation8 + $0x208] sm:$0xff]
          %v7267 = vld [vmem:[#allocation8 + $0x210] sm:$0xff]
          %v7268 = vld [vmem:[#allocation8 + $0x218] sm:$0xff]
          %v7269 = vld [vmem:[#allocation8 + $0x220] sm:$0xff]
          %v7270 = vld [vmem:[#allocation8 + $0x228] sm:$0xff]
          %v7271 = vld [vmem:[#allocation8 + $0x230] sm:$0xff]
          %v7272 = vld [vmem:[#allocation8 + $0x238] sm:$0xff]
          %v7273 = vld [vmem:[#allocation8 + $0x240] sm:$0xff]
          %v7274 = vld [vmem:[#allocation8 + $0x248] sm:$0xff]
          %v7275 = vld [vmem:[#allocation8 + $0x250] sm:$0xff]
          %v7276 = vld [vmem:[#allocation8 + $0x258] sm:$0xff]
          %v7277 = vld [vmem:[#allocation8 + $0x260] sm:$0xff]
          %v7278 = vld [vmem:[#allocation8 + $0x268] sm:$0xff]
          %v7279 = vld [vmem:[#allocation8 + $0x270] sm:$0xff]
          %v7280 = vld [vmem:[#allocation8 + $0x278] sm:$0xff]
          %v7281 = vld [vmem:[#allocation8 + $0x280] sm:$0xff]
          %v7282 = vld [vmem:[#allocation8 + $0x288] sm:$0xff]
          %v7283 = vld [vmem:[#allocation8 + $0x290] sm:$0xff]
          %v7284 = vld [vmem:[#allocation8 + $0x298] sm:$0xff]
          %v7285 = vld [vmem:[#allocation8 + $0x2a0] sm:$0xff]
          %v7286 = vld [vmem:[#allocation8 + $0x2a8] sm:$0xff]
          %v7287 = vld [vmem:[#allocation8 + $0x2b0] sm:$0xff]
          %v7288 = vld [vmem:[#allocation8 + $0x2b8] sm:$0xff]
          %v7289 = vld [vmem:[#allocation8 + $0x2c0] sm:$0xff]
          %v7290 = vld [vmem:[#allocation8 + $0x2c8] sm:$0xff]
          %v7291 = vld [vmem:[#allocation8 + $0x2d0] sm:$0xff]
          %v7292 = vld [vmem:[#allocation8 + $0x2d8] sm:$0xff]
          %v7293 = vld [vmem:[#allocation8 + $0x2e0] sm:$0xff]
          %v7294 = vld [vmem:[#allocation8 + $0x2e8] sm:$0xff]
          %v7295 = vld [vmem:[#allocation8 + $0x2f0] sm:$0xff]
          %v7296 = vld [vmem:[#allocation8 + $0x2f8] sm:$0xff]
          %v7297 = vld [vmem:[#allocation8 + $0x300] sm:$0xff]
          %v7298 = vld [vmem:[#allocation8 + $0x308] sm:$0xff]
          %v7299 = vld [vmem:[#allocation8 + $0x310] sm:$0xff]
          %v7300 = vld [vmem:[#allocation8 + $0x318] sm:$0xff]
          %v7301 = vld [vmem:[#allocation8 + $0x320] sm:$0xff]
          %v7302 = vld [vmem:[#allocation8 + $0x328] sm:$0xff]
          %v7303 = vld [vmem:[#allocation8 + $0x330] sm:$0xff]
          %v7304 = vld [vmem:[#allocation8 + $0x338] sm:$0xff]
          %v7305 = vld [vmem:[#allocation8 + $0x340] sm:$0xff]
          %v7306 = vld [vmem:[#allocation8 + $0x348] sm:$0xff]
          %v7307 = vld [vmem:[#allocation8 + $0x350] sm:$0xff]
          %v7308 = vld [vmem:[#allocation8 + $0x358] sm:$0xff]
          %v7309 = vld [vmem:[#allocation8 + $0x360] sm:$0xff]
          %v7310 = vld [vmem:[#allocation8 + $0x368] sm:$0xff]
          %v7311 = vld [vmem:[#allocation8 + $0x370] sm:$0xff]
          %v7312 = vld [vmem:[#allocation8 + $0x378] sm:$0xff]
          %v7313 = vld [vmem:[#allocation8 + $0x380] sm:$0xff]
          %v7314 = vld [vmem:[#allocation8 + $0x388] sm:$0xff]
          %v7315 = vld [vmem:[#allocation8 + $0x390] sm:$0xff]
          %v7316 = vld [vmem:[#allocation8 + $0x398] sm:$0xff]
          %v7317 = vld [vmem:[#allocation8 + $0x3a0] sm:$0xff]
          %v7318 = vld [vmem:[#allocation8 + $0x3a8] sm:$0xff]
          %v7319 = vld [vmem:[#allocation8 + $0x3b0] sm:$0xff]
          %v7320 = vld [vmem:[#allocation8 + $0x3b8] sm:$0xff]
          %v7321 = vld [vmem:[#allocation8 + $0x3c0] sm:$0xff]
          %v7322 = vld [vmem:[#allocation8 + $0x3c8] sm:$0xff]
          %v7323 = vld [vmem:[#allocation8 + $0x3d0] sm:$0xff]
          %v7324 = vld [vmem:[#allocation8 + $0x3d8] sm:$0xff]
          %v7325 = vld [vmem:[#allocation8 + $0x3e0] sm:$0xff]
          %v7326 = vld [vmem:[#allocation8 + $0x3e8] sm:$0xff]
          %v7327 = vld [vmem:[#allocation8 + $0x3f0] sm:$0xff]
          %v7328 = vld [vmem:[#allocation8 + $0x3f8] sm:$0xff]
          %v7329 = vld [vmem:[#allocation8 + $0x400] sm:$0xff]
          %v7330 = vld [vmem:[#allocation8 + $0x408] sm:$0xff]
          %v7331 = vld [vmem:[#allocation8 + $0x410] sm:$0xff]
          %v7332 = vld [vmem:[#allocation8 + $0x418] sm:$0xff]
          %v7333 = vld [vmem:[#allocation8 + $0x420] sm:$0xff]
          %v7334 = vld [vmem:[#allocation8 + $0x428] sm:$0xff]
          %v7335 = vld [vmem:[#allocation8 + $0x430] sm:$0xff]
          %v7336 = vld [vmem:[#allocation8 + $0x438] sm:$0xff]
          %v7337 = vld [vmem:[#allocation8 + $0x440] sm:$0xff]
          %v7338 = vld [vmem:[#allocation8 + $0x448] sm:$0xff]
          %v7339 = vld [vmem:[#allocation8 + $0x450] sm:$0xff]
          %v7340 = vld [vmem:[#allocation8 + $0x458] sm:$0xff]
          %v7341 = vld [vmem:[#allocation8 + $0x460] sm:$0xff]
          %v7342 = vld [vmem:[#allocation8 + $0x468] sm:$0xff]
          %v7343 = vld [vmem:[#allocation8 + $0x470] sm:$0xff]
          %v7344 = vld [vmem:[#allocation8 + $0x478] sm:$0xff]
          %v7345 = vld [vmem:[#allocation8 + $0x480] sm:$0xff]
          %v7346 = vld [vmem:[#allocation8 + $0x488] sm:$0xff]
          %v7347 = vld [vmem:[#allocation8 + $0x490] sm:$0xff]
          %v7348 = vld [vmem:[#allocation8 + $0x498] sm:$0xff]
          %v7349 = vld [vmem:[#allocation8 + $0x4a0] sm:$0xff]
          %v7350 = vld [vmem:[#allocation8 + $0x4a8] sm:$0xff]
          %v7351 = vld [vmem:[#allocation8 + $0x4b0] sm:$0xff]
          %v7352 = vld [vmem:[#allocation8 + $0x4b8] sm:$0xff]
          %v7353 = vld [vmem:[#allocation8 + $0x4c0] sm:$0xff]
          %v7354 = vld [vmem:[#allocation8 + $0x4c8] sm:$0xff]
          %v7355 = vld [vmem:[#allocation8 + $0x4d0] sm:$0xff]
          %v7356 = vld [vmem:[#allocation8 + $0x4d8] sm:$0xff]
          %v7357 = vld [vmem:[#allocation8 + $0x4e0] sm:$0xff]
          %v7358 = vld [vmem:[#allocation8 + $0x4e8] sm:$0xff]
          %v7359 = vld [vmem:[#allocation8 + $0x4f0] sm:$0xff]
          %v7360 = vld [vmem:[#allocation8 + $0x4f8] sm:$0xff]
          %v7361 = vld [vmem:[#allocation8 + $0x500] sm:$0xff]
          %v7362 = vld [vmem:[#allocation8 + $0x508] sm:$0xff]
          %v7363 = vld [vmem:[#allocation8 + $0x510] sm:$0xff]
          %v7364 = vld [vmem:[#allocation8 + $0x518] sm:$0xff]
          %v7365 = vld [vmem:[#allocation8 + $0x520] sm:$0xff]
          %v7366 = vld [vmem:[#allocation8 + $0x528] sm:$0xff]
          %v7367 = vld [vmem:[#allocation8 + $0x530] sm:$0xff]
          %v7368 = vld [vmem:[#allocation8 + $0x538] sm:$0xff]
          %v7369 = vld [vmem:[#allocation8 + $0x540] sm:$0xff]
          %v7370 = vld [vmem:[#allocation8 + $0x548] sm:$0xff]
          %v7371 = vld [vmem:[#allocation8 + $0x550] sm:$0xff]
          %v7372 = vld [vmem:[#allocation8 + $0x558] sm:$0xff]
          %v7373 = vld [vmem:[#allocation8 + $0x560] sm:$0xff]
          %v7374 = vld [vmem:[#allocation8 + $0x568] sm:$0xff]
          %v7375 = vld [vmem:[#allocation8 + $0x570] sm:$0xff]
          %v7376 = vld [vmem:[#allocation8 + $0x578] sm:$0xff]
          %v7377 = vld [vmem:[#allocation8 + $0x580] sm:$0xff]
          %v7378 = vld [vmem:[#allocation8 + $0x588] sm:$0xff]
          %v7379 = vld [vmem:[#allocation8 + $0x590] sm:$0xff]
          %v7380 = vld [vmem:[#allocation8 + $0x598] sm:$0xff]
          %v7381 = vld [vmem:[#allocation8 + $0x5a0] sm:$0xff]
          %v7382 = vld [vmem:[#allocation8 + $0x5a8] sm:$0xff]
          %v7383 = vld [vmem:[#allocation8 + $0x5b0] sm:$0xff]
          %v7384 = vld [vmem:[#allocation8 + $0x5b8] sm:$0xff]
          %v7385 = vld [vmem:[#allocation8 + $0x5c0] sm:$0xff]
          %v7386 = vld [vmem:[#allocation8 + $0x5c8] sm:$0xff]
          %v7387 = vld [vmem:[#allocation8 + $0x5d0] sm:$0xff]
          %v7388 = vld [vmem:[#allocation8 + $0x5d8] sm:$0xff]
          %v7389 = vld [vmem:[#allocation8 + $0x5e0] sm:$0xff]
          %v7390 = vld [vmem:[#allocation8 + $0x5e8] sm:$0xff]
          %v7391 = vld [vmem:[#allocation8 + $0x5f0] sm:$0xff]
          %v7392 = vld [vmem:[#allocation8 + $0x5f8] sm:$0xff]
          %v7393 = vld [vmem:[#allocation8 + $0x600] sm:$0xff]
          %v7394 = vld [vmem:[#allocation8 + $0x608] sm:$0xff]
          %v7395 = vld [vmem:[#allocation8 + $0x610] sm:$0xff]
          %v7396 = vld [vmem:[#allocation8 + $0x618] sm:$0xff]
          %v7397 = vld [vmem:[#allocation8 + $0x620] sm:$0xff]
          %v7398 = vld [vmem:[#allocation8 + $0x628] sm:$0xff]
          %v7399 = vld [vmem:[#allocation8 + $0x630] sm:$0xff]
          %v7400 = vld [vmem:[#allocation8 + $0x638] sm:$0xff]
          %v7401 = vld [vmem:[#allocation8 + $0x640] sm:$0xff]
          %v7402 = vld [vmem:[#allocation8 + $0x648] sm:$0xff]
          %v7403 = vld [vmem:[#allocation8 + $0x650] sm:$0xff]
          %v7404 = vld [vmem:[#allocation8 + $0x658] sm:$0xff]
          %v7405 = vld [vmem:[#allocation8 + $0x660] sm:$0xff]
          %v7406 = vld [vmem:[#allocation8 + $0x668] sm:$0xff]
          %v7407 = vld [vmem:[#allocation8 + $0x670] sm:$0xff]
          %v7408 = vld [vmem:[#allocation8 + $0x678] sm:$0xff]
          %v7409 = vld [vmem:[#allocation8 + $0x680] sm:$0xff]
          %v7410 = vld [vmem:[#allocation8 + $0x688] sm:$0xff]
          %v7411 = vld [vmem:[#allocation8 + $0x690] sm:$0xff]
          %v7412 = vld [vmem:[#allocation8 + $0x698] sm:$0xff]
          %v7413 = vld [vmem:[#allocation8 + $0x6a0] sm:$0xff]
          %v7414 = vld [vmem:[#allocation8 + $0x6a8] sm:$0xff]
          %v7415 = vld [vmem:[#allocation8 + $0x6b0] sm:$0xff]
          %v7416 = vld [vmem:[#allocation8 + $0x6b8] sm:$0xff]
          %v7417 = vld [vmem:[#allocation8 + $0x6c0] sm:$0xff]
          %v7418 = vld [vmem:[#allocation8 + $0x6c8] sm:$0xff]
          %v7419 = vld [vmem:[#allocation8 + $0x6d0] sm:$0xff]
          %v7420 = vld [vmem:[#allocation8 + $0x6d8] sm:$0xff]
          %v7421 = vld [vmem:[#allocation8 + $0x6e0] sm:$0xff]
          %v7422 = vld [vmem:[#allocation8 + $0x6e8] sm:$0xff]
          %v7423 = vld [vmem:[#allocation8 + $0x6f0] sm:$0xff]
          %v7424 = vld [vmem:[#allocation8 + $0x6f8] sm:$0xff]
          %v7425 = vld [vmem:[#allocation8 + $0x700] sm:$0xff]
          %v7426 = vld [vmem:[#allocation8 + $0x708] sm:$0xff]
          %v7427 = vld [vmem:[#allocation8 + $0x710] sm:$0xff]
          %v7428 = vld [vmem:[#allocation8 + $0x718] sm:$0xff]
          %v7429 = vld [vmem:[#allocation8 + $0x720] sm:$0xff]
          %v7430 = vld [vmem:[#allocation8 + $0x728] sm:$0xff]
          %v7431 = vld [vmem:[#allocation8 + $0x730] sm:$0xff]
          %v7432 = vld [vmem:[#allocation8 + $0x738] sm:$0xff]
          %v7433 = vld [vmem:[#allocation8 + $0x740] sm:$0xff]
          %v7434 = vld [vmem:[#allocation8 + $0x748] sm:$0xff]
          %v7435 = vld [vmem:[#allocation8 + $0x750] sm:$0xff]
          %v7436 = vld [vmem:[#allocation8 + $0x758] sm:$0xff]
          %v7437 = vld [vmem:[#allocation8 + $0x760] sm:$0xff]
          %v7438 = vld [vmem:[#allocation8 + $0x768] sm:$0xff]
          %v7439 = vld [vmem:[#allocation8 + $0x770] sm:$0xff]
          %v7440 = vld [vmem:[#allocation8 + $0x778] sm:$0xff]
          %v7441 = vld [vmem:[#allocation8 + $0x780] sm:$0xff]
          %v7442 = vld [vmem:[#allocation8 + $0x788] sm:$0xff]
          %v7443 = vld [vmem:[#allocation8 + $0x790] sm:$0xff]
          %v7444 = vld [vmem:[#allocation8 + $0x798] sm:$0xff]
          %v7445 = vld [vmem:[#allocation8 + $0x7a0] sm:$0xff]
          %v7446 = vld [vmem:[#allocation8 + $0x7a8] sm:$0xff]
          %v7447 = vld [vmem:[#allocation8 + $0x7b0] sm:$0xff]
          %v7448 = vld [vmem:[#allocation8 + $0x7b8] sm:$0xff]
          %v7449 = vld [vmem:[#allocation8 + $0x7c0] sm:$0xff]
          %v7450 = vld [vmem:[#allocation8 + $0x7c8] sm:$0xff]
          %v7451 = vld [vmem:[#allocation8 + $0x7d0] sm:$0xff]
          %v7452 = vld [vmem:[#allocation8 + $0x7d8] sm:$0xff]
          %v7453 = vld [vmem:[#allocation8 + $0x7e0] sm:$0xff]
          %v7454 = vld [vmem:[#allocation8 + $0x7e8] sm:$0xff]
          %v7455 = vld [vmem:[#allocation8 + $0x7f0] sm:$0xff]
          %v7456 = vld [vmem:[#allocation8 + $0x7f8] sm:$0xff]
          %v7457 = vpack.c.bf16 %v7193, %v7193
          %v7458 = vpack.c.bf16 %v7194, %v7194
          %v7459 = vpack.c.bf16 %v7195, %v7195
          %v7460 = vpack.c.bf16 %v7196, %v7196
          %v7461 = vpack.c.bf16 %v7197, %v7197
          %v7462 = vpack.c.bf16 %v7198, %v7198
          %v7463 = vpack.c.bf16 %v7199, %v7199
          %v7464 = vpack.c.bf16 %v7200, %v7200
          %s7465 = scalar_lea.vmem [#allocation18], 3
          %v7466 = vld [vmem:[%s7465] ss:$8 sm:$0xf]
          %v7468 = vperm.slane %v7466, 0
          %v7469 = vperm.slane %v7466, 1
          %v7470 = vperm.slane %v7466, 2
          %v7471 = vperm.slane %v7466, 3
          %v7732 = vunpack.c.l.b16 %v7201
          %v7733 = vunpack.c.h.b16 %v7201
          %v7734 = vunpack.c.l.b16 %v7202
          %v7735 = vunpack.c.h.b16 %v7202
          %v7736 = vunpack.c.l.b16 %v7203
          %v7737 = vunpack.c.h.b16 %v7203
          %v7738 = vunpack.c.l.b16 %v7204
          %v7739 = vunpack.c.h.b16 %v7204
          %v7740 = vunpack.c.l.b16 %v7205
          %v7741 = vunpack.c.h.b16 %v7205
          %v7742 = vunpack.c.l.b16 %v7206
          %v7743 = vunpack.c.h.b16 %v7206
          %v7744 = vunpack.c.l.b16 %v7207
          %v7745 = vunpack.c.h.b16 %v7207
          %v7746 = vunpack.c.l.b16 %v7208
          %v7747 = vunpack.c.h.b16 %v7208
          %v7748 = vunpack.c.l.b16 %v7209
          %v7749 = vunpack.c.h.b16 %v7209
          %v7750 = vunpack.c.l.b16 %v7210
          %v7751 = vunpack.c.h.b16 %v7210
          %v7752 = vunpack.c.l.b16 %v7211
          %v7753 = vunpack.c.h.b16 %v7211
          %v7754 = vunpack.c.l.b16 %v7212
          %v7755 = vunpack.c.h.b16 %v7212
          %v7756 = vunpack.c.l.b16 %v7213
          %v7757 = vunpack.c.h.b16 %v7213
          %v7758 = vunpack.c.l.b16 %v7214
          %v7759 = vunpack.c.h.b16 %v7214
          %v7760 = vunpack.c.l.b16 %v7215
          %v7761 = vunpack.c.h.b16 %v7215
          %v7762 = vunpack.c.l.b16 %v7216
          %v7763 = vunpack.c.h.b16 %v7216
          %v7764 = vunpack.c.l.b16 %v7217
          %v7765 = vunpack.c.h.b16 %v7217
          %v7766 = vunpack.c.l.b16 %v7218
          %v7767 = vunpack.c.h.b16 %v7218
          %v7768 = vunpack.c.l.b16 %v7219
          %v7769 = vunpack.c.h.b16 %v7219
          %v7770 = vunpack.c.l.b16 %v7220
          %v7771 = vunpack.c.h.b16 %v7220
          %v7772 = vunpack.c.l.b16 %v7221
          %v7773 = vunpack.c.h.b16 %v7221
          %v7774 = vunpack.c.l.b16 %v7222
          %v7775 = vunpack.c.h.b16 %v7222
          %v7776 = vunpack.c.l.b16 %v7223
          %v7777 = vunpack.c.h.b16 %v7223
          %v7778 = vunpack.c.l.b16 %v7224
          %v7779 = vunpack.c.h.b16 %v7224
          %v7780 = vunpack.c.l.b16 %v7225
          %v7781 = vunpack.c.h.b16 %v7225
          %v7782 = vunpack.c.l.b16 %v7226
          %v7783 = vunpack.c.h.b16 %v7226
          %v7784 = vunpack.c.l.b16 %v7227
          %v7785 = vunpack.c.h.b16 %v7227
          %v7786 = vunpack.c.l.b16 %v7228
          %v7787 = vunpack.c.h.b16 %v7228
          %v7788 = vunpack.c.l.b16 %v7229
          %v7789 = vunpack.c.h.b16 %v7229
          %v7790 = vunpack.c.l.b16 %v7230
          %v7791 = vunpack.c.h.b16 %v7230
          %v7792 = vunpack.c.l.b16 %v7231
          %v7793 = vunpack.c.h.b16 %v7231
          %v7794 = vunpack.c.l.b16 %v7232
          %v7795 = vunpack.c.h.b16 %v7232
          %v7796 = vunpack.c.l.b16 %v7233
          %v7797 = vunpack.c.h.b16 %v7233
          %v7798 = vunpack.c.l.b16 %v7234
          %v7799 = vunpack.c.h.b16 %v7234
          %v7800 = vunpack.c.l.b16 %v7235
          %v7801 = vunpack.c.h.b16 %v7235
          %v7802 = vunpack.c.l.b16 %v7236
          %v7803 = vunpack.c.h.b16 %v7236
          %v7804 = vunpack.c.l.b16 %v7237
          %v7805 = vunpack.c.h.b16 %v7237
          %v7806 = vunpack.c.l.b16 %v7238
          %v7807 = vunpack.c.h.b16 %v7238
          %v7808 = vunpack.c.l.b16 %v7239
          %v7809 = vunpack.c.h.b16 %v7239
          %v7810 = vunpack.c.l.b16 %v7240
          %v7811 = vunpack.c.h.b16 %v7240
          %v7812 = vunpack.c.l.b16 %v7241
          %v7813 = vunpack.c.h.b16 %v7241
          %v7814 = vunpack.c.l.b16 %v7242
          %v7815 = vunpack.c.h.b16 %v7242
          %v7816 = vunpack.c.l.b16 %v7243
          %v7817 = vunpack.c.h.b16 %v7243
          %v7818 = vunpack.c.l.b16 %v7244
          %v7819 = vunpack.c.h.b16 %v7244
          %v7820 = vunpack.c.l.b16 %v7245
          %v7821 = vunpack.c.h.b16 %v7245
          %v7822 = vunpack.c.l.b16 %v7246
          %v7823 = vunpack.c.h.b16 %v7246
          %v7824 = vunpack.c.l.b16 %v7247
          %v7825 = vunpack.c.h.b16 %v7247
          %v7826 = vunpack.c.l.b16 %v7248
          %v7827 = vunpack.c.h.b16 %v7248
          %v7828 = vunpack.c.l.b16 %v7249
          %v7829 = vunpack.c.h.b16 %v7249
          %v7830 = vunpack.c.l.b16 %v7250
          %v7831 = vunpack.c.h.b16 %v7250
          %v7832 = vunpack.c.l.b16 %v7251
          %v7833 = vunpack.c.h.b16 %v7251
          %v7834 = vunpack.c.l.b16 %v7252
          %v7835 = vunpack.c.h.b16 %v7252
          %v7836 = vunpack.c.l.b16 %v7253
          %v7837 = vunpack.c.h.b16 %v7253
          %v7838 = vunpack.c.l.b16 %v7254
          %v7839 = vunpack.c.h.b16 %v7254
          %v7840 = vunpack.c.l.b16 %v7255
          %v7841 = vunpack.c.h.b16 %v7255
          %v7842 = vunpack.c.l.b16 %v7256
          %v7843 = vunpack.c.h.b16 %v7256
          %v7844 = vunpack.c.l.b16 %v7257
          %v7845 = vunpack.c.h.b16 %v7257
          %v7846 = vunpack.c.l.b16 %v7258
          %v7847 = vunpack.c.h.b16 %v7258
          %v7848 = vunpack.c.l.b16 %v7259
          %v7849 = vunpack.c.h.b16 %v7259
          %v7850 = vunpack.c.l.b16 %v7260
          %v7851 = vunpack.c.h.b16 %v7260
          %v7852 = vunpack.c.l.b16 %v7261
          %v7853 = vunpack.c.h.b16 %v7261
          %v7854 = vunpack.c.l.b16 %v7262
          %v7855 = vunpack.c.h.b16 %v7262
          %v7856 = vunpack.c.l.b16 %v7263
          %v7857 = vunpack.c.h.b16 %v7263
          %v7858 = vunpack.c.l.b16 %v7264
          %v7859 = vunpack.c.h.b16 %v7264
          %v7860 = vunpack.c.l.b16 %v7265
          %v7861 = vunpack.c.h.b16 %v7265
          %v7862 = vunpack.c.l.b16 %v7266
          %v7863 = vunpack.c.h.b16 %v7266
          %v7864 = vunpack.c.l.b16 %v7267
          %v7865 = vunpack.c.h.b16 %v7267
          %v7866 = vunpack.c.l.b16 %v7268
          %v7867 = vunpack.c.h.b16 %v7268
          %v7868 = vunpack.c.l.b16 %v7269
          %v7869 = vunpack.c.h.b16 %v7269
          %v7870 = vunpack.c.l.b16 %v7270
          %v7871 = vunpack.c.h.b16 %v7270
          %v7872 = vunpack.c.l.b16 %v7271
          %v7873 = vunpack.c.h.b16 %v7271
          %v7874 = vunpack.c.l.b16 %v7272
          %v7875 = vunpack.c.h.b16 %v7272
          %v7876 = vunpack.c.l.b16 %v7273
          %v7877 = vunpack.c.h.b16 %v7273
          %v7878 = vunpack.c.l.b16 %v7274
          %v7879 = vunpack.c.h.b16 %v7274
          %v7880 = vunpack.c.l.b16 %v7275
          %v7881 = vunpack.c.h.b16 %v7275
          %v7882 = vunpack.c.l.b16 %v7276
          %v7883 = vunpack.c.h.b16 %v7276
          %v7884 = vunpack.c.l.b16 %v7277
          %v7885 = vunpack.c.h.b16 %v7277
          %v7886 = vunpack.c.l.b16 %v7278
          %v7887 = vunpack.c.h.b16 %v7278
          %v7888 = vunpack.c.l.b16 %v7279
          %v7889 = vunpack.c.h.b16 %v7279
          %v7890 = vunpack.c.l.b16 %v7280
          %v7891 = vunpack.c.h.b16 %v7280
          %v7892 = vunpack.c.l.b16 %v7281
          %v7893 = vunpack.c.h.b16 %v7281
          %v7894 = vunpack.c.l.b16 %v7282
          %v7895 = vunpack.c.h.b16 %v7282
          %v7896 = vunpack.c.l.b16 %v7283
          %v7897 = vunpack.c.h.b16 %v7283
          %v7898 = vunpack.c.l.b16 %v7284
          %v7899 = vunpack.c.h.b16 %v7284
          %v7900 = vunpack.c.l.b16 %v7285
          %v7901 = vunpack.c.h.b16 %v7285
          %v7902 = vunpack.c.l.b16 %v7286
          %v7903 = vunpack.c.h.b16 %v7286
          %v7904 = vunpack.c.l.b16 %v7287
          %v7905 = vunpack.c.h.b16 %v7287
          %v7906 = vunpack.c.l.b16 %v7288
          %v7907 = vunpack.c.h.b16 %v7288
          %v7908 = vunpack.c.l.b16 %v7289
          %v7909 = vunpack.c.h.b16 %v7289
          %v7910 = vunpack.c.l.b16 %v7290
          %v7911 = vunpack.c.h.b16 %v7290
          %v7912 = vunpack.c.l.b16 %v7291
          %v7913 = vunpack.c.h.b16 %v7291
          %v7914 = vunpack.c.l.b16 %v7292
          %v7915 = vunpack.c.h.b16 %v7292
          %v7916 = vunpack.c.l.b16 %v7293
          %v7917 = vunpack.c.h.b16 %v7293
          %v7918 = vunpack.c.l.b16 %v7294
          %v7919 = vunpack.c.h.b16 %v7294
          %v7920 = vunpack.c.l.b16 %v7295
          %v7921 = vunpack.c.h.b16 %v7295
          %v7922 = vunpack.c.l.b16 %v7296
          %v7923 = vunpack.c.h.b16 %v7296
          %v7924 = vunpack.c.l.b16 %v7297
          %v7925 = vunpack.c.h.b16 %v7297
          %v7926 = vunpack.c.l.b16 %v7298
          %v7927 = vunpack.c.h.b16 %v7298
          %v7928 = vunpack.c.l.b16 %v7299
          %v7929 = vunpack.c.h.b16 %v7299
          %v7930 = vunpack.c.l.b16 %v7300
          %v7931 = vunpack.c.h.b16 %v7300
          %v7932 = vunpack.c.l.b16 %v7301
          %v7933 = vunpack.c.h.b16 %v7301
          %v7934 = vunpack.c.l.b16 %v7302
          %v7935 = vunpack.c.h.b16 %v7302
          %v7936 = vunpack.c.l.b16 %v7303
          %v7937 = vunpack.c.h.b16 %v7303
          %v7938 = vunpack.c.l.b16 %v7304
          %v7939 = vunpack.c.h.b16 %v7304
          %v7940 = vunpack.c.l.b16 %v7305
          %v7941 = vunpack.c.h.b16 %v7305
          %v7942 = vunpack.c.l.b16 %v7306
          %v7943 = vunpack.c.h.b16 %v7306
          %v7944 = vunpack.c.l.b16 %v7307
          %v7945 = vunpack.c.h.b16 %v7307
          %v7946 = vunpack.c.l.b16 %v7308
          %v7947 = vunpack.c.h.b16 %v7308
          %v7948 = vunpack.c.l.b16 %v7309
          %v7949 = vunpack.c.h.b16 %v7309
          %v7950 = vunpack.c.l.b16 %v7310
          %v7951 = vunpack.c.h.b16 %v7310
          %v7952 = vunpack.c.l.b16 %v7311
          %v7953 = vunpack.c.h.b16 %v7311
          %v7954 = vunpack.c.l.b16 %v7312
          %v7955 = vunpack.c.h.b16 %v7312
          %v7956 = vunpack.c.l.b16 %v7313
          %v7957 = vunpack.c.h.b16 %v7313
          %v7958 = vunpack.c.l.b16 %v7314
          %v7959 = vunpack.c.h.b16 %v7314
          %v7960 = vunpack.c.l.b16 %v7315
          %v7961 = vunpack.c.h.b16 %v7315
          %v7962 = vunpack.c.l.b16 %v7316
          %v7963 = vunpack.c.h.b16 %v7316
          %v7964 = vunpack.c.l.b16 %v7317
          %v7965 = vunpack.c.h.b16 %v7317
          %v7966 = vunpack.c.l.b16 %v7318
          %v7967 = vunpack.c.h.b16 %v7318
          %v7968 = vunpack.c.l.b16 %v7319
          %v7969 = vunpack.c.h.b16 %v7319
          %v7970 = vunpack.c.l.b16 %v7320
          %v7971 = vunpack.c.h.b16 %v7320
          %v7972 = vunpack.c.l.b16 %v7321
          %v7973 = vunpack.c.h.b16 %v7321
          %v7974 = vunpack.c.l.b16 %v7322
          %v7975 = vunpack.c.h.b16 %v7322
          %v7976 = vunpack.c.l.b16 %v7323
          %v7977 = vunpack.c.h.b16 %v7323
          %v7978 = vunpack.c.l.b16 %v7324
          %v7979 = vunpack.c.h.b16 %v7324
          %v7980 = vunpack.c.l.b16 %v7325
          %v7981 = vunpack.c.h.b16 %v7325
          %v7982 = vunpack.c.l.b16 %v7326
          %v7983 = vunpack.c.h.b16 %v7326
          %v7984 = vunpack.c.l.b16 %v7327
          %v7985 = vunpack.c.h.b16 %v7327
          %v7986 = vunpack.c.l.b16 %v7328
          %v7987 = vunpack.c.h.b16 %v7328
          %v7988 = vunpack.c.l.b16 %v7329
          %v7989 = vunpack.c.h.b16 %v7329
          %v7990 = vunpack.c.l.b16 %v7330
          %v7991 = vunpack.c.h.b16 %v7330
          %v7992 = vunpack.c.l.b16 %v7331
          %v7993 = vunpack.c.h.b16 %v7331
          %v7994 = vunpack.c.l.b16 %v7332
          %v7995 = vunpack.c.h.b16 %v7332
          %v7996 = vunpack.c.l.b16 %v7333
          %v7997 = vunpack.c.h.b16 %v7333
          %v7998 = vunpack.c.l.b16 %v7334
          %v7999 = vunpack.c.h.b16 %v7334
          %v8000 = vunpack.c.l.b16 %v7335
          %v8001 = vunpack.c.h.b16 %v7335
          %v8002 = vunpack.c.l.b16 %v7336
          %v8003 = vunpack.c.h.b16 %v7336
          %v8004 = vunpack.c.l.b16 %v7337
          %v8005 = vunpack.c.h.b16 %v7337
          %v8006 = vunpack.c.l.b16 %v7338
          %v8007 = vunpack.c.h.b16 %v7338
          %v8008 = vunpack.c.l.b16 %v7339
          %v8009 = vunpack.c.h.b16 %v7339
          %v8010 = vunpack.c.l.b16 %v7340
          %v8011 = vunpack.c.h.b16 %v7340
          %v8012 = vunpack.c.l.b16 %v7341
          %v8013 = vunpack.c.h.b16 %v7341
          %v8014 = vunpack.c.l.b16 %v7342
          %v8015 = vunpack.c.h.b16 %v7342
          %v8016 = vunpack.c.l.b16 %v7343
          %v8017 = vunpack.c.h.b16 %v7343
          %v8018 = vunpack.c.l.b16 %v7344
          %v8019 = vunpack.c.h.b16 %v7344
          %v8020 = vunpack.c.l.b16 %v7345
          %v8021 = vunpack.c.h.b16 %v7345
          %v8022 = vunpack.c.l.b16 %v7346
          %v8023 = vunpack.c.h.b16 %v7346
          %v8024 = vunpack.c.l.b16 %v7347
          %v8025 = vunpack.c.h.b16 %v7347
          %v8026 = vunpack.c.l.b16 %v7348
          %v8027 = vunpack.c.h.b16 %v7348
          %v8028 = vunpack.c.l.b16 %v7349
          %v8029 = vunpack.c.h.b16 %v7349
          %v8030 = vunpack.c.l.b16 %v7350
          %v8031 = vunpack.c.h.b16 %v7350
          %v8032 = vunpack.c.l.b16 %v7351
          %v8033 = vunpack.c.h.b16 %v7351
          %v8034 = vunpack.c.l.b16 %v7352
          %v8035 = vunpack.c.h.b16 %v7352
          %v8036 = vunpack.c.l.b16 %v7353
          %v8037 = vunpack.c.h.b16 %v7353
          %v8038 = vunpack.c.l.b16 %v7354
          %v8039 = vunpack.c.h.b16 %v7354
          %v8040 = vunpack.c.l.b16 %v7355
          %v8041 = vunpack.c.h.b16 %v7355
          %v8042 = vunpack.c.l.b16 %v7356
          %v8043 = vunpack.c.h.b16 %v7356
          %v8044 = vunpack.c.l.b16 %v7357
          %v8045 = vunpack.c.h.b16 %v7357
          %v8046 = vunpack.c.l.b16 %v7358
          %v8047 = vunpack.c.h.b16 %v7358
          %v8048 = vunpack.c.l.b16 %v7359
          %v8049 = vunpack.c.h.b16 %v7359
          %v8050 = vunpack.c.l.b16 %v7360
          %v8051 = vunpack.c.h.b16 %v7360
          %v8052 = vunpack.c.l.b16 %v7361
          %v8053 = vunpack.c.h.b16 %v7361
          %v8054 = vunpack.c.l.b16 %v7362
          %v8055 = vunpack.c.h.b16 %v7362
          %v8056 = vunpack.c.l.b16 %v7363
          %v8057 = vunpack.c.h.b16 %v7363
          %v8058 = vunpack.c.l.b16 %v7364
          %v8059 = vunpack.c.h.b16 %v7364
          %v8060 = vunpack.c.l.b16 %v7365
          %v8061 = vunpack.c.h.b16 %v7365
          %v8062 = vunpack.c.l.b16 %v7366
          %v8063 = vunpack.c.h.b16 %v7366
          %v8064 = vunpack.c.l.b16 %v7367
          %v8065 = vunpack.c.h.b16 %v7367
          %v8066 = vunpack.c.l.b16 %v7368
          %v8067 = vunpack.c.h.b16 %v7368
          %v8068 = vunpack.c.l.b16 %v7369
          %v8069 = vunpack.c.h.b16 %v7369
          %v8070 = vunpack.c.l.b16 %v7370
          %v8071 = vunpack.c.h.b16 %v7370
          %v8072 = vunpack.c.l.b16 %v7371
          %v8073 = vunpack.c.h.b16 %v7371
          %v8074 = vunpack.c.l.b16 %v7372
          %v8075 = vunpack.c.h.b16 %v7372
          %v8076 = vunpack.c.l.b16 %v7373
          %v8077 = vunpack.c.h.b16 %v7373
          %v8078 = vunpack.c.l.b16 %v7374
          %v8079 = vunpack.c.h.b16 %v7374
          %v8080 = vunpack.c.l.b16 %v7375
          %v8081 = vunpack.c.h.b16 %v7375
          %v8082 = vunpack.c.l.b16 %v7376
          %v8083 = vunpack.c.h.b16 %v7376
          %v8084 = vunpack.c.l.b16 %v7377
          %v8085 = vunpack.c.h.b16 %v7377
          %v8086 = vunpack.c.l.b16 %v7378
          %v8087 = vunpack.c.h.b16 %v7378
          %v8088 = vunpack.c.l.b16 %v7379
          %v8089 = vunpack.c.h.b16 %v7379
          %v8090 = vunpack.c.l.b16 %v7380
          %v8091 = vunpack.c.h.b16 %v7380
          %v8092 = vunpack.c.l.b16 %v7381
          %v8093 = vunpack.c.h.b16 %v7381
          %v8094 = vunpack.c.l.b16 %v7382
          %v8095 = vunpack.c.h.b16 %v7382
          %v8096 = vunpack.c.l.b16 %v7383
          %v8097 = vunpack.c.h.b16 %v7383
          %v8098 = vunpack.c.l.b16 %v7384
          %v8099 = vunpack.c.h.b16 %v7384
          %v8100 = vunpack.c.l.b16 %v7385
          %v8101 = vunpack.c.h.b16 %v7385
          %v8102 = vunpack.c.l.b16 %v7386
          %v8103 = vunpack.c.h.b16 %v7386
          %v8104 = vunpack.c.l.b16 %v7387
          %v8105 = vunpack.c.h.b16 %v7387
          %v8106 = vunpack.c.l.b16 %v7388
          %v8107 = vunpack.c.h.b16 %v7388
          %v8108 = vunpack.c.l.b16 %v7389
          %v8109 = vunpack.c.h.b16 %v7389
          %v8110 = vunpack.c.l.b16 %v7390
          %v8111 = vunpack.c.h.b16 %v7390
          %v8112 = vunpack.c.l.b16 %v7391
          %v8113 = vunpack.c.h.b16 %v7391
          %v8114 = vunpack.c.l.b16 %v7392
          %v8115 = vunpack.c.h.b16 %v7392
          %v8116 = vunpack.c.l.b16 %v7393
          %v8117 = vunpack.c.h.b16 %v7393
          %v8118 = vunpack.c.l.b16 %v7394
          %v8119 = vunpack.c.h.b16 %v7394
          %v8120 = vunpack.c.l.b16 %v7395
          %v8121 = vunpack.c.h.b16 %v7395
          %v8122 = vunpack.c.l.b16 %v7396
          %v8123 = vunpack.c.h.b16 %v7396
          %v8124 = vunpack.c.l.b16 %v7397
          %v8125 = vunpack.c.h.b16 %v7397
          %v8126 = vunpack.c.l.b16 %v7398
          %v8127 = vunpack.c.h.b16 %v7398
          %v8128 = vunpack.c.l.b16 %v7399
          %v8129 = vunpack.c.h.b16 %v7399
          %v8130 = vunpack.c.l.b16 %v7400
          %v8131 = vunpack.c.h.b16 %v7400
          %v8132 = vunpack.c.l.b16 %v7401
          %v8133 = vunpack.c.h.b16 %v7401
          %v8134 = vunpack.c.l.b16 %v7402
          %v8135 = vunpack.c.h.b16 %v7402
          %v8136 = vunpack.c.l.b16 %v7403
          %v8137 = vunpack.c.h.b16 %v7403
          %v8138 = vunpack.c.l.b16 %v7404
          %v8139 = vunpack.c.h.b16 %v7404
          %v8140 = vunpack.c.l.b16 %v7405
          %v8141 = vunpack.c.h.b16 %v7405
          %v8142 = vunpack.c.l.b16 %v7406
          %v8143 = vunpack.c.h.b16 %v7406
          %v8144 = vunpack.c.l.b16 %v7407
          %v8145 = vunpack.c.h.b16 %v7407
          %v8146 = vunpack.c.l.b16 %v7408
          %v8147 = vunpack.c.h.b16 %v7408
          %v8148 = vunpack.c.l.b16 %v7409
          %v8149 = vunpack.c.h.b16 %v7409
          %v8150 = vunpack.c.l.b16 %v7410
          %v8151 = vunpack.c.h.b16 %v7410
          %v8152 = vunpack.c.l.b16 %v7411
          %v8153 = vunpack.c.h.b16 %v7411
          %v8154 = vunpack.c.l.b16 %v7412
          %v8155 = vunpack.c.h.b16 %v7412
          %v8156 = vunpack.c.l.b16 %v7413
          %v8157 = vunpack.c.h.b16 %v7413
          %v8158 = vunpack.c.l.b16 %v7414
          %v8159 = vunpack.c.h.b16 %v7414
          %v8160 = vunpack.c.l.b16 %v7415
          %v8161 = vunpack.c.h.b16 %v7415
          %v8162 = vunpack.c.l.b16 %v7416
          %v8163 = vunpack.c.h.b16 %v7416
          %v8164 = vunpack.c.l.b16 %v7417
          %v8165 = vunpack.c.h.b16 %v7417
          %v8166 = vunpack.c.l.b16 %v7418
          %v8167 = vunpack.c.h.b16 %v7418
          %v8168 = vunpack.c.l.b16 %v7419
          %v8169 = vunpack.c.h.b16 %v7419
          %v8170 = vunpack.c.l.b16 %v7420
          %v8171 = vunpack.c.h.b16 %v7420
          %v8172 = vunpack.c.l.b16 %v7421
          %v8173 = vunpack.c.h.b16 %v7421
          %v8174 = vunpack.c.l.b16 %v7422
          %v8175 = vunpack.c.h.b16 %v7422
          %v8176 = vunpack.c.l.b16 %v7423
          %v8177 = vunpack.c.h.b16 %v7423
          %v8178 = vunpack.c.l.b16 %v7424
          %v8179 = vunpack.c.h.b16 %v7424
          %v8180 = vunpack.c.l.b16 %v7425
          %v8181 = vunpack.c.h.b16 %v7425
          %v8182 = vunpack.c.l.b16 %v7426
          %v8183 = vunpack.c.h.b16 %v7426
          %v8184 = vunpack.c.l.b16 %v7427
          %v8185 = vunpack.c.h.b16 %v7427
          %v8186 = vunpack.c.l.b16 %v7428
          %v8187 = vunpack.c.h.b16 %v7428
          %v8188 = vunpack.c.l.b16 %v7429
          %v8189 = vunpack.c.h.b16 %v7429
          %v8190 = vunpack.c.l.b16 %v7430
          %v8191 = vunpack.c.h.b16 %v7430
          %v8192 = vunpack.c.l.b16 %v7431
          %v8193 = vunpack.c.h.b16 %v7431
          %v8194 = vunpack.c.l.b16 %v7432
          %v8195 = vunpack.c.h.b16 %v7432
          %v8196 = vunpack.c.l.b16 %v7433
          %v8197 = vunpack.c.h.b16 %v7433
          %v8198 = vunpack.c.l.b16 %v7434
          %v8199 = vunpack.c.h.b16 %v7434
          %v8200 = vunpack.c.l.b16 %v7435
          %v8201 = vunpack.c.h.b16 %v7435
          %v8202 = vunpack.c.l.b16 %v7436
          %v8203 = vunpack.c.h.b16 %v7436
          %v8204 = vunpack.c.l.b16 %v7437
          %v8205 = vunpack.c.h.b16 %v7437
          %v8206 = vunpack.c.l.b16 %v7438
          %v8207 = vunpack.c.h.b16 %v7438
          %v8208 = vunpack.c.l.b16 %v7439
          %v8209 = vunpack.c.h.b16 %v7439
          %v8210 = vunpack.c.l.b16 %v7440
          %v8211 = vunpack.c.h.b16 %v7440
          %v8212 = vunpack.c.l.b16 %v7441
          %v8213 = vunpack.c.h.b16 %v7441
          %v8214 = vunpack.c.l.b16 %v7442
          %v8215 = vunpack.c.h.b16 %v7442
          %v8216 = vunpack.c.l.b16 %v7443
          %v8217 = vunpack.c.h.b16 %v7443
          %v8218 = vunpack.c.l.b16 %v7444
          %v8219 = vunpack.c.h.b16 %v7444
          %v8220 = vunpack.c.l.b16 %v7445
          %v8221 = vunpack.c.h.b16 %v7445
          %v8222 = vunpack.c.l.b16 %v7446
          %v8223 = vunpack.c.h.b16 %v7446
          %v8224 = vunpack.c.l.b16 %v7447
          %v8225 = vunpack.c.h.b16 %v7447
          %v8226 = vunpack.c.l.b16 %v7448
          %v8227 = vunpack.c.h.b16 %v7448
          %v8228 = vunpack.c.l.b16 %v7449
          %v8229 = vunpack.c.h.b16 %v7449
          %v8230 = vunpack.c.l.b16 %v7450
          %v8231 = vunpack.c.h.b16 %v7450
          %v8232 = vunpack.c.l.b16 %v7451
          %v8233 = vunpack.c.h.b16 %v7451
          %v8234 = vunpack.c.l.b16 %v7452
          %v8235 = vunpack.c.h.b16 %v7452
          %v8236 = vunpack.c.l.b16 %v7453
          %v8237 = vunpack.c.h.b16 %v7453
          %v8238 = vunpack.c.l.b16 %v7454
          %v8239 = vunpack.c.h.b16 %v7454
          %v8240 = vunpack.c.l.b16 %v7455
          %v8241 = vunpack.c.h.b16 %v7455
          %v8242 = vunpack.c.l.b16 %v7456
          %v8243 = vunpack.c.h.b16 %v7456
          %v8244 = vpack.c.b16 %v7736, %v7732
          %v8245 = vpack.c.b16 %v7737, %v7733
          %v8246 = vpack.c.b16 %v7738, %v7734
          %v8247 = vpack.c.b16 %v7739, %v7735
          %v8248 = vpack.c.b16 %v7744, %v7740
          %v8249 = vpack.c.b16 %v7745, %v7741
          %v8250 = vpack.c.b16 %v7746, %v7742
          %v8251 = vpack.c.b16 %v7747, %v7743
          %v8252 = vpack.c.b16 %v7752, %v7748
          %v8253 = vpack.c.b16 %v7753, %v7749
          %v8254 = vpack.c.b16 %v7754, %v7750
          %v8255 = vpack.c.b16 %v7755, %v7751
          %v8256 = vpack.c.b16 %v7760, %v7756
          %v8257 = vpack.c.b16 %v7761, %v7757
          %v8258 = vpack.c.b16 %v7762, %v7758
          %v8259 = vpack.c.b16 %v7763, %v7759
          %v8260 = vpack.c.b16 %v7768, %v7764
          %v8261 = vpack.c.b16 %v7769, %v7765
          %v8262 = vpack.c.b16 %v7770, %v7766
          %v8263 = vpack.c.b16 %v7771, %v7767
          %v8264 = vpack.c.b16 %v7776, %v7772
          %v8265 = vpack.c.b16 %v7777, %v7773
          %v8266 = vpack.c.b16 %v7778, %v7774
          %v8267 = vpack.c.b16 %v7779, %v7775
          %v8268 = vpack.c.b16 %v7784, %v7780
          %v8269 = vpack.c.b16 %v7785, %v7781
          %v8270 = vpack.c.b16 %v7786, %v7782
          %v8271 = vpack.c.b16 %v7787, %v7783
          %v8272 = vpack.c.b16 %v7792, %v7788
          %v8273 = vpack.c.b16 %v7793, %v7789
          %v8274 = vpack.c.b16 %v7794, %v7790
          %v8275 = vpack.c.b16 %v7795, %v7791
          %v8276 = vpack.c.b16 %v7800, %v7796
          %v8277 = vpack.c.b16 %v7801, %v7797
          %v8278 = vpack.c.b16 %v7802, %v7798
          %v8279 = vpack.c.b16 %v7803, %v7799
          %v8280 = vpack.c.b16 %v7808, %v7804
          %v8281 = vpack.c.b16 %v7809, %v7805
          %v8282 = vpack.c.b16 %v7810, %v7806
          %v8283 = vpack.c.b16 %v7811, %v7807
          %v8284 = vpack.c.b16 %v7816, %v7812
          %v8285 = vpack.c.b16 %v7817, %v7813
          %v8286 = vpack.c.b16 %v7818, %v7814
          %v8287 = vpack.c.b16 %v7819, %v7815
          %v8288 = vpack.c.b16 %v7824, %v7820
          %v8289 = vpack.c.b16 %v7825, %v7821
          %v8290 = vpack.c.b16 %v7826, %v7822
          %v8291 = vpack.c.b16 %v7827, %v7823
          %v8292 = vpack.c.b16 %v7832, %v7828
          %v8293 = vpack.c.b16 %v7833, %v7829
          %v8294 = vpack.c.b16 %v7834, %v7830
          %v8295 = vpack.c.b16 %v7835, %v7831
          %v8296 = vpack.c.b16 %v7840, %v7836
          %v8297 = vpack.c.b16 %v7841, %v7837
          %v8298 = vpack.c.b16 %v7842, %v7838
          %v8299 = vpack.c.b16 %v7843, %v7839
          %v8300 = vpack.c.b16 %v7848, %v7844
          %v8301 = vpack.c.b16 %v7849, %v7845
          %v8302 = vpack.c.b16 %v7850, %v7846
          %v8303 = vpack.c.b16 %v7851, %v7847
          %v8304 = vpack.c.b16 %v7856, %v7852
          %v8305 = vpack.c.b16 %v7857, %v7853
          %v8306 = vpack.c.b16 %v7858, %v7854
          %v8307 = vpack.c.b16 %v7859, %v7855
          %v8308 = vpack.c.b16 %v7864, %v7860
          %v8309 = vpack.c.b16 %v7865, %v7861
          %v8310 = vpack.c.b16 %v7866, %v7862
          %v8311 = vpack.c.b16 %v7867, %v7863
          %v8312 = vpack.c.b16 %v7872, %v7868
          %v8313 = vpack.c.b16 %v7873, %v7869
          %v8314 = vpack.c.b16 %v7874, %v7870
          %v8315 = vpack.c.b16 %v7875, %v7871
          %v8316 = vpack.c.b16 %v7880, %v7876
          %v8317 = vpack.c.b16 %v7881, %v7877
          %v8318 = vpack.c.b16 %v7882, %v7878
          %v8319 = vpack.c.b16 %v7883, %v7879
          %v8320 = vpack.c.b16 %v7888, %v7884
          %v8321 = vpack.c.b16 %v7889, %v7885
          %v8322 = vpack.c.b16 %v7890, %v7886
          %v8323 = vpack.c.b16 %v7891, %v7887
          %v8324 = vpack.c.b16 %v7896, %v7892
          %v8325 = vpack.c.b16 %v7897, %v7893
          %v8326 = vpack.c.b16 %v7898, %v7894
          %v8327 = vpack.c.b16 %v7899, %v7895
          %v8328 = vpack.c.b16 %v7904, %v7900
          %v8329 = vpack.c.b16 %v7905, %v7901
          %v8330 = vpack.c.b16 %v7906, %v7902
          %v8331 = vpack.c.b16 %v7907, %v7903
          %v8332 = vpack.c.b16 %v7912, %v7908
          %v8333 = vpack.c.b16 %v7913, %v7909
          %v8334 = vpack.c.b16 %v7914, %v7910
          %v8335 = vpack.c.b16 %v7915, %v7911
          %v8336 = vpack.c.b16 %v7920, %v7916
          %v8337 = vpack.c.b16 %v7921, %v7917
          %v8338 = vpack.c.b16 %v7922, %v7918
          %v8339 = vpack.c.b16 %v7923, %v7919
          %v8340 = vpack.c.b16 %v7928, %v7924
          %v8341 = vpack.c.b16 %v7929, %v7925
          %v8342 = vpack.c.b16 %v7930, %v7926
          %v8343 = vpack.c.b16 %v7931, %v7927
          %v8344 = vpack.c.b16 %v7936, %v7932
          %v8345 = vpack.c.b16 %v7937, %v7933
          %v8346 = vpack.c.b16 %v7938, %v7934
          %v8347 = vpack.c.b16 %v7939, %v7935
          %v8348 = vpack.c.b16 %v7944, %v7940
          %v8349 = vpack.c.b16 %v7945, %v7941
          %v8350 = vpack.c.b16 %v7946, %v7942
          %v8351 = vpack.c.b16 %v7947, %v7943
          %v8352 = vpack.c.b16 %v7952, %v7948
          %v8353 = vpack.c.b16 %v7953, %v7949
          %v8354 = vpack.c.b16 %v7954, %v7950
          %v8355 = vpack.c.b16 %v7955, %v7951
          %v8356 = vpack.c.b16 %v7960, %v7956
          %v8357 = vpack.c.b16 %v7961, %v7957
          %v8358 = vpack.c.b16 %v7962, %v7958
          %v8359 = vpack.c.b16 %v7963, %v7959
          %v8360 = vpack.c.b16 %v7968, %v7964
          %v8361 = vpack.c.b16 %v7969, %v7965
          %v8362 = vpack.c.b16 %v7970, %v7966
          %v8363 = vpack.c.b16 %v7971, %v7967
          %v8364 = vpack.c.b16 %v7976, %v7972
          %v8365 = vpack.c.b16 %v7977, %v7973
          %v8366 = vpack.c.b16 %v7978, %v7974
          %v8367 = vpack.c.b16 %v7979, %v7975
          %v8368 = vpack.c.b16 %v7984, %v7980
          %v8369 = vpack.c.b16 %v7985, %v7981
          %v8370 = vpack.c.b16 %v7986, %v7982
          %v8371 = vpack.c.b16 %v7987, %v7983
          %v8372 = vpack.c.b16 %v7992, %v7988
          %v8373 = vpack.c.b16 %v7993, %v7989
          %v8374 = vpack.c.b16 %v7994, %v7990
          %v8375 = vpack.c.b16 %v7995, %v7991
          %v8376 = vpack.c.b16 %v8000, %v7996
          %v8377 = vpack.c.b16 %v8001, %v7997
          %v8378 = vpack.c.b16 %v8002, %v7998
          %v8379 = vpack.c.b16 %v8003, %v7999
          %v8380 = vpack.c.b16 %v8008, %v8004
          %v8381 = vpack.c.b16 %v8009, %v8005
          %v8382 = vpack.c.b16 %v8010, %v8006
          %v8383 = vpack.c.b16 %v8011, %v8007
          %v8384 = vpack.c.b16 %v8016, %v8012
          %v8385 = vpack.c.b16 %v8017, %v8013
          %v8386 = vpack.c.b16 %v8018, %v8014
          %v8387 = vpack.c.b16 %v8019, %v8015
          %v8388 = vpack.c.b16 %v8024, %v8020
          %v8389 = vpack.c.b16 %v8025, %v8021
          %v8390 = vpack.c.b16 %v8026, %v8022
          %v8391 = vpack.c.b16 %v8027, %v8023
          %v8392 = vpack.c.b16 %v8032, %v8028
          %v8393 = vpack.c.b16 %v8033, %v8029
          %v8394 = vpack.c.b16 %v8034, %v8030
          %v8395 = vpack.c.b16 %v8035, %v8031
          %v8396 = vpack.c.b16 %v8040, %v8036
          %v8397 = vpack.c.b16 %v8041, %v8037
          %v8398 = vpack.c.b16 %v8042, %v8038
          %v8399 = vpack.c.b16 %v8043, %v8039
          %v8400 = vpack.c.b16 %v8048, %v8044
          %v8401 = vpack.c.b16 %v8049, %v8045
          %v8402 = vpack.c.b16 %v8050, %v8046
          %v8403 = vpack.c.b16 %v8051, %v8047
          %v8404 = vpack.c.b16 %v8056, %v8052
          %v8405 = vpack.c.b16 %v8057, %v8053
          %v8406 = vpack.c.b16 %v8058, %v8054
          %v8407 = vpack.c.b16 %v8059, %v8055
          %v8408 = vpack.c.b16 %v8064, %v8060
          %v8409 = vpack.c.b16 %v8065, %v8061
          %v8410 = vpack.c.b16 %v8066, %v8062
          %v8411 = vpack.c.b16 %v8067, %v8063
          %v8412 = vpack.c.b16 %v8072, %v8068
          %v8413 = vpack.c.b16 %v8073, %v8069
          %v8414 = vpack.c.b16 %v8074, %v8070
          %v8415 = vpack.c.b16 %v8075, %v8071
          %v8416 = vpack.c.b16 %v8080, %v8076
          %v8417 = vpack.c.b16 %v8081, %v8077
          %v8418 = vpack.c.b16 %v8082, %v8078
          %v8419 = vpack.c.b16 %v8083, %v8079
          %v8420 = vpack.c.b16 %v8088, %v8084
          %v8421 = vpack.c.b16 %v8089, %v8085
          %v8422 = vpack.c.b16 %v8090, %v8086
          %v8423 = vpack.c.b16 %v8091, %v8087
          %v8424 = vpack.c.b16 %v8096, %v8092
          %v8425 = vpack.c.b16 %v8097, %v8093
          %v8426 = vpack.c.b16 %v8098, %v8094
          %v8427 = vpack.c.b16 %v8099, %v8095
          %v8428 = vpack.c.b16 %v8104, %v8100
          %v8429 = vpack.c.b16 %v8105, %v8101
          %v8430 = vpack.c.b16 %v8106, %v8102
          %v8431 = vpack.c.b16 %v8107, %v8103
          %v8432 = vpack.c.b16 %v8112, %v8108
          %v8433 = vpack.c.b16 %v8113, %v8109
          %v8434 = vpack.c.b16 %v8114, %v8110
          %v8435 = vpack.c.b16 %v8115, %v8111
          %v8436 = vpack.c.b16 %v8120, %v8116
          %v8437 = vpack.c.b16 %v8121, %v8117
          %v8438 = vpack.c.b16 %v8122, %v8118
          %v8439 = vpack.c.b16 %v8123, %v8119
          %v8440 = vpack.c.b16 %v8128, %v8124
          %v8441 = vpack.c.b16 %v8129, %v8125
          %v8442 = vpack.c.b16 %v8130, %v8126
          %v8443 = vpack.c.b16 %v8131, %v8127
          %v8444 = vpack.c.b16 %v8136, %v8132
          %v8445 = vpack.c.b16 %v8137, %v8133
          %v8446 = vpack.c.b16 %v8138, %v8134
          %v8447 = vpack.c.b16 %v8139, %v8135
          %v8448 = vpack.c.b16 %v8144, %v8140
          %v8449 = vpack.c.b16 %v8145, %v8141
          %v8450 = vpack.c.b16 %v8146, %v8142
          %v8451 = vpack.c.b16 %v8147, %v8143
          %v8452 = vpack.c.b16 %v8152, %v8148
          %v8453 = vpack.c.b16 %v8153, %v8149
          %v8454 = vpack.c.b16 %v8154, %v8150
          %v8455 = vpack.c.b16 %v8155, %v8151
          %v8456 = vpack.c.b16 %v8160, %v8156
          %v8457 = vpack.c.b16 %v8161, %v8157
          %v8458 = vpack.c.b16 %v8162, %v8158
          %v8459 = vpack.c.b16 %v8163, %v8159
          %v8460 = vpack.c.b16 %v8168, %v8164
          %v8461 = vpack.c.b16 %v8169, %v8165
          %v8462 = vpack.c.b16 %v8170, %v8166
          %v8463 = vpack.c.b16 %v8171, %v8167
          %v8464 = vpack.c.b16 %v8176, %v8172
          %v8465 = vpack.c.b16 %v8177, %v8173
          %v8466 = vpack.c.b16 %v8178, %v8174
          %v8467 = vpack.c.b16 %v8179, %v8175
          %v8468 = vpack.c.b16 %v8184, %v8180
          %v8469 = vpack.c.b16 %v8185, %v8181
          %v8470 = vpack.c.b16 %v8186, %v8182
          %v8471 = vpack.c.b16 %v8187, %v8183
          %v8472 = vpack.c.b16 %v8192, %v8188
          %v8473 = vpack.c.b16 %v8193, %v8189
          %v8474 = vpack.c.b16 %v8194, %v8190
          %v8475 = vpack.c.b16 %v8195, %v8191
          %v8476 = vpack.c.b16 %v8200, %v8196
          %v8477 = vpack.c.b16 %v8201, %v8197
          %v8478 = vpack.c.b16 %v8202, %v8198
          %v8479 = vpack.c.b16 %v8203, %v8199
          %v8480 = vpack.c.b16 %v8208, %v8204
          %v8481 = vpack.c.b16 %v8209, %v8205
          %v8482 = vpack.c.b16 %v8210, %v8206
          %v8483 = vpack.c.b16 %v8211, %v8207
          %v8484 = vpack.c.b16 %v8216, %v8212
          %v8485 = vpack.c.b16 %v8217, %v8213
          %v8486 = vpack.c.b16 %v8218, %v8214
          %v8487 = vpack.c.b16 %v8219, %v8215
          %v8488 = vpack.c.b16 %v8224, %v8220
          %v8489 = vpack.c.b16 %v8225, %v8221
          %v8490 = vpack.c.b16 %v8226, %v8222
          %v8491 = vpack.c.b16 %v8227, %v8223
          %v8492 = vpack.c.b16 %v8232, %v8228
          %v8493 = vpack.c.b16 %v8233, %v8229
          %v8494 = vpack.c.b16 %v8234, %v8230
          %v8495 = vpack.c.b16 %v8235, %v8231
          %v8496 = vpack.c.b16 %v8240, %v8236
          %v8497 = vpack.c.b16 %v8241, %v8237
          %v8498 = vpack.c.b16 %v8242, %v8238
          %v8499 = vpack.c.b16 %v8243, %v8239
          %8756 = vmatpush.bf16.msra.mxu0 %v8272
          %8757 = vmatpush.bf16.msra.mxu0 %v8268
          %8758 = vmatpush.bf16.msra.mxu0 %v8264
          %8759 = vmatpush.bf16.msra.mxu0 %v8260
          %8760 = vmatpush.bf16.msra.mxu0 %v8256
          %8761 = vmatpush.bf16.msra.mxu0 %v8252
          %8762 = vmatpush.bf16.msra.mxu0 %v8248
          %8763 = vmatpush.bf16.msra.mxu0 %v8244
          %8764 = vmatmul.bf16.gmra.mxu0 %v7457
          %v8765 = vpop.f32.mrf.mxu0
          %v8766 = vadd.f32 %v7468, %v8765
          %v8767 = vpop.f32.mrf.mxu0
          %8768 = vdwg.mxu0
          %8769 = vmatpush.bf16.msra.mxu0 %v8304
          %8770 = vmatpush.bf16.msra.mxu0 %v8300
          %8771 = vmatpush.bf16.msra.mxu0 %v8296
          %8772 = vmatpush.bf16.msra.mxu0 %v8292
          %8773 = vmatpush.bf16.msra.mxu0 %v8288
          %8774 = vmatpush.bf16.msra.mxu0 %v8284
          %8775 = vmatpush.bf16.msra.mxu0 %v8280
          %8776 = vmatpush.bf16.msra.mxu0 %v8276
          %8777 = vmatmul.bf16.gmra.mxu0 %v7458
          %v8778 = vpop.f32.mrf.mxu0
          %v8779 = vadd.f32 %v8766, %v8778
          %v8780 = vpop.f32.mrf.mxu0
          %8781 = vdwg.mxu0
          %8782 = vmatpush.bf16.msra.mxu0 %v8336
          %8783 = vmatpush.bf16.msra.mxu0 %v8332
          %8784 = vmatpush.bf16.msra.mxu0 %v8328
          %8785 = vmatpush.bf16.msra.mxu0 %v8324
          %8786 = vmatpush.bf16.msra.mxu0 %v8320
          %8787 = vmatpush.bf16.msra.mxu0 %v8316
          %8788 = vmatpush.bf16.msra.mxu0 %v8312
          %8789 = vmatpush.bf16.msra.mxu0 %v8308
          %8790 = vmatmul.bf16.gmra.mxu0 %v7459
          %v8791 = vpop.f32.mrf.mxu0
          %v8792 = vadd.f32 %v8779, %v8791
          %v8793 = vpop.f32.mrf.mxu0
          %8794 = vdwg.mxu0
          %8795 = vmatpush.bf16.msra.mxu0 %v8368
          %8796 = vmatpush.bf16.msra.mxu0 %v8364
          %8797 = vmatpush.bf16.msra.mxu0 %v8360
          %8798 = vmatpush.bf16.msra.mxu0 %v8356
          %8799 = vmatpush.bf16.msra.mxu0 %v8352
          %8800 = vmatpush.bf16.msra.mxu0 %v8348
          %8801 = vmatpush.bf16.msra.mxu0 %v8344
          %8802 = vmatpush.bf16.msra.mxu0 %v8340
          %8803 = vmatmul.bf16.gmra.mxu0 %v7460
          %v8804 = vpop.f32.mrf.mxu0
          %v8805 = vadd.f32 %v8792, %v8804
          %v8806 = vpop.f32.mrf.mxu0
          %8807 = vdwg.mxu0
          %8808 = vmatpush.bf16.msra.mxu0 %v8400
          %8809 = vmatpush.bf16.msra.mxu0 %v8396
          %8810 = vmatpush.bf16.msra.mxu0 %v8392
          %8811 = vmatpush.bf16.msra.mxu0 %v8388
          %8812 = vmatpush.bf16.msra.mxu0 %v8384
          %8813 = vmatpush.bf16.msra.mxu0 %v8380
          %8814 = vmatpush.bf16.msra.mxu0 %v8376
          %8815 = vmatpush.bf16.msra.mxu0 %v8372
          %8816 = vmatmul.bf16.gmra.mxu0 %v7461
          %v8817 = vpop.f32.mrf.mxu0
          %v8818 = vadd.f32 %v8805, %v8817
          %v8819 = vpop.f32.mrf.mxu0
          %8820 = vdwg.mxu0
          %8821 = vmatpush.bf16.msra.mxu0 %v8432
          %8822 = vmatpush.bf16.msra.mxu0 %v8428
          %8823 = vmatpush.bf16.msra.mxu0 %v8424
          %8824 = vmatpush.bf16.msra.mxu0 %v8420
          %8825 = vmatpush.bf16.msra.mxu0 %v8416
          %8826 = vmatpush.bf16.msra.mxu0 %v8412
          %8827 = vmatpush.bf16.msra.mxu0 %v8408
          %8828 = vmatpush.bf16.msra.mxu0 %v8404
          %8829 = vmatmul.bf16.gmra.mxu0 %v7462
          %v8830 = vpop.f32.mrf.mxu0
          %v8831 = vadd.f32 %v8818, %v8830
          %v8832 = vpop.f32.mrf.mxu0
          %8833 = vdwg.mxu0
          %8834 = vmatpush.bf16.msra.mxu0 %v8464
          %8835 = vmatpush.bf16.msra.mxu0 %v8460
          %8836 = vmatpush.bf16.msra.mxu0 %v8456
          %8837 = vmatpush.bf16.msra.mxu0 %v8452
          %8838 = vmatpush.bf16.msra.mxu0 %v8448
          %8839 = vmatpush.bf16.msra.mxu0 %v8444
          %8840 = vmatpush.bf16.msra.mxu0 %v8440
          %8841 = vmatpush.bf16.msra.mxu0 %v8436
          %8842 = vmatmul.bf16.gmra.mxu0 %v7463
          %v8843 = vpop.f32.mrf.mxu0
          %v8844 = vadd.f32 %v8831, %v8843
          %v8845 = vpop.f32.mrf.mxu0
          %8846 = vdwg.mxu0
          %8847 = vmatpush.bf16.msra.mxu0 %v8496
          %8848 = vmatpush.bf16.msra.mxu0 %v8492
          %8849 = vmatpush.bf16.msra.mxu0 %v8488
          %8850 = vmatpush.bf16.msra.mxu0 %v8484
          %8851 = vmatpush.bf16.msra.mxu0 %v8480
          %8852 = vmatpush.bf16.msra.mxu0 %v8476
          %8853 = vmatpush.bf16.msra.mxu0 %v8472
          %8854 = vmatpush.bf16.msra.mxu0 %v8468
          %8855 = vmatmul.bf16.gmra.mxu0 %v7464
          %v8856 = vpop.f32.mrf.mxu0
          %v8857 = vadd.f32 %v8844, %v8856
          %v8858 = vpop.f32.mrf.mxu0
          %8859 = vdwg.mxu0
          %8860 = vmatpush.bf16.msra.mxu0 %v8273
          %8861 = vmatpush.bf16.msra.mxu0 %v8269
          %8862 = vmatpush.bf16.msra.mxu0 %v8265
          %8863 = vmatpush.bf16.msra.mxu0 %v8261
          %8864 = vmatpush.bf16.msra.mxu0 %v8257
          %8865 = vmatpush.bf16.msra.mxu0 %v8253
          %8866 = vmatpush.bf16.msra.mxu0 %v8249
          %8867 = vmatpush.bf16.msra.mxu0 %v8245
          %8868 = vmatmul.bf16.gmra.mxu0 %v7457
          %v8869 = vpop.f32.mrf.mxu0
          %v8870 = vadd.f32 %v7469, %v8869
          %v8871 = vpop.f32.mrf.mxu0
          %8872 = vdwg.mxu0
          %8873 = vmatpush.bf16.msra.mxu0 %v8305
          %8874 = vmatpush.bf16.msra.mxu0 %v8301
          %8875 = vmatpush.bf16.msra.mxu0 %v8297
          %8876 = vmatpush.bf16.msra.mxu0 %v8293
          %8877 = vmatpush.bf16.msra.mxu0 %v8289
          %8878 = vmatpush.bf16.msra.mxu0 %v8285
          %8879 = vmatpush.bf16.msra.mxu0 %v8281
          %8880 = vmatpush.bf16.msra.mxu0 %v8277
          %8881 = vmatmul.bf16.gmra.mxu0 %v7458
          %v8882 = vpop.f32.mrf.mxu0
          %v8883 = vadd.f32 %v8870, %v8882
          %v8884 = vpop.f32.mrf.mxu0
          %8885 = vdwg.mxu0
          %8886 = vmatpush.bf16.msra.mxu0 %v8337
          %8887 = vmatpush.bf16.msra.mxu0 %v8333
          %8888 = vmatpush.bf16.msra.mxu0 %v8329
          %8889 = vmatpush.bf16.msra.mxu0 %v8325
          %8890 = vmatpush.bf16.msra.mxu0 %v8321
          %8891 = vmatpush.bf16.msra.mxu0 %v8317
          %8892 = vmatpush.bf16.msra.mxu0 %v8313
          %8893 = vmatpush.bf16.msra.mxu0 %v8309
          %8894 = vmatmul.bf16.gmra.mxu0 %v7459
          %v8895 = vpop.f32.mrf.mxu0
          %v8896 = vadd.f32 %v8883, %v8895
          %v8897 = vpop.f32.mrf.mxu0
          %8898 = vdwg.mxu0
          %8899 = vmatpush.bf16.msra.mxu0 %v8369
          %8900 = vmatpush.bf16.msra.mxu0 %v8365
          %8901 = vmatpush.bf16.msra.mxu0 %v8361
          %8902 = vmatpush.bf16.msra.mxu0 %v8357
          %8903 = vmatpush.bf16.msra.mxu0 %v8353
          %8904 = vmatpush.bf16.msra.mxu0 %v8349
          %8905 = vmatpush.bf16.msra.mxu0 %v8345
          %8906 = vmatpush.bf16.msra.mxu0 %v8341
          %8907 = vmatmul.bf16.gmra.mxu0 %v7460
          %v8908 = vpop.f32.mrf.mxu0
          %v8909 = vadd.f32 %v8896, %v8908
          %v8910 = vpop.f32.mrf.mxu0
          %8911 = vdwg.mxu0
          %8912 = vmatpush.bf16.msra.mxu0 %v8401
          %8913 = vmatpush.bf16.msra.mxu0 %v8397
          %8914 = vmatpush.bf16.msra.mxu0 %v8393
          %8915 = vmatpush.bf16.msra.mxu0 %v8389
          %8916 = vmatpush.bf16.msra.mxu0 %v8385
          %8917 = vmatpush.bf16.msra.mxu0 %v8381
          %8918 = vmatpush.bf16.msra.mxu0 %v8377
          %8919 = vmatpush.bf16.msra.mxu0 %v8373
          %8920 = vmatmul.bf16.gmra.mxu0 %v7461
          %v8921 = vpop.f32.mrf.mxu0
          %v8922 = vadd.f32 %v8909, %v8921
          %v8923 = vpop.f32.mrf.mxu0
          %8924 = vdwg.mxu0
          %8925 = vmatpush.bf16.msra.mxu0 %v8433
          %8926 = vmatpush.bf16.msra.mxu0 %v8429
          %8927 = vmatpush.bf16.msra.mxu0 %v8425
          %8928 = vmatpush.bf16.msra.mxu0 %v8421
          %8929 = vmatpush.bf16.msra.mxu0 %v8417
          %8930 = vmatpush.bf16.msra.mxu0 %v8413
          %8931 = vmatpush.bf16.msra.mxu0 %v8409
          %8932 = vmatpush.bf16.msra.mxu0 %v8405
          %8933 = vmatmul.bf16.gmra.mxu0 %v7462
          %v8934 = vpop.f32.mrf.mxu0
          %v8935 = vadd.f32 %v8922, %v8934
          %v8936 = vpop.f32.mrf.mxu0
          %8937 = vdwg.mxu0
          %8938 = vmatpush.bf16.msra.mxu0 %v8465
          %8939 = vmatpush.bf16.msra.mxu0 %v8461
          %8940 = vmatpush.bf16.msra.mxu0 %v8457
          %8941 = vmatpush.bf16.msra.mxu0 %v8453
          %8942 = vmatpush.bf16.msra.mxu0 %v8449
          %8943 = vmatpush.bf16.msra.mxu0 %v8445
          %8944 = vmatpush.bf16.msra.mxu0 %v8441
          %8945 = vmatpush.bf16.msra.mxu0 %v8437
          %8946 = vmatmul.bf16.gmra.mxu0 %v7463
          %v8947 = vpop.f32.mrf.mxu0
          %v8948 = vadd.f32 %v8935, %v8947
          %v8949 = vpop.f32.mrf.mxu0
          %8950 = vdwg.mxu0
          %8951 = vmatpush.bf16.msra.mxu0 %v8497
          %8952 = vmatpush.bf16.msra.mxu0 %v8493
          %8953 = vmatpush.bf16.msra.mxu0 %v8489
          %8954 = vmatpush.bf16.msra.mxu0 %v8485
          %8955 = vmatpush.bf16.msra.mxu0 %v8481
          %8956 = vmatpush.bf16.msra.mxu0 %v8477
          %8957 = vmatpush.bf16.msra.mxu0 %v8473
          %8958 = vmatpush.bf16.msra.mxu0 %v8469
          %8959 = vmatmul.bf16.gmra.mxu0 %v7464
          %v8960 = vpop.f32.mrf.mxu0
          %v8961 = vadd.f32 %v8948, %v8960
          %v8962 = vpop.f32.mrf.mxu0
          %8963 = vdwg.mxu0
          %8964 = vmatpush.bf16.msra.mxu0 %v8274
          %8965 = vmatpush.bf16.msra.mxu0 %v8270
          %8966 = vmatpush.bf16.msra.mxu0 %v8266
          %8967 = vmatpush.bf16.msra.mxu0 %v8262
          %8968 = vmatpush.bf16.msra.mxu0 %v8258
          %8969 = vmatpush.bf16.msra.mxu0 %v8254
          %8970 = vmatpush.bf16.msra.mxu0 %v8250
          %8971 = vmatpush.bf16.msra.mxu0 %v8246
          %8972 = vmatmul.bf16.gmra.mxu0 %v7457
          %v8973 = vpop.f32.mrf.mxu0
          %v8974 = vadd.f32 %v7470, %v8973
          %v8975 = vpop.f32.mrf.mxu0
          %8976 = vdwg.mxu0
          %8977 = vmatpush.bf16.msra.mxu0 %v8306
          %8978 = vmatpush.bf16.msra.mxu0 %v8302
          %8979 = vmatpush.bf16.msra.mxu0 %v8298
          %8980 = vmatpush.bf16.msra.mxu0 %v8294
          %8981 = vmatpush.bf16.msra.mxu0 %v8290
          %8982 = vmatpush.bf16.msra.mxu0 %v8286
          %8983 = vmatpush.bf16.msra.mxu0 %v8282
          %8984 = vmatpush.bf16.msra.mxu0 %v8278
          %8985 = vmatmul.bf16.gmra.mxu0 %v7458
          %v8986 = vpop.f32.mrf.mxu0
          %v8987 = vadd.f32 %v8974, %v8986
          %v8988 = vpop.f32.mrf.mxu0
          %8989 = vdwg.mxu0
          %8990 = vmatpush.bf16.msra.mxu0 %v8338
          %8991 = vmatpush.bf16.msra.mxu0 %v8334
          %8992 = vmatpush.bf16.msra.mxu0 %v8330
          %8993 = vmatpush.bf16.msra.mxu0 %v8326
          %8994 = vmatpush.bf16.msra.mxu0 %v8322
          %8995 = vmatpush.bf16.msra.mxu0 %v8318
          %8996 = vmatpush.bf16.msra.mxu0 %v8314
          %8997 = vmatpush.bf16.msra.mxu0 %v8310
          %8998 = vmatmul.bf16.gmra.mxu0 %v7459
          %v8999 = vpop.f32.mrf.mxu0
          %v9000 = vadd.f32 %v8987, %v8999
          %v9001 = vpop.f32.mrf.mxu0
          %9002 = vdwg.mxu0
          %9003 = vmatpush.bf16.msra.mxu0 %v8370
          %9004 = vmatpush.bf16.msra.mxu0 %v8366
          %9005 = vmatpush.bf16.msra.mxu0 %v8362
          %9006 = vmatpush.bf16.msra.mxu0 %v8358
          %9007 = vmatpush.bf16.msra.mxu0 %v8354
          %9008 = vmatpush.bf16.msra.mxu0 %v8350
          %9009 = vmatpush.bf16.msra.mxu0 %v8346
          %9010 = vmatpush.bf16.msra.mxu0 %v8342
          %9011 = vmatmul.bf16.gmra.mxu0 %v7460
          %v9012 = vpop.f32.mrf.mxu0
          %v9013 = vadd.f32 %v9000, %v9012
          %v9014 = vpop.f32.mrf.mxu0
          %9015 = vdwg.mxu0
          %9016 = vmatpush.bf16.msra.mxu0 %v8402
          %9017 = vmatpush.bf16.msra.mxu0 %v8398
          %9018 = vmatpush.bf16.msra.mxu0 %v8394
          %9019 = vmatpush.bf16.msra.mxu0 %v8390
          %9020 = vmatpush.bf16.msra.mxu0 %v8386
          %9021 = vmatpush.bf16.msra.mxu0 %v8382
          %9022 = vmatpush.bf16.msra.mxu0 %v8378
          %9023 = vmatpush.bf16.msra.mxu0 %v8374
          %9024 = vmatmul.bf16.gmra.mxu0 %v7461
          %v9025 = vpop.f32.mrf.mxu0
          %v9026 = vadd.f32 %v9013, %v9025
          %v9027 = vpop.f32.mrf.mxu0
          %9028 = vdwg.mxu0
          %9029 = vmatpush.bf16.msra.mxu0 %v8434
          %9030 = vmatpush.bf16.msra.mxu0 %v8430
          %9031 = vmatpush.bf16.msra.mxu0 %v8426
          %9032 = vmatpush.bf16.msra.mxu0 %v8422
          %9033 = vmatpush.bf16.msra.mxu0 %v8418
          %9034 = vmatpush.bf16.msra.mxu0 %v8414
          %9035 = vmatpush.bf16.msra.mxu0 %v8410
          %9036 = vmatpush.bf16.msra.mxu0 %v8406
          %9037 = vmatmul.bf16.gmra.mxu0 %v7462
          %v9038 = vpop.f32.mrf.mxu0
          %v9039 = vadd.f32 %v9026, %v9038
          %v9040 = vpop.f32.mrf.mxu0
          %9041 = vdwg.mxu0
          %9042 = vmatpush.bf16.msra.mxu0 %v8466
          %9043 = vmatpush.bf16.msra.mxu0 %v8462
          %9044 = vmatpush.bf16.msra.mxu0 %v8458
          %9045 = vmatpush.bf16.msra.mxu0 %v8454
          %9046 = vmatpush.bf16.msra.mxu0 %v8450
          %9047 = vmatpush.bf16.msra.mxu0 %v8446
          %9048 = vmatpush.bf16.msra.mxu0 %v8442
          %9049 = vmatpush.bf16.msra.mxu0 %v8438
          %9050 = vmatmul.bf16.gmra.mxu0 %v7463
          %v9051 = vpop.f32.mrf.mxu0
          %v9052 = vadd.f32 %v9039, %v9051
          %v9053 = vpop.f32.mrf.mxu0
          %9054 = vdwg.mxu0
          %9055 = vmatpush.bf16.msra.mxu0 %v8498
          %9056 = vmatpush.bf16.msra.mxu0 %v8494
          %9057 = vmatpush.bf16.msra.mxu0 %v8490
          %9058 = vmatpush.bf16.msra.mxu0 %v8486
          %9059 = vmatpush.bf16.msra.mxu0 %v8482
          %9060 = vmatpush.bf16.msra.mxu0 %v8478
          %9061 = vmatpush.bf16.msra.mxu0 %v8474
          %9062 = vmatpush.bf16.msra.mxu0 %v8470
          %9063 = vmatmul.bf16.gmra.mxu0 %v7464
          %v9064 = vpop.f32.mrf.mxu0
          %v9065 = vadd.f32 %v9052, %v9064
          %v9066 = vpop.f32.mrf.mxu0
          %9067 = vdwg.mxu0
          %9068 = vmatpush.bf16.msra.mxu0 %v8275
          %9069 = vmatpush.bf16.msra.mxu0 %v8271
          %9070 = vmatpush.bf16.msra.mxu0 %v8267
          %9071 = vmatpush.bf16.msra.mxu0 %v8263
          %9072 = vmatpush.bf16.msra.mxu0 %v8259
          %9073 = vmatpush.bf16.msra.mxu0 %v8255
          %9074 = vmatpush.bf16.msra.mxu0 %v8251
          %9075 = vmatpush.bf16.msra.mxu0 %v8247
          %9076 = vmatmul.bf16.gmra.mxu0 %v7457
          %v9077 = vpop.f32.mrf.mxu0
          %v9078 = vadd.f32 %v7471, %v9077
          %v9079 = vpop.f32.mrf.mxu0
          %9080 = vdwg.mxu0
          %9081 = vmatpush.bf16.msra.mxu0 %v8307
          %9082 = vmatpush.bf16.msra.mxu0 %v8303
          %9083 = vmatpush.bf16.msra.mxu0 %v8299
          %9084 = vmatpush.bf16.msra.mxu0 %v8295
          %9085 = vmatpush.bf16.msra.mxu0 %v8291
          %9086 = vmatpush.bf16.msra.mxu0 %v8287
          %9087 = vmatpush.bf16.msra.mxu0 %v8283
          %9088 = vmatpush.bf16.msra.mxu0 %v8279
          %9089 = vmatmul.bf16.gmra.mxu0 %v7458
          %v9090 = vpop.f32.mrf.mxu0
          %v9091 = vadd.f32 %v9078, %v9090
          %v9092 = vpop.f32.mrf.mxu0
          %9093 = vdwg.mxu0
          %9094 = vmatpush.bf16.msra.mxu0 %v8339
          %9095 = vmatpush.bf16.msra.mxu0 %v8335
          %9096 = vmatpush.bf16.msra.mxu0 %v8331
          %9097 = vmatpush.bf16.msra.mxu0 %v8327
          %9098 = vmatpush.bf16.msra.mxu0 %v8323
          %9099 = vmatpush.bf16.msra.mxu0 %v8319
          %9100 = vmatpush.bf16.msra.mxu0 %v8315
          %9101 = vmatpush.bf16.msra.mxu0 %v8311
          %9102 = vmatmul.bf16.gmra.mxu0 %v7459
          %v9103 = vpop.f32.mrf.mxu0
          %v9104 = vadd.f32 %v9091, %v9103
          %v9105 = vpop.f32.mrf.mxu0
          %9106 = vdwg.mxu0
          %9107 = vmatpush.bf16.msra.mxu0 %v8371
          %9108 = vmatpush.bf16.msra.mxu0 %v8367
          %9109 = vmatpush.bf16.msra.mxu0 %v8363
          %9110 = vmatpush.bf16.msra.mxu0 %v8359
          %9111 = vmatpush.bf16.msra.mxu0 %v8355
          %9112 = vmatpush.bf16.msra.mxu0 %v8351
          %9113 = vmatpush.bf16.msra.mxu0 %v8347
          %9114 = vmatpush.bf16.msra.mxu0 %v8343
          %9115 = vmatmul.bf16.gmra.mxu0 %v7460
          %v9116 = vpop.f32.mrf.mxu0
          %v9117 = vadd.f32 %v9104, %v9116
          %v9118 = vpop.f32.mrf.mxu0
          %9119 = vdwg.mxu0
          %9120 = vmatpush.bf16.msra.mxu0 %v8403
          %9121 = vmatpush.bf16.msra.mxu0 %v8399
          %9122 = vmatpush.bf16.msra.mxu0 %v8395
          %9123 = vmatpush.bf16.msra.mxu0 %v8391
          %9124 = vmatpush.bf16.msra.mxu0 %v8387
          %9125 = vmatpush.bf16.msra.mxu0 %v8383
          %9126 = vmatpush.bf16.msra.mxu0 %v8379
          %9127 = vmatpush.bf16.msra.mxu0 %v8375
          %9128 = vmatmul.bf16.gmra.mxu0 %v7461
          %v9129 = vpop.f32.mrf.mxu0
          %v9130 = vadd.f32 %v9117, %v9129
          %v9131 = vpop.f32.mrf.mxu0
          %9132 = vdwg.mxu0
          %9133 = vmatpush.bf16.msra.mxu0 %v8435
          %9134 = vmatpush.bf16.msra.mxu0 %v8431
          %9135 = vmatpush.bf16.msra.mxu0 %v8427
          %9136 = vmatpush.bf16.msra.mxu0 %v8423
          %9137 = vmatpush.bf16.msra.mxu0 %v8419
          %9138 = vmatpush.bf16.msra.mxu0 %v8415
          %9139 = vmatpush.bf16.msra.mxu0 %v8411
          %9140 = vmatpush.bf16.msra.mxu0 %v8407
          %9141 = vmatmul.bf16.gmra.mxu0 %v7462
          %v9142 = vpop.f32.mrf.mxu0
          %v9143 = vadd.f32 %v9130, %v9142
          %v9144 = vpop.f32.mrf.mxu0
          %9145 = vdwg.mxu0
          %9146 = vmatpush.bf16.msra.mxu0 %v8467
          %9147 = vmatpush.bf16.msra.mxu0 %v8463
          %9148 = vmatpush.bf16.msra.mxu0 %v8459
          %9149 = vmatpush.bf16.msra.mxu0 %v8455
          %9150 = vmatpush.bf16.msra.mxu0 %v8451
          %9151 = vmatpush.bf16.msra.mxu0 %v8447
          %9152 = vmatpush.bf16.msra.mxu0 %v8443
          %9153 = vmatpush.bf16.msra.mxu0 %v8439
          %9154 = vmatmul.bf16.gmra.mxu0 %v7463
          %v9155 = vpop.f32.mrf.mxu0
          %v9156 = vadd.f32 %v9143, %v9155
          %v9157 = vpop.f32.mrf.mxu0
          %9158 = vdwg.mxu0
          %9159 = vmatpush.bf16.msra.mxu0 %v8499
          %9160 = vmatpush.bf16.msra.mxu0 %v8495
          %9161 = vmatpush.bf16.msra.mxu0 %v8491
          %9162 = vmatpush.bf16.msra.mxu0 %v8487
          %9163 = vmatpush.bf16.msra.mxu0 %v8483
          %9164 = vmatpush.bf16.msra.mxu0 %v8479
          %9165 = vmatpush.bf16.msra.mxu0 %v8475
          %9166 = vmatpush.bf16.msra.mxu0 %v8471
          %9167 = vmatmul.bf16.gmra.mxu0 %v7464
          %v9168 = vpop.f32.mrf.mxu0
          %v9169 = vadd.f32 %v9156, %v9168
          %v9170 = vpop.f32.mrf.mxu0
          %9171 = vdwg.mxu0
          %v9172 = vmax.f32 %v8857, 0.0
          %v9173 = vmax.f32 %v8961, 0.0
          %v9174 = vmax.f32 %v9065, 0.0
          %v9175 = vmax.f32 %v9169, 0.0
          %v9176 = vld [vmem:[#allocation10] sm:$0xff]
          %v9177 = vld [vmem:[#allocation10 + $0x8] sm:$0xff]
          %v9178 = vld [vmem:[#allocation10 + $0x10] sm:$0xff]
          %v9179 = vld [vmem:[#allocation10 + $0x18] sm:$0xff]
          %v9180 = vld [vmem:[#allocation10 + $0x20] sm:$0xff]
          %v9181 = vld [vmem:[#allocation10 + $0x28] sm:$0xff]
          %v9182 = vld [vmem:[#allocation10 + $0x30] sm:$0xff]
          %v9183 = vld [vmem:[#allocation10 + $0x38] sm:$0xff]
          %v9184 = vld [vmem:[#allocation10 + $0x40] sm:$0xff]
          %v9185 = vld [vmem:[#allocation10 + $0x48] sm:$0xff]
          %v9186 = vld [vmem:[#allocation10 + $0x50] sm:$0xff]
          %v9187 = vld [vmem:[#allocation10 + $0x58] sm:$0xff]
          %v9188 = vld [vmem:[#allocation10 + $0x60] sm:$0xff]
          %v9189 = vld [vmem:[#allocation10 + $0x68] sm:$0xff]
          %v9190 = vld [vmem:[#allocation10 + $0x70] sm:$0xff]
          %v9191 = vld [vmem:[#allocation10 + $0x78] sm:$0xff]
          %v9192 = vld [vmem:[#allocation10 + $0x80] sm:$0xff]
          %v9193 = vld [vmem:[#allocation10 + $0x88] sm:$0xff]
          %v9194 = vld [vmem:[#allocation10 + $0x90] sm:$0xff]
          %v9195 = vld [vmem:[#allocation10 + $0x98] sm:$0xff]
          %v9196 = vld [vmem:[#allocation10 + $0xa0] sm:$0xff]
          %v9197 = vld [vmem:[#allocation10 + $0xa8] sm:$0xff]
          %v9198 = vld [vmem:[#allocation10 + $0xb0] sm:$0xff]
          %v9199 = vld [vmem:[#allocation10 + $0xb8] sm:$0xff]
          %v9200 = vld [vmem:[#allocation10 + $0xc0] sm:$0xff]
          %v9201 = vld [vmem:[#allocation10 + $0xc8] sm:$0xff]
          %v9202 = vld [vmem:[#allocation10 + $0xd0] sm:$0xff]
          %v9203 = vld [vmem:[#allocation10 + $0xd8] sm:$0xff]
          %v9204 = vld [vmem:[#allocation10 + $0xe0] sm:$0xff]
          %v9205 = vld [vmem:[#allocation10 + $0xe8] sm:$0xff]
          %v9206 = vld [vmem:[#allocation10 + $0xf0] sm:$0xff]
          %v9207 = vld [vmem:[#allocation10 + $0xf8] sm:$0xff]
          %v9208 = vld [vmem:[#allocation10 + $0x100] sm:$0xff]
          %v9209 = vld [vmem:[#allocation10 + $0x108] sm:$0xff]
          %v9210 = vld [vmem:[#allocation10 + $0x110] sm:$0xff]
          %v9211 = vld [vmem:[#allocation10 + $0x118] sm:$0xff]
          %v9212 = vld [vmem:[#allocation10 + $0x120] sm:$0xff]
          %v9213 = vld [vmem:[#allocation10 + $0x128] sm:$0xff]
          %v9214 = vld [vmem:[#allocation10 + $0x130] sm:$0xff]
          %v9215 = vld [vmem:[#allocation10 + $0x138] sm:$0xff]
          %v9216 = vld [vmem:[#allocation10 + $0x140] sm:$0xff]
          %v9217 = vld [vmem:[#allocation10 + $0x148] sm:$0xff]
          %v9218 = vld [vmem:[#allocation10 + $0x150] sm:$0xff]
          %v9219 = vld [vmem:[#allocation10 + $0x158] sm:$0xff]
          %v9220 = vld [vmem:[#allocation10 + $0x160] sm:$0xff]
          %v9221 = vld [vmem:[#allocation10 + $0x168] sm:$0xff]
          %v9222 = vld [vmem:[#allocation10 + $0x170] sm:$0xff]
          %v9223 = vld [vmem:[#allocation10 + $0x178] sm:$0xff]
          %v9224 = vld [vmem:[#allocation10 + $0x180] sm:$0xff]
          %v9225 = vld [vmem:[#allocation10 + $0x188] sm:$0xff]
          %v9226 = vld [vmem:[#allocation10 + $0x190] sm:$0xff]
          %v9227 = vld [vmem:[#allocation10 + $0x198] sm:$0xff]
          %v9228 = vld [vmem:[#allocation10 + $0x1a0] sm:$0xff]
          %v9229 = vld [vmem:[#allocation10 + $0x1a8] sm:$0xff]
          %v9230 = vld [vmem:[#allocation10 + $0x1b0] sm:$0xff]
          %v9231 = vld [vmem:[#allocation10 + $0x1b8] sm:$0xff]
          %v9232 = vld [vmem:[#allocation10 + $0x1c0] sm:$0xff]
          %v9233 = vld [vmem:[#allocation10 + $0x1c8] sm:$0xff]
          %v9234 = vld [vmem:[#allocation10 + $0x1d0] sm:$0xff]
          %v9235 = vld [vmem:[#allocation10 + $0x1d8] sm:$0xff]
          %v9236 = vld [vmem:[#allocation10 + $0x1e0] sm:$0xff]
          %v9237 = vld [vmem:[#allocation10 + $0x1e8] sm:$0xff]
          %v9238 = vld [vmem:[#allocation10 + $0x1f0] sm:$0xff]
          %v9239 = vld [vmem:[#allocation10 + $0x1f8] sm:$0xff]
          %v9240 = vpack.c.bf16 %v9172, %v9172
          %v9241 = vpack.c.bf16 %v9173, %v9173
          %v9242 = vpack.c.bf16 %v9174, %v9174
          %v9243 = vpack.c.bf16 %v9175, %v9175
          %s9244 = scalar_lea.vmem [#allocation18], 4
          %v9245 = vld [vmem:[%s9244] ss:$8 sm:$0x3]
          %v9247 = vperm.slane %v9245, 0
          %v9248 = vperm.slane %v9245, 1
          %v9315 = vunpack.c.l.b16 %v9176
          %v9316 = vunpack.c.h.b16 %v9176
          %v9317 = vunpack.c.l.b16 %v9177
          %v9318 = vunpack.c.h.b16 %v9177
          %v9319 = vunpack.c.l.b16 %v9178
          %v9320 = vunpack.c.h.b16 %v9178
          %v9321 = vunpack.c.l.b16 %v9179
          %v9322 = vunpack.c.h.b16 %v9179
          %v9323 = vunpack.c.l.b16 %v9180
          %v9324 = vunpack.c.h.b16 %v9180
          %v9325 = vunpack.c.l.b16 %v9181
          %v9326 = vunpack.c.h.b16 %v9181
          %v9327 = vunpack.c.l.b16 %v9182
          %v9328 = vunpack.c.h.b16 %v9182
          %v9329 = vunpack.c.l.b16 %v9183
          %v9330 = vunpack.c.h.b16 %v9183
          %v9331 = vunpack.c.l.b16 %v9184
          %v9332 = vunpack.c.h.b16 %v9184
          %v9333 = vunpack.c.l.b16 %v9185
          %v9334 = vunpack.c.h.b16 %v9185
          %v9335 = vunpack.c.l.b16 %v9186
          %v9336 = vunpack.c.h.b16 %v9186
          %v9337 = vunpack.c.l.b16 %v9187
          %v9338 = vunpack.c.h.b16 %v9187
          %v9339 = vunpack.c.l.b16 %v9188
          %v9340 = vunpack.c.h.b16 %v9188
          %v9341 = vunpack.c.l.b16 %v9189
          %v9342 = vunpack.c.h.b16 %v9189
          %v9343 = vunpack.c.l.b16 %v9190
          %v9344 = vunpack.c.h.b16 %v9190
          %v9345 = vunpack.c.l.b16 %v9191
          %v9346 = vunpack.c.h.b16 %v9191
          %v9347 = vunpack.c.l.b16 %v9192
          %v9348 = vunpack.c.h.b16 %v9192
          %v9349 = vunpack.c.l.b16 %v9193
          %v9350 = vunpack.c.h.b16 %v9193
          %v9351 = vunpack.c.l.b16 %v9194
          %v9352 = vunpack.c.h.b16 %v9194
          %v9353 = vunpack.c.l.b16 %v9195
          %v9354 = vunpack.c.h.b16 %v9195
          %v9355 = vunpack.c.l.b16 %v9196
          %v9356 = vunpack.c.h.b16 %v9196
          %v9357 = vunpack.c.l.b16 %v9197
          %v9358 = vunpack.c.h.b16 %v9197
          %v9359 = vunpack.c.l.b16 %v9198
          %v9360 = vunpack.c.h.b16 %v9198
          %v9361 = vunpack.c.l.b16 %v9199
          %v9362 = vunpack.c.h.b16 %v9199
          %v9363 = vunpack.c.l.b16 %v9200
          %v9364 = vunpack.c.h.b16 %v9200
          %v9365 = vunpack.c.l.b16 %v9201
          %v9366 = vunpack.c.h.b16 %v9201
          %v9367 = vunpack.c.l.b16 %v9202
          %v9368 = vunpack.c.h.b16 %v9202
          %v9369 = vunpack.c.l.b16 %v9203
          %v9370 = vunpack.c.h.b16 %v9203
          %v9371 = vunpack.c.l.b16 %v9204
          %v9372 = vunpack.c.h.b16 %v9204
          %v9373 = vunpack.c.l.b16 %v9205
          %v9374 = vunpack.c.h.b16 %v9205
          %v9375 = vunpack.c.l.b16 %v9206
          %v9376 = vunpack.c.h.b16 %v9206
          %v9377 = vunpack.c.l.b16 %v9207
          %v9378 = vunpack.c.h.b16 %v9207
          %v9379 = vunpack.c.l.b16 %v9208
          %v9380 = vunpack.c.h.b16 %v9208
          %v9381 = vunpack.c.l.b16 %v9209
          %v9382 = vunpack.c.h.b16 %v9209
          %v9383 = vunpack.c.l.b16 %v9210
          %v9384 = vunpack.c.h.b16 %v9210
          %v9385 = vunpack.c.l.b16 %v9211
          %v9386 = vunpack.c.h.b16 %v9211
          %v9387 = vunpack.c.l.b16 %v9212
          %v9388 = vunpack.c.h.b16 %v9212
          %v9389 = vunpack.c.l.b16 %v9213
          %v9390 = vunpack.c.h.b16 %v9213
          %v9391 = vunpack.c.l.b16 %v9214
          %v9392 = vunpack.c.h.b16 %v9214
          %v9393 = vunpack.c.l.b16 %v9215
          %v9394 = vunpack.c.h.b16 %v9215
          %v9395 = vunpack.c.l.b16 %v9216
          %v9396 = vunpack.c.h.b16 %v9216
          %v9397 = vunpack.c.l.b16 %v9217
          %v9398 = vunpack.c.h.b16 %v9217
          %v9399 = vunpack.c.l.b16 %v9218
          %v9400 = vunpack.c.h.b16 %v9218
          %v9401 = vunpack.c.l.b16 %v9219
          %v9402 = vunpack.c.h.b16 %v9219
          %v9403 = vunpack.c.l.b16 %v9220
          %v9404 = vunpack.c.h.b16 %v9220
          %v9405 = vunpack.c.l.b16 %v9221
          %v9406 = vunpack.c.h.b16 %v9221
          %v9407 = vunpack.c.l.b16 %v9222
          %v9408 = vunpack.c.h.b16 %v9222
          %v9409 = vunpack.c.l.b16 %v9223
          %v9410 = vunpack.c.h.b16 %v9223
          %v9411 = vunpack.c.l.b16 %v9224
          %v9412 = vunpack.c.h.b16 %v9224
          %v9413 = vunpack.c.l.b16 %v9225
          %v9414 = vunpack.c.h.b16 %v9225
          %v9415 = vunpack.c.l.b16 %v9226
          %v9416 = vunpack.c.h.b16 %v9226
          %v9417 = vunpack.c.l.b16 %v9227
          %v9418 = vunpack.c.h.b16 %v9227
          %v9419 = vunpack.c.l.b16 %v9228
          %v9420 = vunpack.c.h.b16 %v9228
          %v9421 = vunpack.c.l.b16 %v9229
          %v9422 = vunpack.c.h.b16 %v9229
          %v9423 = vunpack.c.l.b16 %v9230
          %v9424 = vunpack.c.h.b16 %v9230
          %v9425 = vunpack.c.l.b16 %v9231
          %v9426 = vunpack.c.h.b16 %v9231
          %v9427 = vunpack.c.l.b16 %v9232
          %v9428 = vunpack.c.h.b16 %v9232
          %v9429 = vunpack.c.l.b16 %v9233
          %v9430 = vunpack.c.h.b16 %v9233
          %v9431 = vunpack.c.l.b16 %v9234
          %v9432 = vunpack.c.h.b16 %v9234
          %v9433 = vunpack.c.l.b16 %v9235
          %v9434 = vunpack.c.h.b16 %v9235
          %v9435 = vunpack.c.l.b16 %v9236
          %v9436 = vunpack.c.h.b16 %v9236
          %v9437 = vunpack.c.l.b16 %v9237
          %v9438 = vunpack.c.h.b16 %v9237
          %v9439 = vunpack.c.l.b16 %v9238
          %v9440 = vunpack.c.h.b16 %v9238
          %v9441 = vunpack.c.l.b16 %v9239
          %v9442 = vunpack.c.h.b16 %v9239
          %v9443 = vpack.c.b16 %v9317, %v9315
          %v9444 = vpack.c.b16 %v9318, %v9316
          %v9445 = vpack.c.b16 %v9321, %v9319
          %v9446 = vpack.c.b16 %v9322, %v9320
          %v9447 = vpack.c.b16 %v9325, %v9323
          %v9448 = vpack.c.b16 %v9326, %v9324
          %v9449 = vpack.c.b16 %v9329, %v9327
          %v9450 = vpack.c.b16 %v9330, %v9328
          %v9451 = vpack.c.b16 %v9333, %v9331
          %v9452 = vpack.c.b16 %v9334, %v9332
          %v9453 = vpack.c.b16 %v9337, %v9335
          %v9454 = vpack.c.b16 %v9338, %v9336
          %v9455 = vpack.c.b16 %v9341, %v9339
          %v9456 = vpack.c.b16 %v9342, %v9340
          %v9457 = vpack.c.b16 %v9345, %v9343
          %v9458 = vpack.c.b16 %v9346, %v9344
          %v9459 = vpack.c.b16 %v9349, %v9347
          %v9460 = vpack.c.b16 %v9350, %v9348
          %v9461 = vpack.c.b16 %v9353, %v9351
          %v9462 = vpack.c.b16 %v9354, %v9352
          %v9463 = vpack.c.b16 %v9357, %v9355
          %v9464 = vpack.c.b16 %v9358, %v9356
          %v9465 = vpack.c.b16 %v9361, %v9359
          %v9466 = vpack.c.b16 %v9362, %v9360
          %v9467 = vpack.c.b16 %v9365, %v9363
          %v9468 = vpack.c.b16 %v9366, %v9364
          %v9469 = vpack.c.b16 %v9369, %v9367
          %v9470 = vpack.c.b16 %v9370, %v9368
          %v9471 = vpack.c.b16 %v9373, %v9371
          %v9472 = vpack.c.b16 %v9374, %v9372
          %v9473 = vpack.c.b16 %v9377, %v9375
          %v9474 = vpack.c.b16 %v9378, %v9376
          %v9475 = vpack.c.b16 %v9381, %v9379
          %v9476 = vpack.c.b16 %v9382, %v9380
          %v9477 = vpack.c.b16 %v9385, %v9383
          %v9478 = vpack.c.b16 %v9386, %v9384
          %v9479 = vpack.c.b16 %v9389, %v9387
          %v9480 = vpack.c.b16 %v9390, %v9388
          %v9481 = vpack.c.b16 %v9393, %v9391
          %v9482 = vpack.c.b16 %v9394, %v9392
          %v9483 = vpack.c.b16 %v9397, %v9395
          %v9484 = vpack.c.b16 %v9398, %v9396
          %v9485 = vpack.c.b16 %v9401, %v9399
          %v9486 = vpack.c.b16 %v9402, %v9400
          %v9487 = vpack.c.b16 %v9405, %v9403
          %v9488 = vpack.c.b16 %v9406, %v9404
          %v9489 = vpack.c.b16 %v9409, %v9407
          %v9490 = vpack.c.b16 %v9410, %v9408
          %v9491 = vpack.c.b16 %v9413, %v9411
          %v9492 = vpack.c.b16 %v9414, %v9412
          %v9493 = vpack.c.b16 %v9417, %v9415
          %v9494 = vpack.c.b16 %v9418, %v9416
          %v9495 = vpack.c.b16 %v9421, %v9419
          %v9496 = vpack.c.b16 %v9422, %v9420
          %v9497 = vpack.c.b16 %v9425, %v9423
          %v9498 = vpack.c.b16 %v9426, %v9424
          %v9499 = vpack.c.b16 %v9429, %v9427
          %v9500 = vpack.c.b16 %v9430, %v9428
          %v9501 = vpack.c.b16 %v9433, %v9431
          %v9502 = vpack.c.b16 %v9434, %v9432
          %v9503 = vpack.c.b16 %v9437, %v9435
          %v9504 = vpack.c.b16 %v9438, %v9436
          %v9505 = vpack.c.b16 %v9441, %v9439
          %v9506 = vpack.c.b16 %v9442, %v9440
          %9571 = vmatpush.bf16.msra.mxu0 %v9457
          %9572 = vmatpush.bf16.msra.mxu0 %v9455
          %9573 = vmatpush.bf16.msra.mxu0 %v9453
          %9574 = vmatpush.bf16.msra.mxu0 %v9451
          %9575 = vmatpush.bf16.msra.mxu0 %v9449
          %9576 = vmatpush.bf16.msra.mxu0 %v9447
          %9577 = vmatpush.bf16.msra.mxu0 %v9445
          %9578 = vmatpush.bf16.msra.mxu0 %v9443
          %9579 = vmatmul.bf16.gmra.mxu0 %v9240
          %v9580 = vpop.f32.mrf.mxu0
          %v9581 = vadd.f32 %v9247, %v9580
          %v9582 = vpop.f32.mrf.mxu0
          %9583 = vdwg.mxu0
          %9584 = vmatpush.bf16.msra.mxu0 %v9473
          %9585 = vmatpush.bf16.msra.mxu0 %v9471
          %9586 = vmatpush.bf16.msra.mxu0 %v9469
          %9587 = vmatpush.bf16.msra.mxu0 %v9467
          %9588 = vmatpush.bf16.msra.mxu0 %v9465
          %9589 = vmatpush.bf16.msra.mxu0 %v9463
          %9590 = vmatpush.bf16.msra.mxu0 %v9461
          %9591 = vmatpush.bf16.msra.mxu0 %v9459
          %9592 = vmatmul.bf16.gmra.mxu0 %v9241
          %v9593 = vpop.f32.mrf.mxu0
          %v9594 = vadd.f32 %v9581, %v9593
          %v9595 = vpop.f32.mrf.mxu0
          %9596 = vdwg.mxu0
          %9597 = vmatpush.bf16.msra.mxu0 %v9489
          %9598 = vmatpush.bf16.msra.mxu0 %v9487
          %9599 = vmatpush.bf16.msra.mxu0 %v9485
          %9600 = vmatpush.bf16.msra.mxu0 %v9483
          %9601 = vmatpush.bf16.msra.mxu0 %v9481
          %9602 = vmatpush.bf16.msra.mxu0 %v9479
          %9603 = vmatpush.bf16.msra.mxu0 %v9477
          %9604 = vmatpush.bf16.msra.mxu0 %v9475
          %9605 = vmatmul.bf16.gmra.mxu0 %v9242
          %v9606 = vpop.f32.mrf.mxu0
          %v9607 = vadd.f32 %v9594, %v9606
          %v9608 = vpop.f32.mrf.mxu0
          %9609 = vdwg.mxu0
          %9610 = vmatpush.bf16.msra.mxu0 %v9505
          %9611 = vmatpush.bf16.msra.mxu0 %v9503
          %9612 = vmatpush.bf16.msra.mxu0 %v9501
          %9613 = vmatpush.bf16.msra.mxu0 %v9499
          %9614 = vmatpush.bf16.msra.mxu0 %v9497
          %9615 = vmatpush.bf16.msra.mxu0 %v9495
          %9616 = vmatpush.bf16.msra.mxu0 %v9493
          %9617 = vmatpush.bf16.msra.mxu0 %v9491
          %9618 = vmatmul.bf16.gmra.mxu0 %v9243
          %v9619 = vpop.f32.mrf.mxu0
          %v9620 = vadd.f32 %v9607, %v9619
          %v9621 = vpop.f32.mrf.mxu0
          %9622 = vdwg.mxu0
          %9623 = vmatpush.bf16.msra.mxu0 %v9458
          %9624 = vmatpush.bf16.msra.mxu0 %v9456
          %9625 = vmatpush.bf16.msra.mxu0 %v9454
          %9626 = vmatpush.bf16.msra.mxu0 %v9452
          %9627 = vmatpush.bf16.msra.mxu0 %v9450
          %9628 = vmatpush.bf16.msra.mxu0 %v9448
          %9629 = vmatpush.bf16.msra.mxu0 %v9446
          %9630 = vmatpush.bf16.msra.mxu0 %v9444
          %9631 = vmatmul.bf16.gmra.mxu0 %v9240
          %v9632 = vpop.f32.mrf.mxu0
          %v9633 = vadd.f32 %v9248, %v9632
          %v9634 = vpop.f32.mrf.mxu0
          %9635 = vdwg.mxu0
          %9636 = vmatpush.bf16.msra.mxu0 %v9474
          %9637 = vmatpush.bf16.msra.mxu0 %v9472
          %9638 = vmatpush.bf16.msra.mxu0 %v9470
          %9639 = vmatpush.bf16.msra.mxu0 %v9468
          %9640 = vmatpush.bf16.msra.mxu0 %v9466
          %9641 = vmatpush.bf16.msra.mxu0 %v9464
          %9642 = vmatpush.bf16.msra.mxu0 %v9462
          %9643 = vmatpush.bf16.msra.mxu0 %v9460
          %9644 = vmatmul.bf16.gmra.mxu0 %v9241
          %v9645 = vpop.f32.mrf.mxu0
          %v9646 = vadd.f32 %v9633, %v9645
          %v9647 = vpop.f32.mrf.mxu0
          %9648 = vdwg.mxu0
          %9649 = vmatpush.bf16.msra.mxu0 %v9490
          %9650 = vmatpush.bf16.msra.mxu0 %v9488
          %9651 = vmatpush.bf16.msra.mxu0 %v9486
          %9652 = vmatpush.bf16.msra.mxu0 %v9484
          %9653 = vmatpush.bf16.msra.mxu0 %v9482
          %9654 = vmatpush.bf16.msra.mxu0 %v9480
          %9655 = vmatpush.bf16.msra.mxu0 %v9478
          %9656 = vmatpush.bf16.msra.mxu0 %v9476
          %9657 = vmatmul.bf16.gmra.mxu0 %v9242
          %v9658 = vpop.f32.mrf.mxu0
          %v9659 = vadd.f32 %v9646, %v9658
          %v9660 = vpop.f32.mrf.mxu0
          %9661 = vdwg.mxu0
          %9662 = vmatpush.bf16.msra.mxu0 %v9506
          %9663 = vmatpush.bf16.msra.mxu0 %v9504
          %9664 = vmatpush.bf16.msra.mxu0 %v9502
          %9665 = vmatpush.bf16.msra.mxu0 %v9500
          %9666 = vmatpush.bf16.msra.mxu0 %v9498
          %9667 = vmatpush.bf16.msra.mxu0 %v9496
          %9668 = vmatpush.bf16.msra.mxu0 %v9494
          %9669 = vmatpush.bf16.msra.mxu0 %v9492
          %9670 = vmatmul.bf16.gmra.mxu0 %v9243
          %v9671 = vpop.f32.mrf.mxu0
          %v9672 = vadd.f32 %v9659, %v9671
          %v9673 = vpop.f32.mrf.mxu0
          %9674 = vdwg.mxu0
          %v9675 = vmax.f32 %v9620, 0.0
          %v9676 = vmax.f32 %v9672, 0.0
          %v9677 = vld [vmem:[#allocation11] sm:$0xf]
          %v9678 = vld [vmem:[#allocation11 + $0x4] sm:$0xf]
          %v9679 = vld [vmem:[#allocation11 + $0x8] sm:$0xf]
          %v9680 = vld [vmem:[#allocation11 + $0xc] sm:$0xf]
          %v9681 = vld [vmem:[#allocation11 + $0x10] sm:$0xf]
          %v9682 = vld [vmem:[#allocation11 + $0x14] sm:$0xf]
          %v9683 = vld [vmem:[#allocation11 + $0x18] sm:$0xf]
          %v9684 = vld [vmem:[#allocation11 + $0x1c] sm:$0xf]
          %v9685 = vld [vmem:[#allocation11 + $0x20] sm:$0xf]
          %v9686 = vld [vmem:[#allocation11 + $0x24] sm:$0xf]
          %v9687 = vld [vmem:[#allocation11 + $0x28] sm:$0xf]
          %v9688 = vld [vmem:[#allocation11 + $0x2c] sm:$0xf]
          %v9689 = vld [vmem:[#allocation11 + $0x30] sm:$0xf]
          %v9690 = vld [vmem:[#allocation11 + $0x34] sm:$0xf]
          %v9691 = vld [vmem:[#allocation11 + $0x38] sm:$0xf]
          %v9692 = vld [vmem:[#allocation11 + $0x3c] sm:$0xf]
          %v9693 = vld [vmem:[#allocation11 + $0x40] sm:$0xf]
          %v9694 = vld [vmem:[#allocation11 + $0x44] sm:$0xf]
          %v9695 = vld [vmem:[#allocation11 + $0x48] sm:$0xf]
          %v9696 = vld [vmem:[#allocation11 + $0x4c] sm:$0xf]
          %v9697 = vld [vmem:[#allocation11 + $0x50] sm:$0xf]
          %v9698 = vld [vmem:[#allocation11 + $0x54] sm:$0xf]
          %v9699 = vld [vmem:[#allocation11 + $0x58] sm:$0xf]
          %v9700 = vld [vmem:[#allocation11 + $0x5c] sm:$0xf]
          %v9701 = vld [vmem:[#allocation11 + $0x60] sm:$0xf]
          %v9702 = vld [vmem:[#allocation11 + $0x64] sm:$0xf]
          %v9703 = vld [vmem:[#allocation11 + $0x68] sm:$0xf]
          %v9704 = vld [vmem:[#allocation11 + $0x6c] sm:$0xf]
          %v9705 = vld [vmem:[#allocation11 + $0x70] sm:$0xf]
          %v9706 = vld [vmem:[#allocation11 + $0x74] sm:$0xf]
          %v9707 = vld [vmem:[#allocation11 + $0x78] sm:$0xf]
          %v9708 = vld [vmem:[#allocation11 + $0x7c] sm:$0xf]
          %v9709 = vpack.c.bf16 %v9675, %v9675
          %v9710 = vpack.c.bf16 %v9676, %v9676
          %v9711 = vld [vmem:[#allocation18 + $0x5] ss:$0 sm:$0xff]
          %v9744 = vunpack.c.l.b16 %v9677
          %v9745 = vunpack.c.l.b16 %v9678
          %v9746 = vunpack.c.l.b16 %v9679
          %v9747 = vunpack.c.l.b16 %v9680
          %v9748 = vunpack.c.l.b16 %v9681
          %v9749 = vunpack.c.l.b16 %v9682
          %v9750 = vunpack.c.l.b16 %v9683
          %v9751 = vunpack.c.l.b16 %v9684
          %v9752 = vunpack.c.l.b16 %v9685
          %v9753 = vunpack.c.l.b16 %v9686
          %v9754 = vunpack.c.l.b16 %v9687
          %v9755 = vunpack.c.l.b16 %v9688
          %v9756 = vunpack.c.l.b16 %v9689
          %v9757 = vunpack.c.l.b16 %v9690
          %v9758 = vunpack.c.l.b16 %v9691
          %v9759 = vunpack.c.l.b16 %v9692
          %v9760 = vunpack.c.l.b16 %v9693
          %v9761 = vunpack.c.l.b16 %v9694
          %v9762 = vunpack.c.l.b16 %v9695
          %v9763 = vunpack.c.l.b16 %v9696
          %v9764 = vunpack.c.l.b16 %v9697
          %v9765 = vunpack.c.l.b16 %v9698
          %v9766 = vunpack.c.l.b16 %v9699
          %v9767 = vunpack.c.l.b16 %v9700
          %v9768 = vunpack.c.l.b16 %v9701
          %v9769 = vunpack.c.l.b16 %v9702
          %v9770 = vunpack.c.l.b16 %v9703
          %v9771 = vunpack.c.l.b16 %v9704
          %v9772 = vunpack.c.l.b16 %v9705
          %v9773 = vunpack.c.l.b16 %v9706
          %v9774 = vunpack.c.l.b16 %v9707
          %v9775 = vunpack.c.l.b16 %v9708
          %v9776 = vpack.c.b16 %v9745, %v9744
          %v9777 = vpack.c.b16 %v9747, %v9746
          %v9778 = vpack.c.b16 %v9749, %v9748
          %v9779 = vpack.c.b16 %v9751, %v9750
          %v9780 = vpack.c.b16 %v9753, %v9752
          %v9781 = vpack.c.b16 %v9755, %v9754
          %v9782 = vpack.c.b16 %v9757, %v9756
          %v9783 = vpack.c.b16 %v9759, %v9758
          %v9784 = vpack.c.b16 %v9761, %v9760
          %v9785 = vpack.c.b16 %v9763, %v9762
          %v9786 = vpack.c.b16 %v9765, %v9764
          %v9787 = vpack.c.b16 %v9767, %v9766
          %v9788 = vpack.c.b16 %v9769, %v9768
          %v9789 = vpack.c.b16 %v9771, %v9770
          %v9790 = vpack.c.b16 %v9773, %v9772
          %v9791 = vpack.c.b16 %v9775, %v9774
          %9808 = vmatpush.bf16.msra.mxu0 %v9783
          %9809 = vmatpush.bf16.msra.mxu0 %v9782
          %9810 = vmatpush.bf16.msra.mxu0 %v9781
          %9811 = vmatpush.bf16.msra.mxu0 %v9780
          %9812 = vmatpush.bf16.msra.mxu0 %v9779
          %9813 = vmatpush.bf16.msra.mxu0 %v9778
          %9814 = vmatpush.bf16.msra.mxu0 %v9777
          %9815 = vmatpush.bf16.msra.mxu0 %v9776
          %9816 = vmatmul.bf16.gmra.mxu0 %v9709
          %v9817 = vpop.f32.mrf.mxu0
          %v9818 = vadd.f32 %v9711, %v9817
          %v9819 = vpop.f32.mrf.mxu0
          %9820 = vdwg.mxu0
          %9821 = vmatpush.bf16.msra.mxu0 %v9791
          %9822 = vmatpush.bf16.msra.mxu0 %v9790
          %9823 = vmatpush.bf16.msra.mxu0 %v9789
          %9824 = vmatpush.bf16.msra.mxu0 %v9788
          %9825 = vmatpush.bf16.msra.mxu0 %v9787
          %9826 = vmatpush.bf16.msra.mxu0 %v9786
          %9827 = vmatpush.bf16.msra.mxu0 %v9785
          %9828 = vmatpush.bf16.msra.mxu0 %v9784
          %9829 = vmatmul.bf16.gmra.mxu0 %v9710
          %v9830 = vpop.f32.mrf.mxu0
          %v9831 = vadd.f32 %v9818, %v9830
          %v9832 = vpop.f32.mrf.mxu0
          %9833 = vdwg.mxu0
          %v9834 = vmax.f32 %v9831, 0.0
          %v9835 = vld [vmem:[#allocation13] sm:$0xf]
          %v9836 = vld [vmem:[#allocation13 + $0x4] sm:$0xf]
          %v9837 = vld [vmem:[#allocation13 + $0x8] sm:$0xf]
          %v9838 = vld [vmem:[#allocation13 + $0xc] sm:$0xf]
          %v9839 = vld [vmem:[#allocation13 + $0x10] sm:$0xf]
          %v9840 = vld [vmem:[#allocation13 + $0x14] sm:$0xf]
          %v9841 = vld [vmem:[#allocation13 + $0x18] sm:$0xf]
          %v9842 = vld [vmem:[#allocation13 + $0x1c] sm:$0xf]
          %v9843 = vld [vmem:[#allocation13 + $0x20] sm:$0xf]
          %v9844 = vld [vmem:[#allocation13 + $0x24] sm:$0xf]
          %v9845 = vld [vmem:[#allocation13 + $0x28] sm:$0xf]
          %v9846 = vld [vmem:[#allocation13 + $0x2c] sm:$0xf]
          %v9847 = vld [vmem:[#allocation13 + $0x30] sm:$0xf]
          %v9848 = vld [vmem:[#allocation13 + $0x34] sm:$0xf]
          %v9849 = vld [vmem:[#allocation13 + $0x38] sm:$0xf]
          %v9850 = vld [vmem:[#allocation13 + $0x3c] sm:$0xf]
          %v9851 = vpack.c.bf16 %v9834, %v9834
          %v9852 = vld [vmem:[#allocation18 + $0x6] ss:$0 sm:$0xff]
          %v9869 = vunpack.c.l.b16 %v9835
          %v9870 = vunpack.c.l.b16 %v9836
          %v9871 = vunpack.c.l.b16 %v9837
          %v9872 = vunpack.c.l.b16 %v9838
          %v9873 = vunpack.c.l.b16 %v9839
          %v9874 = vunpack.c.l.b16 %v9840
          %v9875 = vunpack.c.l.b16 %v9841
          %v9876 = vunpack.c.l.b16 %v9842
          %v9877 = vunpack.c.l.b16 %v9843
          %v9878 = vunpack.c.l.b16 %v9844
          %v9879 = vunpack.c.l.b16 %v9845
          %v9880 = vunpack.c.l.b16 %v9846
          %v9881 = vunpack.c.l.b16 %v9847
          %v9882 = vunpack.c.l.b16 %v9848
          %v9883 = vunpack.c.l.b16 %v9849
          %v9884 = vunpack.c.l.b16 %v9850
          %v9885 = vpack.c.b16 %v9870, %v9869
          %v9886 = vpack.c.b16 %v9872, %v9871
          %v9887 = vpack.c.b16 %v9874, %v9873
          %v9888 = vpack.c.b16 %v9876, %v9875
          %v9889 = vpack.c.b16 %v9878, %v9877
          %v9890 = vpack.c.b16 %v9880, %v9879
          %v9891 = vpack.c.b16 %v9882, %v9881
          %v9892 = vpack.c.b16 %v9884, %v9883
          %9901 = vmatpush.bf16.msra.mxu0 %v9892
          %9902 = vmatpush.bf16.msra.mxu0 %v9891
          %9903 = vmatpush.bf16.msra.mxu0 %v9890
          %9904 = vmatpush.bf16.msra.mxu0 %v9889
          %9905 = vmatpush.bf16.msra.mxu0 %v9888
          %9906 = vmatpush.bf16.msra.mxu0 %v9887
          %9907 = vmatpush.bf16.msra.mxu0 %v9886
          %9908 = vmatpush.bf16.msra.mxu0 %v9885
          %9909 = vmatmul.bf16.gmra.mxu0 %v9851
          %v9910 = vpop.f32.mrf.mxu0
          %v9911 = vadd.f32 %v9852, %v9910
          %v9912 = vpop.f32.mrf.mxu0
          %9913 = vdwg.mxu0
          %v9914 = vmax.f32 %v9911, 0.0
          %v9915 = vld [vmem:[#allocation14] sm:$0xf]
          %v9916 = vld [vmem:[#allocation14 + $0x4] sm:$0xf]
          %v9917 = vld [vmem:[#allocation14 + $0x8] sm:$0xf]
          %v9918 = vld [vmem:[#allocation14 + $0xc] sm:$0xf]
          %v9919 = vld [vmem:[#allocation14 + $0x10] sm:$0xf]
          %v9920 = vld [vmem:[#allocation14 + $0x14] sm:$0xf]
          %v9921 = vld [vmem:[#allocation14 + $0x18] sm:$0xf]
          %v9922 = vld [vmem:[#allocation14 + $0x1c] sm:$0xf]
          %v9923 = vld [vmem:[#allocation14 + $0x20] sm:$0xf]
          %v9924 = vld [vmem:[#allocation14 + $0x24] sm:$0xf]
          %v9925 = vld [vmem:[#allocation14 + $0x28] sm:$0xf]
          %v9926 = vld [vmem:[#allocation14 + $0x2c] sm:$0xf]
          %v9927 = vld [vmem:[#allocation14 + $0x30] sm:$0xf]
          %v9928 = vld [vmem:[#allocation14 + $0x34] sm:$0xf]
          %v9929 = vld [vmem:[#allocation14 + $0x38] sm:$0xf]
          %v9930 = vld [vmem:[#allocation14 + $0x3c] sm:$0xf]
          %v9931 = vpack.c.bf16 %v9914, %v9914
          %v9932 = vld [vmem:[#allocation18 + $0x7] ss:$0 sm:$0xff]
          %v9949 = vunpack.c.l.b16 %v9915
          %v9950 = vunpack.c.l.b16 %v9916
          %v9951 = vunpack.c.l.b16 %v9917
          %v9952 = vunpack.c.l.b16 %v9918
          %v9953 = vunpack.c.l.b16 %v9919
          %v9954 = vunpack.c.l.b16 %v9920
          %v9955 = vunpack.c.l.b16 %v9921
          %v9956 = vunpack.c.l.b16 %v9922
          %v9957 = vunpack.c.l.b16 %v9923
          %v9958 = vunpack.c.l.b16 %v9924
          %v9959 = vunpack.c.l.b16 %v9925
          %v9960 = vunpack.c.l.b16 %v9926
          %v9961 = vunpack.c.l.b16 %v9927
          %v9962 = vunpack.c.l.b16 %v9928
          %v9963 = vunpack.c.l.b16 %v9929
          %v9964 = vunpack.c.l.b16 %v9930
          %v9965 = vpack.c.b16 %v9950, %v9949
          %v9966 = vpack.c.b16 %v9952, %v9951
          %v9967 = vpack.c.b16 %v9954, %v9953
          %v9968 = vpack.c.b16 %v9956, %v9955
          %v9969 = vpack.c.b16 %v9958, %v9957
          %v9970 = vpack.c.b16 %v9960, %v9959
          %v9971 = vpack.c.b16 %v9962, %v9961
          %v9972 = vpack.c.b16 %v9964, %v9963
          %9981 = vmatpush.bf16.msra.mxu0 %v9972
          %9982 = vmatpush.bf16.msra.mxu0 %v9971
          %9983 = vmatpush.bf16.msra.mxu0 %v9970
          %9984 = vmatpush.bf16.msra.mxu0 %v9969
          %9985 = vmatpush.bf16.msra.mxu0 %v9968
          %9986 = vmatpush.bf16.msra.mxu0 %v9967
          %9987 = vmatpush.bf16.msra.mxu0 %v9966
          %9988 = vmatpush.bf16.msra.mxu0 %v9965
          %9989 = vmatmul.bf16.gmra.mxu0 %v9931
          %v9990 = vpop.f32.mrf.mxu0
          %v9991 = vadd.f32 %v9932, %v9990
          %v9992 = vpop.f32.mrf.mxu0
          %9993 = vdwg.mxu0
          %v9994 = vmax.f32 %v9991, 0.0
          %v9995 = vsub.f32 0.0, %v9994
          %v9996 = vmul.f32 %v9995, 1.442695
          %v9997 = vpow.pop %v9996
          %v9998 = vadd.f32 %v9997, 1.0
          %v9999 = vrcp.pop %v9998
          %v10000 = vmul.f32 %v9998, %v9999
          %v10001 = vsub.f32 1.0, %v10000
          %v10002 = vmul.f32 %v9999, %v10001
          %v10003 = vadd.f32 %v9999, %v10002
          %vm10004 = vweird.f32 %v9998
          %vm10005 = vweird.f32 %v9999
          %vm10006 = vmor %vm10004, %vm10005
          %v10007 = vsel %vm10006, %v9999, %v10003
          %v10008 = vand.u32 2147483647, %v9998
          %vm10009 = vcmp.eq.f32.partialorder %v10008, 8.507059e+37
          %v10010 = vand.u32 %v9998, 2147483648
          %v10011 = vor.u32 1.1754944e-38, %v10010
          %v10012 = vsel %vm10009, %v10011, %v10007
          %v10013 = vmul.f32 1.0, %v10012
          %10014 = vst [vmem:[%s12] sm:$0xff] %v10013
        $region120: #{fused_forward.1} parent=67 // pred_fallthru
          _
        // Predicated region
        $region121: #{fused_forward.1} parent=67 // pred_check
          %p10015 = pneg %p303
        $region122: #{fused_forward.1} parent=67 // pred_check_branch
          %10017 = sbr.rel (%p10015) target = $region124
        $region123: #{fused_forward.1} parent=67 // pred_region
          _
        $region124: #{fused_forward.1} parent=67 // pred_fallthru
          _
        // Predicated region
        $region125: #{fused_forward.1} parent=67 // pred_check
          %p10018 = pneg %p303
        $region126: #{fused_forward.1} parent=67 // pred_check_branch
          %10020 = sbr.rel (%p10018) target = $region128
        $region127: #{fused_forward.1} parent=67 // pred_region
          _
        $region128: #{fused_forward.1} parent=67 // pred_fallthru
          _
      $region68: #{fused_forward.1} parent=5 // pred_fallthru
        _
      %p10021 = scmp.le.s32.totalorder 2, %s23
      // Predicated region
      $region129: #{fused_forward.1} parent=5 // pred_check
        %p10022 = pneg %p10021
      $region130: #{fused_forward.1} parent=5 // pred_check_branch
        %10024 = sbr.rel (%p10022) target = $region132
      $region131: #{fused_forward.1} parent=5 // pred_region
        %s10025 = ssub.s32 %s23, 2
      $region132: #{fused_forward.1} parent=5 // pred_fallthru
        _
    $region6: #{fused_forward.1} parent=1 // loop_footer
      %s27 = sadd.s32 1, %s23
    $region7: #{fused_forward.1} parent=1 // loop_footer_branch
      %22 = sbr.rel target = $region3
    $region8: #{fused_forward.1} parent=1 // loop_exit
      _
    %10026 = vsyncpa [#allocation4], 1
    %s10027 = scalar_lea.sflag [#allocation4], 1
    %10028 = vsyncpa %s10027, 1
    %10029 = vsyncpa [#allocation6], 1
    %10030 = vsyncpa [#allocation9], 1
    %10031 = vsyncpa [#allocation12], 1
    %10032 = vsyncpa [#allocation15], 1

</llo_original>
